<compile_context>
chip_gen: v7x
topology: tpu7x:2x2x1
jax: 0.10.0
libtpu: 0.0.40
codegen_flags: <defaults>
</compile_context>

<pallas_src>
import jax
import jax.numpy as jnp
from jax.experimental import pallas as pl
from jax.experimental.pallas import tpu as pltpu


# ---------------------------------------------------------------------------
# Fused kernel: entire SimpleCNN forward for ONE image (grid is over batch).
# ---------------------------------------------------------------------------
def _simple_cnn_kernel(xcol_ref,                      # (1024, 27)  bf16  im2col of layer-0 input
                       w0_ref, b0_ref,                # (27, 32) bf16 ; (1, 32)  f32
                       w1_ref, b1_ref,                # (9, 32, 64) bf16 ; (1, 64) f32
                       w2_ref, b2_ref,                # (9, 64, 128) bf16 ; (1, 128) f32
                       wf1_ref, bf1_ref,              # (16, 128, 256) bf16 ; (1, 256) f32
                       wf2_ref, bf2_ref,              # (256, nc) bf16 ; (1, nc) f32
                       o_ref,                         # (1, nc) f32
                       act0, act1, act2,              # pre-pool activations (VMEM scratch, f32)
                       pad1, pad2):                   # padded block inputs (VMEM scratch, f32)
    f32 = jnp.float32
    bf16 = jnp.bfloat16

    # ---------------- Block 0: conv3x3 (via host im2col, single K=27 dot) ---
    a0 = jnp.dot(xcol_ref[...], w0_ref[...], preferred_element_type=f32)   # (1024, 32)
    a0 = jnp.maximum(a0 + b0_ref[...], 0.0)                                # folded-BN bias + ReLU
    act0[...] = a0.reshape(32, 32, 32)                                     # (H, W, C)
    # 2x2 stride-2 max pool: W via stride-2 ref reads, H via major-dim reshape.
    wmax = jnp.maximum(act0[:, pl.ds(0, 16, stride=2), :],
                       act0[:, pl.ds(1, 16, stride=2), :])                 # (32, 16, 32)
    pooled0 = jnp.max(wmax.reshape(16, 2, 16, 32), axis=1)                 # (16, 16, 32)

    # ---------------- Block 1: conv3x3 pad=1 on (16,16,32) -> (8,8,64) ------
    pad1[...] = jnp.zeros_like(pad1)               # zero halo (interior overwritten below)
    pad1[1:17, 1:17, :] = pooled0
    acc = jnp.zeros((256, 64), f32)
    for dy in range(3):
        for dx in range(3):
            win = pad1[dy:dy + 16, dx:dx + 16, :].reshape(256, 32).astype(bf16)
            acc = acc + jnp.dot(win, w1_ref[dy * 3 + dx], preferred_element_type=f32)
    acc = jnp.maximum(acc + b1_ref[...], 0.0)
    act1[...] = acc.reshape(16, 16, 64)
    wmax = jnp.maximum(act1[:, pl.ds(0, 8, stride=2), :],
                       act1[:, pl.ds(1, 8, stride=2), :])                  # (16, 8, 64)
    pooled1 = jnp.max(wmax.reshape(8, 2, 8, 64), axis=1)                   # (8, 8, 64)

    # ---------------- Block 2: conv3x3 pad=1 on (8,8,64) -> (4,4,128) -------
    pad2[...] = jnp.zeros_like(pad2)
    pad2[1:9, 1:9, :] = pooled1
    acc = jnp.zeros((64, 128), f32)
    for dy in range(3):
        for dx in range(3):
            win = pad2[dy:dy + 8, dx:dx + 8, :].reshape(64, 64).astype(bf16)
            acc = acc + jnp.dot(win, w2_ref[dy * 3 + dx], preferred_element_type=f32)
    acc = jnp.maximum(acc + b2_ref[...], 0.0)
    act2[...] = acc.reshape(8, 8, 128)
    wmax = jnp.maximum(act2[:, pl.ds(0, 4, stride=2), :],
                       act2[:, pl.ds(1, 4, stride=2), :])                  # (8, 4, 128)
    pooled2 = jnp.max(wmax.reshape(4, 2, 4, 128), axis=1)                  # (4, 4, 128)

    # ---------------- Classifier: Dropout=identity (eval), fc1+ReLU+fc2 -----
    # fc1 weights are pre-reshaped to (16 positions, 128 ch, 256): contract
    # position-by-position so no sublane->lane flatten relayout is needed.
    h = bf1_ref[...]                                                       # (1, 256) f32
    for p in range(16):
        row = pooled2[p // 4, (p % 4):(p % 4) + 1, :].astype(bf16)         # (1, 128)
        h = h + jnp.dot(row, wf1_ref[p], preferred_element_type=f32)
    h = jnp.maximum(h, 0.0)
    logits = jnp.dot(h.astype(bf16), wf2_ref[...],
                     preferred_element_type=f32) + bf2_ref[...]            # (1, nc)
    o_ref[...] = logits


def simple_cnn_fused(x_col, p):
    # x_col: (B, 1024, 27) bf16 im2col of the padded NHWC input.
    B = x_col.shape[0]
    nc = p["wfc2"].shape[1]

    def full(a):
        return pl.BlockSpec(a.shape, lambda b, _nd=a.ndim: (0,) * _nd)

    out = pl.pallas_call(
        _simple_cnn_kernel,
        out_shape=jax.ShapeDtypeStruct((B, 1, nc), jnp.float32),
        grid=(B,),
        in_specs=[
            pl.BlockSpec((None, 1024, 27), lambda b: (b, 0, 0)),
            full(p["w0"]), full(p["b0"]),
            full(p["w1"]), full(p["b1"]),
            full(p["w2"]), full(p["b2"]),
            full(p["wfc1"]), full(p["bfc1"]),
            full(p["wfc2"]), full(p["bfc2"]),
        ],
        out_specs=pl.BlockSpec((None, 1, nc), lambda b: (b, 0, 0)),
        scratch_shapes=[
            pltpu.VMEM((32, 32, 32), jnp.float32),    # act0 (pre-pool)
            pltpu.VMEM((16, 16, 64), jnp.float32),    # act1
            pltpu.VMEM((8, 8, 128), jnp.float32),     # act2
            pltpu.VMEM((18, 18, 32), jnp.float32),    # padded block1 input
            pltpu.VMEM((10, 10, 64), jnp.float32),    # padded block2 input
        ],
        compiler_params=pltpu.CompilerParams(
            dimension_semantics=("parallel",)),       # batch over both TCs on v7x
    )(x_col, p["w0"], p["b0"], p["w1"], p["b1"], p["w2"], p["b2"],
      p["wfc1"], p["bfc1"], p["wfc2"], p["bfc2"])
    return out.reshape(B, nc)


# ---------------------------------------------------------------------------
# Parameters: synthetic PyTorch-layout params + one-time inference prep
# (BN fold, layout permutes/reshapes, bf16 casts).
# ---------------------------------------------------------------------------
def init_params(key, num_classes=10):
    def conv_p(k, cout, cin):
        kw, kb = jax.random.split(k)
        w = 0.05 * jax.random.normal(kw, (cout, cin, 3, 3), jnp.float32)
        b = 0.05 * jax.random.normal(kb, (cout,), jnp.float32)
        return w, b

    def bn_p(k, c):
        k1, k2, k3 = jax.random.split(k, 3)
        gamma = 1.0 + 0.1 * jax.random.normal(k1, (c,), jnp.float32)
        beta = 0.1 * jax.random.normal(k2, (c,), jnp.float32)
        mean = 0.1 * jax.random.normal(k3, (c,), jnp.float32)
        var = jnp.ones((c,), jnp.float32)
        return gamma, beta, mean, var

    ks = jax.random.split(key, 8)
    params = {}
    for i, (cin, cout) in enumerate([(3, 32), (32, 64), (64, 128)]):
        w, b = conv_p(ks[2 * i], cout, cin)
        g, be, m, v = bn_p(ks[2 * i + 1], cout)
        params[f"block{i}"] = (w, b, g, be, m, v)
    k1, k2, k3, k4 = jax.random.split(ks[6], 4)
    params["fc1"] = (0.02 * jax.random.normal(k1, (256, 128 * 4 * 4), jnp.float32),
                     0.02 * jax.random.normal(k2, (256,), jnp.float32))
    params["fc2"] = (0.02 * jax.random.normal(k3, (num_classes, 256), jnp.float32),
                     0.02 * jax.random.normal(k4, (num_classes,), jnp.float32))
    return params


def prepare_params(params, num_classes=10, eps=1e-5):
    prepped = {}
    for i, (cin, cout) in enumerate([(3, 32), (32, 64), (64, 128)]):
        w, b, gamma, beta, mean, var = params[f"block{i}"]
        scale = gamma / jnp.sqrt(var + eps)
        # (cout,cin,kh,kw) -> (kh,kw,cin,cout) -> (9,cin,cout); fold BN scale.
        w9 = jnp.transpose(w, (2, 3, 1, 0)).reshape(9, cin, cout) * scale[None, None, :]
        if i == 0:
            prepped["w0"] = w9.reshape(27, cout).astype(jnp.bfloat16)   # single K=27 dot
        else:
            prepped[f"w{i}"] = w9.astype(jnp.bfloat16)
        prepped[f"b{i}"] = (beta + scale * (b - mean)).reshape(1, cout).astype(jnp.float32)

    w1, b1 = params["fc1"]            # (256, 2048); PyTorch flatten idx = c*16 + h*4 + w
    w2, b2 = params["fc2"]            # (nc, 256)
    # Re-layout fc1 to (position p=h*4+w, channel c, hidden) -> kernel needs no flatten.
    w1k = w1.reshape(256, 128, 4, 4).transpose(2, 3, 1, 0).reshape(16, 128, 256)
    prepped["wfc1"] = w1k.astype(jnp.bfloat16)
    prepped["bfc1"] = b1.reshape(1, 256).astype(jnp.float32)
    prepped["wfc2"] = w2.T.astype(jnp.bfloat16)
    prepped["bfc2"] = b2.reshape(1, num_classes).astype(jnp.float32)
    return prepped


# ---------------------------------------------------------------------------
# Forward pass
# ---------------------------------------------------------------------------
def simple_cnn_forward(x_nchw, prepped):
    # x_nchw: (B, 3, 32, 32) float32
    B = x_nchw.shape[0]
    x = jnp.transpose(x_nchw, (0, 2, 3, 1))                     # NCHW -> NHWC
    xp = jnp.pad(x, ((0, 0), (1, 1), (1, 1), (0, 0)))           # pad=1 (layer 0 only)
    # Host-side im2col for layer 0: (B, 32*32, 9*3); column order = (tap, cin),
    # matching w0's row order. Fixes the cin=3 lane-starved layout.
    cols = [xp[:, dy:dy + 32, dx:dx + 32, :] for dy in range(3) for dx in range(3)]
    x_col = jnp.concatenate(cols, axis=-1).reshape(B, 32 * 32, 27).astype(jnp.bfloat16)
    return simple_cnn_fused(x_col, prepped)


if __name__ == "__main__":
    key = jax.random.PRNGKey(0)
    kx, kp = jax.random.split(key)
    x = jax.random.normal(kx, (2, 3, 32, 32), jnp.float32)      # module requires 3x32x32
    params = init_params(kp, num_classes=10)
    prepped = prepare_params(params, num_classes=10)
    out = jax.jit(simple_cnn_forward)(x, prepped)
    out = jax.block_until_ready(out)
    assert out.shape == (2, 10) and out.dtype == jnp.float32
    print("KERNEL_OK")
</pallas_src>

<mosaic_0001>
module attributes {stable_mosaic.version = 11 : i64} {
  func.func @_simple_cnn_kernel(%arg0: i32, %arg1: memref<1x1024x27xbf16, #tpu.memory_space<vmem>>, %arg2: memref<27x32xbf16, #tpu.memory_space<vmem>>, %arg3: memref<1x32xf32, #tpu.memory_space<vmem>>, %arg4: memref<9x32x64xbf16, #tpu.memory_space<vmem>>, %arg5: memref<1x64xf32, #tpu.memory_space<vmem>>, %arg6: memref<9x64x128xbf16, #tpu.memory_space<vmem>>, %arg7: memref<1x128xf32, #tpu.memory_space<vmem>>, %arg8: memref<16x128x256xbf16, #tpu.memory_space<vmem>>, %arg9: memref<1x256xf32, #tpu.memory_space<vmem>>, %arg10: memref<256x10xbf16, #tpu.memory_space<vmem>>, %arg11: memref<1x10xf32, #tpu.memory_space<vmem>>, %arg12: memref<1x1x10xf32, #tpu.memory_space<vmem>>, %arg13: memref<32x32x32xf32, #tpu.memory_space<vmem>>, %arg14: memref<16x16x64xf32, #tpu.memory_space<vmem>>, %arg15: memref<8x8x128xf32, #tpu.memory_space<vmem>>, %arg16: memref<18x18x32xf32, #tpu.memory_space<vmem>>, %arg17: memref<10x10x64xf32, #tpu.memory_space<vmem>>) attributes {dimension_semantics = [#tpu.dimension_semantics<parallel>], iteration_bounds = array<i64: 2>, scalar_prefetch = 0 : i64, scratch_operands = 5 : i64, tpu.core_type = #tpu.core_type<tc>, window_params = [{transform_indices = @transform_0, window_bounds = array<i64: 1, 1024, 27>}, {pipeline_mode = #tpu.pipeline_mode<synchronous>, transform_indices = @transform_1, window_bounds = array<i64: 27, 32>}, {pipeline_mode = #tpu.pipeline_mode<synchronous>, transform_indices = @transform_2, window_bounds = array<i64: 1, 32>}, {pipeline_mode = #tpu.pipeline_mode<synchronous>, transform_indices = @transform_3, window_bounds = array<i64: 9, 32, 64>}, {pipeline_mode = #tpu.pipeline_mode<synchronous>, transform_indices = @transform_4, window_bounds = array<i64: 1, 64>}, {pipeline_mode = #tpu.pipeline_mode<synchronous>, transform_indices = @transform_5, window_bounds = array<i64: 9, 64, 128>}, {pipeline_mode = #tpu.pipeline_mode<synchronous>, transform_indices = @transform_6, window_bounds = array<i64: 1, 128>}, {pipeline_mode = #tpu.pipeline_mode<synchronous>, transform_indices = @transform_7, window_bounds = array<i64: 16, 128, 256>}, {pipeline_mode = #tpu.pipeline_mode<synchronous>, transform_indices = @transform_8, window_bounds = array<i64: 1, 256>}, {pipeline_mode = #tpu.pipeline_mode<synchronous>, transform_indices = @transform_9, window_bounds = array<i64: 256, 10>}, {pipeline_mode = #tpu.pipeline_mode<synchronous>, transform_indices = @transform_10, window_bounds = array<i64: 1, 10>}, {transform_indices = @transform_11, window_bounds = array<i64: 1, 1, 10>}]} {
    %c0 = arith.constant 0 : index
    %c0_0 = arith.constant 0 : index
    %c0_1 = arith.constant 0 : index
    %0 = vector.load %arg1[%c0, %c0_0, %c0_1] : memref<1x1024x27xbf16, #tpu.memory_space<vmem>>, vector<1x1024x27xbf16>
    %1 = vector.shape_cast %0 : vector<1x1024x27xbf16> to vector<1024x27xbf16>
    %c0_2 = arith.constant 0 : index
    %c0_3 = arith.constant 0 : index
    %2 = vector.load %arg2[%c0_2, %c0_3] : memref<27x32xbf16, #tpu.memory_space<vmem>>, vector<27x32xbf16>
    %cst = arith.constant dense<0.000000e+00> : vector<1024x32xf32>
    %3 = tpu.matmul %1, %2, %cst {dimension_numbers = #tpu.dot_dimension_numbers<[1], [0], [0], [1], [0, 0, 1, 1], [], []>} : vector<1024x27xbf16>, vector<27x32xbf16>, vector<1024x32xf32> -> vector<1024x32xf32>
    %c0_4 = arith.constant 0 : index
    %c0_5 = arith.constant 0 : index
    %4 = vector.load %arg3[%c0_4, %c0_5] : memref<1x32xf32, #tpu.memory_space<vmem>>, vector<1x32xf32>
    %5 = vector.broadcast %4 : vector<1x32xf32> to vector<1024x32xf32>
    %6 = arith.addf %3, %5 : vector<1024x32xf32>
    %cst_6 = arith.constant 0.000000e+00 : f32
    %7 = vector.broadcast %cst_6 : f32 to vector<1024x32xf32>
    %8 = arith.maximumf %6, %7 : vector<1024x32xf32>
    %9 = vector.shape_cast %8 : vector<1024x32xf32> to vector<32x32x32xf32>
    %c0_7 = arith.constant 0 : index
    %c0_8 = arith.constant 0 : index
    %c0_9 = arith.constant 0 : index
    %10 = vector.load %arg13[%c0_7, %c0_8, %c0_9] : memref<32x32x32xf32, #tpu.memory_space<vmem>>, vector<32x32x32xf32>
    tpu.vector_store %arg13[%c0_7, %c0_8, %c0_9], %9 {strides = array<i32>} : memref<32x32x32xf32, #tpu.memory_space<vmem>>, vector<32x32x32xf32>,
    %c0_10 = arith.constant 0 : index
    %c0_11 = arith.constant 0 : index
    %c0_12 = arith.constant 0 : index
    %11 = tpu.strided_load %arg13[%c0_10, %c0_11, %c0_12] {strides = array<i32: 1, 2, 1>} : memref<32x32x32xf32, #tpu.memory_space<vmem>>, vector<32x16x32xf32>
    %c0_13 = arith.constant 0 : index
    %c1 = arith.constant 1 : index
    %c0_14 = arith.constant 0 : index
    %12 = tpu.strided_load %arg13[%c0_13, %c1, %c0_14] {strides = array<i32: 1, 2, 1>} : memref<32x32x32xf32, #tpu.memory_space<vmem>>, vector<32x16x32xf32>
    %13 = arith.maximumf %11, %12 : vector<32x16x32xf32>
    %14 = vector.shape_cast %13 : vector<32x16x32xf32> to vector<16x2x16x32xf32>
    %cst_15 = arith.constant dense<0xFF800000> : vector<16x16x32xf32>
    %15 = vector.multi_reduction <maximumf>, %14, %cst_15 [1] : vector<16x2x16x32xf32> to vector<16x16x32xf32>
    %cst_16 = arith.constant 0.000000e+00 : f32
    %16 = vector.broadcast %cst_16 : f32 to vector<18x18x32xf32>
    %c0_17 = arith.constant 0 : index
    %c0_18 = arith.constant 0 : index
    %c0_19 = arith.constant 0 : index
    %17 = vector.load %arg16[%c0_17, %c0_18, %c0_19] : memref<18x18x32xf32, #tpu.memory_space<vmem>>, vector<18x18x32xf32>
    tpu.vector_store %arg16[%c0_17, %c0_18, %c0_19], %16 {strides = array<i32>} : memref<18x18x32xf32, #tpu.memory_space<vmem>>, vector<18x18x32xf32>,
    %c1_20 = arith.constant 1 : index
    %c1_21 = arith.constant 1 : index
    %c0_22 = arith.constant 0 : index
    %18 = vector.load %arg16[%c1_20, %c1_21, %c0_22] : memref<18x18x32xf32, #tpu.memory_space<vmem>>, vector<16x16x32xf32>
    tpu.vector_store %arg16[%c1_20, %c1_21, %c0_22], %15 {strides = array<i32>} : memref<18x18x32xf32, #tpu.memory_space<vmem>>, vector<16x16x32xf32>,
    %cst_23 = arith.constant 0.000000e+00 : f32
    %19 = vector.broadcast %cst_23 : f32 to vector<256x64xf32>
    %c0_24 = arith.constant 0 : index
    %c0_25 = arith.constant 0 : index
    %c0_26 = arith.constant 0 : index
    %20 = vector.load %arg16[%c0_24, %c0_25, %c0_26] : memref<18x18x32xf32, #tpu.memory_space<vmem>>, vector<16x16x32xf32>
    %21 = vector.shape_cast %20 : vector<16x16x32xf32> to vector<256x32xf32>
    %22 = arith.truncf %21 : vector<256x32xf32> to vector<256x32xbf16>
    %c0_27 = arith.constant 0 : index
    %c0_28 = arith.constant 0 : index
    %c0_29 = arith.constant 0 : index
    %23 = vector.load %arg4[%c0_27, %c0_28, %c0_29] : memref<9x32x64xbf16, #tpu.memory_space<vmem>>, vector<1x32x64xbf16>
    %24 = vector.shape_cast %23 : vector<1x32x64xbf16> to vector<32x64xbf16>
    %cst_30 = arith.constant dense<0.000000e+00> : vector<256x64xf32>
    %25 = tpu.matmul %22, %24, %cst_30 {dimension_numbers = #tpu.dot_dimension_numbers<[1], [0], [0], [1], [0, 0, 1, 1], [], []>} : vector<256x32xbf16>, vector<32x64xbf16>, vector<256x64xf32> -> vector<256x64xf32>
    %26 = arith.addf %19, %25 : vector<256x64xf32>
    %c0_31 = arith.constant 0 : index
    %c1_32 = arith.constant 1 : index
    %c0_33 = arith.constant 0 : index
    %27 = vector.load %arg16[%c0_31, %c1_32, %c0_33] : memref<18x18x32xf32, #tpu.memory_space<vmem>>, vector<16x16x32xf32>
    %28 = vector.shape_cast %27 : vector<16x16x32xf32> to vector<256x32xf32>
    %29 = arith.truncf %28 : vector<256x32xf32> to vector<256x32xbf16>
    %c1_34 = arith.constant 1 : index
    %c0_35 = arith.constant 0 : index
    %c0_36 = arith.constant 0 : index
    %30 = vector.load %arg4[%c1_34, %c0_35, %c0_36] : memref<9x32x64xbf16, #tpu.memory_space<vmem>>, vector<1x32x64xbf16>
    %31 = vector.shape_cast %30 : vector<1x32x64xbf16> to vector<32x64xbf16>
    %cst_37 = arith.constant dense<0.000000e+00> : vector<256x64xf32>
    %32 = tpu.matmul %29, %31, %cst_37 {dimension_numbers = #tpu.dot_dimension_numbers<[1], [0], [0], [1], [0, 0, 1, 1], [], []>} : vector<256x32xbf16>, vector<32x64xbf16>, vector<256x64xf32> -> vector<256x64xf32>
    %33 = arith.addf %26, %32 : vector<256x64xf32>
    %c0_38 = arith.constant 0 : index
    %c2 = arith.constant 2 : index
    %c0_39 = arith.constant 0 : index
    %34 = vector.load %arg16[%c0_38, %c2, %c0_39] : memref<18x18x32xf32, #tpu.memory_space<vmem>>, vector<16x16x32xf32>
    %35 = vector.shape_cast %34 : vector<16x16x32xf32> to vector<256x32xf32>
    %36 = arith.truncf %35 : vector<256x32xf32> to vector<256x32xbf16>
    %c2_40 = arith.constant 2 : index
    %c0_41 = arith.constant 0 : index
    %c0_42 = arith.constant 0 : index
    %37 = vector.load %arg4[%c2_40, %c0_41, %c0_42] : memref<9x32x64xbf16, #tpu.memory_space<vmem>>, vector<1x32x64xbf16>
    %38 = vector.shape_cast %37 : vector<1x32x64xbf16> to vector<32x64xbf16>
    %cst_43 = arith.constant dense<0.000000e+00> : vector<256x64xf32>
    %39 = tpu.matmul %36, %38, %cst_43 {dimension_numbers = #tpu.dot_dimension_numbers<[1], [0], [0], [1], [0, 0, 1, 1], [], []>} : vector<256x32xbf16>, vector<32x64xbf16>, vector<256x64xf32> -> vector<256x64xf32>
    %40 = arith.addf %33, %39 : vector<256x64xf32>
    %c1_44 = arith.constant 1 : index
    %c0_45 = arith.constant 0 : index
    %c0_46 = arith.constant 0 : index
    %41 = vector.load %arg16[%c1_44, %c0_45, %c0_46] : memref<18x18x32xf32, #tpu.memory_space<vmem>>, vector<16x16x32xf32>
    %42 = vector.shape_cast %41 : vector<16x16x32xf32> to vector<256x32xf32>
    %43 = arith.truncf %42 : vector<256x32xf32> to vector<256x32xbf16>
    %c3 = arith.constant 3 : index
    %c0_47 = arith.constant 0 : index
    %c0_48 = arith.constant 0 : index
    %44 = vector.load %arg4[%c3, %c0_47, %c0_48] : memref<9x32x64xbf16, #tpu.memory_space<vmem>>, vector<1x32x64xbf16>
    %45 = vector.shape_cast %44 : vector<1x32x64xbf16> to vector<32x64xbf16>
    %cst_49 = arith.constant dense<0.000000e+00> : vector<256x64xf32>
    %46 = tpu.matmul %43, %45, %cst_49 {dimension_numbers = #tpu.dot_dimension_numbers<[1], [0], [0], [1], [0, 0, 1, 1], [], []>} : vector<256x32xbf16>, vector<32x64xbf16>, vector<256x64xf32> -> vector<256x64xf32>
    %47 = arith.addf %40, %46 : vector<256x64xf32>
    %c1_50 = arith.constant 1 : index
    %c1_51 = arith.constant 1 : index
    %c0_52 = arith.constant 0 : index
    %48 = vector.load %arg16[%c1_50, %c1_51, %c0_52] : memref<18x18x32xf32, #tpu.memory_space<vmem>>, vector<16x16x32xf32>
    %49 = vector.shape_cast %48 : vector<16x16x32xf32> to vector<256x32xf32>
    %50 = arith.truncf %49 : vector<256x32xf32> to vector<256x32xbf16>
    %c4 = arith.constant 4 : index
    %c0_53 = arith.constant 0 : index
    %c0_54 = arith.constant 0 : index
    %51 = vector.load %arg4[%c4, %c0_53, %c0_54] : memref<9x32x64xbf16, #tpu.memory_space<vmem>>, vector<1x32x64xbf16>
    %52 = vector.shape_cast %51 : vector<1x32x64xbf16> to vector<32x64xbf16>
    %cst_55 = arith.constant dense<0.000000e+00> : vector<256x64xf32>
    %53 = tpu.matmul %50, %52, %cst_55 {dimension_numbers = #tpu.dot_dimension_numbers<[1], [0], [0], [1], [0, 0, 1, 1], [], []>} : vector<256x32xbf16>, vector<32x64xbf16>, vector<256x64xf32> -> vector<256x64xf32>
    %54 = arith.addf %47, %53 : vector<256x64xf32>
    %c1_56 = arith.constant 1 : index
    %c2_57 = arith.constant 2 : index
    %c0_58 = arith.constant 0 : index
    %55 = vector.load %arg16[%c1_56, %c2_57, %c0_58] : memref<18x18x32xf32, #tpu.memory_space<vmem>>, vector<16x16x32xf32>
    %56 = vector.shape_cast %55 : vector<16x16x32xf32> to vector<256x32xf32>
    %57 = arith.truncf %56 : vector<256x32xf32> to vector<256x32xbf16>
    %c5 = arith.constant 5 : index
    %c0_59 = arith.constant 0 : index
    %c0_60 = arith.constant 0 : index
    %58 = vector.load %arg4[%c5, %c0_59, %c0_60] : memref<9x32x64xbf16, #tpu.memory_space<vmem>>, vector<1x32x64xbf16>
    %59 = vector.shape_cast %58 : vector<1x32x64xbf16> to vector<32x64xbf16>
    %cst_61 = arith.constant dense<0.000000e+00> : vector<256x64xf32>
    %60 = tpu.matmul %57, %59, %cst_61 {dimension_numbers = #tpu.dot_dimension_numbers<[1], [0], [0], [1], [0, 0, 1, 1], [], []>} : vector<256x32xbf16>, vector<32x64xbf16>, vector<256x64xf32> -> vector<256x64xf32>
    %61 = arith.addf %54, %60 : vector<256x64xf32>
    %c2_62 = arith.constant 2 : index
    %c0_63 = arith.constant 0 : index
    %c0_64 = arith.constant 0 : index
    %62 = vector.load %arg16[%c2_62, %c0_63, %c0_64] : memref<18x18x32xf32, #tpu.memory_space<vmem>>, vector<16x16x32xf32>
    %63 = vector.shape_cast %62 : vector<16x16x32xf32> to vector<256x32xf32>
    %64 = arith.truncf %63 : vector<256x32xf32> to vector<256x32xbf16>
    %c6 = arith.constant 6 : index
    %c0_65 = arith.constant 0 : index
    %c0_66 = arith.constant 0 : index
    %65 = vector.load %arg4[%c6, %c0_65, %c0_66] : memref<9x32x64xbf16, #tpu.memory_space<vmem>>, vector<1x32x64xbf16>
    %66 = vector.shape_cast %65 : vector<1x32x64xbf16> to vector<32x64xbf16>
    %cst_67 = arith.constant dense<0.000000e+00> : vector<256x64xf32>
    %67 = tpu.matmul %64, %66, %cst_67 {dimension_numbers = #tpu.dot_dimension_numbers<[1], [0], [0], [1], [0, 0, 1, 1], [], []>} : vector<256x32xbf16>, vector<32x64xbf16>, vector<256x64xf32> -> vector<256x64xf32>
    %68 = arith.addf %61, %67 : vector<256x64xf32>
    %c2_68 = arith.constant 2 : index
    %c1_69 = arith.constant 1 : index
    %c0_70 = arith.constant 0 : index
    %69 = vector.load %arg16[%c2_68, %c1_69, %c0_70] : memref<18x18x32xf32, #tpu.memory_space<vmem>>, vector<16x16x32xf32>
    %70 = vector.shape_cast %69 : vector<16x16x32xf32> to vector<256x32xf32>
    %71 = arith.truncf %70 : vector<256x32xf32> to vector<256x32xbf16>
    %c7 = arith.constant 7 : index
    %c0_71 = arith.constant 0 : index
    %c0_72 = arith.constant 0 : index
    %72 = vector.load %arg4[%c7, %c0_71, %c0_72] : memref<9x32x64xbf16, #tpu.memory_space<vmem>>, vector<1x32x64xbf16>
    %73 = vector.shape_cast %72 : vector<1x32x64xbf16> to vector<32x64xbf16>
    %cst_73 = arith.constant dense<0.000000e+00> : vector<256x64xf32>
    %74 = tpu.matmul %71, %73, %cst_73 {dimension_numbers = #tpu.dot_dimension_numbers<[1], [0], [0], [1], [0, 0, 1, 1], [], []>} : vector<256x32xbf16>, vector<32x64xbf16>, vector<256x64xf32> -> vector<256x64xf32>
    %75 = arith.addf %68, %74 : vector<256x64xf32>
    %c2_74 = arith.constant 2 : index
    %c2_75 = arith.constant 2 : index
    %c0_76 = arith.constant 0 : index
    %76 = vector.load %arg16[%c2_74, %c2_75, %c0_76] : memref<18x18x32xf32, #tpu.memory_space<vmem>>, vector<16x16x32xf32>
    %77 = vector.shape_cast %76 : vector<16x16x32xf32> to vector<256x32xf32>
    %78 = arith.truncf %77 : vector<256x32xf32> to vector<256x32xbf16>
    %c8 = arith.constant 8 : index
    %c0_77 = arith.constant 0 : index
    %c0_78 = arith.constant 0 : index
    %79 = vector.load %arg4[%c8, %c0_77, %c0_78] : memref<9x32x64xbf16, #tpu.memory_space<vmem>>, vector<1x32x64xbf16>
    %80 = vector.shape_cast %79 : vector<1x32x64xbf16> to vector<32x64xbf16>
    %cst_79 = arith.constant dense<0.000000e+00> : vector<256x64xf32>
    %81 = tpu.matmul %78, %80, %cst_79 {dimension_numbers = #tpu.dot_dimension_numbers<[1], [0], [0], [1], [0, 0, 1, 1], [], []>} : vector<256x32xbf16>, vector<32x64xbf16>, vector<256x64xf32> -> vector<256x64xf32>
    %82 = arith.addf %75, %81 : vector<256x64xf32>
    %c0_80 = arith.constant 0 : index
    %c0_81 = arith.constant 0 : index
    %83 = vector.load %arg5[%c0_80, %c0_81] : memref<1x64xf32, #tpu.memory_space<vmem>>, vector<1x64xf32>
    %84 = vector.broadcast %83 : vector<1x64xf32> to vector<256x64xf32>
    %85 = arith.addf %82, %84 : vector<256x64xf32>
    %cst_82 = arith.constant 0.000000e+00 : f32
    %86 = vector.broadcast %cst_82 : f32 to vector<256x64xf32>
    %87 = arith.maximumf %85, %86 : vector<256x64xf32>
    %88 = vector.shape_cast %87 : vector<256x64xf32> to vector<16x16x64xf32>
    %c0_83 = arith.constant 0 : index
    %c0_84 = arith.constant 0 : index
    %c0_85 = arith.constant 0 : index
    %89 = vector.load %arg14[%c0_83, %c0_84, %c0_85] : memref<16x16x64xf32, #tpu.memory_space<vmem>>, vector<16x16x64xf32>
    tpu.vector_store %arg14[%c0_83, %c0_84, %c0_85], %88 {strides = array<i32>} : memref<16x16x64xf32, #tpu.memory_space<vmem>>, vector<16x16x64xf32>,
    %c0_86 = arith.constant 0 : index
    %c0_87 = arith.constant 0 : index
    %c0_88 = arith.constant 0 : index
    %90 = tpu.strided_load %arg14[%c0_86, %c0_87, %c0_88] {strides = array<i32: 1, 2, 1>} : memref<16x16x64xf32, #tpu.memory_space<vmem>>, vector<16x8x64xf32>
    %c0_89 = arith.constant 0 : index
    %c1_90 = arith.constant 1 : index
    %c0_91 = arith.constant 0 : index
    %91 = tpu.strided_load %arg14[%c0_89, %c1_90, %c0_91] {strides = array<i32: 1, 2, 1>} : memref<16x16x64xf32, #tpu.memory_space<vmem>>, vector<16x8x64xf32>
    %92 = arith.maximumf %90, %91 : vector<16x8x64xf32>
    %93 = vector.shape_cast %92 : vector<16x8x64xf32> to vector<8x2x8x64xf32>
    %cst_92 = arith.constant dense<0xFF800000> : vector<8x8x64xf32>
    %94 = vector.multi_reduction <maximumf>, %93, %cst_92 [1] : vector<8x2x8x64xf32> to vector<8x8x64xf32>
    %cst_93 = arith.constant 0.000000e+00 : f32
    %95 = vector.broadcast %cst_93 : f32 to vector<10x10x64xf32>
    %c0_94 = arith.constant 0 : index
    %c0_95 = arith.constant 0 : index
    %c0_96 = arith.constant 0 : index
    %96 = vector.load %arg17[%c0_94, %c0_95, %c0_96] : memref<10x10x64xf32, #tpu.memory_space<vmem>>, vector<10x10x64xf32>
    tpu.vector_store %arg17[%c0_94, %c0_95, %c0_96], %95 {strides = array<i32>} : memref<10x10x64xf32, #tpu.memory_space<vmem>>, vector<10x10x64xf32>,
    %c1_97 = arith.constant 1 : index
    %c1_98 = arith.constant 1 : index
    %c0_99 = arith.constant 0 : index
    %97 = vector.load %arg17[%c1_97, %c1_98, %c0_99] : memref<10x10x64xf32, #tpu.memory_space<vmem>>, vector<8x8x64xf32>
    tpu.vector_store %arg17[%c1_97, %c1_98, %c0_99], %94 {strides = array<i32>} : memref<10x10x64xf32, #tpu.memory_space<vmem>>, vector<8x8x64xf32>,
    %cst_100 = arith.constant 0.000000e+00 : f32
    %98 = vector.broadcast %cst_100 : f32 to vector<64x128xf32>
    %c0_101 = arith.constant 0 : index
    %c0_102 = arith.constant 0 : index
    %c0_103 = arith.constant 0 : index
    %99 = vector.load %arg17[%c0_101, %c0_102, %c0_103] : memref<10x10x64xf32, #tpu.memory_space<vmem>>, vector<8x8x64xf32>
    %100 = vector.shape_cast %99 : vector<8x8x64xf32> to vector<64x64xf32>
    %101 = arith.truncf %100 : vector<64x64xf32> to vector<64x64xbf16>
    %c0_104 = arith.constant 0 : index
    %c0_105 = arith.constant 0 : index
    %c0_106 = arith.constant 0 : index
    %102 = vector.load %arg6[%c0_104, %c0_105, %c0_106] : memref<9x64x128xbf16, #tpu.memory_space<vmem>>, vector<1x64x128xbf16>
    %103 = vector.shape_cast %102 : vector<1x64x128xbf16> to vector<64x128xbf16>
    %cst_107 = arith.constant dense<0.000000e+00> : vector<64x128xf32>
    %104 = tpu.matmul %101, %103, %cst_107 {dimension_numbers = #tpu.dot_dimension_numbers<[1], [0], [0], [1], [0, 0, 1, 1], [], []>} : vector<64x64xbf16>, vector<64x128xbf16>, vector<64x128xf32> -> vector<64x128xf32>
    %105 = arith.addf %98, %104 : vector<64x128xf32>
    %c0_108 = arith.constant 0 : index
    %c1_109 = arith.constant 1 : index
    %c0_110 = arith.constant 0 : index
    %106 = vector.load %arg17[%c0_108, %c1_109, %c0_110] : memref<10x10x64xf32, #tpu.memory_space<vmem>>, vector<8x8x64xf32>
    %107 = vector.shape_cast %106 : vector<8x8x64xf32> to vector<64x64xf32>
    %108 = arith.truncf %107 : vector<64x64xf32> to vector<64x64xbf16>
    %c1_111 = arith.constant 1 : index
    %c0_112 = arith.constant 0 : index
    %c0_113 = arith.constant 0 : index
    %109 = vector.load %arg6[%c1_111, %c0_112, %c0_113] : memref<9x64x128xbf16, #tpu.memory_space<vmem>>, vector<1x64x128xbf16>
    %110 = vector.shape_cast %109 : vector<1x64x128xbf16> to vector<64x128xbf16>
    %cst_114 = arith.constant dense<0.000000e+00> : vector<64x128xf32>
    %111 = tpu.matmul %108, %110, %cst_114 {dimension_numbers = #tpu.dot_dimension_numbers<[1], [0], [0], [1], [0, 0, 1, 1], [], []>} : vector<64x64xbf16>, vector<64x128xbf16>, vector<64x128xf32> -> vector<64x128xf32>
    %112 = arith.addf %105, %111 : vector<64x128xf32>
    %c0_115 = arith.constant 0 : index
    %c2_116 = arith.constant 2 : index
    %c0_117 = arith.constant 0 : index
    %113 = vector.load %arg17[%c0_115, %c2_116, %c0_117] : memref<10x10x64xf32, #tpu.memory_space<vmem>>, vector<8x8x64xf32>
    %114 = vector.shape_cast %113 : vector<8x8x64xf32> to vector<64x64xf32>
    %115 = arith.truncf %114 : vector<64x64xf32> to vector<64x64xbf16>
    %c2_118 = arith.constant 2 : index
    %c0_119 = arith.constant 0 : index
    %c0_120 = arith.constant 0 : index
    %116 = vector.load %arg6[%c2_118, %c0_119, %c0_120] : memref<9x64x128xbf16, #tpu.memory_space<vmem>>, vector<1x64x128xbf16>
    %117 = vector.shape_cast %116 : vector<1x64x128xbf16> to vector<64x128xbf16>
    %cst_121 = arith.constant dense<0.000000e+00> : vector<64x128xf32>
    %118 = tpu.matmul %115, %117, %cst_121 {dimension_numbers = #tpu.dot_dimension_numbers<[1], [0], [0], [1], [0, 0, 1, 1], [], []>} : vector<64x64xbf16>, vector<64x128xbf16>, vector<64x128xf32> -> vector<64x128xf32>
    %119 = arith.addf %112, %118 : vector<64x128xf32>
    %c1_122 = arith.constant 1 : index
    %c0_123 = arith.constant 0 : index
    %c0_124 = arith.constant 0 : index
    %120 = vector.load %arg17[%c1_122, %c0_123, %c0_124] : memref<10x10x64xf32, #tpu.memory_space<vmem>>, vector<8x8x64xf32>
    %121 = vector.shape_cast %120 : vector<8x8x64xf32> to vector<64x64xf32>
    %122 = arith.truncf %121 : vector<64x64xf32> to vector<64x64xbf16>
    %c3_125 = arith.constant 3 : index
    %c0_126 = arith.constant 0 : index
    %c0_127 = arith.constant 0 : index
    %123 = vector.load %arg6[%c3_125, %c0_126, %c0_127] : memref<9x64x128xbf16, #tpu.memory_space<vmem>>, vector<1x64x128xbf16>
    %124 = vector.shape_cast %123 : vector<1x64x128xbf16> to vector<64x128xbf16>
    %cst_128 = arith.constant dense<0.000000e+00> : vector<64x128xf32>
    %125 = tpu.matmul %122, %124, %cst_128 {dimension_numbers = #tpu.dot_dimension_numbers<[1], [0], [0], [1], [0, 0, 1, 1], [], []>} : vector<64x64xbf16>, vector<64x128xbf16>, vector<64x128xf32> -> vector<64x128xf32>
    %126 = arith.addf %119, %125 : vector<64x128xf32>
    %c1_129 = arith.constant 1 : index
    %c1_130 = arith.constant 1 : index
    %c0_131 = arith.constant 0 : index
    %127 = vector.load %arg17[%c1_129, %c1_130, %c0_131] : memref<10x10x64xf32, #tpu.memory_space<vmem>>, vector<8x8x64xf32>
    %128 = vector.shape_cast %127 : vector<8x8x64xf32> to vector<64x64xf32>
    %129 = arith.truncf %128 : vector<64x64xf32> to vector<64x64xbf16>
    %c4_132 = arith.constant 4 : index
    %c0_133 = arith.constant 0 : index
    %c0_134 = arith.constant 0 : index
    %130 = vector.load %arg6[%c4_132, %c0_133, %c0_134] : memref<9x64x128xbf16, #tpu.memory_space<vmem>>, vector<1x64x128xbf16>
    %131 = vector.shape_cast %130 : vector<1x64x128xbf16> to vector<64x128xbf16>
    %cst_135 = arith.constant dense<0.000000e+00> : vector<64x128xf32>
    %132 = tpu.matmul %129, %131, %cst_135 {dimension_numbers = #tpu.dot_dimension_numbers<[1], [0], [0], [1], [0, 0, 1, 1], [], []>} : vector<64x64xbf16>, vector<64x128xbf16>, vector<64x128xf32> -> vector<64x128xf32>
    %133 = arith.addf %126, %132 : vector<64x128xf32>
    %c1_136 = arith.constant 1 : index
    %c2_137 = arith.constant 2 : index
    %c0_138 = arith.constant 0 : index
    %134 = vector.load %arg17[%c1_136, %c2_137, %c0_138] : memref<10x10x64xf32, #tpu.memory_space<vmem>>, vector<8x8x64xf32>
    %135 = vector.shape_cast %134 : vector<8x8x64xf32> to vector<64x64xf32>
    %136 = arith.truncf %135 : vector<64x64xf32> to vector<64x64xbf16>
    %c5_139 = arith.constant 5 : index
    %c0_140 = arith.constant 0 : index
    %c0_141 = arith.constant 0 : index
    %137 = vector.load %arg6[%c5_139, %c0_140, %c0_141] : memref<9x64x128xbf16, #tpu.memory_space<vmem>>, vector<1x64x128xbf16>
    %138 = vector.shape_cast %137 : vector<1x64x128xbf16> to vector<64x128xbf16>
    %cst_142 = arith.constant dense<0.000000e+00> : vector<64x128xf32>
    %139 = tpu.matmul %136, %138, %cst_142 {dimension_numbers = #tpu.dot_dimension_numbers<[1], [0], [0], [1], [0, 0, 1, 1], [], []>} : vector<64x64xbf16>, vector<64x128xbf16>, vector<64x128xf32> -> vector<64x128xf32>
    %140 = arith.addf %133, %139 : vector<64x128xf32>
    %c2_143 = arith.constant 2 : index
    %c0_144 = arith.constant 0 : index
    %c0_145 = arith.constant 0 : index
    %141 = vector.load %arg17[%c2_143, %c0_144, %c0_145] : memref<10x10x64xf32, #tpu.memory_space<vmem>>, vector<8x8x64xf32>
    %142 = vector.shape_cast %141 : vector<8x8x64xf32> to vector<64x64xf32>
    %143 = arith.truncf %142 : vector<64x64xf32> to vector<64x64xbf16>
    %c6_146 = arith.constant 6 : index
    %c0_147 = arith.constant 0 : index
    %c0_148 = arith.constant 0 : index
    %144 = vector.load %arg6[%c6_146, %c0_147, %c0_148] : memref<9x64x128xbf16, #tpu.memory_space<vmem>>, vector<1x64x128xbf16>
    %145 = vector.shape_cast %144 : vector<1x64x128xbf16> to vector<64x128xbf16>
    %cst_149 = arith.constant dense<0.000000e+00> : vector<64x128xf32>
    %146 = tpu.matmul %143, %145, %cst_149 {dimension_numbers = #tpu.dot_dimension_numbers<[1], [0], [0], [1], [0, 0, 1, 1], [], []>} : vector<64x64xbf16>, vector<64x128xbf16>, vector<64x128xf32> -> vector<64x128xf32>
    %147 = arith.addf %140, %146 : vector<64x128xf32>
    %c2_150 = arith.constant 2 : index
    %c1_151 = arith.constant 1 : index
    %c0_152 = arith.constant 0 : index
    %148 = vector.load %arg17[%c2_150, %c1_151, %c0_152] : memref<10x10x64xf32, #tpu.memory_space<vmem>>, vector<8x8x64xf32>
    %149 = vector.shape_cast %148 : vector<8x8x64xf32> to vector<64x64xf32>
    %150 = arith.truncf %149 : vector<64x64xf32> to vector<64x64xbf16>
    %c7_153 = arith.constant 7 : index
    %c0_154 = arith.constant 0 : index
    %c0_155 = arith.constant 0 : index
    %151 = vector.load %arg6[%c7_153, %c0_154, %c0_155] : memref<9x64x128xbf16, #tpu.memory_space<vmem>>, vector<1x64x128xbf16>
    %152 = vector.shape_cast %151 : vector<1x64x128xbf16> to vector<64x128xbf16>
    %cst_156 = arith.constant dense<0.000000e+00> : vector<64x128xf32>
    %153 = tpu.matmul %150, %152, %cst_156 {dimension_numbers = #tpu.dot_dimension_numbers<[1], [0], [0], [1], [0, 0, 1, 1], [], []>} : vector<64x64xbf16>, vector<64x128xbf16>, vector<64x128xf32> -> vector<64x128xf32>
    %154 = arith.addf %147, %153 : vector<64x128xf32>
    %c2_157 = arith.constant 2 : index
    %c2_158 = arith.constant 2 : index
    %c0_159 = arith.constant 0 : index
    %155 = vector.load %arg17[%c2_157, %c2_158, %c0_159] : memref<10x10x64xf32, #tpu.memory_space<vmem>>, vector<8x8x64xf32>
    %156 = vector.shape_cast %155 : vector<8x8x64xf32> to vector<64x64xf32>
    %157 = arith.truncf %156 : vector<64x64xf32> to vector<64x64xbf16>
    %c8_160 = arith.constant 8 : index
    %c0_161 = arith.constant 0 : index
    %c0_162 = arith.constant 0 : index
    %158 = vector.load %arg6[%c8_160, %c0_161, %c0_162] : memref<9x64x128xbf16, #tpu.memory_space<vmem>>, vector<1x64x128xbf16>
    %159 = vector.shape_cast %158 : vector<1x64x128xbf16> to vector<64x128xbf16>
    %cst_163 = arith.constant dense<0.000000e+00> : vector<64x128xf32>
    %160 = tpu.matmul %157, %159, %cst_163 {dimension_numbers = #tpu.dot_dimension_numbers<[1], [0], [0], [1], [0, 0, 1, 1], [], []>} : vector<64x64xbf16>, vector<64x128xbf16>, vector<64x128xf32> -> vector<64x128xf32>
    %161 = arith.addf %154, %160 : vector<64x128xf32>
    %c0_164 = arith.constant 0 : index
    %c0_165 = arith.constant 0 : index
    %162 = vector.load %arg7[%c0_164, %c0_165] : memref<1x128xf32, #tpu.memory_space<vmem>>, vector<1x128xf32>
    %163 = vector.broadcast %162 : vector<1x128xf32> to vector<64x128xf32>
    %164 = arith.addf %161, %163 : vector<64x128xf32>
    %cst_166 = arith.constant 0.000000e+00 : f32
    %165 = vector.broadcast %cst_166 : f32 to vector<64x128xf32>
    %166 = arith.maximumf %164, %165 : vector<64x128xf32>
    %167 = vector.shape_cast %166 : vector<64x128xf32> to vector<8x8x128xf32>
    %c0_167 = arith.constant 0 : index
    %c0_168 = arith.constant 0 : index
    %c0_169 = arith.constant 0 : index
    %168 = vector.load %arg15[%c0_167, %c0_168, %c0_169] : memref<8x8x128xf32, #tpu.memory_space<vmem>>, vector<8x8x128xf32>
    tpu.vector_store %arg15[%c0_167, %c0_168, %c0_169], %167 {strides = array<i32>} : memref<8x8x128xf32, #tpu.memory_space<vmem>>, vector<8x8x128xf32>,
    %c0_170 = arith.constant 0 : index
    %c0_171 = arith.constant 0 : index
    %c0_172 = arith.constant 0 : index
    %169 = tpu.strided_load %arg15[%c0_170, %c0_171, %c0_172] {strides = array<i32: 1, 2, 1>} : memref<8x8x128xf32, #tpu.memory_space<vmem>>, vector<8x4x128xf32>
    %c0_173 = arith.constant 0 : index
    %c1_174 = arith.constant 1 : index
    %c0_175 = arith.constant 0 : index
    %170 = tpu.strided_load %arg15[%c0_173, %c1_174, %c0_175] {strides = array<i32: 1, 2, 1>} : memref<8x8x128xf32, #tpu.memory_space<vmem>>, vector<8x4x128xf32>
    %171 = arith.maximumf %169, %170 : vector<8x4x128xf32>
    %172 = vector.shape_cast %171 : vector<8x4x128xf32> to vector<4x2x4x128xf32>
    %cst_176 = arith.constant dense<0xFF800000> : vector<4x4x128xf32>
    %173 = vector.multi_reduction <maximumf>, %172, %cst_176 [1] : vector<4x2x4x128xf32> to vector<4x4x128xf32>
    %c0_177 = arith.constant 0 : index
    %c0_178 = arith.constant 0 : index
    %174 = vector.load %arg9[%c0_177, %c0_178] : memref<1x256xf32, #tpu.memory_space<vmem>>, vector<1x256xf32>
    %175 = vector.extract_strided_slice %173 {offsets = [0, 0, 0], sizes = [1, 1, 128], strides = [1, 1, 1]} : vector<4x4x128xf32> to vector<1x1x128xf32>
    %176 = vector.shape_cast %175 : vector<1x1x128xf32> to vector<1x128xf32>
    %177 = arith.truncf %176 : vector<1x128xf32> to vector<1x128xbf16>
    %c0_179 = arith.constant 0 : index
    %c0_180 = arith.constant 0 : index
    %c0_181 = arith.constant 0 : index
    %178 = vector.load %arg8[%c0_179, %c0_180, %c0_181] : memref<16x128x256xbf16, #tpu.memory_space<vmem>>, vector<1x128x256xbf16>
    %179 = vector.shape_cast %178 : vector<1x128x256xbf16> to vector<128x256xbf16>
    %cst_182 = arith.constant dense<0.000000e+00> : vector<1x256xf32>
    %180 = tpu.matmul %177, %179, %cst_182 {dimension_numbers = #tpu.dot_dimension_numbers<[1], [0], [0], [1], [0, 0, 1, 1], [], []>} : vector<1x128xbf16>, vector<128x256xbf16>, vector<1x256xf32> -> vector<1x256xf32>
    %181 = arith.addf %174, %180 : vector<1x256xf32>
    %182 = vector.extract_strided_slice %173 {offsets = [0, 1, 0], sizes = [1, 1, 128], strides = [1, 1, 1]} : vector<4x4x128xf32> to vector<1x1x128xf32>
    %183 = vector.shape_cast %182 : vector<1x1x128xf32> to vector<1x128xf32>
    %184 = arith.truncf %183 : vector<1x128xf32> to vector<1x128xbf16>
    %c1_183 = arith.constant 1 : index
    %c0_184 = arith.constant 0 : index
    %c0_185 = arith.constant 0 : index
    %185 = vector.load %arg8[%c1_183, %c0_184, %c0_185] : memref<16x128x256xbf16, #tpu.memory_space<vmem>>, vector<1x128x256xbf16>
    %186 = vector.shape_cast %185 : vector<1x128x256xbf16> to vector<128x256xbf16>
    %cst_186 = arith.constant dense<0.000000e+00> : vector<1x256xf32>
    %187 = tpu.matmul %184, %186, %cst_186 {dimension_numbers = #tpu.dot_dimension_numbers<[1], [0], [0], [1], [0, 0, 1, 1], [], []>} : vector<1x128xbf16>, vector<128x256xbf16>, vector<1x256xf32> -> vector<1x256xf32>
    %188 = arith.addf %181, %187 : vector<1x256xf32>
    %189 = vector.extract_strided_slice %173 {offsets = [0, 2, 0], sizes = [1, 1, 128], strides = [1, 1, 1]} : vector<4x4x128xf32> to vector<1x1x128xf32>
    %190 = vector.shape_cast %189 : vector<1x1x128xf32> to vector<1x128xf32>
    %191 = arith.truncf %190 : vector<1x128xf32> to vector<1x128xbf16>
    %c2_187 = arith.constant 2 : index
    %c0_188 = arith.constant 0 : index
    %c0_189 = arith.constant 0 : index
    %192 = vector.load %arg8[%c2_187, %c0_188, %c0_189] : memref<16x128x256xbf16, #tpu.memory_space<vmem>>, vector<1x128x256xbf16>
    %193 = vector.shape_cast %192 : vector<1x128x256xbf16> to vector<128x256xbf16>
    %cst_190 = arith.constant dense<0.000000e+00> : vector<1x256xf32>
    %194 = tpu.matmul %191, %193, %cst_190 {dimension_numbers = #tpu.dot_dimension_numbers<[1], [0], [0], [1], [0, 0, 1, 1], [], []>} : vector<1x128xbf16>, vector<128x256xbf16>, vector<1x256xf32> -> vector<1x256xf32>
    %195 = arith.addf %188, %194 : vector<1x256xf32>
    %196 = vector.extract_strided_slice %173 {offsets = [0, 3, 0], sizes = [1, 1, 128], strides = [1, 1, 1]} : vector<4x4x128xf32> to vector<1x1x128xf32>
    %197 = vector.shape_cast %196 : vector<1x1x128xf32> to vector<1x128xf32>
    %198 = arith.truncf %197 : vector<1x128xf32> to vector<1x128xbf16>
    %c3_191 = arith.constant 3 : index
    %c0_192 = arith.constant 0 : index
    %c0_193 = arith.constant 0 : index
    %199 = vector.load %arg8[%c3_191, %c0_192, %c0_193] : memref<16x128x256xbf16, #tpu.memory_space<vmem>>, vector<1x128x256xbf16>
    %200 = vector.shape_cast %199 : vector<1x128x256xbf16> to vector<128x256xbf16>
    %cst_194 = arith.constant dense<0.000000e+00> : vector<1x256xf32>
    %201 = tpu.matmul %198, %200, %cst_194 {dimension_numbers = #tpu.dot_dimension_numbers<[1], [0], [0], [1], [0, 0, 1, 1], [], []>} : vector<1x128xbf16>, vector<128x256xbf16>, vector<1x256xf32> -> vector<1x256xf32>
    %202 = arith.addf %195, %201 : vector<1x256xf32>
    %203 = vector.extract_strided_slice %173 {offsets = [1, 0, 0], sizes = [1, 1, 128], strides = [1, 1, 1]} : vector<4x4x128xf32> to vector<1x1x128xf32>
    %204 = vector.shape_cast %203 : vector<1x1x128xf32> to vector<1x128xf32>
    %205 = arith.truncf %204 : vector<1x128xf32> to vector<1x128xbf16>
    %c4_195 = arith.constant 4 : index
    %c0_196 = arith.constant 0 : index
    %c0_197 = arith.constant 0 : index
    %206 = vector.load %arg8[%c4_195, %c0_196, %c0_197] : memref<16x128x256xbf16, #tpu.memory_space<vmem>>, vector<1x128x256xbf16>
    %207 = vector.shape_cast %206 : vector<1x128x256xbf16> to vector<128x256xbf16>
    %cst_198 = arith.constant dense<0.000000e+00> : vector<1x256xf32>
    %208 = tpu.matmul %205, %207, %cst_198 {dimension_numbers = #tpu.dot_dimension_numbers<[1], [0], [0], [1], [0, 0, 1, 1], [], []>} : vector<1x128xbf16>, vector<128x256xbf16>, vector<1x256xf32> -> vector<1x256xf32>
    %209 = arith.addf %202, %208 : vector<1x256xf32>
    %210 = vector.extract_strided_slice %173 {offsets = [1, 1, 0], sizes = [1, 1, 128], strides = [1, 1, 1]} : vector<4x4x128xf32> to vector<1x1x128xf32>
    %211 = vector.shape_cast %210 : vector<1x1x128xf32> to vector<1x128xf32>
    %212 = arith.truncf %211 : vector<1x128xf32> to vector<1x128xbf16>
    %c5_199 = arith.constant 5 : index
    %c0_200 = arith.constant 0 : index
    %c0_201 = arith.constant 0 : index
    %213 = vector.load %arg8[%c5_199, %c0_200, %c0_201] : memref<16x128x256xbf16, #tpu.memory_space<vmem>>, vector<1x128x256xbf16>
    %214 = vector.shape_cast %213 : vector<1x128x256xbf16> to vector<128x256xbf16>
    %cst_202 = arith.constant dense<0.000000e+00> : vector<1x256xf32>
    %215 = tpu.matmul %212, %214, %cst_202 {dimension_numbers = #tpu.dot_dimension_numbers<[1], [0], [0], [1], [0, 0, 1, 1], [], []>} : vector<1x128xbf16>, vector<128x256xbf16>, vector<1x256xf32> -> vector<1x256xf32>
    %216 = arith.addf %209, %215 : vector<1x256xf32>
    %217 = vector.extract_strided_slice %173 {offsets = [1, 2, 0], sizes = [1, 1, 128], strides = [1, 1, 1]} : vector<4x4x128xf32> to vector<1x1x128xf32>
    %218 = vector.shape_cast %217 : vector<1x1x128xf32> to vector<1x128xf32>
    %219 = arith.truncf %218 : vector<1x128xf32> to vector<1x128xbf16>
    %c6_203 = arith.constant 6 : index
    %c0_204 = arith.constant 0 : index
    %c0_205 = arith.constant 0 : index
    %220 = vector.load %arg8[%c6_203, %c0_204, %c0_205] : memref<16x128x256xbf16, #tpu.memory_space<vmem>>, vector<1x128x256xbf16>
    %221 = vector.shape_cast %220 : vector<1x128x256xbf16> to vector<128x256xbf16>
    %cst_206 = arith.constant dense<0.000000e+00> : vector<1x256xf32>
    %222 = tpu.matmul %219, %221, %cst_206 {dimension_numbers = #tpu.dot_dimension_numbers<[1], [0], [0], [1], [0, 0, 1, 1], [], []>} : vector<1x128xbf16>, vector<128x256xbf16>, vector<1x256xf32> -> vector<1x256xf32>
    %223 = arith.addf %216, %222 : vector<1x256xf32>
    %224 = vector.extract_strided_slice %173 {offsets = [1, 3, 0], sizes = [1, 1, 128], strides = [1, 1, 1]} : vector<4x4x128xf32> to vector<1x1x128xf32>
    %225 = vector.shape_cast %224 : vector<1x1x128xf32> to vector<1x128xf32>
    %226 = arith.truncf %225 : vector<1x128xf32> to vector<1x128xbf16>
    %c7_207 = arith.constant 7 : index
    %c0_208 = arith.constant 0 : index
    %c0_209 = arith.constant 0 : index
    %227 = vector.load %arg8[%c7_207, %c0_208, %c0_209] : memref<16x128x256xbf16, #tpu.memory_space<vmem>>, vector<1x128x256xbf16>
    %228 = vector.shape_cast %227 : vector<1x128x256xbf16> to vector<128x256xbf16>
    %cst_210 = arith.constant dense<0.000000e+00> : vector<1x256xf32>
    %229 = tpu.matmul %226, %228, %cst_210 {dimension_numbers = #tpu.dot_dimension_numbers<[1], [0], [0], [1], [0, 0, 1, 1], [], []>} : vector<1x128xbf16>, vector<128x256xbf16>, vector<1x256xf32> -> vector<1x256xf32>
    %230 = arith.addf %223, %229 : vector<1x256xf32>
    %231 = vector.extract_strided_slice %173 {offsets = [2, 0, 0], sizes = [1, 1, 128], strides = [1, 1, 1]} : vector<4x4x128xf32> to vector<1x1x128xf32>
    %232 = vector.shape_cast %231 : vector<1x1x128xf32> to vector<1x128xf32>
    %233 = arith.truncf %232 : vector<1x128xf32> to vector<1x128xbf16>
    %c8_211 = arith.constant 8 : index
    %c0_212 = arith.constant 0 : index
    %c0_213 = arith.constant 0 : index
    %234 = vector.load %arg8[%c8_211, %c0_212, %c0_213] : memref<16x128x256xbf16, #tpu.memory_space<vmem>>, vector<1x128x256xbf16>
    %235 = vector.shape_cast %234 : vector<1x128x256xbf16> to vector<128x256xbf16>
    %cst_214 = arith.constant dense<0.000000e+00> : vector<1x256xf32>
    %236 = tpu.matmul %233, %235, %cst_214 {dimension_numbers = #tpu.dot_dimension_numbers<[1], [0], [0], [1], [0, 0, 1, 1], [], []>} : vector<1x128xbf16>, vector<128x256xbf16>, vector<1x256xf32> -> vector<1x256xf32>
    %237 = arith.addf %230, %236 : vector<1x256xf32>
    %238 = vector.extract_strided_slice %173 {offsets = [2, 1, 0], sizes = [1, 1, 128], strides = [1, 1, 1]} : vector<4x4x128xf32> to vector<1x1x128xf32>
    %239 = vector.shape_cast %238 : vector<1x1x128xf32> to vector<1x128xf32>
    %240 = arith.truncf %239 : vector<1x128xf32> to vector<1x128xbf16>
    %c9 = arith.constant 9 : index
    %c0_215 = arith.constant 0 : index
    %c0_216 = arith.constant 0 : index
    %241 = vector.load %arg8[%c9, %c0_215, %c0_216] : memref<16x128x256xbf16, #tpu.memory_space<vmem>>, vector<1x128x256xbf16>
    %242 = vector.shape_cast %241 : vector<1x128x256xbf16> to vector<128x256xbf16>
    %cst_217 = arith.constant dense<0.000000e+00> : vector<1x256xf32>
    %243 = tpu.matmul %240, %242, %cst_217 {dimension_numbers = #tpu.dot_dimension_numbers<[1], [0], [0], [1], [0, 0, 1, 1], [], []>} : vector<1x128xbf16>, vector<128x256xbf16>, vector<1x256xf32> -> vector<1x256xf32>
    %244 = arith.addf %237, %243 : vector<1x256xf32>
    %245 = vector.extract_strided_slice %173 {offsets = [2, 2, 0], sizes = [1, 1, 128], strides = [1, 1, 1]} : vector<4x4x128xf32> to vector<1x1x128xf32>
    %246 = vector.shape_cast %245 : vector<1x1x128xf32> to vector<1x128xf32>
    %247 = arith.truncf %246 : vector<1x128xf32> to vector<1x128xbf16>
    %c10 = arith.constant 10 : index
    %c0_218 = arith.constant 0 : index
    %c0_219 = arith.constant 0 : index
    %248 = vector.load %arg8[%c10, %c0_218, %c0_219] : memref<16x128x256xbf16, #tpu.memory_space<vmem>>, vector<1x128x256xbf16>
    %249 = vector.shape_cast %248 : vector<1x128x256xbf16> to vector<128x256xbf16>
    %cst_220 = arith.constant dense<0.000000e+00> : vector<1x256xf32>
    %250 = tpu.matmul %247, %249, %cst_220 {dimension_numbers = #tpu.dot_dimension_numbers<[1], [0], [0], [1], [0, 0, 1, 1], [], []>} : vector<1x128xbf16>, vector<128x256xbf16>, vector<1x256xf32> -> vector<1x256xf32>
    %251 = arith.addf %244, %250 : vector<1x256xf32>
    %252 = vector.extract_strided_slice %173 {offsets = [2, 3, 0], sizes = [1, 1, 128], strides = [1, 1, 1]} : vector<4x4x128xf32> to vector<1x1x128xf32>
    %253 = vector.shape_cast %252 : vector<1x1x128xf32> to vector<1x128xf32>
    %254 = arith.truncf %253 : vector<1x128xf32> to vector<1x128xbf16>
    %c11 = arith.constant 11 : index
    %c0_221 = arith.constant 0 : index
    %c0_222 = arith.constant 0 : index
    %255 = vector.load %arg8[%c11, %c0_221, %c0_222] : memref<16x128x256xbf16, #tpu.memory_space<vmem>>, vector<1x128x256xbf16>
    %256 = vector.shape_cast %255 : vector<1x128x256xbf16> to vector<128x256xbf16>
    %cst_223 = arith.constant dense<0.000000e+00> : vector<1x256xf32>
    %257 = tpu.matmul %254, %256, %cst_223 {dimension_numbers = #tpu.dot_dimension_numbers<[1], [0], [0], [1], [0, 0, 1, 1], [], []>} : vector<1x128xbf16>, vector<128x256xbf16>, vector<1x256xf32> -> vector<1x256xf32>
    %258 = arith.addf %251, %257 : vector<1x256xf32>
    %259 = vector.extract_strided_slice %173 {offsets = [3, 0, 0], sizes = [1, 1, 128], strides = [1, 1, 1]} : vector<4x4x128xf32> to vector<1x1x128xf32>
    %260 = vector.shape_cast %259 : vector<1x1x128xf32> to vector<1x128xf32>
    %261 = arith.truncf %260 : vector<1x128xf32> to vector<1x128xbf16>
    %c12 = arith.constant 12 : index
    %c0_224 = arith.constant 0 : index
    %c0_225 = arith.constant 0 : index
    %262 = vector.load %arg8[%c12, %c0_224, %c0_225] : memref<16x128x256xbf16, #tpu.memory_space<vmem>>, vector<1x128x256xbf16>
    %263 = vector.shape_cast %262 : vector<1x128x256xbf16> to vector<128x256xbf16>
    %cst_226 = arith.constant dense<0.000000e+00> : vector<1x256xf32>
    %264 = tpu.matmul %261, %263, %cst_226 {dimension_numbers = #tpu.dot_dimension_numbers<[1], [0], [0], [1], [0, 0, 1, 1], [], []>} : vector<1x128xbf16>, vector<128x256xbf16>, vector<1x256xf32> -> vector<1x256xf32>
    %265 = arith.addf %258, %264 : vector<1x256xf32>
    %266 = vector.extract_strided_slice %173 {offsets = [3, 1, 0], sizes = [1, 1, 128], strides = [1, 1, 1]} : vector<4x4x128xf32> to vector<1x1x128xf32>
    %267 = vector.shape_cast %266 : vector<1x1x128xf32> to vector<1x128xf32>
    %268 = arith.truncf %267 : vector<1x128xf32> to vector<1x128xbf16>
    %c13 = arith.constant 13 : index
    %c0_227 = arith.constant 0 : index
    %c0_228 = arith.constant 0 : index
    %269 = vector.load %arg8[%c13, %c0_227, %c0_228] : memref<16x128x256xbf16, #tpu.memory_space<vmem>>, vector<1x128x256xbf16>
    %270 = vector.shape_cast %269 : vector<1x128x256xbf16> to vector<128x256xbf16>
    %cst_229 = arith.constant dense<0.000000e+00> : vector<1x256xf32>
    %271 = tpu.matmul %268, %270, %cst_229 {dimension_numbers = #tpu.dot_dimension_numbers<[1], [0], [0], [1], [0, 0, 1, 1], [], []>} : vector<1x128xbf16>, vector<128x256xbf16>, vector<1x256xf32> -> vector<1x256xf32>
    %272 = arith.addf %265, %271 : vector<1x256xf32>
    %273 = vector.extract_strided_slice %173 {offsets = [3, 2, 0], sizes = [1, 1, 128], strides = [1, 1, 1]} : vector<4x4x128xf32> to vector<1x1x128xf32>
    %274 = vector.shape_cast %273 : vector<1x1x128xf32> to vector<1x128xf32>
    %275 = arith.truncf %274 : vector<1x128xf32> to vector<1x128xbf16>
    %c14 = arith.constant 14 : index
    %c0_230 = arith.constant 0 : index
    %c0_231 = arith.constant 0 : index
    %276 = vector.load %arg8[%c14, %c0_230, %c0_231] : memref<16x128x256xbf16, #tpu.memory_space<vmem>>, vector<1x128x256xbf16>
    %277 = vector.shape_cast %276 : vector<1x128x256xbf16> to vector<128x256xbf16>
    %cst_232 = arith.constant dense<0.000000e+00> : vector<1x256xf32>
    %278 = tpu.matmul %275, %277, %cst_232 {dimension_numbers = #tpu.dot_dimension_numbers<[1], [0], [0], [1], [0, 0, 1, 1], [], []>} : vector<1x128xbf16>, vector<128x256xbf16>, vector<1x256xf32> -> vector<1x256xf32>
    %279 = arith.addf %272, %278 : vector<1x256xf32>
    %280 = vector.extract_strided_slice %173 {offsets = [3, 3, 0], sizes = [1, 1, 128], strides = [1, 1, 1]} : vector<4x4x128xf32> to vector<1x1x128xf32>
    %281 = vector.shape_cast %280 : vector<1x1x128xf32> to vector<1x128xf32>
    %282 = arith.truncf %281 : vector<1x128xf32> to vector<1x128xbf16>
    %c15 = arith.constant 15 : index
    %c0_233 = arith.constant 0 : index
    %c0_234 = arith.constant 0 : index
    %283 = vector.load %arg8[%c15, %c0_233, %c0_234] : memref<16x128x256xbf16, #tpu.memory_space<vmem>>, vector<1x128x256xbf16>
    %284 = vector.shape_cast %283 : vector<1x128x256xbf16> to vector<128x256xbf16>
    %cst_235 = arith.constant dense<0.000000e+00> : vector<1x256xf32>
    %285 = tpu.matmul %282, %284, %cst_235 {dimension_numbers = #tpu.dot_dimension_numbers<[1], [0], [0], [1], [0, 0, 1, 1], [], []>} : vector<1x128xbf16>, vector<128x256xbf16>, vector<1x256xf32> -> vector<1x256xf32>
    %286 = arith.addf %279, %285 : vector<1x256xf32>
    %cst_236 = arith.constant 0.000000e+00 : f32
    %287 = vector.broadcast %cst_236 : f32 to vector<1x256xf32>
    %288 = arith.maximumf %286, %287 : vector<1x256xf32>
    %289 = arith.truncf %288 : vector<1x256xf32> to vector<1x256xbf16>
    %c0_237 = arith.constant 0 : index
    %c0_238 = arith.constant 0 : index
    %290 = vector.load %arg10[%c0_237, %c0_238] : memref<256x10xbf16, #tpu.memory_space<vmem>>, vector<256x10xbf16>
    %cst_239 = arith.constant dense<0.000000e+00> : vector<1x10xf32>
    %291 = tpu.matmul %289, %290, %cst_239 {dimension_numbers = #tpu.dot_dimension_numbers<[1], [0], [0], [1], [0, 0, 1, 1], [], []>} : vector<1x256xbf16>, vector<256x10xbf16>, vector<1x10xf32> -> vector<1x10xf32>
    %c0_240 = arith.constant 0 : index
    %c0_241 = arith.constant 0 : index
    %292 = vector.load %arg11[%c0_240, %c0_241] : memref<1x10xf32, #tpu.memory_space<vmem>>, vector<1x10xf32>
    %293 = arith.addf %291, %292 : vector<1x10xf32>
    %c0_242 = arith.constant 0 : index
    %c0_243 = arith.constant 0 : index
    %c0_244 = arith.constant 0 : index
    %294 = vector.load %arg12[%c0_242, %c0_243, %c0_244] : memref<1x1x10xf32, #tpu.memory_space<vmem>>, vector<1x1x10xf32>
    %295 = vector.shape_cast %294 : vector<1x1x10xf32> to vector<1x10xf32>
    %296 = vector.shape_cast %293 : vector<1x10xf32> to vector<1x1x10xf32>
    tpu.vector_store %arg12[%c0_242, %c0_243, %c0_244], %296 {strides = array<i32>} : memref<1x1x10xf32, #tpu.memory_space<vmem>>, vector<1x1x10xf32>,
    return
  }
  func.func @transform_0(%arg0: i32) -> (i32, i32, i32) {
    %c0_i32 = arith.constant 0 : i32
    %c0_i32_0 = arith.constant 0 : i32
    %c0_i32_1 = arith.constant 0 : i32
    return %arg0, %c0_i32, %c0_i32_0 : i32, i32, i32
  }
  func.func @transform_1(%arg0: i32) -> (i32, i32) {
    %c0_i32 = arith.constant 0 : i32
    %c0_i32_0 = arith.constant 0 : i32
    %c0_i32_1 = arith.constant 0 : i32
    return %c0_i32, %c0_i32_0 : i32, i32
  }
  func.func @transform_2(%arg0: i32) -> (i32, i32) {
    %c0_i32 = arith.constant 0 : i32
    %c0_i32_0 = arith.constant 0 : i32
    %c0_i32_1 = arith.constant 0 : i32
    return %c0_i32, %c0_i32_0 : i32, i32
  }
  func.func @transform_3(%arg0: i32) -> (i32, i32, i32) {
    %c0_i32 = arith.constant 0 : i32
    %c0_i32_0 = arith.constant 0 : i32
    %c0_i32_1 = arith.constant 0 : i32
    %c0_i32_2 = arith.constant 0 : i32
    return %c0_i32, %c0_i32_0, %c0_i32_1 : i32, i32, i32
  }
  func.func @transform_4(%arg0: i32) -> (i32, i32) {
    %c0_i32 = arith.constant 0 : i32
    %c0_i32_0 = arith.constant 0 : i32
    %c0_i32_1 = arith.constant 0 : i32
    return %c0_i32, %c0_i32_0 : i32, i32
  }
  func.func @transform_5(%arg0: i32) -> (i32, i32, i32) {
    %c0_i32 = arith.constant 0 : i32
    %c0_i32_0 = arith.constant 0 : i32
    %c0_i32_1 = arith.constant 0 : i32
    %c0_i32_2 = arith.constant 0 : i32
    return %c0_i32, %c0_i32_0, %c0_i32_1 : i32, i32, i32
  }
  func.func @transform_6(%arg0: i32) -> (i32, i32) {
    %c0_i32 = arith.constant 0 : i32
    %c0_i32_0 = arith.constant 0 : i32
    %c0_i32_1 = arith.constant 0 : i32
    return %c0_i32, %c0_i32_0 : i32, i32
  }
  func.func @transform_7(%arg0: i32) -> (i32, i32, i32) {
    %c0_i32 = arith.constant 0 : i32
    %c0_i32_0 = arith.constant 0 : i32
    %c0_i32_1 = arith.constant 0 : i32
    %c0_i32_2 = arith.constant 0 : i32
    return %c0_i32, %c0_i32_0, %c0_i32_1 : i32, i32, i32
  }
  func.func @transform_8(%arg0: i32) -> (i32, i32) {
    %c0_i32 = arith.constant 0 : i32
    %c0_i32_0 = arith.constant 0 : i32
    %c0_i32_1 = arith.constant 0 : i32
    return %c0_i32, %c0_i32_0 : i32, i32
  }
  func.func @transform_9(%arg0: i32) -> (i32, i32) {
    %c0_i32 = arith.constant 0 : i32
    %c0_i32_0 = arith.constant 0 : i32
    %c0_i32_1 = arith.constant 0 : i32
    return %c0_i32, %c0_i32_0 : i32, i32
  }
  func.func @transform_10(%arg0: i32) -> (i32, i32) {
    %c0_i32 = arith.constant 0 : i32
    %c0_i32_0 = arith.constant 0 : i32
    %c0_i32_1 = arith.constant 0 : i32
    return %c0_i32, %c0_i32_0 : i32, i32
  }
  func.func @transform_11(%arg0: i32) -> (i32, i32, i32) {
    %c0_i32 = arith.constant 0 : i32
    %c0_i32_0 = arith.constant 0 : i32
    %c0_i32_1 = arith.constant 0 : i32
    return %arg0, %c0_i32, %c0_i32_0 : i32, i32, i32
  }
}

</mosaic_0001>

<llo_original>
// kernel: simple_cnn_forward.1
$region0: #{simple_cnn_forward.1}
  #allocation0 [shape = 'u32[]', space=smem, size = 0x4, offset = 0x4, fixed_abs, tag = 'smem constant byte address 0x4 - core index']
  #allocation1 [shape = 'u32[144,128]{1,0:T(1,128)}', space=vmem, size = 0x12000, scoped, tag = 'internal scratch']
  #allocation2 [shape = 'f32[32,32,32]{2,1,0:T(8,128)}', space=vmem, size = 0x80000, scoped, tag = 'scratch operand']
  #allocation3 [shape = 'f32[16,16,64]{2,1,0:T(8,128)}', space=vmem, size = 0x20000, scoped, tag = 'scratch operand']
  #allocation4 [shape = 'f32[8,8,128]{2,1,0:T(8,128)}', space=vmem, size = 0x8000, scoped, tag = 'scratch operand']
  #allocation5 [shape = 'f32[18,18,32]{2,1,0:T(8,128)}', space=vmem, size = 0x36000, scoped, tag = 'scratch operand']
  #allocation6 [shape = 'f32[10,10,64]{2,1,0:T(8,128)}', space=vmem, size = 0x14000, scoped, tag = 'scratch operand']
  %s0 = inlined_call_operand.vmem [shape: bf16[2,1024,27], index: 0, kind: input, shape index: {}]
  %s1 = inlined_call_operand.vmem [shape: bf16[27,32], index: 1, kind: input, shape index: {}]
  %s2 = inlined_call_operand.vmem [shape: f32[1,32], index: 2, kind: input, shape index: {}]
  %s3 = inlined_call_operand.vmem [shape: bf16[9,32,64], index: 3, kind: input, shape index: {}]
  %s4 = inlined_call_operand.vmem [shape: f32[1,64], index: 4, kind: input, shape index: {}]
  %s5 = inlined_call_operand.vmem [shape: bf16[9,64,128], index: 5, kind: input, shape index: {}]
  %s6 = inlined_call_operand.vmem [shape: f32[1,128], index: 6, kind: input, shape index: {}]
  %s7 = inlined_call_operand.vmem [shape: bf16[16,128,256], index: 7, kind: input, shape index: {}]
  %s8 = inlined_call_operand.vmem [shape: f32[1,256], index: 8, kind: input, shape index: {}]
  %s9 = inlined_call_operand.vmem [shape: bf16[256,10], index: 9, kind: input, shape index: {}]
  %s10 = inlined_call_operand.vmem [shape: f32[1,10], index: 10, kind: input, shape index: {}]
  %s11 = inlined_call_operand.hbm [shape: f32[2,1,10], index: 11, kind: output, shape index: {}]
  %s12 = sld [smem:[#allocation0]]
  $region77: #{simple_cnn_forward.1} parent=0
    _
  %s14 = ssub.s32 1, %s12
  %s15 = scalar_select 0, %s14, %s12
  $region1: #{simple_cnn_forward.1} parent=0
    #allocation7 [shape = 'u8[1024]{0}', space=vmem, size = 0x400, scoped, tag = 'output window, operand 0']
    #allocation8 [shape = 's32[2]{0}', space=sflag, size = 0x8, scoped, tag = 'scoped memory for simple_cnn_forward.1']
    %16 = vsyncpa [#allocation8], 0
    %s17 = scalar_lea.sflag [#allocation8], 1
    %18 = vsyncpa %s17, 0
    loop: start=0, step=1, limit=4
    $region2: #{simple_cnn_forward.1} parent=1 // loop_pre_header
      _
    $region3: #{simple_cnn_forward.1} parent=1 // loop_header
      %s20 = sphi 0, %s24
      %p21 = scmp.ge.s32.totalorder %s20, 4
      %s30 = sphi 0, %s32
      %s33 = sphi 0, %s30
      %s34 = sphi 0, %s33
      %s50 = sphi 0, %s34
      %s54 = sphi 0, %s54
      %s56 = sphi 0, %s54
      %s57 = sphi 0, %s56
      %s71 = sphi 0, %s57
      %s75 = sphi 0, %s75
      %s77 = sphi 0, %s75
      %s78 = sphi 0, %s77
      %s92 = sphi 0, %s78
      %s96 = sphi 0, %s96
      %s98 = sphi 0, %s96
      %s99 = sphi 0, %s98
      %s113 = sphi 0, %s99
      %s117 = sphi 0, %s117
      %s119 = sphi 0, %s117
      %s120 = sphi 0, %s119
      %s134 = sphi 0, %s120
      %s138 = sphi 0, %s138
      %s140 = sphi 0, %s138
      %s141 = sphi 0, %s140
      %s155 = sphi 0, %s141
      %s159 = sphi 0, %s159
      %s161 = sphi 0, %s159
      %s162 = sphi 0, %s161
      %s176 = sphi 0, %s162
      %s180 = sphi 0, %s180
      %s182 = sphi 0, %s180
      %s183 = sphi 0, %s182
      %s197 = sphi 0, %s183
      %s201 = sphi 0, %s201
      %s203 = sphi 0, %s201
      %s204 = sphi 0, %s203
      %s218 = sphi 0, %s204
      %s222 = sphi 0, %s222
      %s224 = sphi 0, %s222
      %s225 = sphi 0, %s224
      %s239 = sphi 0, %s225
      %s243 = sphi 0, %s243
      %s245 = sphi 0, %s243
      %s246 = sphi 0, %s245
      %s260 = sphi 0, %s246
      %s266 = sphi 0, %s268
      %s269 = sphi 0, %s266
      %s270 = sphi 0, %s269
      %s286 = sphi 0, %s270
    $region4: #{simple_cnn_forward.1} parent=1 // loop_header_branch
      %23 = sbr.rel (%p21) target = $region8
    $region5: #{simple_cnn_forward.1} parent=1 // loop_body
      %s25 = ssub.s32 %s20, 1
      %s26 = ssub.s32 %s20, 2
      %s27 = sadd.s32 %s20, 1
      %s28 = ssub.s32 %s20, %s27
      %p29 = scmp.eq.s32.totalorder %s28, 0
      %s31 = sadd.s32 %s30, 1
      %s32 = scalar_select %p29, %s30, %s31
      %p35 = pneg %p29
      %p36 = scmp.eq.s32.totalorder %s20, 1
      %p37 = por %p35, %p36
      %p38 = scmp.ne.s32.totalorder %s30, %s33
      %p39 = scmp.eq.s32.totalorder %s20, 0
      %p40 = por %p38, %p39
      %p41 = scmp.ne.s32.totalorder %s30, %s33
      %p42 = scmp.eq.s32.totalorder %s25, 1
      %p43 = por %p41, %p42
      %p44 = scmp.ne.s32.totalorder %s33, %s34
      %p45 = scmp.eq.s32.totalorder %s25, 0
      %p46 = por %p44, %p45
      %p47 = scmp.ne.s32.totalorder %s33, %s34
      %p48 = scmp.eq.s32.totalorder %s26, 1
      %p49 = por %p47, %p48
      %p51 = scmp.ne.s32.totalorder %s34, %s50
      %p52 = scmp.eq.s32.totalorder %s26, 0
      %p53 = por %p51, %p52
      %s55 = sadd.s32 %s54, 1
      %p58 = scmp.eq.s32.totalorder %s20, 1
      %p59 = scmp.ne.s32.totalorder %s54, %s56
      %p60 = scmp.eq.s32.totalorder %s20, 0
      %p61 = por %p59, %p60
      %p62 = scmp.ne.s32.totalorder %s54, %s56
      %p63 = scmp.eq.s32.totalorder %s25, 1
      %p64 = por %p62, %p63
      %p65 = scmp.ne.s32.totalorder %s56, %s57
      %p66 = scmp.eq.s32.totalorder %s25, 0
      %p67 = por %p65, %p66
      %p68 = scmp.ne.s32.totalorder %s56, %s57
      %p69 = scmp.eq.s32.totalorder %s26, 1
      %p70 = por %p68, %p69
      %p72 = scmp.ne.s32.totalorder %s57, %s71
      %p73 = scmp.eq.s32.totalorder %s26, 0
      %p74 = por %p72, %p73
      %s76 = sadd.s32 %s75, 1
      %p79 = scmp.eq.s32.totalorder %s20, 1
      %p80 = scmp.ne.s32.totalorder %s75, %s77
      %p81 = scmp.eq.s32.totalorder %s20, 0
      %p82 = por %p80, %p81
      %p83 = scmp.ne.s32.totalorder %s75, %s77
      %p84 = scmp.eq.s32.totalorder %s25, 1
      %p85 = por %p83, %p84
      %p86 = scmp.ne.s32.totalorder %s77, %s78
      %p87 = scmp.eq.s32.totalorder %s25, 0
      %p88 = por %p86, %p87
      %p89 = scmp.ne.s32.totalorder %s77, %s78
      %p90 = scmp.eq.s32.totalorder %s26, 1
      %p91 = por %p89, %p90
      %p93 = scmp.ne.s32.totalorder %s78, %s92
      %p94 = scmp.eq.s32.totalorder %s26, 0
      %p95 = por %p93, %p94
      %s97 = sadd.s32 %s96, 1
      %p100 = scmp.eq.s32.totalorder %s20, 1
      %p101 = scmp.ne.s32.totalorder %s96, %s98
      %p102 = scmp.eq.s32.totalorder %s20, 0
      %p103 = por %p101, %p102
      %p104 = scmp.ne.s32.totalorder %s96, %s98
      %p105 = scmp.eq.s32.totalorder %s25, 1
      %p106 = por %p104, %p105
      %p107 = scmp.ne.s32.totalorder %s98, %s99
      %p108 = scmp.eq.s32.totalorder %s25, 0
      %p109 = por %p107, %p108
      %p110 = scmp.ne.s32.totalorder %s98, %s99
      %p111 = scmp.eq.s32.totalorder %s26, 1
      %p112 = por %p110, %p111
      %p114 = scmp.ne.s32.totalorder %s99, %s113
      %p115 = scmp.eq.s32.totalorder %s26, 0
      %p116 = por %p114, %p115
      %s118 = sadd.s32 %s117, 1
      %p121 = scmp.eq.s32.totalorder %s20, 1
      %p122 = scmp.ne.s32.totalorder %s117, %s119
      %p123 = scmp.eq.s32.totalorder %s20, 0
      %p124 = por %p122, %p123
      %p125 = scmp.ne.s32.totalorder %s117, %s119
      %p126 = scmp.eq.s32.totalorder %s25, 1
      %p127 = por %p125, %p126
      %p128 = scmp.ne.s32.totalorder %s119, %s120
      %p129 = scmp.eq.s32.totalorder %s25, 0
      %p130 = por %p128, %p129
      %p131 = scmp.ne.s32.totalorder %s119, %s120
      %p132 = scmp.eq.s32.totalorder %s26, 1
      %p133 = por %p131, %p132
      %p135 = scmp.ne.s32.totalorder %s120, %s134
      %p136 = scmp.eq.s32.totalorder %s26, 0
      %p137 = por %p135, %p136
      %s139 = sadd.s32 %s138, 1
      %p142 = scmp.eq.s32.totalorder %s20, 1
      %p143 = scmp.ne.s32.totalorder %s138, %s140
      %p144 = scmp.eq.s32.totalorder %s20, 0
      %p145 = por %p143, %p144
      %p146 = scmp.ne.s32.totalorder %s138, %s140
      %p147 = scmp.eq.s32.totalorder %s25, 1
      %p148 = por %p146, %p147
      %p149 = scmp.ne.s32.totalorder %s140, %s141
      %p150 = scmp.eq.s32.totalorder %s25, 0
      %p151 = por %p149, %p150
      %p152 = scmp.ne.s32.totalorder %s140, %s141
      %p153 = scmp.eq.s32.totalorder %s26, 1
      %p154 = por %p152, %p153
      %p156 = scmp.ne.s32.totalorder %s141, %s155
      %p157 = scmp.eq.s32.totalorder %s26, 0
      %p158 = por %p156, %p157
      %s160 = sadd.s32 %s159, 1
      %p163 = scmp.eq.s32.totalorder %s20, 1
      %p164 = scmp.ne.s32.totalorder %s159, %s161
      %p165 = scmp.eq.s32.totalorder %s20, 0
      %p166 = por %p164, %p165
      %p167 = scmp.ne.s32.totalorder %s159, %s161
      %p168 = scmp.eq.s32.totalorder %s25, 1
      %p169 = por %p167, %p168
      %p170 = scmp.ne.s32.totalorder %s161, %s162
      %p171 = scmp.eq.s32.totalorder %s25, 0
      %p172 = por %p170, %p171
      %p173 = scmp.ne.s32.totalorder %s161, %s162
      %p174 = scmp.eq.s32.totalorder %s26, 1
      %p175 = por %p173, %p174
      %p177 = scmp.ne.s32.totalorder %s162, %s176
      %p178 = scmp.eq.s32.totalorder %s26, 0
      %p179 = por %p177, %p178
      %s181 = sadd.s32 %s180, 1
      %p184 = scmp.eq.s32.totalorder %s20, 1
      %p185 = scmp.ne.s32.totalorder %s180, %s182
      %p186 = scmp.eq.s32.totalorder %s20, 0
      %p187 = por %p185, %p186
      %p188 = scmp.ne.s32.totalorder %s180, %s182
      %p189 = scmp.eq.s32.totalorder %s25, 1
      %p190 = por %p188, %p189
      %p191 = scmp.ne.s32.totalorder %s182, %s183
      %p192 = scmp.eq.s32.totalorder %s25, 0
      %p193 = por %p191, %p192
      %p194 = scmp.ne.s32.totalorder %s182, %s183
      %p195 = scmp.eq.s32.totalorder %s26, 1
      %p196 = por %p194, %p195
      %p198 = scmp.ne.s32.totalorder %s183, %s197
      %p199 = scmp.eq.s32.totalorder %s26, 0
      %p200 = por %p198, %p199
      %s202 = sadd.s32 %s201, 1
      %p205 = scmp.eq.s32.totalorder %s20, 1
      %p206 = scmp.ne.s32.totalorder %s201, %s203
      %p207 = scmp.eq.s32.totalorder %s20, 0
      %p208 = por %p206, %p207
      %p209 = scmp.ne.s32.totalorder %s201, %s203
      %p210 = scmp.eq.s32.totalorder %s25, 1
      %p211 = por %p209, %p210
      %p212 = scmp.ne.s32.totalorder %s203, %s204
      %p213 = scmp.eq.s32.totalorder %s25, 0
      %p214 = por %p212, %p213
      %p215 = scmp.ne.s32.totalorder %s203, %s204
      %p216 = scmp.eq.s32.totalorder %s26, 1
      %p217 = por %p215, %p216
      %p219 = scmp.ne.s32.totalorder %s204, %s218
      %p220 = scmp.eq.s32.totalorder %s26, 0
      %p221 = por %p219, %p220
      %s223 = sadd.s32 %s222, 1
      %p226 = scmp.eq.s32.totalorder %s20, 1
      %p227 = scmp.ne.s32.totalorder %s222, %s224
      %p228 = scmp.eq.s32.totalorder %s20, 0
      %p229 = por %p227, %p228
      %p230 = scmp.ne.s32.totalorder %s222, %s224
      %p231 = scmp.eq.s32.totalorder %s25, 1
      %p232 = por %p230, %p231
      %p233 = scmp.ne.s32.totalorder %s224, %s225
      %p234 = scmp.eq.s32.totalorder %s25, 0
      %p235 = por %p233, %p234
      %p236 = scmp.ne.s32.totalorder %s224, %s225
      %p237 = scmp.eq.s32.totalorder %s26, 1
      %p238 = por %p236, %p237
      %p240 = scmp.ne.s32.totalorder %s225, %s239
      %p241 = scmp.eq.s32.totalorder %s26, 0
      %p242 = por %p240, %p241
      %s244 = sadd.s32 %s243, 1
      %p247 = scmp.eq.s32.totalorder %s20, 1
      %p248 = scmp.ne.s32.totalorder %s243, %s245
      %p249 = scmp.eq.s32.totalorder %s20, 0
      %p250 = por %p248, %p249
      %p251 = scmp.ne.s32.totalorder %s243, %s245
      %p252 = scmp.eq.s32.totalorder %s25, 1
      %p253 = por %p251, %p252
      %p254 = scmp.ne.s32.totalorder %s245, %s246
      %p255 = scmp.eq.s32.totalorder %s25, 0
      %p256 = por %p254, %p255
      %p257 = scmp.ne.s32.totalorder %s245, %s246
      %p258 = scmp.eq.s32.totalorder %s26, 1
      %p259 = por %p257, %p258
      %p261 = scmp.ne.s32.totalorder %s246, %s260
      %p262 = scmp.eq.s32.totalorder %s26, 0
      %p263 = por %p261, %p262
      %s264 = ssub.s32 %s20, %s27
      %p265 = scmp.eq.s32.totalorder %s264, 0
      %s267 = sadd.s32 %s266, 1
      %s268 = scalar_select %p265, %s266, %s267
      %p271 = pneg %p265
      %p272 = scmp.eq.s32.totalorder %s20, 1
      %p273 = por %p271, %p272
      %p274 = scmp.ne.s32.totalorder %s266, %s269
      %p275 = scmp.eq.s32.totalorder %s20, 0
      %p276 = por %p274, %p275
      %p277 = scmp.ne.s32.totalorder %s266, %s269
      %p278 = scmp.eq.s32.totalorder %s25, 1
      %p279 = por %p277, %p278
      %p280 = scmp.ne.s32.totalorder %s269, %s270
      %p281 = scmp.eq.s32.totalorder %s25, 0
      %p282 = por %p280, %p281
      %p283 = scmp.ne.s32.totalorder %s269, %s270
      %p284 = scmp.eq.s32.totalorder %s26, 1
      %p285 = por %p283, %p284
      %p287 = scmp.ne.s32.totalorder %s270, %s286
      %p288 = scmp.eq.s32.totalorder %s26, 0
      %p289 = por %p287, %p288
      %p290 = scmp.le.s32.totalorder 1, %s20
      %p291 = scmp.lt.s32.totalorder %s20, 3
      %p292 = pnand %p290, %p291
      %p293 = pneg %p292
      // Predicated region
      $region9: #{simple_cnn_forward.1} parent=5 // pred_check
        _
      $region10: #{simple_cnn_forward.1} parent=5 // pred_check_branch
        %295 = sbr.rel (%p292) target = $region12
      $region11: #{simple_cnn_forward.1} parent=5 // pred_region
        %s296 = ssub.s32 %s20, 1
        // Predicated region
        $region13: #{simple_cnn_forward.1} parent=11 // pred_check
          %p297 = pneg %p67
        $region14: #{simple_cnn_forward.1} parent=11 // pred_check_branch
          %299 = sbr.rel (%p297) target = $region16
        $region15: #{simple_cnn_forward.1} parent=11 // pred_region
          _
        $region16: #{simple_cnn_forward.1} parent=11 // pred_fallthru
          _
        // Predicated region
        $region17: #{simple_cnn_forward.1} parent=11 // pred_check
          %p300 = pneg %p88
        $region18: #{simple_cnn_forward.1} parent=11 // pred_check_branch
          %302 = sbr.rel (%p300) target = $region20
        $region19: #{simple_cnn_forward.1} parent=11 // pred_region
          _
        $region20: #{simple_cnn_forward.1} parent=11 // pred_fallthru
          _
        // Predicated region
        $region21: #{simple_cnn_forward.1} parent=11 // pred_check
          %p303 = pneg %p109
        $region22: #{simple_cnn_forward.1} parent=11 // pred_check_branch
          %305 = sbr.rel (%p303) target = $region24
        $region23: #{simple_cnn_forward.1} parent=11 // pred_region
          _
        $region24: #{simple_cnn_forward.1} parent=11 // pred_fallthru
          _
        // Predicated region
        $region25: #{simple_cnn_forward.1} parent=11 // pred_check
          %p306 = pneg %p130
        $region26: #{simple_cnn_forward.1} parent=11 // pred_check_branch
          %308 = sbr.rel (%p306) target = $region28
        $region27: #{simple_cnn_forward.1} parent=11 // pred_region
          _
        $region28: #{simple_cnn_forward.1} parent=11 // pred_fallthru
          _
        // Predicated region
        $region29: #{simple_cnn_forward.1} parent=11 // pred_check
          %p309 = pneg %p151
        $region30: #{simple_cnn_forward.1} parent=11 // pred_check_branch
          %311 = sbr.rel (%p309) target = $region32
        $region31: #{simple_cnn_forward.1} parent=11 // pred_region
          _
        $region32: #{simple_cnn_forward.1} parent=11 // pred_fallthru
          _
        // Predicated region
        $region33: #{simple_cnn_forward.1} parent=11 // pred_check
          %p312 = pneg %p172
        $region34: #{simple_cnn_forward.1} parent=11 // pred_check_branch
          %314 = sbr.rel (%p312) target = $region36
        $region35: #{simple_cnn_forward.1} parent=11 // pred_region
          _
        $region36: #{simple_cnn_forward.1} parent=11 // pred_fallthru
          _
        // Predicated region
        $region37: #{simple_cnn_forward.1} parent=11 // pred_check
          %p315 = pneg %p193
        $region38: #{simple_cnn_forward.1} parent=11 // pred_check_branch
          %317 = sbr.rel (%p315) target = $region40
        $region39: #{simple_cnn_forward.1} parent=11 // pred_region
          _
        $region40: #{simple_cnn_forward.1} parent=11 // pred_fallthru
          _
        // Predicated region
        $region41: #{simple_cnn_forward.1} parent=11 // pred_check
          %p318 = pneg %p214
        $region42: #{simple_cnn_forward.1} parent=11 // pred_check_branch
          %320 = sbr.rel (%p318) target = $region44
        $region43: #{simple_cnn_forward.1} parent=11 // pred_region
          _
        $region44: #{simple_cnn_forward.1} parent=11 // pred_fallthru
          _
        // Predicated region
        $region45: #{simple_cnn_forward.1} parent=11 // pred_check
          %p321 = pneg %p235
        $region46: #{simple_cnn_forward.1} parent=11 // pred_check_branch
          %323 = sbr.rel (%p321) target = $region48
        $region47: #{simple_cnn_forward.1} parent=11 // pred_region
          _
        $region48: #{simple_cnn_forward.1} parent=11 // pred_fallthru
          _
        // Predicated region
        $region49: #{simple_cnn_forward.1} parent=11 // pred_check
          %p324 = pneg %p256
        $region50: #{simple_cnn_forward.1} parent=11 // pred_check_branch
          %326 = sbr.rel (%p324) target = $region52
        $region51: #{simple_cnn_forward.1} parent=11 // pred_region
          _
        $region52: #{simple_cnn_forward.1} parent=11 // pred_fallthru
          _
      $region12: #{simple_cnn_forward.1} parent=5 // pred_fallthru
        _
      %p327 = scmp.lt.s32.totalorder %s20, 2
      // Predicated region
      $region53: #{simple_cnn_forward.1} parent=5 // pred_check
        %p328 = pneg %p327
      $region54: #{simple_cnn_forward.1} parent=5 // pred_check_branch
        %330 = sbr.rel (%p328) target = $region56
      $region55: #{simple_cnn_forward.1} parent=5 // pred_region
        // Predicated region
        $region57: #{simple_cnn_forward.1} parent=55 // pred_check
          %p331 = pneg %p40
        $region58: #{simple_cnn_forward.1} parent=55 // pred_check_branch
          %333 = sbr.rel (%p331) target = $region60
        $region59: #{simple_cnn_forward.1} parent=55 // pred_region
          %p334 = scmp.lt.s32.totalorder %s20, 1
          %s335 = scalar_select %p334, %s20, 1
          %s336 = smul.addr %s335, 128
          %s337 = smul.addr %s336, 4
          %s338 = scalar_lea.vmem %s0, %s337
        $region60: #{simple_cnn_forward.1} parent=55 // pred_fallthru
          _
      $region56: #{simple_cnn_forward.1} parent=5 // pred_fallthru
        _
      %p339 = scmp.le.s32.totalorder 1, %s20
      %p340 = scmp.lt.s32.totalorder %s20, 3
      %p341 = pnand %p339, %p340
      %p342 = pneg %p341
      // Predicated region
      $region61: #{simple_cnn_forward.1} parent=5 // pred_check
        _
      $region62: #{simple_cnn_forward.1} parent=5 // pred_check_branch
        %344 = sbr.rel (%p341) target = $region64
      $region63: #{simple_cnn_forward.1} parent=5 // pred_region
        %s345 = ssub.s32 %s20, 1
        %p346 = scmp.lt.s32.totalorder %s25, 1
        %s347 = scalar_select %p346, %s25, 1
        %s348 = smul.addr %s347, 128
        %s349 = smul.addr %s348, 4
        %s350 = scalar_lea.vmem %s0, %s349
        %p351 = pneg %p46
        %p352 = pneg %p43
        %p353 = pneg %p67
        %p354 = pneg %p64
        %p355 = pneg %p88
        %p356 = pneg %p85
        %p357 = pneg %p109
        %p358 = pneg %p106
        %p359 = pneg %p130
        %p360 = pneg %p127
        %p361 = pneg %p151
        %p362 = pneg %p148
        %p363 = pneg %p172
        %p364 = pneg %p169
        %p365 = pneg %p193
        %p366 = pneg %p190
        %p367 = pneg %p214
        %p368 = pneg %p211
        %p369 = pneg %p235
        %p370 = pneg %p232
        %p371 = pneg %p256
        %p372 = pneg %p253
        %p373 = pneg %p282
        %p374 = pneg %p279
        %s375 = sand.u32 %s269, 1
        %s376 = scalar_lea.sflag [#allocation8], %s375
        %s377 = sand.u32 %s269, 1
        %s378 = scalar_lea.vmem [#allocation7], %s377
        %p379 = scmp.lt.s32.totalorder %s25, 1
        %s380 = scalar_select %p379, %s25, 1
        %s381 = smul.addr %s380, 128
        %s382 = smul.addr %s381, 4
        %s383 = scalar_lea.vmem %s0, %s382
        %v385 = vld [vmem:[%s383] sm:$0xf]
        %v386 = vld [vmem:[%s383 + $0x4] sm:$0xf]
        %v387 = vld [vmem:[%s383 + $0x8] sm:$0xf]
        %v388 = vld [vmem:[%s383 + $0xc] sm:$0xf]
        %v389 = vld [vmem:[%s383 + $0x10] sm:$0xf]
        %v390 = vld [vmem:[%s383 + $0x14] sm:$0xf]
        %v391 = vld [vmem:[%s383 + $0x18] sm:$0xf]
        %v392 = vld [vmem:[%s383 + $0x1c] sm:$0xf]
        %v393 = vld [vmem:[%s383 + $0x20] sm:$0xf]
        %v394 = vld [vmem:[%s383 + $0x24] sm:$0xf]
        %v395 = vld [vmem:[%s383 + $0x28] sm:$0xf]
        %v396 = vld [vmem:[%s383 + $0x2c] sm:$0xf]
        %v397 = vld [vmem:[%s383 + $0x30] sm:$0xf]
        %v398 = vld [vmem:[%s383 + $0x34] sm:$0xf]
        %v399 = vld [vmem:[%s383 + $0x38] sm:$0xf]
        %v400 = vld [vmem:[%s383 + $0x3c] sm:$0xf]
        %v401 = vld [vmem:[%s383 + $0x40] sm:$0xf]
        %v402 = vld [vmem:[%s383 + $0x44] sm:$0xf]
        %v403 = vld [vmem:[%s383 + $0x48] sm:$0xf]
        %v404 = vld [vmem:[%s383 + $0x4c] sm:$0xf]
        %v405 = vld [vmem:[%s383 + $0x50] sm:$0xf]
        %v406 = vld [vmem:[%s383 + $0x54] sm:$0xf]
        %v407 = vld [vmem:[%s383 + $0x58] sm:$0xf]
        %v408 = vld [vmem:[%s383 + $0x5c] sm:$0xf]
        %v409 = vld [vmem:[%s383 + $0x60] sm:$0xf]
        %v410 = vld [vmem:[%s383 + $0x64] sm:$0xf]
        %v411 = vld [vmem:[%s383 + $0x68] sm:$0xf]
        %v412 = vld [vmem:[%s383 + $0x6c] sm:$0xf]
        %v413 = vld [vmem:[%s383 + $0x70] sm:$0xf]
        %v414 = vld [vmem:[%s383 + $0x74] sm:$0xf]
        %v415 = vld [vmem:[%s383 + $0x78] sm:$0xf]
        %v416 = vld [vmem:[%s383 + $0x7c] sm:$0xf]
        %v417 = vld [vmem:[%s383 + $0x80] sm:$0xf]
        %v418 = vld [vmem:[%s383 + $0x84] sm:$0xf]
        %v419 = vld [vmem:[%s383 + $0x88] sm:$0xf]
        %v420 = vld [vmem:[%s383 + $0x8c] sm:$0xf]
        %v421 = vld [vmem:[%s383 + $0x90] sm:$0xf]
        %v422 = vld [vmem:[%s383 + $0x94] sm:$0xf]
        %v423 = vld [vmem:[%s383 + $0x98] sm:$0xf]
        %v424 = vld [vmem:[%s383 + $0x9c] sm:$0xf]
        %v425 = vld [vmem:[%s383 + $0xa0] sm:$0xf]
        %v426 = vld [vmem:[%s383 + $0xa4] sm:$0xf]
        %v427 = vld [vmem:[%s383 + $0xa8] sm:$0xf]
        %v428 = vld [vmem:[%s383 + $0xac] sm:$0xf]
        %v429 = vld [vmem:[%s383 + $0xb0] sm:$0xf]
        %v430 = vld [vmem:[%s383 + $0xb4] sm:$0xf]
        %v431 = vld [vmem:[%s383 + $0xb8] sm:$0xf]
        %v432 = vld [vmem:[%s383 + $0xbc] sm:$0xf]
        %v433 = vld [vmem:[%s383 + $0xc0] sm:$0xf]
        %v434 = vld [vmem:[%s383 + $0xc4] sm:$0xf]
        %v435 = vld [vmem:[%s383 + $0xc8] sm:$0xf]
        %v436 = vld [vmem:[%s383 + $0xcc] sm:$0xf]
        %v437 = vld [vmem:[%s383 + $0xd0] sm:$0xf]
        %v438 = vld [vmem:[%s383 + $0xd4] sm:$0xf]
        %v439 = vld [vmem:[%s383 + $0xd8] sm:$0xf]
        %v440 = vld [vmem:[%s383 + $0xdc] sm:$0xf]
        %v441 = vld [vmem:[%s383 + $0xe0] sm:$0xf]
        %v442 = vld [vmem:[%s383 + $0xe4] sm:$0xf]
        %v443 = vld [vmem:[%s383 + $0xe8] sm:$0xf]
        %v444 = vld [vmem:[%s383 + $0xec] sm:$0xf]
        %v445 = vld [vmem:[%s383 + $0xf0] sm:$0xf]
        %v446 = vld [vmem:[%s383 + $0xf4] sm:$0xf]
        %v447 = vld [vmem:[%s383 + $0xf8] sm:$0xf]
        %v448 = vld [vmem:[%s383 + $0xfc] sm:$0xf]
        %v449 = vld [vmem:[%s383 + $0x100] sm:$0xf]
        %v450 = vld [vmem:[%s383 + $0x104] sm:$0xf]
        %v451 = vld [vmem:[%s383 + $0x108] sm:$0xf]
        %v452 = vld [vmem:[%s383 + $0x10c] sm:$0xf]
        %v453 = vld [vmem:[%s383 + $0x110] sm:$0xf]
        %v454 = vld [vmem:[%s383 + $0x114] sm:$0xf]
        %v455 = vld [vmem:[%s383 + $0x118] sm:$0xf]
        %v456 = vld [vmem:[%s383 + $0x11c] sm:$0xf]
        %v457 = vld [vmem:[%s383 + $0x120] sm:$0xf]
        %v458 = vld [vmem:[%s383 + $0x124] sm:$0xf]
        %v459 = vld [vmem:[%s383 + $0x128] sm:$0xf]
        %v460 = vld [vmem:[%s383 + $0x12c] sm:$0xf]
        %v461 = vld [vmem:[%s383 + $0x130] sm:$0xf]
        %v462 = vld [vmem:[%s383 + $0x134] sm:$0xf]
        %v463 = vld [vmem:[%s383 + $0x138] sm:$0xf]
        %v464 = vld [vmem:[%s383 + $0x13c] sm:$0xf]
        %v465 = vld [vmem:[%s383 + $0x140] sm:$0xf]
        %v466 = vld [vmem:[%s383 + $0x144] sm:$0xf]
        %v467 = vld [vmem:[%s383 + $0x148] sm:$0xf]
        %v468 = vld [vmem:[%s383 + $0x14c] sm:$0xf]
        %v469 = vld [vmem:[%s383 + $0x150] sm:$0xf]
        %v470 = vld [vmem:[%s383 + $0x154] sm:$0xf]
        %v471 = vld [vmem:[%s383 + $0x158] sm:$0xf]
        %v472 = vld [vmem:[%s383 + $0x15c] sm:$0xf]
        %v473 = vld [vmem:[%s383 + $0x160] sm:$0xf]
        %v474 = vld [vmem:[%s383 + $0x164] sm:$0xf]
        %v475 = vld [vmem:[%s383 + $0x168] sm:$0xf]
        %v476 = vld [vmem:[%s383 + $0x16c] sm:$0xf]
        %v477 = vld [vmem:[%s383 + $0x170] sm:$0xf]
        %v478 = vld [vmem:[%s383 + $0x174] sm:$0xf]
        %v479 = vld [vmem:[%s383 + $0x178] sm:$0xf]
        %v480 = vld [vmem:[%s383 + $0x17c] sm:$0xf]
        %v481 = vld [vmem:[%s383 + $0x180] sm:$0xf]
        %v482 = vld [vmem:[%s383 + $0x184] sm:$0xf]
        %v483 = vld [vmem:[%s383 + $0x188] sm:$0xf]
        %v484 = vld [vmem:[%s383 + $0x18c] sm:$0xf]
        %v485 = vld [vmem:[%s383 + $0x190] sm:$0xf]
        %v486 = vld [vmem:[%s383 + $0x194] sm:$0xf]
        %v487 = vld [vmem:[%s383 + $0x198] sm:$0xf]
        %v488 = vld [vmem:[%s383 + $0x19c] sm:$0xf]
        %v489 = vld [vmem:[%s383 + $0x1a0] sm:$0xf]
        %v490 = vld [vmem:[%s383 + $0x1a4] sm:$0xf]
        %v491 = vld [vmem:[%s383 + $0x1a8] sm:$0xf]
        %v492 = vld [vmem:[%s383 + $0x1ac] sm:$0xf]
        %v493 = vld [vmem:[%s383 + $0x1b0] sm:$0xf]
        %v494 = vld [vmem:[%s383 + $0x1b4] sm:$0xf]
        %v495 = vld [vmem:[%s383 + $0x1b8] sm:$0xf]
        %v496 = vld [vmem:[%s383 + $0x1bc] sm:$0xf]
        %v497 = vld [vmem:[%s383 + $0x1c0] sm:$0xf]
        %v498 = vld [vmem:[%s383 + $0x1c4] sm:$0xf]
        %v499 = vld [vmem:[%s383 + $0x1c8] sm:$0xf]
        %v500 = vld [vmem:[%s383 + $0x1cc] sm:$0xf]
        %v501 = vld [vmem:[%s383 + $0x1d0] sm:$0xf]
        %v502 = vld [vmem:[%s383 + $0x1d4] sm:$0xf]
        %v503 = vld [vmem:[%s383 + $0x1d8] sm:$0xf]
        %v504 = vld [vmem:[%s383 + $0x1dc] sm:$0xf]
        %v505 = vld [vmem:[%s383 + $0x1e0] sm:$0xf]
        %v506 = vld [vmem:[%s383 + $0x1e4] sm:$0xf]
        %v507 = vld [vmem:[%s383 + $0x1e8] sm:$0xf]
        %v508 = vld [vmem:[%s383 + $0x1ec] sm:$0xf]
        %v509 = vld [vmem:[%s383 + $0x1f0] sm:$0xf]
        %v510 = vld [vmem:[%s383 + $0x1f4] sm:$0xf]
        %v511 = vld [vmem:[%s383 + $0x1f8] sm:$0xf]
        %v512 = vld [vmem:[%s383 + $0x1fc] sm:$0xf]
        %v513 = vld [vmem:[%s1] sm:$0xf]
        %v514 = vld [vmem:[%s1 + $0x4] sm:$0xf]
        %v515 = vld [vmem:[%s1 + $0x8] sm:$0xf]
        %v516 = vld [vmem:[%s1 + $0xc] sm:$0x3]
        %v517 = vld [vmem:[%s2] sm:$0x1]
        %v519 = vlaneseq
        %v520 = vshrl.u32 %v519, 7
        %v521 = vsub.s32 0, %v520
        %v522 = vrot.slane %v517, %v521
        %v652 = vunpack.c.l.b16 %v385
        %v653 = vunpack.c.l.b16 %v386
        %v654 = vunpack.c.l.b16 %v387
        %v655 = vunpack.c.l.b16 %v388
        %v656 = vunpack.c.l.b16 %v389
        %v657 = vunpack.c.l.b16 %v390
        %v658 = vunpack.c.l.b16 %v391
        %v659 = vunpack.c.l.b16 %v392
        %v660 = vunpack.c.l.b16 %v393
        %v661 = vunpack.c.l.b16 %v394
        %v662 = vunpack.c.l.b16 %v395
        %v663 = vunpack.c.l.b16 %v396
        %v664 = vunpack.c.l.b16 %v397
        %v665 = vunpack.c.l.b16 %v398
        %v666 = vunpack.c.l.b16 %v399
        %v667 = vunpack.c.l.b16 %v400
        %v668 = vunpack.c.l.b16 %v401
        %v669 = vunpack.c.l.b16 %v402
        %v670 = vunpack.c.l.b16 %v403
        %v671 = vunpack.c.l.b16 %v404
        %v672 = vunpack.c.l.b16 %v405
        %v673 = vunpack.c.l.b16 %v406
        %v674 = vunpack.c.l.b16 %v407
        %v675 = vunpack.c.l.b16 %v408
        %v676 = vunpack.c.l.b16 %v409
        %v677 = vunpack.c.l.b16 %v410
        %v678 = vunpack.c.l.b16 %v411
        %v679 = vunpack.c.l.b16 %v412
        %v680 = vunpack.c.l.b16 %v413
        %v681 = vunpack.c.l.b16 %v414
        %v682 = vunpack.c.l.b16 %v415
        %v683 = vunpack.c.l.b16 %v416
        %v684 = vunpack.c.l.b16 %v417
        %v685 = vunpack.c.l.b16 %v418
        %v686 = vunpack.c.l.b16 %v419
        %v687 = vunpack.c.l.b16 %v420
        %v688 = vunpack.c.l.b16 %v421
        %v689 = vunpack.c.l.b16 %v422
        %v690 = vunpack.c.l.b16 %v423
        %v691 = vunpack.c.l.b16 %v424
        %v692 = vunpack.c.l.b16 %v425
        %v693 = vunpack.c.l.b16 %v426
        %v694 = vunpack.c.l.b16 %v427
        %v695 = vunpack.c.l.b16 %v428
        %v696 = vunpack.c.l.b16 %v429
        %v697 = vunpack.c.l.b16 %v430
        %v698 = vunpack.c.l.b16 %v431
        %v699 = vunpack.c.l.b16 %v432
        %v700 = vunpack.c.l.b16 %v433
        %v701 = vunpack.c.l.b16 %v434
        %v702 = vunpack.c.l.b16 %v435
        %v703 = vunpack.c.l.b16 %v436
        %v704 = vunpack.c.l.b16 %v437
        %v705 = vunpack.c.l.b16 %v438
        %v706 = vunpack.c.l.b16 %v439
        %v707 = vunpack.c.l.b16 %v440
        %v708 = vunpack.c.l.b16 %v441
        %v709 = vunpack.c.l.b16 %v442
        %v710 = vunpack.c.l.b16 %v443
        %v711 = vunpack.c.l.b16 %v444
        %v712 = vunpack.c.l.b16 %v445
        %v713 = vunpack.c.l.b16 %v446
        %v714 = vunpack.c.l.b16 %v447
        %v715 = vunpack.c.l.b16 %v448
        %v716 = vunpack.c.l.b16 %v449
        %v717 = vunpack.c.l.b16 %v450
        %v718 = vunpack.c.l.b16 %v451
        %v719 = vunpack.c.l.b16 %v452
        %v720 = vunpack.c.l.b16 %v453
        %v721 = vunpack.c.l.b16 %v454
        %v722 = vunpack.c.l.b16 %v455
        %v723 = vunpack.c.l.b16 %v456
        %v724 = vunpack.c.l.b16 %v457
        %v725 = vunpack.c.l.b16 %v458
        %v726 = vunpack.c.l.b16 %v459
        %v727 = vunpack.c.l.b16 %v460
        %v728 = vunpack.c.l.b16 %v461
        %v729 = vunpack.c.l.b16 %v462
        %v730 = vunpack.c.l.b16 %v463
        %v731 = vunpack.c.l.b16 %v464
        %v732 = vunpack.c.l.b16 %v465
        %v733 = vunpack.c.l.b16 %v466
        %v734 = vunpack.c.l.b16 %v467
        %v735 = vunpack.c.l.b16 %v468
        %v736 = vunpack.c.l.b16 %v469
        %v737 = vunpack.c.l.b16 %v470
        %v738 = vunpack.c.l.b16 %v471
        %v739 = vunpack.c.l.b16 %v472
        %v740 = vunpack.c.l.b16 %v473
        %v741 = vunpack.c.l.b16 %v474
        %v742 = vunpack.c.l.b16 %v475
        %v743 = vunpack.c.l.b16 %v476
        %v744 = vunpack.c.l.b16 %v477
        %v745 = vunpack.c.l.b16 %v478
        %v746 = vunpack.c.l.b16 %v479
        %v747 = vunpack.c.l.b16 %v480
        %v748 = vunpack.c.l.b16 %v481
        %v749 = vunpack.c.l.b16 %v482
        %v750 = vunpack.c.l.b16 %v483
        %v751 = vunpack.c.l.b16 %v484
        %v752 = vunpack.c.l.b16 %v485
        %v753 = vunpack.c.l.b16 %v486
        %v754 = vunpack.c.l.b16 %v487
        %v755 = vunpack.c.l.b16 %v488
        %v756 = vunpack.c.l.b16 %v489
        %v757 = vunpack.c.l.b16 %v490
        %v758 = vunpack.c.l.b16 %v491
        %v759 = vunpack.c.l.b16 %v492
        %v760 = vunpack.c.l.b16 %v493
        %v761 = vunpack.c.l.b16 %v494
        %v762 = vunpack.c.l.b16 %v495
        %v763 = vunpack.c.l.b16 %v496
        %v764 = vunpack.c.l.b16 %v497
        %v765 = vunpack.c.l.b16 %v498
        %v766 = vunpack.c.l.b16 %v499
        %v767 = vunpack.c.l.b16 %v500
        %v768 = vunpack.c.l.b16 %v501
        %v769 = vunpack.c.l.b16 %v502
        %v770 = vunpack.c.l.b16 %v503
        %v771 = vunpack.c.l.b16 %v504
        %v772 = vunpack.c.l.b16 %v505
        %v773 = vunpack.c.l.b16 %v506
        %v774 = vunpack.c.l.b16 %v507
        %v775 = vunpack.c.l.b16 %v508
        %v776 = vunpack.c.l.b16 %v509
        %v777 = vunpack.c.l.b16 %v510
        %v778 = vunpack.c.l.b16 %v511
        %v779 = vunpack.c.l.b16 %v512
        %v780 = vpack.c.b16 %v653, %v652
        %v781 = vpack.c.b16 %v655, %v654
        %v782 = vpack.c.b16 %v657, %v656
        %v783 = vpack.c.b16 %v659, %v658
        %v784 = vpack.c.b16 %v661, %v660
        %v785 = vpack.c.b16 %v663, %v662
        %v786 = vpack.c.b16 %v665, %v664
        %v787 = vpack.c.b16 %v667, %v666
        %v788 = vpack.c.b16 %v669, %v668
        %v789 = vpack.c.b16 %v671, %v670
        %v790 = vpack.c.b16 %v673, %v672
        %v791 = vpack.c.b16 %v675, %v674
        %v792 = vpack.c.b16 %v677, %v676
        %v793 = vpack.c.b16 %v679, %v678
        %v794 = vpack.c.b16 %v681, %v680
        %v795 = vpack.c.b16 %v683, %v682
        %v796 = vpack.c.b16 %v685, %v684
        %v797 = vpack.c.b16 %v687, %v686
        %v798 = vpack.c.b16 %v689, %v688
        %v799 = vpack.c.b16 %v691, %v690
        %v800 = vpack.c.b16 %v693, %v692
        %v801 = vpack.c.b16 %v695, %v694
        %v802 = vpack.c.b16 %v697, %v696
        %v803 = vpack.c.b16 %v699, %v698
        %v804 = vpack.c.b16 %v701, %v700
        %v805 = vpack.c.b16 %v703, %v702
        %v806 = vpack.c.b16 %v705, %v704
        %v807 = vpack.c.b16 %v707, %v706
        %v808 = vpack.c.b16 %v709, %v708
        %v809 = vpack.c.b16 %v711, %v710
        %v810 = vpack.c.b16 %v713, %v712
        %v811 = vpack.c.b16 %v715, %v714
        %v812 = vpack.c.b16 %v717, %v716
        %v813 = vpack.c.b16 %v719, %v718
        %v814 = vpack.c.b16 %v721, %v720
        %v815 = vpack.c.b16 %v723, %v722
        %v816 = vpack.c.b16 %v725, %v724
        %v817 = vpack.c.b16 %v727, %v726
        %v818 = vpack.c.b16 %v729, %v728
        %v819 = vpack.c.b16 %v731, %v730
        %v820 = vpack.c.b16 %v733, %v732
        %v821 = vpack.c.b16 %v735, %v734
        %v822 = vpack.c.b16 %v737, %v736
        %v823 = vpack.c.b16 %v739, %v738
        %v824 = vpack.c.b16 %v741, %v740
        %v825 = vpack.c.b16 %v743, %v742
        %v826 = vpack.c.b16 %v745, %v744
        %v827 = vpack.c.b16 %v747, %v746
        %v828 = vpack.c.b16 %v749, %v748
        %v829 = vpack.c.b16 %v751, %v750
        %v830 = vpack.c.b16 %v753, %v752
        %v831 = vpack.c.b16 %v755, %v754
        %v832 = vpack.c.b16 %v757, %v756
        %v833 = vpack.c.b16 %v759, %v758
        %v834 = vpack.c.b16 %v761, %v760
        %v835 = vpack.c.b16 %v763, %v762
        %v836 = vpack.c.b16 %v765, %v764
        %v837 = vpack.c.b16 %v767, %v766
        %v838 = vpack.c.b16 %v769, %v768
        %v839 = vpack.c.b16 %v771, %v770
        %v840 = vpack.c.b16 %v773, %v772
        %v841 = vpack.c.b16 %v775, %v774
        %v842 = vpack.c.b16 %v777, %v776
        %v843 = vpack.c.b16 %v779, %v778
        %v848 = vunpack.c.l.b16 %v513
        %v849 = vunpack.c.l.b16 %v514
        %v850 = vunpack.c.l.b16 %v515
        %v851 = vunpack.c.l.b16 %v516
        %v852 = vpack.c.b16 %v849, %v848
        %v853 = vpack.c.b16 %v851, %v850
        %vm855 = vcmask 220160
        %v857 = vsel %vm855, %v780, 0
        %v860 = vsel %vm855, %v781, 0
        %v863 = vsel %vm855, %v782, 0
        %v866 = vsel %vm855, %v783, 0
        %v869 = vsel %vm855, %v784, 0
        %v872 = vsel %vm855, %v785, 0
        %v875 = vsel %vm855, %v786, 0
        %v878 = vsel %vm855, %v787, 0
        %v881 = vsel %vm855, %v788, 0
        %v884 = vsel %vm855, %v789, 0
        %v887 = vsel %vm855, %v790, 0
        %v890 = vsel %vm855, %v791, 0
        %v893 = vsel %vm855, %v792, 0
        %v896 = vsel %vm855, %v793, 0
        %v899 = vsel %vm855, %v794, 0
        %v902 = vsel %vm855, %v795, 0
        %v905 = vsel %vm855, %v796, 0
        %v908 = vsel %vm855, %v797, 0
        %v911 = vsel %vm855, %v798, 0
        %v914 = vsel %vm855, %v799, 0
        %v917 = vsel %vm855, %v800, 0
        %v920 = vsel %vm855, %v801, 0
        %v923 = vsel %vm855, %v802, 0
        %v926 = vsel %vm855, %v803, 0
        %v929 = vsel %vm855, %v804, 0
        %v932 = vsel %vm855, %v805, 0
        %v935 = vsel %vm855, %v806, 0
        %v938 = vsel %vm855, %v807, 0
        %v941 = vsel %vm855, %v808, 0
        %v944 = vsel %vm855, %v809, 0
        %v947 = vsel %vm855, %v810, 0
        %v950 = vsel %vm855, %v811, 0
        %v953 = vsel %vm855, %v812, 0
        %v956 = vsel %vm855, %v813, 0
        %v959 = vsel %vm855, %v814, 0
        %v962 = vsel %vm855, %v815, 0
        %v965 = vsel %vm855, %v816, 0
        %v968 = vsel %vm855, %v817, 0
        %v971 = vsel %vm855, %v818, 0
        %v974 = vsel %vm855, %v819, 0
        %v977 = vsel %vm855, %v820, 0
        %v980 = vsel %vm855, %v821, 0
        %v983 = vsel %vm855, %v822, 0
        %v986 = vsel %vm855, %v823, 0
        %v989 = vsel %vm855, %v824, 0
        %v992 = vsel %vm855, %v825, 0
        %v995 = vsel %vm855, %v826, 0
        %v998 = vsel %vm855, %v827, 0
        %v1001 = vsel %vm855, %v828, 0
        %v1004 = vsel %vm855, %v829, 0
        %v1007 = vsel %vm855, %v830, 0
        %v1010 = vsel %vm855, %v831, 0
        %v1013 = vsel %vm855, %v832, 0
        %v1016 = vsel %vm855, %v833, 0
        %v1019 = vsel %vm855, %v834, 0
        %v1022 = vsel %vm855, %v835, 0
        %v1025 = vsel %vm855, %v836, 0
        %v1028 = vsel %vm855, %v837, 0
        %v1031 = vsel %vm855, %v838, 0
        %v1034 = vsel %vm855, %v839, 0
        %v1037 = vsel %vm855, %v840, 0
        %v1040 = vsel %vm855, %v841, 0
        %v1043 = vsel %vm855, %v842, 0
        %v1046 = vsel %vm855, %v843, 0
        %vm1048 = vcmask 1044480
        %vm1049 = vcmask 1045504
        %v1050 = vsel %vm1048, 4294967295, 65535
        %v1051 = vsel %vm1049, %v1050, 0
        %v1053 = vand.u32 %v853, %v1051
        %1055 = vmatprep.subr.bf16.mxu0 0
        %1056 = vmatpush1.bf16.msra.mxu0 %v852
        %1057 = vmatprep.subr.bf16.mxu0 0
        %1058 = vmatpush1.bf16.msra.mxu0 %v1053
        %1059 = vmatprep.subr.bf16.mxu0 0
        %1060 = vmatpush1.bf16.msra.mxu0 0
        %1061 = vmatprep.subr.bf16.mxu0 0
        %1062 = vmatpush1.bf16.msra.mxu0 0
        %1063 = vmatprep.subr.bf16.mxu0 0
        %1064 = vmatpush1.bf16.msra.mxu0 0
        %1065 = vmatprep.subr.bf16.mxu0 0
        %1066 = vmatpush1.bf16.msra.mxu0 0
        %1067 = vmatprep.subr.bf16.mxu0 0
        %1068 = vmatpush1.bf16.msra.mxu0 0
        %1069 = vmatprep.subr.bf16.mxu0 0
        %1070 = vmatpush1.bf16.msra.mxu0 0
        %1071 = vmatprep.subr.bf16.mxu0 0
        %1072 = vmatpush1.bf16.msra.mxu0 0
        %1073 = vmatprep.subr.bf16.mxu0 0
        %1074 = vmatpush1.bf16.msra.mxu0 0
        %1075 = vmatprep.subr.bf16.mxu0 0
        %1076 = vmatpush1.bf16.msra.mxu0 0
        %1077 = vmatprep.subr.bf16.mxu0 0
        %1078 = vmatpush1.bf16.msra.mxu0 0
        %1079 = vmatprep.subr.bf16.mxu0 0
        %1080 = vmatpush1.bf16.msra.mxu0 0
        %1081 = vmatprep.subr.bf16.mxu0 0
        %1082 = vmatpush1.bf16.msra.mxu0 0
        %1083 = vmatprep.subr.bf16.mxu0 0
        %1084 = vmatpush1.bf16.msra.mxu0 0
        %1085 = vmatprep.subr.bf16.mxu0 0
        %1086 = vmatpush1.bf16.msra.mxu0 0
        %1087 = vmatprep.mubr.bf16.mxu0 0
        %1088 = vmatmul.mubr.bf16.gmra.mrb[0].mxu0 %v857
        %v1089 = vpop.f32.mrb[0].mxu0
        %v1090 = vadd.f32 %v522, %v1089
        %v1091 = vpop.f32.mrb[0].mxu0
        %v1092 = vpop.f32.mrb[0].mxu0
        %v1093 = vadd.f32 %v522, %v1092
        %v1094 = vpop.f32.mrb[0].mxu0
        %1095 = vmatprep.mubr.bf16.mxu0 0
        %1096 = vmatmul.mubr.bf16.gmra.mrb[0].mxu0 %v860
        %v1097 = vpop.f32.mrb[0].mxu0
        %v1098 = vadd.f32 %v522, %v1097
        %v1099 = vpop.f32.mrb[0].mxu0
        %v1100 = vpop.f32.mrb[0].mxu0
        %v1101 = vadd.f32 %v522, %v1100
        %v1102 = vpop.f32.mrb[0].mxu0
        %1103 = vmatprep.mubr.bf16.mxu0 0
        %1104 = vmatmul.mubr.bf16.gmra.mrb[0].mxu0 %v863
        %v1105 = vpop.f32.mrb[0].mxu0
        %v1106 = vadd.f32 %v522, %v1105
        %v1107 = vpop.f32.mrb[0].mxu0
        %v1108 = vpop.f32.mrb[0].mxu0
        %v1109 = vadd.f32 %v522, %v1108
        %v1110 = vpop.f32.mrb[0].mxu0
        %1111 = vmatprep.mubr.bf16.mxu0 0
        %1112 = vmatmul.mubr.bf16.gmra.mrb[0].mxu0 %v866
        %v1113 = vpop.f32.mrb[0].mxu0
        %v1114 = vadd.f32 %v522, %v1113
        %v1115 = vpop.f32.mrb[0].mxu0
        %v1116 = vpop.f32.mrb[0].mxu0
        %v1117 = vadd.f32 %v522, %v1116
        %v1118 = vpop.f32.mrb[0].mxu0
        %1119 = vmatprep.mubr.bf16.mxu0 0
        %1120 = vmatmul.mubr.bf16.gmra.mrb[0].mxu0 %v869
        %v1121 = vpop.f32.mrb[0].mxu0
        %v1122 = vadd.f32 %v522, %v1121
        %v1123 = vpop.f32.mrb[0].mxu0
        %v1124 = vpop.f32.mrb[0].mxu0
        %v1125 = vadd.f32 %v522, %v1124
        %v1126 = vpop.f32.mrb[0].mxu0
        %1127 = vmatprep.mubr.bf16.mxu0 0
        %1128 = vmatmul.mubr.bf16.gmra.mrb[0].mxu0 %v872
        %v1129 = vpop.f32.mrb[0].mxu0
        %v1130 = vadd.f32 %v522, %v1129
        %v1131 = vpop.f32.mrb[0].mxu0
        %v1132 = vpop.f32.mrb[0].mxu0
        %v1133 = vadd.f32 %v522, %v1132
        %v1134 = vpop.f32.mrb[0].mxu0
        %1135 = vmatprep.mubr.bf16.mxu0 0
        %1136 = vmatmul.mubr.bf16.gmra.mrb[0].mxu0 %v875
        %v1137 = vpop.f32.mrb[0].mxu0
        %v1138 = vadd.f32 %v522, %v1137
        %v1139 = vpop.f32.mrb[0].mxu0
        %v1140 = vpop.f32.mrb[0].mxu0
        %v1141 = vadd.f32 %v522, %v1140
        %v1142 = vpop.f32.mrb[0].mxu0
        %1143 = vmatprep.mubr.bf16.mxu0 0
        %1144 = vmatmul.mubr.bf16.gmra.mrb[0].mxu0 %v878
        %v1145 = vpop.f32.mrb[0].mxu0
        %v1146 = vadd.f32 %v522, %v1145
        %v1147 = vpop.f32.mrb[0].mxu0
        %v1148 = vpop.f32.mrb[0].mxu0
        %v1149 = vadd.f32 %v522, %v1148
        %v1150 = vpop.f32.mrb[0].mxu0
        %1151 = vmatprep.mubr.bf16.mxu0 0
        %1152 = vmatmul.mubr.bf16.gmra.mrb[0].mxu0 %v881
        %v1153 = vpop.f32.mrb[0].mxu0
        %v1154 = vadd.f32 %v522, %v1153
        %v1155 = vpop.f32.mrb[0].mxu0
        %v1156 = vpop.f32.mrb[0].mxu0
        %v1157 = vadd.f32 %v522, %v1156
        %v1158 = vpop.f32.mrb[0].mxu0
        %1159 = vmatprep.mubr.bf16.mxu0 0
        %1160 = vmatmul.mubr.bf16.gmra.mrb[0].mxu0 %v884
        %v1161 = vpop.f32.mrb[0].mxu0
        %v1162 = vadd.f32 %v522, %v1161
        %v1163 = vpop.f32.mrb[0].mxu0
        %v1164 = vpop.f32.mrb[0].mxu0
        %v1165 = vadd.f32 %v522, %v1164
        %v1166 = vpop.f32.mrb[0].mxu0
        %1167 = vmatprep.mubr.bf16.mxu0 0
        %1168 = vmatmul.mubr.bf16.gmra.mrb[0].mxu0 %v887
        %v1169 = vpop.f32.mrb[0].mxu0
        %v1170 = vadd.f32 %v522, %v1169
        %v1171 = vpop.f32.mrb[0].mxu0
        %v1172 = vpop.f32.mrb[0].mxu0
        %v1173 = vadd.f32 %v522, %v1172
        %v1174 = vpop.f32.mrb[0].mxu0
        %1175 = vmatprep.mubr.bf16.mxu0 0
        %1176 = vmatmul.mubr.bf16.gmra.mrb[0].mxu0 %v890
        %v1177 = vpop.f32.mrb[0].mxu0
        %v1178 = vadd.f32 %v522, %v1177
        %v1179 = vpop.f32.mrb[0].mxu0
        %v1180 = vpop.f32.mrb[0].mxu0
        %v1181 = vadd.f32 %v522, %v1180
        %v1182 = vpop.f32.mrb[0].mxu0
        %1183 = vmatprep.mubr.bf16.mxu0 0
        %1184 = vmatmul.mubr.bf16.gmra.mrb[0].mxu0 %v893
        %v1185 = vpop.f32.mrb[0].mxu0
        %v1186 = vadd.f32 %v522, %v1185
        %v1187 = vpop.f32.mrb[0].mxu0
        %v1188 = vpop.f32.mrb[0].mxu0
        %v1189 = vadd.f32 %v522, %v1188
        %v1190 = vpop.f32.mrb[0].mxu0
        %1191 = vmatprep.mubr.bf16.mxu0 0
        %1192 = vmatmul.mubr.bf16.gmra.mrb[0].mxu0 %v896
        %v1193 = vpop.f32.mrb[0].mxu0
        %v1194 = vadd.f32 %v522, %v1193
        %v1195 = vpop.f32.mrb[0].mxu0
        %v1196 = vpop.f32.mrb[0].mxu0
        %v1197 = vadd.f32 %v522, %v1196
        %v1198 = vpop.f32.mrb[0].mxu0
        %1199 = vmatprep.mubr.bf16.mxu0 0
        %1200 = vmatmul.mubr.bf16.gmra.mrb[0].mxu0 %v899
        %v1201 = vpop.f32.mrb[0].mxu0
        %v1202 = vadd.f32 %v522, %v1201
        %v1203 = vpop.f32.mrb[0].mxu0
        %v1204 = vpop.f32.mrb[0].mxu0
        %v1205 = vadd.f32 %v522, %v1204
        %v1206 = vpop.f32.mrb[0].mxu0
        %1207 = vmatprep.mubr.bf16.mxu0 0
        %1208 = vmatmul.mubr.bf16.gmra.mrb[0].mxu0 %v902
        %v1209 = vpop.f32.mrb[0].mxu0
        %v1210 = vadd.f32 %v522, %v1209
        %v1211 = vpop.f32.mrb[0].mxu0
        %v1212 = vpop.f32.mrb[0].mxu0
        %v1213 = vadd.f32 %v522, %v1212
        %v1214 = vpop.f32.mrb[0].mxu0
        %1215 = vmatprep.mubr.bf16.mxu0 0
        %1216 = vmatmul.mubr.bf16.gmra.mrb[0].mxu0 %v905
        %v1217 = vpop.f32.mrb[0].mxu0
        %v1218 = vadd.f32 %v522, %v1217
        %v1219 = vpop.f32.mrb[0].mxu0
        %v1220 = vpop.f32.mrb[0].mxu0
        %v1221 = vadd.f32 %v522, %v1220
        %v1222 = vpop.f32.mrb[0].mxu0
        %1223 = vmatprep.mubr.bf16.mxu0 0
        %1224 = vmatmul.mubr.bf16.gmra.mrb[0].mxu0 %v908
        %v1225 = vpop.f32.mrb[0].mxu0
        %v1226 = vadd.f32 %v522, %v1225
        %v1227 = vpop.f32.mrb[0].mxu0
        %v1228 = vpop.f32.mrb[0].mxu0
        %v1229 = vadd.f32 %v522, %v1228
        %v1230 = vpop.f32.mrb[0].mxu0
        %1231 = vmatprep.mubr.bf16.mxu0 0
        %1232 = vmatmul.mubr.bf16.gmra.mrb[0].mxu0 %v911
        %v1233 = vpop.f32.mrb[0].mxu0
        %v1234 = vadd.f32 %v522, %v1233
        %v1235 = vpop.f32.mrb[0].mxu0
        %v1236 = vpop.f32.mrb[0].mxu0
        %v1237 = vadd.f32 %v522, %v1236
        %v1238 = vpop.f32.mrb[0].mxu0
        %1239 = vmatprep.mubr.bf16.mxu0 0
        %1240 = vmatmul.mubr.bf16.gmra.mrb[0].mxu0 %v914
        %v1241 = vpop.f32.mrb[0].mxu0
        %v1242 = vadd.f32 %v522, %v1241
        %v1243 = vpop.f32.mrb[0].mxu0
        %v1244 = vpop.f32.mrb[0].mxu0
        %v1245 = vadd.f32 %v522, %v1244
        %v1246 = vpop.f32.mrb[0].mxu0
        %1247 = vmatprep.mubr.bf16.mxu0 0
        %1248 = vmatmul.mubr.bf16.gmra.mrb[0].mxu0 %v917
        %v1249 = vpop.f32.mrb[0].mxu0
        %v1250 = vadd.f32 %v522, %v1249
        %v1251 = vpop.f32.mrb[0].mxu0
        %v1252 = vpop.f32.mrb[0].mxu0
        %v1253 = vadd.f32 %v522, %v1252
        %v1254 = vpop.f32.mrb[0].mxu0
        %1255 = vmatprep.mubr.bf16.mxu0 0
        %1256 = vmatmul.mubr.bf16.gmra.mrb[0].mxu0 %v920
        %v1257 = vpop.f32.mrb[0].mxu0
        %v1258 = vadd.f32 %v522, %v1257
        %v1259 = vpop.f32.mrb[0].mxu0
        %v1260 = vpop.f32.mrb[0].mxu0
        %v1261 = vadd.f32 %v522, %v1260
        %v1262 = vpop.f32.mrb[0].mxu0
        %1263 = vmatprep.mubr.bf16.mxu0 0
        %1264 = vmatmul.mubr.bf16.gmra.mrb[0].mxu0 %v923
        %v1265 = vpop.f32.mrb[0].mxu0
        %v1266 = vadd.f32 %v522, %v1265
        %v1267 = vpop.f32.mrb[0].mxu0
        %v1268 = vpop.f32.mrb[0].mxu0
        %v1269 = vadd.f32 %v522, %v1268
        %v1270 = vpop.f32.mrb[0].mxu0
        %1271 = vmatprep.mubr.bf16.mxu0 0
        %1272 = vmatmul.mubr.bf16.gmra.mrb[0].mxu0 %v926
        %v1273 = vpop.f32.mrb[0].mxu0
        %v1274 = vadd.f32 %v522, %v1273
        %v1275 = vpop.f32.mrb[0].mxu0
        %v1276 = vpop.f32.mrb[0].mxu0
        %v1277 = vadd.f32 %v522, %v1276
        %v1278 = vpop.f32.mrb[0].mxu0
        %1279 = vmatprep.mubr.bf16.mxu0 0
        %1280 = vmatmul.mubr.bf16.gmra.mrb[0].mxu0 %v929
        %v1281 = vpop.f32.mrb[0].mxu0
        %v1282 = vadd.f32 %v522, %v1281
        %v1283 = vpop.f32.mrb[0].mxu0
        %v1284 = vpop.f32.mrb[0].mxu0
        %v1285 = vadd.f32 %v522, %v1284
        %v1286 = vpop.f32.mrb[0].mxu0
        %1287 = vmatprep.mubr.bf16.mxu0 0
        %1288 = vmatmul.mubr.bf16.gmra.mrb[0].mxu0 %v932
        %v1289 = vpop.f32.mrb[0].mxu0
        %v1290 = vadd.f32 %v522, %v1289
        %v1291 = vpop.f32.mrb[0].mxu0
        %v1292 = vpop.f32.mrb[0].mxu0
        %v1293 = vadd.f32 %v522, %v1292
        %v1294 = vpop.f32.mrb[0].mxu0
        %1295 = vmatprep.mubr.bf16.mxu0 0
        %1296 = vmatmul.mubr.bf16.gmra.mrb[0].mxu0 %v935
        %v1297 = vpop.f32.mrb[0].mxu0
        %v1298 = vadd.f32 %v522, %v1297
        %v1299 = vpop.f32.mrb[0].mxu0
        %v1300 = vpop.f32.mrb[0].mxu0
        %v1301 = vadd.f32 %v522, %v1300
        %v1302 = vpop.f32.mrb[0].mxu0
        %1303 = vmatprep.mubr.bf16.mxu0 0
        %1304 = vmatmul.mubr.bf16.gmra.mrb[0].mxu0 %v938
        %v1305 = vpop.f32.mrb[0].mxu0
        %v1306 = vadd.f32 %v522, %v1305
        %v1307 = vpop.f32.mrb[0].mxu0
        %v1308 = vpop.f32.mrb[0].mxu0
        %v1309 = vadd.f32 %v522, %v1308
        %v1310 = vpop.f32.mrb[0].mxu0
        %1311 = vmatprep.mubr.bf16.mxu0 0
        %1312 = vmatmul.mubr.bf16.gmra.mrb[0].mxu0 %v941
        %v1313 = vpop.f32.mrb[0].mxu0
        %v1314 = vadd.f32 %v522, %v1313
        %v1315 = vpop.f32.mrb[0].mxu0
        %v1316 = vpop.f32.mrb[0].mxu0
        %v1317 = vadd.f32 %v522, %v1316
        %v1318 = vpop.f32.mrb[0].mxu0
        %1319 = vmatprep.mubr.bf16.mxu0 0
        %1320 = vmatmul.mubr.bf16.gmra.mrb[0].mxu0 %v944
        %v1321 = vpop.f32.mrb[0].mxu0
        %v1322 = vadd.f32 %v522, %v1321
        %v1323 = vpop.f32.mrb[0].mxu0
        %v1324 = vpop.f32.mrb[0].mxu0
        %v1325 = vadd.f32 %v522, %v1324
        %v1326 = vpop.f32.mrb[0].mxu0
        %1327 = vmatprep.mubr.bf16.mxu0 0
        %1328 = vmatmul.mubr.bf16.gmra.mrb[0].mxu0 %v947
        %v1329 = vpop.f32.mrb[0].mxu0
        %v1330 = vadd.f32 %v522, %v1329
        %v1331 = vpop.f32.mrb[0].mxu0
        %v1332 = vpop.f32.mrb[0].mxu0
        %v1333 = vadd.f32 %v522, %v1332
        %v1334 = vpop.f32.mrb[0].mxu0
        %1335 = vmatprep.mubr.bf16.mxu0 0
        %1336 = vmatmul.mubr.bf16.gmra.mrb[0].mxu0 %v950
        %v1337 = vpop.f32.mrb[0].mxu0
        %v1338 = vadd.f32 %v522, %v1337
        %v1339 = vpop.f32.mrb[0].mxu0
        %v1340 = vpop.f32.mrb[0].mxu0
        %v1341 = vadd.f32 %v522, %v1340
        %v1342 = vpop.f32.mrb[0].mxu0
        %1343 = vmatprep.mubr.bf16.mxu0 0
        %1344 = vmatmul.mubr.bf16.gmra.mrb[0].mxu0 %v953
        %v1345 = vpop.f32.mrb[0].mxu0
        %v1346 = vadd.f32 %v522, %v1345
        %v1347 = vpop.f32.mrb[0].mxu0
        %v1348 = vpop.f32.mrb[0].mxu0
        %v1349 = vadd.f32 %v522, %v1348
        %v1350 = vpop.f32.mrb[0].mxu0
        %1351 = vmatprep.mubr.bf16.mxu0 0
        %1352 = vmatmul.mubr.bf16.gmra.mrb[0].mxu0 %v956
        %v1353 = vpop.f32.mrb[0].mxu0
        %v1354 = vadd.f32 %v522, %v1353
        %v1355 = vpop.f32.mrb[0].mxu0
        %v1356 = vpop.f32.mrb[0].mxu0
        %v1357 = vadd.f32 %v522, %v1356
        %v1358 = vpop.f32.mrb[0].mxu0
        %1359 = vmatprep.mubr.bf16.mxu0 0
        %1360 = vmatmul.mubr.bf16.gmra.mrb[0].mxu0 %v959
        %v1361 = vpop.f32.mrb[0].mxu0
        %v1362 = vadd.f32 %v522, %v1361
        %v1363 = vpop.f32.mrb[0].mxu0
        %v1364 = vpop.f32.mrb[0].mxu0
        %v1365 = vadd.f32 %v522, %v1364
        %v1366 = vpop.f32.mrb[0].mxu0
        %1367 = vmatprep.mubr.bf16.mxu0 0
        %1368 = vmatmul.mubr.bf16.gmra.mrb[0].mxu0 %v962
        %v1369 = vpop.f32.mrb[0].mxu0
        %v1370 = vadd.f32 %v522, %v1369
        %v1371 = vpop.f32.mrb[0].mxu0
        %v1372 = vpop.f32.mrb[0].mxu0
        %v1373 = vadd.f32 %v522, %v1372
        %v1374 = vpop.f32.mrb[0].mxu0
        %1375 = vmatprep.mubr.bf16.mxu0 0
        %1376 = vmatmul.mubr.bf16.gmra.mrb[0].mxu0 %v965
        %v1377 = vpop.f32.mrb[0].mxu0
        %v1378 = vadd.f32 %v522, %v1377
        %v1379 = vpop.f32.mrb[0].mxu0
        %v1380 = vpop.f32.mrb[0].mxu0
        %v1381 = vadd.f32 %v522, %v1380
        %v1382 = vpop.f32.mrb[0].mxu0
        %1383 = vmatprep.mubr.bf16.mxu0 0
        %1384 = vmatmul.mubr.bf16.gmra.mrb[0].mxu0 %v968
        %v1385 = vpop.f32.mrb[0].mxu0
        %v1386 = vadd.f32 %v522, %v1385
        %v1387 = vpop.f32.mrb[0].mxu0
        %v1388 = vpop.f32.mrb[0].mxu0
        %v1389 = vadd.f32 %v522, %v1388
        %v1390 = vpop.f32.mrb[0].mxu0
        %1391 = vmatprep.mubr.bf16.mxu0 0
        %1392 = vmatmul.mubr.bf16.gmra.mrb[0].mxu0 %v971
        %v1393 = vpop.f32.mrb[0].mxu0
        %v1394 = vadd.f32 %v522, %v1393
        %v1395 = vpop.f32.mrb[0].mxu0
        %v1396 = vpop.f32.mrb[0].mxu0
        %v1397 = vadd.f32 %v522, %v1396
        %v1398 = vpop.f32.mrb[0].mxu0
        %1399 = vmatprep.mubr.bf16.mxu0 0
        %1400 = vmatmul.mubr.bf16.gmra.mrb[0].mxu0 %v974
        %v1401 = vpop.f32.mrb[0].mxu0
        %v1402 = vadd.f32 %v522, %v1401
        %v1403 = vpop.f32.mrb[0].mxu0
        %v1404 = vpop.f32.mrb[0].mxu0
        %v1405 = vadd.f32 %v522, %v1404
        %v1406 = vpop.f32.mrb[0].mxu0
        %1407 = vmatprep.mubr.bf16.mxu0 0
        %1408 = vmatmul.mubr.bf16.gmra.mrb[0].mxu0 %v977
        %v1409 = vpop.f32.mrb[0].mxu0
        %v1410 = vadd.f32 %v522, %v1409
        %v1411 = vpop.f32.mrb[0].mxu0
        %v1412 = vpop.f32.mrb[0].mxu0
        %v1413 = vadd.f32 %v522, %v1412
        %v1414 = vpop.f32.mrb[0].mxu0
        %1415 = vmatprep.mubr.bf16.mxu0 0
        %1416 = vmatmul.mubr.bf16.gmra.mrb[0].mxu0 %v980
        %v1417 = vpop.f32.mrb[0].mxu0
        %v1418 = vadd.f32 %v522, %v1417
        %v1419 = vpop.f32.mrb[0].mxu0
        %v1420 = vpop.f32.mrb[0].mxu0
        %v1421 = vadd.f32 %v522, %v1420
        %v1422 = vpop.f32.mrb[0].mxu0
        %1423 = vmatprep.mubr.bf16.mxu0 0
        %1424 = vmatmul.mubr.bf16.gmra.mrb[0].mxu0 %v983
        %v1425 = vpop.f32.mrb[0].mxu0
        %v1426 = vadd.f32 %v522, %v1425
        %v1427 = vpop.f32.mrb[0].mxu0
        %v1428 = vpop.f32.mrb[0].mxu0
        %v1429 = vadd.f32 %v522, %v1428
        %v1430 = vpop.f32.mrb[0].mxu0
        %1431 = vmatprep.mubr.bf16.mxu0 0
        %1432 = vmatmul.mubr.bf16.gmra.mrb[0].mxu0 %v986
        %v1433 = vpop.f32.mrb[0].mxu0
        %v1434 = vadd.f32 %v522, %v1433
        %v1435 = vpop.f32.mrb[0].mxu0
        %v1436 = vpop.f32.mrb[0].mxu0
        %v1437 = vadd.f32 %v522, %v1436
        %v1438 = vpop.f32.mrb[0].mxu0
        %1439 = vmatprep.mubr.bf16.mxu0 0
        %1440 = vmatmul.mubr.bf16.gmra.mrb[0].mxu0 %v989
        %v1441 = vpop.f32.mrb[0].mxu0
        %v1442 = vadd.f32 %v522, %v1441
        %v1443 = vpop.f32.mrb[0].mxu0
        %v1444 = vpop.f32.mrb[0].mxu0
        %v1445 = vadd.f32 %v522, %v1444
        %v1446 = vpop.f32.mrb[0].mxu0
        %1447 = vmatprep.mubr.bf16.mxu0 0
        %1448 = vmatmul.mubr.bf16.gmra.mrb[0].mxu0 %v992
        %v1449 = vpop.f32.mrb[0].mxu0
        %v1450 = vadd.f32 %v522, %v1449
        %v1451 = vpop.f32.mrb[0].mxu0
        %v1452 = vpop.f32.mrb[0].mxu0
        %v1453 = vadd.f32 %v522, %v1452
        %v1454 = vpop.f32.mrb[0].mxu0
        %1455 = vmatprep.mubr.bf16.mxu0 0
        %1456 = vmatmul.mubr.bf16.gmra.mrb[0].mxu0 %v995
        %v1457 = vpop.f32.mrb[0].mxu0
        %v1458 = vadd.f32 %v522, %v1457
        %v1459 = vpop.f32.mrb[0].mxu0
        %v1460 = vpop.f32.mrb[0].mxu0
        %v1461 = vadd.f32 %v522, %v1460
        %v1462 = vpop.f32.mrb[0].mxu0
        %1463 = vmatprep.mubr.bf16.mxu0 0
        %1464 = vmatmul.mubr.bf16.gmra.mrb[0].mxu0 %v998
        %v1465 = vpop.f32.mrb[0].mxu0
        %v1466 = vadd.f32 %v522, %v1465
        %v1467 = vpop.f32.mrb[0].mxu0
        %v1468 = vpop.f32.mrb[0].mxu0
        %v1469 = vadd.f32 %v522, %v1468
        %v1470 = vpop.f32.mrb[0].mxu0
        %1471 = vmatprep.mubr.bf16.mxu0 0
        %1472 = vmatmul.mubr.bf16.gmra.mrb[0].mxu0 %v1001
        %v1473 = vpop.f32.mrb[0].mxu0
        %v1474 = vadd.f32 %v522, %v1473
        %v1475 = vpop.f32.mrb[0].mxu0
        %v1476 = vpop.f32.mrb[0].mxu0
        %v1477 = vadd.f32 %v522, %v1476
        %v1478 = vpop.f32.mrb[0].mxu0
        %1479 = vmatprep.mubr.bf16.mxu0 0
        %1480 = vmatmul.mubr.bf16.gmra.mrb[0].mxu0 %v1004
        %v1481 = vpop.f32.mrb[0].mxu0
        %v1482 = vadd.f32 %v522, %v1481
        %v1483 = vpop.f32.mrb[0].mxu0
        %v1484 = vpop.f32.mrb[0].mxu0
        %v1485 = vadd.f32 %v522, %v1484
        %v1486 = vpop.f32.mrb[0].mxu0
        %1487 = vmatprep.mubr.bf16.mxu0 0
        %1488 = vmatmul.mubr.bf16.gmra.mrb[0].mxu0 %v1007
        %v1489 = vpop.f32.mrb[0].mxu0
        %v1490 = vadd.f32 %v522, %v1489
        %v1491 = vpop.f32.mrb[0].mxu0
        %v1492 = vpop.f32.mrb[0].mxu0
        %v1493 = vadd.f32 %v522, %v1492
        %v1494 = vpop.f32.mrb[0].mxu0
        %1495 = vmatprep.mubr.bf16.mxu0 0
        %1496 = vmatmul.mubr.bf16.gmra.mrb[0].mxu0 %v1010
        %v1497 = vpop.f32.mrb[0].mxu0
        %v1498 = vadd.f32 %v522, %v1497
        %v1499 = vpop.f32.mrb[0].mxu0
        %v1500 = vpop.f32.mrb[0].mxu0
        %v1501 = vadd.f32 %v522, %v1500
        %v1502 = vpop.f32.mrb[0].mxu0
        %1503 = vmatprep.mubr.bf16.mxu0 0
        %1504 = vmatmul.mubr.bf16.gmra.mrb[0].mxu0 %v1013
        %v1505 = vpop.f32.mrb[0].mxu0
        %v1506 = vadd.f32 %v522, %v1505
        %v1507 = vpop.f32.mrb[0].mxu0
        %v1508 = vpop.f32.mrb[0].mxu0
        %v1509 = vadd.f32 %v522, %v1508
        %v1510 = vpop.f32.mrb[0].mxu0
        %1511 = vmatprep.mubr.bf16.mxu0 0
        %1512 = vmatmul.mubr.bf16.gmra.mrb[0].mxu0 %v1016
        %v1513 = vpop.f32.mrb[0].mxu0
        %v1514 = vadd.f32 %v522, %v1513
        %v1515 = vpop.f32.mrb[0].mxu0
        %v1516 = vpop.f32.mrb[0].mxu0
        %v1517 = vadd.f32 %v522, %v1516
        %v1518 = vpop.f32.mrb[0].mxu0
        %1519 = vmatprep.mubr.bf16.mxu0 0
        %1520 = vmatmul.mubr.bf16.gmra.mrb[0].mxu0 %v1019
        %v1521 = vpop.f32.mrb[0].mxu0
        %v1522 = vadd.f32 %v522, %v1521
        %v1523 = vpop.f32.mrb[0].mxu0
        %v1524 = vpop.f32.mrb[0].mxu0
        %v1525 = vadd.f32 %v522, %v1524
        %v1526 = vpop.f32.mrb[0].mxu0
        %1527 = vmatprep.mubr.bf16.mxu0 0
        %1528 = vmatmul.mubr.bf16.gmra.mrb[0].mxu0 %v1022
        %v1529 = vpop.f32.mrb[0].mxu0
        %v1530 = vadd.f32 %v522, %v1529
        %v1531 = vpop.f32.mrb[0].mxu0
        %v1532 = vpop.f32.mrb[0].mxu0
        %v1533 = vadd.f32 %v522, %v1532
        %v1534 = vpop.f32.mrb[0].mxu0
        %1535 = vmatprep.mubr.bf16.mxu0 0
        %1536 = vmatmul.mubr.bf16.gmra.mrb[0].mxu0 %v1025
        %v1537 = vpop.f32.mrb[0].mxu0
        %v1538 = vadd.f32 %v522, %v1537
        %v1539 = vpop.f32.mrb[0].mxu0
        %v1540 = vpop.f32.mrb[0].mxu0
        %v1541 = vadd.f32 %v522, %v1540
        %v1542 = vpop.f32.mrb[0].mxu0
        %1543 = vmatprep.mubr.bf16.mxu0 0
        %1544 = vmatmul.mubr.bf16.gmra.mrb[0].mxu0 %v1028
        %v1545 = vpop.f32.mrb[0].mxu0
        %v1546 = vadd.f32 %v522, %v1545
        %v1547 = vpop.f32.mrb[0].mxu0
        %v1548 = vpop.f32.mrb[0].mxu0
        %v1549 = vadd.f32 %v522, %v1548
        %v1550 = vpop.f32.mrb[0].mxu0
        %1551 = vmatprep.mubr.bf16.mxu0 0
        %1552 = vmatmul.mubr.bf16.gmra.mrb[0].mxu0 %v1031
        %v1553 = vpop.f32.mrb[0].mxu0
        %v1554 = vadd.f32 %v522, %v1553
        %v1555 = vpop.f32.mrb[0].mxu0
        %v1556 = vpop.f32.mrb[0].mxu0
        %v1557 = vadd.f32 %v522, %v1556
        %v1558 = vpop.f32.mrb[0].mxu0
        %1559 = vmatprep.mubr.bf16.mxu0 0
        %1560 = vmatmul.mubr.bf16.gmra.mrb[0].mxu0 %v1034
        %v1561 = vpop.f32.mrb[0].mxu0
        %v1562 = vadd.f32 %v522, %v1561
        %v1563 = vpop.f32.mrb[0].mxu0
        %v1564 = vpop.f32.mrb[0].mxu0
        %v1565 = vadd.f32 %v522, %v1564
        %v1566 = vpop.f32.mrb[0].mxu0
        %1567 = vmatprep.mubr.bf16.mxu0 0
        %1568 = vmatmul.mubr.bf16.gmra.mrb[0].mxu0 %v1037
        %v1569 = vpop.f32.mrb[0].mxu0
        %v1570 = vadd.f32 %v522, %v1569
        %v1571 = vpop.f32.mrb[0].mxu0
        %v1572 = vpop.f32.mrb[0].mxu0
        %v1573 = vadd.f32 %v522, %v1572
        %v1574 = vpop.f32.mrb[0].mxu0
        %1575 = vmatprep.mubr.bf16.mxu0 0
        %1576 = vmatmul.mubr.bf16.gmra.mrb[0].mxu0 %v1040
        %v1577 = vpop.f32.mrb[0].mxu0
        %v1578 = vadd.f32 %v522, %v1577
        %v1579 = vpop.f32.mrb[0].mxu0
        %v1580 = vpop.f32.mrb[0].mxu0
        %v1581 = vadd.f32 %v522, %v1580
        %v1582 = vpop.f32.mrb[0].mxu0
        %1583 = vmatprep.mubr.bf16.mxu0 0
        %1584 = vmatmul.mubr.bf16.gmra.mrb[0].mxu0 %v1043
        %v1585 = vpop.f32.mrb[0].mxu0
        %v1586 = vadd.f32 %v522, %v1585
        %v1587 = vpop.f32.mrb[0].mxu0
        %v1588 = vpop.f32.mrb[0].mxu0
        %v1589 = vadd.f32 %v522, %v1588
        %v1590 = vpop.f32.mrb[0].mxu0
        %1591 = vmatprep.mubr.bf16.mxu0 0
        %1592 = vmatmul.mubr.bf16.gmra.mrb[0].mxu0 %v1046
        %v1593 = vpop.f32.mrb[0].mxu0
        %v1594 = vadd.f32 %v522, %v1593
        %v1595 = vpop.f32.mrb[0].mxu0
        %v1596 = vpop.f32.mrb[0].mxu0
        %v1597 = vadd.f32 %v522, %v1596
        %v1598 = vpop.f32.mrb[0].mxu0
        %1599 = vdwg.mxu0
        %v1600 = vmax.f32 %v1090, 0.0
        %v1601 = vmax.f32 %v1093, 0.0
        %v1602 = vmax.f32 %v1098, 0.0
        %v1603 = vmax.f32 %v1101, 0.0
        %v1604 = vmax.f32 %v1106, 0.0
        %v1605 = vmax.f32 %v1109, 0.0
        %v1606 = vmax.f32 %v1114, 0.0
        %v1607 = vmax.f32 %v1117, 0.0
        %v1608 = vmax.f32 %v1122, 0.0
        %v1609 = vmax.f32 %v1125, 0.0
        %v1610 = vmax.f32 %v1130, 0.0
        %v1611 = vmax.f32 %v1133, 0.0
        %v1612 = vmax.f32 %v1138, 0.0
        %v1613 = vmax.f32 %v1141, 0.0
        %v1614 = vmax.f32 %v1146, 0.0
        %v1615 = vmax.f32 %v1149, 0.0
        %v1616 = vmax.f32 %v1154, 0.0
        %v1617 = vmax.f32 %v1157, 0.0
        %v1618 = vmax.f32 %v1162, 0.0
        %v1619 = vmax.f32 %v1165, 0.0
        %v1620 = vmax.f32 %v1170, 0.0
        %v1621 = vmax.f32 %v1173, 0.0
        %v1622 = vmax.f32 %v1178, 0.0
        %v1623 = vmax.f32 %v1181, 0.0
        %v1624 = vmax.f32 %v1186, 0.0
        %v1625 = vmax.f32 %v1189, 0.0
        %v1626 = vmax.f32 %v1194, 0.0
        %v1627 = vmax.f32 %v1197, 0.0
        %v1628 = vmax.f32 %v1202, 0.0
        %v1629 = vmax.f32 %v1205, 0.0
        %v1630 = vmax.f32 %v1210, 0.0
        %v1631 = vmax.f32 %v1213, 0.0
        %v1632 = vmax.f32 %v1218, 0.0
        %v1633 = vmax.f32 %v1221, 0.0
        %v1634 = vmax.f32 %v1226, 0.0
        %v1635 = vmax.f32 %v1229, 0.0
        %v1636 = vmax.f32 %v1234, 0.0
        %v1637 = vmax.f32 %v1237, 0.0
        %v1638 = vmax.f32 %v1242, 0.0
        %v1639 = vmax.f32 %v1245, 0.0
        %v1640 = vmax.f32 %v1250, 0.0
        %v1641 = vmax.f32 %v1253, 0.0
        %v1642 = vmax.f32 %v1258, 0.0
        %v1643 = vmax.f32 %v1261, 0.0
        %v1644 = vmax.f32 %v1266, 0.0
        %v1645 = vmax.f32 %v1269, 0.0
        %v1646 = vmax.f32 %v1274, 0.0
        %v1647 = vmax.f32 %v1277, 0.0
        %v1648 = vmax.f32 %v1282, 0.0
        %v1649 = vmax.f32 %v1285, 0.0
        %v1650 = vmax.f32 %v1290, 0.0
        %v1651 = vmax.f32 %v1293, 0.0
        %v1652 = vmax.f32 %v1298, 0.0
        %v1653 = vmax.f32 %v1301, 0.0
        %v1654 = vmax.f32 %v1306, 0.0
        %v1655 = vmax.f32 %v1309, 0.0
        %v1656 = vmax.f32 %v1314, 0.0
        %v1657 = vmax.f32 %v1317, 0.0
        %v1658 = vmax.f32 %v1322, 0.0
        %v1659 = vmax.f32 %v1325, 0.0
        %v1660 = vmax.f32 %v1330, 0.0
        %v1661 = vmax.f32 %v1333, 0.0
        %v1662 = vmax.f32 %v1338, 0.0
        %v1663 = vmax.f32 %v1341, 0.0
        %v1664 = vmax.f32 %v1346, 0.0
        %v1665 = vmax.f32 %v1349, 0.0
        %v1666 = vmax.f32 %v1354, 0.0
        %v1667 = vmax.f32 %v1357, 0.0
        %v1668 = vmax.f32 %v1362, 0.0
        %v1669 = vmax.f32 %v1365, 0.0
        %v1670 = vmax.f32 %v1370, 0.0
        %v1671 = vmax.f32 %v1373, 0.0
        %v1672 = vmax.f32 %v1378, 0.0
        %v1673 = vmax.f32 %v1381, 0.0
        %v1674 = vmax.f32 %v1386, 0.0
        %v1675 = vmax.f32 %v1389, 0.0
        %v1676 = vmax.f32 %v1394, 0.0
        %v1677 = vmax.f32 %v1397, 0.0
        %v1678 = vmax.f32 %v1402, 0.0
        %v1679 = vmax.f32 %v1405, 0.0
        %v1680 = vmax.f32 %v1410, 0.0
        %v1681 = vmax.f32 %v1413, 0.0
        %v1682 = vmax.f32 %v1418, 0.0
        %v1683 = vmax.f32 %v1421, 0.0
        %v1684 = vmax.f32 %v1426, 0.0
        %v1685 = vmax.f32 %v1429, 0.0
        %v1686 = vmax.f32 %v1434, 0.0
        %v1687 = vmax.f32 %v1437, 0.0
        %v1688 = vmax.f32 %v1442, 0.0
        %v1689 = vmax.f32 %v1445, 0.0
        %v1690 = vmax.f32 %v1450, 0.0
        %v1691 = vmax.f32 %v1453, 0.0
        %v1692 = vmax.f32 %v1458, 0.0
        %v1693 = vmax.f32 %v1461, 0.0
        %v1694 = vmax.f32 %v1466, 0.0
        %v1695 = vmax.f32 %v1469, 0.0
        %v1696 = vmax.f32 %v1474, 0.0
        %v1697 = vmax.f32 %v1477, 0.0
        %v1698 = vmax.f32 %v1482, 0.0
        %v1699 = vmax.f32 %v1485, 0.0
        %v1700 = vmax.f32 %v1490, 0.0
        %v1701 = vmax.f32 %v1493, 0.0
        %v1702 = vmax.f32 %v1498, 0.0
        %v1703 = vmax.f32 %v1501, 0.0
        %v1704 = vmax.f32 %v1506, 0.0
        %v1705 = vmax.f32 %v1509, 0.0
        %v1706 = vmax.f32 %v1514, 0.0
        %v1707 = vmax.f32 %v1517, 0.0
        %v1708 = vmax.f32 %v1522, 0.0
        %v1709 = vmax.f32 %v1525, 0.0
        %v1710 = vmax.f32 %v1530, 0.0
        %v1711 = vmax.f32 %v1533, 0.0
        %v1712 = vmax.f32 %v1538, 0.0
        %v1713 = vmax.f32 %v1541, 0.0
        %v1714 = vmax.f32 %v1546, 0.0
        %v1715 = vmax.f32 %v1549, 0.0
        %v1716 = vmax.f32 %v1554, 0.0
        %v1717 = vmax.f32 %v1557, 0.0
        %v1718 = vmax.f32 %v1562, 0.0
        %v1719 = vmax.f32 %v1565, 0.0
        %v1720 = vmax.f32 %v1570, 0.0
        %v1721 = vmax.f32 %v1573, 0.0
        %v1722 = vmax.f32 %v1578, 0.0
        %v1723 = vmax.f32 %v1581, 0.0
        %v1724 = vmax.f32 %v1586, 0.0
        %v1725 = vmax.f32 %v1589, 0.0
        %v1726 = vmax.f32 %v1594, 0.0
        %v1727 = vmax.f32 %v1597, 0.0
        %vm1728 = vcmask 261120
        %1729 = vst.msk [vmem:[#allocation2] sm:$0xff] %vm1728, %v1600
        %1730 = vst.msk [vmem:[#allocation2 + $0x8] sm:$0xff] %vm1728, %v1601
        %1731 = vst.msk [vmem:[#allocation2 + $0x10] sm:$0xff] %vm1728, %v1602
        %1732 = vst.msk [vmem:[#allocation2 + $0x18] sm:$0xff] %vm1728, %v1603
        %1733 = vst.msk [vmem:[#allocation2 + $0x20] sm:$0xff] %vm1728, %v1604
        %1734 = vst.msk [vmem:[#allocation2 + $0x28] sm:$0xff] %vm1728, %v1605
        %1735 = vst.msk [vmem:[#allocation2 + $0x30] sm:$0xff] %vm1728, %v1606
        %1736 = vst.msk [vmem:[#allocation2 + $0x38] sm:$0xff] %vm1728, %v1607
        %1737 = vst.msk [vmem:[#allocation2 + $0x40] sm:$0xff] %vm1728, %v1608
        %1738 = vst.msk [vmem:[#allocation2 + $0x48] sm:$0xff] %vm1728, %v1609
        %1739 = vst.msk [vmem:[#allocation2 + $0x50] sm:$0xff] %vm1728, %v1610
        %1740 = vst.msk [vmem:[#allocation2 + $0x58] sm:$0xff] %vm1728, %v1611
        %1741 = vst.msk [vmem:[#allocation2 + $0x60] sm:$0xff] %vm1728, %v1612
        %1742 = vst.msk [vmem:[#allocation2 + $0x68] sm:$0xff] %vm1728, %v1613
        %1743 = vst.msk [vmem:[#allocation2 + $0x70] sm:$0xff] %vm1728, %v1614
        %1744 = vst.msk [vmem:[#allocation2 + $0x78] sm:$0xff] %vm1728, %v1615
        %1745 = vst.msk [vmem:[#allocation2 + $0x80] sm:$0xff] %vm1728, %v1616
        %1746 = vst.msk [vmem:[#allocation2 + $0x88] sm:$0xff] %vm1728, %v1617
        %1747 = vst.msk [vmem:[#allocation2 + $0x90] sm:$0xff] %vm1728, %v1618
        %1748 = vst.msk [vmem:[#allocation2 + $0x98] sm:$0xff] %vm1728, %v1619
        %1749 = vst.msk [vmem:[#allocation2 + $0xa0] sm:$0xff] %vm1728, %v1620
        %1750 = vst.msk [vmem:[#allocation2 + $0xa8] sm:$0xff] %vm1728, %v1621
        %1751 = vst.msk [vmem:[#allocation2 + $0xb0] sm:$0xff] %vm1728, %v1622
        %1752 = vst.msk [vmem:[#allocation2 + $0xb8] sm:$0xff] %vm1728, %v1623
        %1753 = vst.msk [vmem:[#allocation2 + $0xc0] sm:$0xff] %vm1728, %v1624
        %1754 = vst.msk [vmem:[#allocation2 + $0xc8] sm:$0xff] %vm1728, %v1625
        %1755 = vst.msk [vmem:[#allocation2 + $0xd0] sm:$0xff] %vm1728, %v1626
        %1756 = vst.msk [vmem:[#allocation2 + $0xd8] sm:$0xff] %vm1728, %v1627
        %1757 = vst.msk [vmem:[#allocation2 + $0xe0] sm:$0xff] %vm1728, %v1628
        %1758 = vst.msk [vmem:[#allocation2 + $0xe8] sm:$0xff] %vm1728, %v1629
        %1759 = vst.msk [vmem:[#allocation2 + $0xf0] sm:$0xff] %vm1728, %v1630
        %1760 = vst.msk [vmem:[#allocation2 + $0xf8] sm:$0xff] %vm1728, %v1631
        %1761 = vst.msk [vmem:[#allocation2 + $0x100] sm:$0xff] %vm1728, %v1632
        %1762 = vst.msk [vmem:[#allocation2 + $0x108] sm:$0xff] %vm1728, %v1633
        %1763 = vst.msk [vmem:[#allocation2 + $0x110] sm:$0xff] %vm1728, %v1634
        %1764 = vst.msk [vmem:[#allocation2 + $0x118] sm:$0xff] %vm1728, %v1635
        %1765 = vst.msk [vmem:[#allocation2 + $0x120] sm:$0xff] %vm1728, %v1636
        %1766 = vst.msk [vmem:[#allocation2 + $0x128] sm:$0xff] %vm1728, %v1637
        %1767 = vst.msk [vmem:[#allocation2 + $0x130] sm:$0xff] %vm1728, %v1638
        %1768 = vst.msk [vmem:[#allocation2 + $0x138] sm:$0xff] %vm1728, %v1639
        %1769 = vst.msk [vmem:[#allocation2 + $0x140] sm:$0xff] %vm1728, %v1640
        %1770 = vst.msk [vmem:[#allocation2 + $0x148] sm:$0xff] %vm1728, %v1641
        %1771 = vst.msk [vmem:[#allocation2 + $0x150] sm:$0xff] %vm1728, %v1642
        %1772 = vst.msk [vmem:[#allocation2 + $0x158] sm:$0xff] %vm1728, %v1643
        %1773 = vst.msk [vmem:[#allocation2 + $0x160] sm:$0xff] %vm1728, %v1644
        %1774 = vst.msk [vmem:[#allocation2 + $0x168] sm:$0xff] %vm1728, %v1645
        %1775 = vst.msk [vmem:[#allocation2 + $0x170] sm:$0xff] %vm1728, %v1646
        %1776 = vst.msk [vmem:[#allocation2 + $0x178] sm:$0xff] %vm1728, %v1647
        %1777 = vst.msk [vmem:[#allocation2 + $0x180] sm:$0xff] %vm1728, %v1648
        %1778 = vst.msk [vmem:[#allocation2 + $0x188] sm:$0xff] %vm1728, %v1649
        %1779 = vst.msk [vmem:[#allocation2 + $0x190] sm:$0xff] %vm1728, %v1650
        %1780 = vst.msk [vmem:[#allocation2 + $0x198] sm:$0xff] %vm1728, %v1651
        %1781 = vst.msk [vmem:[#allocation2 + $0x1a0] sm:$0xff] %vm1728, %v1652
        %1782 = vst.msk [vmem:[#allocation2 + $0x1a8] sm:$0xff] %vm1728, %v1653
        %1783 = vst.msk [vmem:[#allocation2 + $0x1b0] sm:$0xff] %vm1728, %v1654
        %1784 = vst.msk [vmem:[#allocation2 + $0x1b8] sm:$0xff] %vm1728, %v1655
        %1785 = vst.msk [vmem:[#allocation2 + $0x1c0] sm:$0xff] %vm1728, %v1656
        %1786 = vst.msk [vmem:[#allocation2 + $0x1c8] sm:$0xff] %vm1728, %v1657
        %1787 = vst.msk [vmem:[#allocation2 + $0x1d0] sm:$0xff] %vm1728, %v1658
        %1788 = vst.msk [vmem:[#allocation2 + $0x1d8] sm:$0xff] %vm1728, %v1659
        %1789 = vst.msk [vmem:[#allocation2 + $0x1e0] sm:$0xff] %vm1728, %v1660
        %1790 = vst.msk [vmem:[#allocation2 + $0x1e8] sm:$0xff] %vm1728, %v1661
        %1791 = vst.msk [vmem:[#allocation2 + $0x1f0] sm:$0xff] %vm1728, %v1662
        %1792 = vst.msk [vmem:[#allocation2 + $0x1f8] sm:$0xff] %vm1728, %v1663
        %1793 = vst.msk [vmem:[#allocation2 + $0x200] sm:$0xff] %vm1728, %v1664
        %1794 = vst.msk [vmem:[#allocation2 + $0x208] sm:$0xff] %vm1728, %v1665
        %1795 = vst.msk [vmem:[#allocation2 + $0x210] sm:$0xff] %vm1728, %v1666
        %1796 = vst.msk [vmem:[#allocation2 + $0x218] sm:$0xff] %vm1728, %v1667
        %1797 = vst.msk [vmem:[#allocation2 + $0x220] sm:$0xff] %vm1728, %v1668
        %1798 = vst.msk [vmem:[#allocation2 + $0x228] sm:$0xff] %vm1728, %v1669
        %1799 = vst.msk [vmem:[#allocation2 + $0x230] sm:$0xff] %vm1728, %v1670
        %1800 = vst.msk [vmem:[#allocation2 + $0x238] sm:$0xff] %vm1728, %v1671
        %1801 = vst.msk [vmem:[#allocation2 + $0x240] sm:$0xff] %vm1728, %v1672
        %1802 = vst.msk [vmem:[#allocation2 + $0x248] sm:$0xff] %vm1728, %v1673
        %1803 = vst.msk [vmem:[#allocation2 + $0x250] sm:$0xff] %vm1728, %v1674
        %1804 = vst.msk [vmem:[#allocation2 + $0x258] sm:$0xff] %vm1728, %v1675
        %1805 = vst.msk [vmem:[#allocation2 + $0x260] sm:$0xff] %vm1728, %v1676
        %1806 = vst.msk [vmem:[#allocation2 + $0x268] sm:$0xff] %vm1728, %v1677
        %1807 = vst.msk [vmem:[#allocation2 + $0x270] sm:$0xff] %vm1728, %v1678
        %1808 = vst.msk [vmem:[#allocation2 + $0x278] sm:$0xff] %vm1728, %v1679
        %1809 = vst.msk [vmem:[#allocation2 + $0x280] sm:$0xff] %vm1728, %v1680
        %1810 = vst.msk [vmem:[#allocation2 + $0x288] sm:$0xff] %vm1728, %v1681
        %1811 = vst.msk [vmem:[#allocation2 + $0x290] sm:$0xff] %vm1728, %v1682
        %1812 = vst.msk [vmem:[#allocation2 + $0x298] sm:$0xff] %vm1728, %v1683
        %1813 = vst.msk [vmem:[#allocation2 + $0x2a0] sm:$0xff] %vm1728, %v1684
        %1814 = vst.msk [vmem:[#allocation2 + $0x2a8] sm:$0xff] %vm1728, %v1685
        %1815 = vst.msk [vmem:[#allocation2 + $0x2b0] sm:$0xff] %vm1728, %v1686
        %1816 = vst.msk [vmem:[#allocation2 + $0x2b8] sm:$0xff] %vm1728, %v1687
        %1817 = vst.msk [vmem:[#allocation2 + $0x2c0] sm:$0xff] %vm1728, %v1688
        %1818 = vst.msk [vmem:[#allocation2 + $0x2c8] sm:$0xff] %vm1728, %v1689
        %1819 = vst.msk [vmem:[#allocation2 + $0x2d0] sm:$0xff] %vm1728, %v1690
        %1820 = vst.msk [vmem:[#allocation2 + $0x2d8] sm:$0xff] %vm1728, %v1691
        %1821 = vst.msk [vmem:[#allocation2 + $0x2e0] sm:$0xff] %vm1728, %v1692
        %1822 = vst.msk [vmem:[#allocation2 + $0x2e8] sm:$0xff] %vm1728, %v1693
        %1823 = vst.msk [vmem:[#allocation2 + $0x2f0] sm:$0xff] %vm1728, %v1694
        %1824 = vst.msk [vmem:[#allocation2 + $0x2f8] sm:$0xff] %vm1728, %v1695
        %1825 = vst.msk [vmem:[#allocation2 + $0x300] sm:$0xff] %vm1728, %v1696
        %1826 = vst.msk [vmem:[#allocation2 + $0x308] sm:$0xff] %vm1728, %v1697
        %1827 = vst.msk [vmem:[#allocation2 + $0x310] sm:$0xff] %vm1728, %v1698
        %1828 = vst.msk [vmem:[#allocation2 + $0x318] sm:$0xff] %vm1728, %v1699
        %1829 = vst.msk [vmem:[#allocation2 + $0x320] sm:$0xff] %vm1728, %v1700
        %1830 = vst.msk [vmem:[#allocation2 + $0x328] sm:$0xff] %vm1728, %v1701
        %1831 = vst.msk [vmem:[#allocation2 + $0x330] sm:$0xff] %vm1728, %v1702
        %1832 = vst.msk [vmem:[#allocation2 + $0x338] sm:$0xff] %vm1728, %v1703
        %1833 = vst.msk [vmem:[#allocation2 + $0x340] sm:$0xff] %vm1728, %v1704
        %1834 = vst.msk [vmem:[#allocation2 + $0x348] sm:$0xff] %vm1728, %v1705
        %1835 = vst.msk [vmem:[#allocation2 + $0x350] sm:$0xff] %vm1728, %v1706
        %1836 = vst.msk [vmem:[#allocation2 + $0x358] sm:$0xff] %vm1728, %v1707
        %1837 = vst.msk [vmem:[#allocation2 + $0x360] sm:$0xff] %vm1728, %v1708
        %1838 = vst.msk [vmem:[#allocation2 + $0x368] sm:$0xff] %vm1728, %v1709
        %1839 = vst.msk [vmem:[#allocation2 + $0x370] sm:$0xff] %vm1728, %v1710
        %1840 = vst.msk [vmem:[#allocation2 + $0x378] sm:$0xff] %vm1728, %v1711
        %1841 = vst.msk [vmem:[#allocation2 + $0x380] sm:$0xff] %vm1728, %v1712
        %1842 = vst.msk [vmem:[#allocation2 + $0x388] sm:$0xff] %vm1728, %v1713
        %1843 = vst.msk [vmem:[#allocation2 + $0x390] sm:$0xff] %vm1728, %v1714
        %1844 = vst.msk [vmem:[#allocation2 + $0x398] sm:$0xff] %vm1728, %v1715
        %1845 = vst.msk [vmem:[#allocation2 + $0x3a0] sm:$0xff] %vm1728, %v1716
        %1846 = vst.msk [vmem:[#allocation2 + $0x3a8] sm:$0xff] %vm1728, %v1717
        %1847 = vst.msk [vmem:[#allocation2 + $0x3b0] sm:$0xff] %vm1728, %v1718
        %1848 = vst.msk [vmem:[#allocation2 + $0x3b8] sm:$0xff] %vm1728, %v1719
        %1849 = vst.msk [vmem:[#allocation2 + $0x3c0] sm:$0xff] %vm1728, %v1720
        %1850 = vst.msk [vmem:[#allocation2 + $0x3c8] sm:$0xff] %vm1728, %v1721
        %1851 = vst.msk [vmem:[#allocation2 + $0x3d0] sm:$0xff] %vm1728, %v1722
        %1852 = vst.msk [vmem:[#allocation2 + $0x3d8] sm:$0xff] %vm1728, %v1723
        %1853 = vst.msk [vmem:[#allocation2 + $0x3e0] sm:$0xff] %vm1728, %v1724
        %1854 = vst.msk [vmem:[#allocation2 + $0x3e8] sm:$0xff] %vm1728, %v1725
        %1855 = vst.msk [vmem:[#allocation2 + $0x3f0] sm:$0xff] %vm1728, %v1726
        %1856 = vst.msk [vmem:[#allocation2 + $0x3f8] sm:$0xff] %vm1728, %v1727
        %v1857 = vld [vmem:[#allocation2] ss:$2 sm:$0xff]
        %s1858 = scalar_lea.vmem [#allocation2], 16
        %v1859 = vld [vmem:[%s1858] ss:$2 sm:$0xff]
        %s1860 = scalar_lea.vmem [#allocation2], 32
        %v1861 = vld [vmem:[%s1860] ss:$2 sm:$0xff]
        %s1862 = scalar_lea.vmem [#allocation2], 48
        %v1863 = vld [vmem:[%s1862] ss:$2 sm:$0xff]
        %s1864 = scalar_lea.vmem [#allocation2], 64
        %v1865 = vld [vmem:[%s1864] ss:$2 sm:$0xff]
        %s1866 = scalar_lea.vmem [#allocation2], 80
        %v1867 = vld [vmem:[%s1866] ss:$2 sm:$0xff]
        %s1868 = scalar_lea.vmem [#allocation2], 96
        %v1869 = vld [vmem:[%s1868] ss:$2 sm:$0xff]
        %s1870 = scalar_lea.vmem [#allocation2], 112
        %v1871 = vld [vmem:[%s1870] ss:$2 sm:$0xff]
        %s1872 = scalar_lea.vmem [#allocation2], 128
        %v1873 = vld [vmem:[%s1872] ss:$2 sm:$0xff]
        %s1874 = scalar_lea.vmem [#allocation2], 144
        %v1875 = vld [vmem:[%s1874] ss:$2 sm:$0xff]
        %s1876 = scalar_lea.vmem [#allocation2], 160
        %v1877 = vld [vmem:[%s1876] ss:$2 sm:$0xff]
        %s1878 = scalar_lea.vmem [#allocation2], 176
        %v1879 = vld [vmem:[%s1878] ss:$2 sm:$0xff]
        %s1880 = scalar_lea.vmem [#allocation2], 192
        %v1881 = vld [vmem:[%s1880] ss:$2 sm:$0xff]
        %s1882 = scalar_lea.vmem [#allocation2], 208
        %v1883 = vld [vmem:[%s1882] ss:$2 sm:$0xff]
        %s1884 = scalar_lea.vmem [#allocation2], 224
        %v1885 = vld [vmem:[%s1884] ss:$2 sm:$0xff]
        %s1886 = scalar_lea.vmem [#allocation2], 240
        %v1887 = vld [vmem:[%s1886] ss:$2 sm:$0xff]
        %s1888 = scalar_lea.vmem [#allocation2], 256
        %v1889 = vld [vmem:[%s1888] ss:$2 sm:$0xff]
        %s1890 = scalar_lea.vmem [#allocation2], 272
        %v1891 = vld [vmem:[%s1890] ss:$2 sm:$0xff]
        %s1892 = scalar_lea.vmem [#allocation2], 288
        %v1893 = vld [vmem:[%s1892] ss:$2 sm:$0xff]
        %s1894 = scalar_lea.vmem [#allocation2], 304
        %v1895 = vld [vmem:[%s1894] ss:$2 sm:$0xff]
        %s1896 = scalar_lea.vmem [#allocation2], 320
        %v1897 = vld [vmem:[%s1896] ss:$2 sm:$0xff]
        %s1898 = scalar_lea.vmem [#allocation2], 336
        %v1899 = vld [vmem:[%s1898] ss:$2 sm:$0xff]
        %s1900 = scalar_lea.vmem [#allocation2], 352
        %v1901 = vld [vmem:[%s1900] ss:$2 sm:$0xff]
        %s1902 = scalar_lea.vmem [#allocation2], 368
        %v1903 = vld [vmem:[%s1902] ss:$2 sm:$0xff]
        %s1904 = scalar_lea.vmem [#allocation2], 384
        %v1905 = vld [vmem:[%s1904] ss:$2 sm:$0xff]
        %s1906 = scalar_lea.vmem [#allocation2], 400
        %v1907 = vld [vmem:[%s1906] ss:$2 sm:$0xff]
        %s1908 = scalar_lea.vmem [#allocation2], 416
        %v1909 = vld [vmem:[%s1908] ss:$2 sm:$0xff]
        %s1910 = scalar_lea.vmem [#allocation2], 432
        %v1911 = vld [vmem:[%s1910] ss:$2 sm:$0xff]
        %s1912 = scalar_lea.vmem [#allocation2], 448
        %v1913 = vld [vmem:[%s1912] ss:$2 sm:$0xff]
        %s1914 = scalar_lea.vmem [#allocation2], 464
        %v1915 = vld [vmem:[%s1914] ss:$2 sm:$0xff]
        %s1916 = scalar_lea.vmem [#allocation2], 480
        %v1917 = vld [vmem:[%s1916] ss:$2 sm:$0xff]
        %s1918 = scalar_lea.vmem [#allocation2], 496
        %v1919 = vld [vmem:[%s1918] ss:$2 sm:$0xff]
        %s1920 = scalar_lea.vmem [#allocation2], 512
        %v1921 = vld [vmem:[%s1920] ss:$2 sm:$0xff]
        %s1922 = scalar_lea.vmem [#allocation2], 528
        %v1923 = vld [vmem:[%s1922] ss:$2 sm:$0xff]
        %s1924 = scalar_lea.vmem [#allocation2], 544
        %v1925 = vld [vmem:[%s1924] ss:$2 sm:$0xff]
        %s1926 = scalar_lea.vmem [#allocation2], 560
        %v1927 = vld [vmem:[%s1926] ss:$2 sm:$0xff]
        %s1928 = scalar_lea.vmem [#allocation2], 576
        %v1929 = vld [vmem:[%s1928] ss:$2 sm:$0xff]
        %s1930 = scalar_lea.vmem [#allocation2], 592
        %v1931 = vld [vmem:[%s1930] ss:$2 sm:$0xff]
        %s1932 = scalar_lea.vmem [#allocation2], 608
        %v1933 = vld [vmem:[%s1932] ss:$2 sm:$0xff]
        %s1934 = scalar_lea.vmem [#allocation2], 624
        %v1935 = vld [vmem:[%s1934] ss:$2 sm:$0xff]
        %s1936 = scalar_lea.vmem [#allocation2], 640
        %v1937 = vld [vmem:[%s1936] ss:$2 sm:$0xff]
        %s1938 = scalar_lea.vmem [#allocation2], 656
        %v1939 = vld [vmem:[%s1938] ss:$2 sm:$0xff]
        %s1940 = scalar_lea.vmem [#allocation2], 672
        %v1941 = vld [vmem:[%s1940] ss:$2 sm:$0xff]
        %s1942 = scalar_lea.vmem [#allocation2], 688
        %v1943 = vld [vmem:[%s1942] ss:$2 sm:$0xff]
        %s1944 = scalar_lea.vmem [#allocation2], 704
        %v1945 = vld [vmem:[%s1944] ss:$2 sm:$0xff]
        %s1946 = scalar_lea.vmem [#allocation2], 720
        %v1947 = vld [vmem:[%s1946] ss:$2 sm:$0xff]
        %s1948 = scalar_lea.vmem [#allocation2], 736
        %v1949 = vld [vmem:[%s1948] ss:$2 sm:$0xff]
        %s1950 = scalar_lea.vmem [#allocation2], 752
        %v1951 = vld [vmem:[%s1950] ss:$2 sm:$0xff]
        %s1952 = scalar_lea.vmem [#allocation2], 768
        %v1953 = vld [vmem:[%s1952] ss:$2 sm:$0xff]
        %s1954 = scalar_lea.vmem [#allocation2], 784
        %v1955 = vld [vmem:[%s1954] ss:$2 sm:$0xff]
        %s1956 = scalar_lea.vmem [#allocation2], 800
        %v1957 = vld [vmem:[%s1956] ss:$2 sm:$0xff]
        %s1958 = scalar_lea.vmem [#allocation2], 816
        %v1959 = vld [vmem:[%s1958] ss:$2 sm:$0xff]
        %s1960 = scalar_lea.vmem [#allocation2], 832
        %v1961 = vld [vmem:[%s1960] ss:$2 sm:$0xff]
        %s1962 = scalar_lea.vmem [#allocation2], 848
        %v1963 = vld [vmem:[%s1962] ss:$2 sm:$0xff]
        %s1964 = scalar_lea.vmem [#allocation2], 864
        %v1965 = vld [vmem:[%s1964] ss:$2 sm:$0xff]
        %s1966 = scalar_lea.vmem [#allocation2], 880
        %v1967 = vld [vmem:[%s1966] ss:$2 sm:$0xff]
        %s1968 = scalar_lea.vmem [#allocation2], 896
        %v1969 = vld [vmem:[%s1968] ss:$2 sm:$0xff]
        %s1970 = scalar_lea.vmem [#allocation2], 912
        %v1971 = vld [vmem:[%s1970] ss:$2 sm:$0xff]
        %s1972 = scalar_lea.vmem [#allocation2], 928
        %v1973 = vld [vmem:[%s1972] ss:$2 sm:$0xff]
        %s1974 = scalar_lea.vmem [#allocation2], 944
        %v1975 = vld [vmem:[%s1974] ss:$2 sm:$0xff]
        %s1976 = scalar_lea.vmem [#allocation2], 960
        %v1977 = vld [vmem:[%s1976] ss:$2 sm:$0xff]
        %s1978 = scalar_lea.vmem [#allocation2], 976
        %v1979 = vld [vmem:[%s1978] ss:$2 sm:$0xff]
        %s1980 = scalar_lea.vmem [#allocation2], 992
        %v1981 = vld [vmem:[%s1980] ss:$2 sm:$0xff]
        %s1982 = scalar_lea.vmem [#allocation2], 1008
        %v1983 = vld [vmem:[%s1982] ss:$2 sm:$0xff]
        %s1984 = scalar_lea.vmem [#allocation2], 1
        %v1985 = vld [vmem:[%s1984] ss:$2 sm:$0xff]
        %s1986 = scalar_lea.vmem [#allocation2], 17
        %v1987 = vld [vmem:[%s1986] ss:$2 sm:$0xff]
        %s1988 = scalar_lea.vmem [#allocation2], 33
        %v1989 = vld [vmem:[%s1988] ss:$2 sm:$0xff]
        %s1990 = scalar_lea.vmem [#allocation2], 49
        %v1991 = vld [vmem:[%s1990] ss:$2 sm:$0xff]
        %s1992 = scalar_lea.vmem [#allocation2], 65
        %v1993 = vld [vmem:[%s1992] ss:$2 sm:$0xff]
        %s1994 = scalar_lea.vmem [#allocation2], 81
        %v1995 = vld [vmem:[%s1994] ss:$2 sm:$0xff]
        %s1996 = scalar_lea.vmem [#allocation2], 97
        %v1997 = vld [vmem:[%s1996] ss:$2 sm:$0xff]
        %s1998 = scalar_lea.vmem [#allocation2], 113
        %v1999 = vld [vmem:[%s1998] ss:$2 sm:$0xff]
        %s2000 = scalar_lea.vmem [#allocation2], 129
        %v2001 = vld [vmem:[%s2000] ss:$2 sm:$0xff]
        %s2002 = scalar_lea.vmem [#allocation2], 145
        %v2003 = vld [vmem:[%s2002] ss:$2 sm:$0xff]
        %s2004 = scalar_lea.vmem [#allocation2], 161
        %v2005 = vld [vmem:[%s2004] ss:$2 sm:$0xff]
        %s2006 = scalar_lea.vmem [#allocation2], 177
        %v2007 = vld [vmem:[%s2006] ss:$2 sm:$0xff]
        %s2008 = scalar_lea.vmem [#allocation2], 193
        %v2009 = vld [vmem:[%s2008] ss:$2 sm:$0xff]
        %s2010 = scalar_lea.vmem [#allocation2], 209
        %v2011 = vld [vmem:[%s2010] ss:$2 sm:$0xff]
        %s2012 = scalar_lea.vmem [#allocation2], 225
        %v2013 = vld [vmem:[%s2012] ss:$2 sm:$0xff]
        %s2014 = scalar_lea.vmem [#allocation2], 241
        %v2015 = vld [vmem:[%s2014] ss:$2 sm:$0xff]
        %s2016 = scalar_lea.vmem [#allocation2], 257
        %v2017 = vld [vmem:[%s2016] ss:$2 sm:$0xff]
        %s2018 = scalar_lea.vmem [#allocation2], 273
        %v2019 = vld [vmem:[%s2018] ss:$2 sm:$0xff]
        %s2020 = scalar_lea.vmem [#allocation2], 289
        %v2021 = vld [vmem:[%s2020] ss:$2 sm:$0xff]
        %s2022 = scalar_lea.vmem [#allocation2], 305
        %v2023 = vld [vmem:[%s2022] ss:$2 sm:$0xff]
        %s2024 = scalar_lea.vmem [#allocation2], 321
        %v2025 = vld [vmem:[%s2024] ss:$2 sm:$0xff]
        %s2026 = scalar_lea.vmem [#allocation2], 337
        %v2027 = vld [vmem:[%s2026] ss:$2 sm:$0xff]
        %s2028 = scalar_lea.vmem [#allocation2], 353
        %v2029 = vld [vmem:[%s2028] ss:$2 sm:$0xff]
        %s2030 = scalar_lea.vmem [#allocation2], 369
        %v2031 = vld [vmem:[%s2030] ss:$2 sm:$0xff]
        %s2032 = scalar_lea.vmem [#allocation2], 385
        %v2033 = vld [vmem:[%s2032] ss:$2 sm:$0xff]
        %s2034 = scalar_lea.vmem [#allocation2], 401
        %v2035 = vld [vmem:[%s2034] ss:$2 sm:$0xff]
        %s2036 = scalar_lea.vmem [#allocation2], 417
        %v2037 = vld [vmem:[%s2036] ss:$2 sm:$0xff]
        %s2038 = scalar_lea.vmem [#allocation2], 433
        %v2039 = vld [vmem:[%s2038] ss:$2 sm:$0xff]
        %s2040 = scalar_lea.vmem [#allocation2], 449
        %v2041 = vld [vmem:[%s2040] ss:$2 sm:$0xff]
        %s2042 = scalar_lea.vmem [#allocation2], 465
        %v2043 = vld [vmem:[%s2042] ss:$2 sm:$0xff]
        %s2044 = scalar_lea.vmem [#allocation2], 481
        %v2045 = vld [vmem:[%s2044] ss:$2 sm:$0xff]
        %s2046 = scalar_lea.vmem [#allocation2], 497
        %v2047 = vld [vmem:[%s2046] ss:$2 sm:$0xff]
        %s2048 = scalar_lea.vmem [#allocation2], 513
        %v2049 = vld [vmem:[%s2048] ss:$2 sm:$0xff]
        %s2050 = scalar_lea.vmem [#allocation2], 529
        %v2051 = vld [vmem:[%s2050] ss:$2 sm:$0xff]
        %s2052 = scalar_lea.vmem [#allocation2], 545
        %v2053 = vld [vmem:[%s2052] ss:$2 sm:$0xff]
        %s2054 = scalar_lea.vmem [#allocation2], 561
        %v2055 = vld [vmem:[%s2054] ss:$2 sm:$0xff]
        %s2056 = scalar_lea.vmem [#allocation2], 577
        %v2057 = vld [vmem:[%s2056] ss:$2 sm:$0xff]
        %s2058 = scalar_lea.vmem [#allocation2], 593
        %v2059 = vld [vmem:[%s2058] ss:$2 sm:$0xff]
        %s2060 = scalar_lea.vmem [#allocation2], 609
        %v2061 = vld [vmem:[%s2060] ss:$2 sm:$0xff]
        %s2062 = scalar_lea.vmem [#allocation2], 625
        %v2063 = vld [vmem:[%s2062] ss:$2 sm:$0xff]
        %s2064 = scalar_lea.vmem [#allocation2], 641
        %v2065 = vld [vmem:[%s2064] ss:$2 sm:$0xff]
        %s2066 = scalar_lea.vmem [#allocation2], 657
        %v2067 = vld [vmem:[%s2066] ss:$2 sm:$0xff]
        %s2068 = scalar_lea.vmem [#allocation2], 673
        %v2069 = vld [vmem:[%s2068] ss:$2 sm:$0xff]
        %s2070 = scalar_lea.vmem [#allocation2], 689
        %v2071 = vld [vmem:[%s2070] ss:$2 sm:$0xff]
        %s2072 = scalar_lea.vmem [#allocation2], 705
        %v2073 = vld [vmem:[%s2072] ss:$2 sm:$0xff]
        %s2074 = scalar_lea.vmem [#allocation2], 721
        %v2075 = vld [vmem:[%s2074] ss:$2 sm:$0xff]
        %s2076 = scalar_lea.vmem [#allocation2], 737
        %v2077 = vld [vmem:[%s2076] ss:$2 sm:$0xff]
        %s2078 = scalar_lea.vmem [#allocation2], 753
        %v2079 = vld [vmem:[%s2078] ss:$2 sm:$0xff]
        %s2080 = scalar_lea.vmem [#allocation2], 769
        %v2081 = vld [vmem:[%s2080] ss:$2 sm:$0xff]
        %s2082 = scalar_lea.vmem [#allocation2], 785
        %v2083 = vld [vmem:[%s2082] ss:$2 sm:$0xff]
        %s2084 = scalar_lea.vmem [#allocation2], 801
        %v2085 = vld [vmem:[%s2084] ss:$2 sm:$0xff]
        %s2086 = scalar_lea.vmem [#allocation2], 817
        %v2087 = vld [vmem:[%s2086] ss:$2 sm:$0xff]
        %s2088 = scalar_lea.vmem [#allocation2], 833
        %v2089 = vld [vmem:[%s2088] ss:$2 sm:$0xff]
        %s2090 = scalar_lea.vmem [#allocation2], 849
        %v2091 = vld [vmem:[%s2090] ss:$2 sm:$0xff]
        %s2092 = scalar_lea.vmem [#allocation2], 865
        %v2093 = vld [vmem:[%s2092] ss:$2 sm:$0xff]
        %s2094 = scalar_lea.vmem [#allocation2], 881
        %v2095 = vld [vmem:[%s2094] ss:$2 sm:$0xff]
        %s2096 = scalar_lea.vmem [#allocation2], 897
        %v2097 = vld [vmem:[%s2096] ss:$2 sm:$0xff]
        %s2098 = scalar_lea.vmem [#allocation2], 913
        %v2099 = vld [vmem:[%s2098] ss:$2 sm:$0xff]
        %s2100 = scalar_lea.vmem [#allocation2], 929
        %v2101 = vld [vmem:[%s2100] ss:$2 sm:$0xff]
        %s2102 = scalar_lea.vmem [#allocation2], 945
        %v2103 = vld [vmem:[%s2102] ss:$2 sm:$0xff]
        %s2104 = scalar_lea.vmem [#allocation2], 961
        %v2105 = vld [vmem:[%s2104] ss:$2 sm:$0xff]
        %s2106 = scalar_lea.vmem [#allocation2], 977
        %v2107 = vld [vmem:[%s2106] ss:$2 sm:$0xff]
        %s2108 = scalar_lea.vmem [#allocation2], 993
        %v2109 = vld [vmem:[%s2108] ss:$2 sm:$0xff]
        %s2110 = scalar_lea.vmem [#allocation2], 1009
        %v2111 = vld [vmem:[%s2110] ss:$2 sm:$0xff]
        %v2112 = vmax.f32 %v1857, %v1985
        %v2113 = vmax.f32 %v1859, %v1987
        %v2114 = vmax.f32 %v1861, %v1989
        %v2115 = vmax.f32 %v1863, %v1991
        %v2116 = vmax.f32 %v1865, %v1993
        %v2117 = vmax.f32 %v1867, %v1995
        %v2118 = vmax.f32 %v1869, %v1997
        %v2119 = vmax.f32 %v1871, %v1999
        %v2120 = vmax.f32 %v1873, %v2001
        %v2121 = vmax.f32 %v1875, %v2003
        %v2122 = vmax.f32 %v1877, %v2005
        %v2123 = vmax.f32 %v1879, %v2007
        %v2124 = vmax.f32 %v1881, %v2009
        %v2125 = vmax.f32 %v1883, %v2011
        %v2126 = vmax.f32 %v1885, %v2013
        %v2127 = vmax.f32 %v1887, %v2015
        %v2128 = vmax.f32 %v1889, %v2017
        %v2129 = vmax.f32 %v1891, %v2019
        %v2130 = vmax.f32 %v1893, %v2021
        %v2131 = vmax.f32 %v1895, %v2023
        %v2132 = vmax.f32 %v1897, %v2025
        %v2133 = vmax.f32 %v1899, %v2027
        %v2134 = vmax.f32 %v1901, %v2029
        %v2135 = vmax.f32 %v1903, %v2031
        %v2136 = vmax.f32 %v1905, %v2033
        %v2137 = vmax.f32 %v1907, %v2035
        %v2138 = vmax.f32 %v1909, %v2037
        %v2139 = vmax.f32 %v1911, %v2039
        %v2140 = vmax.f32 %v1913, %v2041
        %v2141 = vmax.f32 %v1915, %v2043
        %v2142 = vmax.f32 %v1917, %v2045
        %v2143 = vmax.f32 %v1919, %v2047
        %v2144 = vmax.f32 %v1921, %v2049
        %v2145 = vmax.f32 %v1923, %v2051
        %v2146 = vmax.f32 %v1925, %v2053
        %v2147 = vmax.f32 %v1927, %v2055
        %v2148 = vmax.f32 %v1929, %v2057
        %v2149 = vmax.f32 %v1931, %v2059
        %v2150 = vmax.f32 %v1933, %v2061
        %v2151 = vmax.f32 %v1935, %v2063
        %v2152 = vmax.f32 %v1937, %v2065
        %v2153 = vmax.f32 %v1939, %v2067
        %v2154 = vmax.f32 %v1941, %v2069
        %v2155 = vmax.f32 %v1943, %v2071
        %v2156 = vmax.f32 %v1945, %v2073
        %v2157 = vmax.f32 %v1947, %v2075
        %v2158 = vmax.f32 %v1949, %v2077
        %v2159 = vmax.f32 %v1951, %v2079
        %v2160 = vmax.f32 %v1953, %v2081
        %v2161 = vmax.f32 %v1955, %v2083
        %v2162 = vmax.f32 %v1957, %v2085
        %v2163 = vmax.f32 %v1959, %v2087
        %v2164 = vmax.f32 %v1961, %v2089
        %v2165 = vmax.f32 %v1963, %v2091
        %v2166 = vmax.f32 %v1965, %v2093
        %v2167 = vmax.f32 %v1967, %v2095
        %v2168 = vmax.f32 %v1969, %v2097
        %v2169 = vmax.f32 %v1971, %v2099
        %v2170 = vmax.f32 %v1973, %v2101
        %v2171 = vmax.f32 %v1975, %v2103
        %v2172 = vmax.f32 %v1977, %v2105
        %v2173 = vmax.f32 %v1979, %v2107
        %v2174 = vmax.f32 %v1981, %v2109
        %v2175 = vmax.f32 %v1983, %v2111
        %v2176 = vsel %vm1728, %v2112, -inf
        %v2177 = vsel %vm1728, %v2114, -inf
        %v2178 = vmax.f32 %v2176, %v2177
        %v2179 = vsel %vm1728, %v2113, -inf
        %v2180 = vsel %vm1728, %v2115, -inf
        %v2181 = vmax.f32 %v2179, %v2180
        %v2182 = vsel %vm1728, %v2116, -inf
        %v2183 = vsel %vm1728, %v2118, -inf
        %v2184 = vmax.f32 %v2182, %v2183
        %v2185 = vsel %vm1728, %v2117, -inf
        %v2186 = vsel %vm1728, %v2119, -inf
        %v2187 = vmax.f32 %v2185, %v2186
        %v2188 = vsel %vm1728, %v2120, -inf
        %v2189 = vsel %vm1728, %v2122, -inf
        %v2190 = vmax.f32 %v2188, %v2189
        %v2191 = vsel %vm1728, %v2121, -inf
        %v2192 = vsel %vm1728, %v2123, -inf
        %v2193 = vmax.f32 %v2191, %v2192
        %v2194 = vsel %vm1728, %v2124, -inf
        %v2195 = vsel %vm1728, %v2126, -inf
        %v2196 = vmax.f32 %v2194, %v2195
        %v2197 = vsel %vm1728, %v2125, -inf
        %v2198 = vsel %vm1728, %v2127, -inf
        %v2199 = vmax.f32 %v2197, %v2198
        %v2200 = vsel %vm1728, %v2128, -inf
        %v2201 = vsel %vm1728, %v2130, -inf
        %v2202 = vmax.f32 %v2200, %v2201
        %v2203 = vsel %vm1728, %v2129, -inf
        %v2204 = vsel %vm1728, %v2131, -inf
        %v2205 = vmax.f32 %v2203, %v2204
        %v2206 = vsel %vm1728, %v2132, -inf
        %v2207 = vsel %vm1728, %v2134, -inf
        %v2208 = vmax.f32 %v2206, %v2207
        %v2209 = vsel %vm1728, %v2133, -inf
        %v2210 = vsel %vm1728, %v2135, -inf
        %v2211 = vmax.f32 %v2209, %v2210
        %v2212 = vsel %vm1728, %v2136, -inf
        %v2213 = vsel %vm1728, %v2138, -inf
        %v2214 = vmax.f32 %v2212, %v2213
        %v2215 = vsel %vm1728, %v2137, -inf
        %v2216 = vsel %vm1728, %v2139, -inf
        %v2217 = vmax.f32 %v2215, %v2216
        %v2218 = vsel %vm1728, %v2140, -inf
        %v2219 = vsel %vm1728, %v2142, -inf
        %v2220 = vmax.f32 %v2218, %v2219
        %v2221 = vsel %vm1728, %v2141, -inf
        %v2222 = vsel %vm1728, %v2143, -inf
        %v2223 = vmax.f32 %v2221, %v2222
        %v2224 = vsel %vm1728, %v2144, -inf
        %v2225 = vsel %vm1728, %v2146, -inf
        %v2226 = vmax.f32 %v2224, %v2225
        %v2227 = vsel %vm1728, %v2145, -inf
        %v2228 = vsel %vm1728, %v2147, -inf
        %v2229 = vmax.f32 %v2227, %v2228
        %v2230 = vsel %vm1728, %v2148, -inf
        %v2231 = vsel %vm1728, %v2150, -inf
        %v2232 = vmax.f32 %v2230, %v2231
        %v2233 = vsel %vm1728, %v2149, -inf
        %v2234 = vsel %vm1728, %v2151, -inf
        %v2235 = vmax.f32 %v2233, %v2234
        %v2236 = vsel %vm1728, %v2152, -inf
        %v2237 = vsel %vm1728, %v2154, -inf
        %v2238 = vmax.f32 %v2236, %v2237
        %v2239 = vsel %vm1728, %v2153, -inf
        %v2240 = vsel %vm1728, %v2155, -inf
        %v2241 = vmax.f32 %v2239, %v2240
        %v2242 = vsel %vm1728, %v2156, -inf
        %v2243 = vsel %vm1728, %v2158, -inf
        %v2244 = vmax.f32 %v2242, %v2243
        %v2245 = vsel %vm1728, %v2157, -inf
        %v2246 = vsel %vm1728, %v2159, -inf
        %v2247 = vmax.f32 %v2245, %v2246
        %v2248 = vsel %vm1728, %v2160, -inf
        %v2249 = vsel %vm1728, %v2162, -inf
        %v2250 = vmax.f32 %v2248, %v2249
        %v2251 = vsel %vm1728, %v2161, -inf
        %v2252 = vsel %vm1728, %v2163, -inf
        %v2253 = vmax.f32 %v2251, %v2252
        %v2254 = vsel %vm1728, %v2164, -inf
        %v2255 = vsel %vm1728, %v2166, -inf
        %v2256 = vmax.f32 %v2254, %v2255
        %v2257 = vsel %vm1728, %v2165, -inf
        %v2258 = vsel %vm1728, %v2167, -inf
        %v2259 = vmax.f32 %v2257, %v2258
        %v2260 = vsel %vm1728, %v2168, -inf
        %v2261 = vsel %vm1728, %v2170, -inf
        %v2262 = vmax.f32 %v2260, %v2261
        %v2263 = vsel %vm1728, %v2169, -inf
        %v2264 = vsel %vm1728, %v2171, -inf
        %v2265 = vmax.f32 %v2263, %v2264
        %v2266 = vsel %vm1728, %v2172, -inf
        %v2267 = vsel %vm1728, %v2174, -inf
        %v2268 = vmax.f32 %v2266, %v2267
        %v2269 = vsel %vm1728, %v2173, -inf
        %v2270 = vsel %vm1728, %v2175, -inf
        %v2271 = vmax.f32 %v2269, %v2270
        %2272 = vst.msk [vmem:[#allocation5] sm:$0xff] %vm1728, 0.0
        %2273 = vst.msk [vmem:[#allocation5 + $0x8] sm:$0xff] %vm1728, 0.0
        %vm2274 = vcmask 254976
        %2275 = vst.msk [vmem:[#allocation5 + $0x10] sm:$0x3] %vm2274, 0.0
        %2276 = vst.msk [vmem:[#allocation5 + $0x18] sm:$0xff] %vm1728, 0.0
        %2277 = vst.msk [vmem:[#allocation5 + $0x20] sm:$0xff] %vm1728, 0.0
        %2278 = vst.msk [vmem:[#allocation5 + $0x28] sm:$0x3] %vm2274, 0.0
        %2279 = vst.msk [vmem:[#allocation5 + $0x30] sm:$0xff] %vm1728, 0.0
        %2280 = vst.msk [vmem:[#allocation5 + $0x38] sm:$0xff] %vm1728, 0.0
        %2281 = vst.msk [vmem:[#allocation5 + $0x40] sm:$0x3] %vm2274, 0.0
        %2282 = vst.msk [vmem:[#allocation5 + $0x48] sm:$0xff] %vm1728, 0.0
        %2283 = vst.msk [vmem:[#allocation5 + $0x50] sm:$0xff] %vm1728, 0.0
        %2284 = vst.msk [vmem:[#allocation5 + $0x58] sm:$0x3] %vm2274, 0.0
        %2285 = vst.msk [vmem:[#allocation5 + $0x60] sm:$0xff] %vm1728, 0.0
        %2286 = vst.msk [vmem:[#allocation5 + $0x68] sm:$0xff] %vm1728, 0.0
        %2287 = vst.msk [vmem:[#allocation5 + $0x70] sm:$0x3] %vm2274, 0.0
        %2288 = vst.msk [vmem:[#allocation5 + $0x78] sm:$0xff] %vm1728, 0.0
        %2289 = vst.msk [vmem:[#allocation5 + $0x80] sm:$0xff] %vm1728, 0.0
        %2290 = vst.msk [vmem:[#allocation5 + $0x88] sm:$0x3] %vm2274, 0.0
        %2291 = vst.msk [vmem:[#allocation5 + $0x90] sm:$0xff] %vm1728, 0.0
        %2292 = vst.msk [vmem:[#allocation5 + $0x98] sm:$0xff] %vm1728, 0.0
        %2293 = vst.msk [vmem:[#allocation5 + $0xa0] sm:$0x3] %vm2274, 0.0
        %2294 = vst.msk [vmem:[#allocation5 + $0xa8] sm:$0xff] %vm1728, 0.0
        %2295 = vst.msk [vmem:[#allocation5 + $0xb0] sm:$0xff] %vm1728, 0.0
        %2296 = vst.msk [vmem:[#allocation5 + $0xb8] sm:$0x3] %vm2274, 0.0
        %2297 = vst.msk [vmem:[#allocation5 + $0xc0] sm:$0xff] %vm1728, 0.0
        %2298 = vst.msk [vmem:[#allocation5 + $0xc8] sm:$0xff] %vm1728, 0.0
        %2299 = vst.msk [vmem:[#allocation5 + $0xd0] sm:$0x3] %vm2274, 0.0
        %2300 = vst.msk [vmem:[#allocation5 + $0xd8] sm:$0xff] %vm1728, 0.0
        %2301 = vst.msk [vmem:[#allocation5 + $0xe0] sm:$0xff] %vm1728, 0.0
        %2302 = vst.msk [vmem:[#allocation5 + $0xe8] sm:$0x3] %vm2274, 0.0
        %2303 = vst.msk [vmem:[#allocation5 + $0xf0] sm:$0xff] %vm1728, 0.0
        %2304 = vst.msk [vmem:[#allocation5 + $0xf8] sm:$0xff] %vm1728, 0.0
        %2305 = vst.msk [vmem:[#allocation5 + $0x100] sm:$0x3] %vm2274, 0.0
        %2306 = vst.msk [vmem:[#allocation5 + $0x108] sm:$0xff] %vm1728, 0.0
        %2307 = vst.msk [vmem:[#allocation5 + $0x110] sm:$0xff] %vm1728, 0.0
        %2308 = vst.msk [vmem:[#allocation5 + $0x118] sm:$0x3] %vm2274, 0.0
        %2309 = vst.msk [vmem:[#allocation5 + $0x120] sm:$0xff] %vm1728, 0.0
        %2310 = vst.msk [vmem:[#allocation5 + $0x128] sm:$0xff] %vm1728, 0.0
        %2311 = vst.msk [vmem:[#allocation5 + $0x130] sm:$0x3] %vm2274, 0.0
        %2312 = vst.msk [vmem:[#allocation5 + $0x138] sm:$0xff] %vm1728, 0.0
        %2313 = vst.msk [vmem:[#allocation5 + $0x140] sm:$0xff] %vm1728, 0.0
        %2314 = vst.msk [vmem:[#allocation5 + $0x148] sm:$0x3] %vm2274, 0.0
        %2315 = vst.msk [vmem:[#allocation5 + $0x150] sm:$0xff] %vm1728, 0.0
        %2316 = vst.msk [vmem:[#allocation5 + $0x158] sm:$0xff] %vm1728, 0.0
        %2317 = vst.msk [vmem:[#allocation5 + $0x160] sm:$0x3] %vm2274, 0.0
        %2318 = vst.msk [vmem:[#allocation5 + $0x168] sm:$0xff] %vm1728, 0.0
        %2319 = vst.msk [vmem:[#allocation5 + $0x170] sm:$0xff] %vm1728, 0.0
        %2320 = vst.msk [vmem:[#allocation5 + $0x178] sm:$0x3] %vm2274, 0.0
        %2321 = vst.msk [vmem:[#allocation5 + $0x180] sm:$0xff] %vm1728, 0.0
        %2322 = vst.msk [vmem:[#allocation5 + $0x188] sm:$0xff] %vm1728, 0.0
        %2323 = vst.msk [vmem:[#allocation5 + $0x190] sm:$0x3] %vm2274, 0.0
        %2324 = vst.msk [vmem:[#allocation5 + $0x198] sm:$0xff] %vm1728, 0.0
        %2325 = vst.msk [vmem:[#allocation5 + $0x1a0] sm:$0xff] %vm1728, 0.0
        %2326 = vst.msk [vmem:[#allocation5 + $0x1a8] sm:$0x3] %vm2274, 0.0
        %s2327 = scalar_lea.vmem [#allocation5], 24
        %2328 = vst.msk [vmem:[%s2327 + $0x1] sm:$0xff] %vm1728, %v2178
        %2329 = vst.msk [vmem:[%s2327 + $0x9] sm:$0xff] %vm1728, %v2181
        %2330 = vst.msk [vmem:[%s2327 + $0x19] sm:$0xff] %vm1728, %v2184
        %2331 = vst.msk [vmem:[%s2327 + $0x21] sm:$0xff] %vm1728, %v2187
        %2332 = vst.msk [vmem:[%s2327 + $0x31] sm:$0xff] %vm1728, %v2190
        %2333 = vst.msk [vmem:[%s2327 + $0x39] sm:$0xff] %vm1728, %v2193
        %2334 = vst.msk [vmem:[%s2327 + $0x49] sm:$0xff] %vm1728, %v2196
        %2335 = vst.msk [vmem:[%s2327 + $0x51] sm:$0xff] %vm1728, %v2199
        %2336 = vst.msk [vmem:[%s2327 + $0x61] sm:$0xff] %vm1728, %v2202
        %2337 = vst.msk [vmem:[%s2327 + $0x69] sm:$0xff] %vm1728, %v2205
        %2338 = vst.msk [vmem:[%s2327 + $0x79] sm:$0xff] %vm1728, %v2208
        %2339 = vst.msk [vmem:[%s2327 + $0x81] sm:$0xff] %vm1728, %v2211
        %2340 = vst.msk [vmem:[%s2327 + $0x91] sm:$0xff] %vm1728, %v2214
        %2341 = vst.msk [vmem:[%s2327 + $0x99] sm:$0xff] %vm1728, %v2217
        %2342 = vst.msk [vmem:[%s2327 + $0xa9] sm:$0xff] %vm1728, %v2220
        %2343 = vst.msk [vmem:[%s2327 + $0xb1] sm:$0xff] %vm1728, %v2223
        %2344 = vst.msk [vmem:[%s2327 + $0xc1] sm:$0xff] %vm1728, %v2226
        %2345 = vst.msk [vmem:[%s2327 + $0xc9] sm:$0xff] %vm1728, %v2229
        %2346 = vst.msk [vmem:[%s2327 + $0xd9] sm:$0xff] %vm1728, %v2232
        %2347 = vst.msk [vmem:[%s2327 + $0xe1] sm:$0xff] %vm1728, %v2235
        %2348 = vst.msk [vmem:[%s2327 + $0xf1] sm:$0xff] %vm1728, %v2238
        %2349 = vst.msk [vmem:[%s2327 + $0xf9] sm:$0xff] %vm1728, %v2241
        %2350 = vst.msk [vmem:[%s2327 + $0x109] sm:$0xff] %vm1728, %v2244
        %2351 = vst.msk [vmem:[%s2327 + $0x111] sm:$0xff] %vm1728, %v2247
        %2352 = vst.msk [vmem:[%s2327 + $0x121] sm:$0xff] %vm1728, %v2250
        %2353 = vst.msk [vmem:[%s2327 + $0x129] sm:$0xff] %vm1728, %v2253
        %2354 = vst.msk [vmem:[%s2327 + $0x139] sm:$0xff] %vm1728, %v2256
        %2355 = vst.msk [vmem:[%s2327 + $0x141] sm:$0xff] %vm1728, %v2259
        %2356 = vst.msk [vmem:[%s2327 + $0x151] sm:$0xff] %vm1728, %v2262
        %2357 = vst.msk [vmem:[%s2327 + $0x159] sm:$0xff] %vm1728, %v2265
        %2358 = vst.msk [vmem:[%s2327 + $0x169] sm:$0xff] %vm1728, %v2268
        %2359 = vst.msk [vmem:[%s2327 + $0x171] sm:$0xff] %vm1728, %v2271
        %v2360 = vld [vmem:[#allocation5] sm:$0xff]
        %v2361 = vld [vmem:[#allocation5 + $0x8] sm:$0xff]
        %v2362 = vld [vmem:[#allocation5 + $0x18] sm:$0xff]
        %v2363 = vld [vmem:[#allocation5 + $0x20] sm:$0xff]
        %v2364 = vld [vmem:[#allocation5 + $0x30] sm:$0xff]
        %v2365 = vld [vmem:[#allocation5 + $0x38] sm:$0xff]
        %v2366 = vld [vmem:[#allocation5 + $0x48] sm:$0xff]
        %v2367 = vld [vmem:[#allocation5 + $0x50] sm:$0xff]
        %v2368 = vld [vmem:[#allocation5 + $0x60] sm:$0xff]
        %v2369 = vld [vmem:[#allocation5 + $0x68] sm:$0xff]
        %v2370 = vld [vmem:[#allocation5 + $0x78] sm:$0xff]
        %v2371 = vld [vmem:[#allocation5 + $0x80] sm:$0xff]
        %v2372 = vld [vmem:[#allocation5 + $0x90] sm:$0xff]
        %v2373 = vld [vmem:[#allocation5 + $0x98] sm:$0xff]
        %v2374 = vld [vmem:[#allocation5 + $0xa8] sm:$0xff]
        %v2375 = vld [vmem:[#allocation5 + $0xb0] sm:$0xff]
        %v2376 = vld [vmem:[#allocation5 + $0xc0] sm:$0xff]
        %v2377 = vld [vmem:[#allocation5 + $0xc8] sm:$0xff]
        %v2378 = vld [vmem:[#allocation5 + $0xd8] sm:$0xff]
        %v2379 = vld [vmem:[#allocation5 + $0xe0] sm:$0xff]
        %v2380 = vld [vmem:[#allocation5 + $0xf0] sm:$0xff]
        %v2381 = vld [vmem:[#allocation5 + $0xf8] sm:$0xff]
        %v2382 = vld [vmem:[#allocation5 + $0x108] sm:$0xff]
        %v2383 = vld [vmem:[#allocation5 + $0x110] sm:$0xff]
        %v2384 = vld [vmem:[#allocation5 + $0x120] sm:$0xff]
        %v2385 = vld [vmem:[#allocation5 + $0x128] sm:$0xff]
        %v2386 = vld [vmem:[#allocation5 + $0x138] sm:$0xff]
        %v2387 = vld [vmem:[#allocation5 + $0x140] sm:$0xff]
        %v2388 = vld [vmem:[#allocation5 + $0x150] sm:$0xff]
        %v2389 = vld [vmem:[#allocation5 + $0x158] sm:$0xff]
        %v2390 = vld [vmem:[#allocation5 + $0x168] sm:$0xff]
        %v2391 = vld [vmem:[#allocation5 + $0x170] sm:$0xff]
        %v2392 = vpack.c.bf16 %v2361, %v2360
        %v2393 = vpack.c.bf16 %v2363, %v2362
        %v2394 = vpack.c.bf16 %v2365, %v2364
        %v2395 = vpack.c.bf16 %v2367, %v2366
        %v2396 = vpack.c.bf16 %v2369, %v2368
        %v2397 = vpack.c.bf16 %v2371, %v2370
        %v2398 = vpack.c.bf16 %v2373, %v2372
        %v2399 = vpack.c.bf16 %v2375, %v2374
        %v2400 = vpack.c.bf16 %v2377, %v2376
        %v2401 = vpack.c.bf16 %v2379, %v2378
        %v2402 = vpack.c.bf16 %v2381, %v2380
        %v2403 = vpack.c.bf16 %v2383, %v2382
        %v2404 = vpack.c.bf16 %v2385, %v2384
        %v2405 = vpack.c.bf16 %v2387, %v2386
        %v2406 = vpack.c.bf16 %v2389, %v2388
        %v2407 = vpack.c.bf16 %v2391, %v2390
        %v2408 = vld [vmem:[%s3] sm:$0xf]
        %v2409 = vld [vmem:[%s3 + $0x4] sm:$0xf]
        %v2410 = vld [vmem:[%s3 + $0x8] sm:$0xf]
        %v2411 = vld [vmem:[%s3 + $0xc] sm:$0xf]
        %v2412 = vld [vmem:[#allocation5 + $0x1] sm:$0xff]
        %v2413 = vld [vmem:[#allocation5 + $0x9] sm:$0xff]
        %v2414 = vld [vmem:[#allocation5 + $0x19] sm:$0xff]
        %v2415 = vld [vmem:[#allocation5 + $0x21] sm:$0xff]
        %v2416 = vld [vmem:[#allocation5 + $0x31] sm:$0xff]
        %v2417 = vld [vmem:[#allocation5 + $0x39] sm:$0xff]
        %v2418 = vld [vmem:[#allocation5 + $0x49] sm:$0xff]
        %v2419 = vld [vmem:[#allocation5 + $0x51] sm:$0xff]
        %v2420 = vld [vmem:[#allocation5 + $0x61] sm:$0xff]
        %v2421 = vld [vmem:[#allocation5 + $0x69] sm:$0xff]
        %v2422 = vld [vmem:[#allocation5 + $0x79] sm:$0xff]
        %v2423 = vld [vmem:[#allocation5 + $0x81] sm:$0xff]
        %v2424 = vld [vmem:[#allocation5 + $0x91] sm:$0xff]
        %v2425 = vld [vmem:[#allocation5 + $0x99] sm:$0xff]
        %v2426 = vld [vmem:[#allocation5 + $0xa9] sm:$0xff]
        %v2427 = vld [vmem:[#allocation5 + $0xb1] sm:$0xff]
        %v2428 = vld [vmem:[#allocation5 + $0xc1] sm:$0xff]
        %v2429 = vld [vmem:[#allocation5 + $0xc9] sm:$0xff]
        %v2430 = vld [vmem:[#allocation5 + $0xd9] sm:$0xff]
        %v2431 = vld [vmem:[#allocation5 + $0xe1] sm:$0xff]
        %v2432 = vld [vmem:[#allocation5 + $0xf1] sm:$0xff]
        %v2433 = vld [vmem:[#allocation5 + $0xf9] sm:$0xff]
        %v2434 = vld [vmem:[#allocation5 + $0x109] sm:$0xff]
        %v2435 = vld [vmem:[#allocation5 + $0x111] sm:$0xff]
        %v2436 = vld [vmem:[#allocation5 + $0x121] sm:$0xff]
        %v2437 = vld [vmem:[#allocation5 + $0x129] sm:$0xff]
        %v2438 = vld [vmem:[#allocation5 + $0x139] sm:$0xff]
        %v2439 = vld [vmem:[#allocation5 + $0x141] sm:$0xff]
        %v2440 = vld [vmem:[#allocation5 + $0x151] sm:$0xff]
        %v2441 = vld [vmem:[#allocation5 + $0x159] sm:$0xff]
        %v2442 = vld [vmem:[#allocation5 + $0x169] sm:$0xff]
        %v2443 = vld [vmem:[#allocation5 + $0x171] sm:$0xff]
        %v2444 = vpack.c.bf16 %v2413, %v2412
        %v2445 = vpack.c.bf16 %v2415, %v2414
        %v2446 = vpack.c.bf16 %v2417, %v2416
        %v2447 = vpack.c.bf16 %v2419, %v2418
        %v2448 = vpack.c.bf16 %v2421, %v2420
        %v2449 = vpack.c.bf16 %v2423, %v2422
        %v2450 = vpack.c.bf16 %v2425, %v2424
        %v2451 = vpack.c.bf16 %v2427, %v2426
        %v2452 = vpack.c.bf16 %v2429, %v2428
        %v2453 = vpack.c.bf16 %v2431, %v2430
        %v2454 = vpack.c.bf16 %v2433, %v2432
        %v2455 = vpack.c.bf16 %v2435, %v2434
        %v2456 = vpack.c.bf16 %v2437, %v2436
        %v2457 = vpack.c.bf16 %v2439, %v2438
        %v2458 = vpack.c.bf16 %v2441, %v2440
        %v2459 = vpack.c.bf16 %v2443, %v2442
        %s2460 = scalar_lea.vmem %s3, 16
        %v2461 = vld [vmem:[%s2460] sm:$0xf]
        %v2462 = vld [vmem:[%s2460 + $0x4] sm:$0xf]
        %v2463 = vld [vmem:[%s2460 + $0x8] sm:$0xf]
        %v2464 = vld [vmem:[%s2460 + $0xc] sm:$0xf]
        %v2469 = vunpack.c.l.b16 %v2461
        %v2470 = vunpack.c.l.b16 %v2462
        %v2471 = vunpack.c.l.b16 %v2463
        %v2472 = vunpack.c.l.b16 %v2464
        %v2473 = vpack.c.b16 %v2470, %v2469
        %v2474 = vpack.c.b16 %v2472, %v2471
        %v2478 = vsel %vm1728, %v2444, 0
        %v2481 = vsel %vm1728, %v2445, 0
        %v2484 = vsel %vm1728, %v2446, 0
        %v2487 = vsel %vm1728, %v2447, 0
        %v2490 = vsel %vm1728, %v2448, 0
        %v2493 = vsel %vm1728, %v2449, 0
        %v2496 = vsel %vm1728, %v2450, 0
        %v2499 = vsel %vm1728, %v2451, 0
        %v2502 = vsel %vm1728, %v2452, 0
        %v2505 = vsel %vm1728, %v2453, 0
        %v2508 = vsel %vm1728, %v2454, 0
        %v2511 = vsel %vm1728, %v2455, 0
        %v2514 = vsel %vm1728, %v2456, 0
        %v2517 = vsel %vm1728, %v2457, 0
        %v2520 = vsel %vm1728, %v2458, 0
        %v2523 = vsel %vm1728, %v2459, 0
        %2525 = vmatprep.subr.bf16.mxu0 0
        %2526 = vmatpush1.bf16.msra.mxu0 %v2473
        %2527 = vmatprep.subr.bf16.mxu0 0
        %2528 = vmatpush1.bf16.msra.mxu0 %v2474
        %2529 = vmatprep.subr.bf16.mxu0 0
        %2530 = vmatpush1.bf16.msra.mxu0 0
        %2531 = vmatprep.subr.bf16.mxu0 0
        %2532 = vmatpush1.bf16.msra.mxu0 0
        %2533 = vmatprep.subr.bf16.mxu0 0
        %2534 = vmatpush1.bf16.msra.mxu0 0
        %2535 = vmatprep.subr.bf16.mxu0 0
        %2536 = vmatpush1.bf16.msra.mxu0 0
        %2537 = vmatprep.subr.bf16.mxu0 0
        %2538 = vmatpush1.bf16.msra.mxu0 0
        %2539 = vmatprep.subr.bf16.mxu0 0
        %2540 = vmatpush1.bf16.msra.mxu0 0
        %2541 = vmatprep.subr.bf16.mxu0 0
        %2542 = vmatpush1.bf16.msra.mxu0 0
        %2543 = vmatprep.subr.bf16.mxu0 0
        %2544 = vmatpush1.bf16.msra.mxu0 0
        %2545 = vmatprep.subr.bf16.mxu0 0
        %2546 = vmatpush1.bf16.msra.mxu0 0
        %2547 = vmatprep.subr.bf16.mxu0 0
        %2548 = vmatpush1.bf16.msra.mxu0 0
        %2549 = vmatprep.subr.bf16.mxu0 0
        %2550 = vmatpush1.bf16.msra.mxu0 0
        %2551 = vmatprep.subr.bf16.mxu0 0
        %2552 = vmatpush1.bf16.msra.mxu0 0
        %2553 = vmatprep.subr.bf16.mxu0 0
        %2554 = vmatpush1.bf16.msra.mxu0 0
        %2555 = vmatprep.subr.bf16.mxu0 0
        %2556 = vmatpush1.bf16.msra.mxu0 0
        %2557 = vmatprep.mubr.bf16.mxu0 0
        %2558 = vmatmul.mubr.bf16.gmra.mrb[0].mxu0 %v2478
        %v2559 = vpop.f32.mrb[0].mxu0
        %v2560 = vadd.f32 0.0, %v2559
        %v2561 = vpop.f32.mrb[0].mxu0
        %v2562 = vpop.f32.mrb[0].mxu0
        %v2563 = vadd.f32 0.0, %v2562
        %v2564 = vpop.f32.mrb[0].mxu0
        %2565 = vmatprep.mubr.bf16.mxu0 0
        %2566 = vmatmul.mubr.bf16.gmra.mrb[0].mxu0 %v2481
        %v2567 = vpop.f32.mrb[0].mxu0
        %v2568 = vadd.f32 0.0, %v2567
        %v2569 = vpop.f32.mrb[0].mxu0
        %v2570 = vpop.f32.mrb[0].mxu0
        %v2571 = vadd.f32 0.0, %v2570
        %v2572 = vpop.f32.mrb[0].mxu0
        %2573 = vmatprep.mubr.bf16.mxu0 0
        %2574 = vmatmul.mubr.bf16.gmra.mrb[0].mxu0 %v2484
        %v2575 = vpop.f32.mrb[0].mxu0
        %v2576 = vadd.f32 0.0, %v2575
        %v2577 = vpop.f32.mrb[0].mxu0
        %v2578 = vpop.f32.mrb[0].mxu0
        %v2579 = vadd.f32 0.0, %v2578
        %v2580 = vpop.f32.mrb[0].mxu0
        %2581 = vmatprep.mubr.bf16.mxu0 0
        %2582 = vmatmul.mubr.bf16.gmra.mrb[0].mxu0 %v2487
        %v2583 = vpop.f32.mrb[0].mxu0
        %v2584 = vadd.f32 0.0, %v2583
        %v2585 = vpop.f32.mrb[0].mxu0
        %v2586 = vpop.f32.mrb[0].mxu0
        %v2587 = vadd.f32 0.0, %v2586
        %v2588 = vpop.f32.mrb[0].mxu0
        %2589 = vmatprep.mubr.bf16.mxu0 0
        %2590 = vmatmul.mubr.bf16.gmra.mrb[0].mxu0 %v2490
        %v2591 = vpop.f32.mrb[0].mxu0
        %v2592 = vadd.f32 0.0, %v2591
        %v2593 = vpop.f32.mrb[0].mxu0
        %v2594 = vpop.f32.mrb[0].mxu0
        %v2595 = vadd.f32 0.0, %v2594
        %v2596 = vpop.f32.mrb[0].mxu0
        %2597 = vmatprep.mubr.bf16.mxu0 0
        %2598 = vmatmul.mubr.bf16.gmra.mrb[0].mxu0 %v2493
        %v2599 = vpop.f32.mrb[0].mxu0
        %v2600 = vadd.f32 0.0, %v2599
        %v2601 = vpop.f32.mrb[0].mxu0
        %v2602 = vpop.f32.mrb[0].mxu0
        %v2603 = vadd.f32 0.0, %v2602
        %v2604 = vpop.f32.mrb[0].mxu0
        %2605 = vmatprep.mubr.bf16.mxu0 0
        %2606 = vmatmul.mubr.bf16.gmra.mrb[0].mxu0 %v2496
        %v2607 = vpop.f32.mrb[0].mxu0
        %v2608 = vadd.f32 0.0, %v2607
        %v2609 = vpop.f32.mrb[0].mxu0
        %v2610 = vpop.f32.mrb[0].mxu0
        %v2611 = vadd.f32 0.0, %v2610
        %v2612 = vpop.f32.mrb[0].mxu0
        %2613 = vmatprep.mubr.bf16.mxu0 0
        %2614 = vmatmul.mubr.bf16.gmra.mrb[0].mxu0 %v2499
        %v2615 = vpop.f32.mrb[0].mxu0
        %v2616 = vadd.f32 0.0, %v2615
        %v2617 = vpop.f32.mrb[0].mxu0
        %v2618 = vpop.f32.mrb[0].mxu0
        %v2619 = vadd.f32 0.0, %v2618
        %v2620 = vpop.f32.mrb[0].mxu0
        %2621 = vmatprep.mubr.bf16.mxu0 0
        %2622 = vmatmul.mubr.bf16.gmra.mrb[0].mxu0 %v2502
        %v2623 = vpop.f32.mrb[0].mxu0
        %v2624 = vadd.f32 0.0, %v2623
        %v2625 = vpop.f32.mrb[0].mxu0
        %v2626 = vpop.f32.mrb[0].mxu0
        %v2627 = vadd.f32 0.0, %v2626
        %v2628 = vpop.f32.mrb[0].mxu0
        %2629 = vmatprep.mubr.bf16.mxu0 0
        %2630 = vmatmul.mubr.bf16.gmra.mrb[0].mxu0 %v2505
        %v2631 = vpop.f32.mrb[0].mxu0
        %v2632 = vadd.f32 0.0, %v2631
        %v2633 = vpop.f32.mrb[0].mxu0
        %v2634 = vpop.f32.mrb[0].mxu0
        %v2635 = vadd.f32 0.0, %v2634
        %v2636 = vpop.f32.mrb[0].mxu0
        %2637 = vmatprep.mubr.bf16.mxu0 0
        %2638 = vmatmul.mubr.bf16.gmra.mrb[0].mxu0 %v2508
        %v2639 = vpop.f32.mrb[0].mxu0
        %v2640 = vadd.f32 0.0, %v2639
        %v2641 = vpop.f32.mrb[0].mxu0
        %v2642 = vpop.f32.mrb[0].mxu0
        %v2643 = vadd.f32 0.0, %v2642
        %v2644 = vpop.f32.mrb[0].mxu0
        %2645 = vmatprep.mubr.bf16.mxu0 0
        %2646 = vmatmul.mubr.bf16.gmra.mrb[0].mxu0 %v2511
        %v2647 = vpop.f32.mrb[0].mxu0
        %v2648 = vadd.f32 0.0, %v2647
        %v2649 = vpop.f32.mrb[0].mxu0
        %v2650 = vpop.f32.mrb[0].mxu0
        %v2651 = vadd.f32 0.0, %v2650
        %v2652 = vpop.f32.mrb[0].mxu0
        %2653 = vmatprep.mubr.bf16.mxu0 0
        %2654 = vmatmul.mubr.bf16.gmra.mrb[0].mxu0 %v2514
        %v2655 = vpop.f32.mrb[0].mxu0
        %v2656 = vadd.f32 0.0, %v2655
        %v2657 = vpop.f32.mrb[0].mxu0
        %v2658 = vpop.f32.mrb[0].mxu0
        %v2659 = vadd.f32 0.0, %v2658
        %v2660 = vpop.f32.mrb[0].mxu0
        %2661 = vmatprep.mubr.bf16.mxu0 0
        %2662 = vmatmul.mubr.bf16.gmra.mrb[0].mxu0 %v2517
        %v2663 = vpop.f32.mrb[0].mxu0
        %v2664 = vadd.f32 0.0, %v2663
        %v2665 = vpop.f32.mrb[0].mxu0
        %v2666 = vpop.f32.mrb[0].mxu0
        %v2667 = vadd.f32 0.0, %v2666
        %v2668 = vpop.f32.mrb[0].mxu0
        %2669 = vmatprep.mubr.bf16.mxu0 0
        %2670 = vmatmul.mubr.bf16.gmra.mrb[0].mxu0 %v2520
        %v2671 = vpop.f32.mrb[0].mxu0
        %v2672 = vadd.f32 0.0, %v2671
        %v2673 = vpop.f32.mrb[0].mxu0
        %v2674 = vpop.f32.mrb[0].mxu0
        %v2675 = vadd.f32 0.0, %v2674
        %v2676 = vpop.f32.mrb[0].mxu0
        %2677 = vmatprep.mubr.bf16.mxu0 0
        %2678 = vmatmul.mubr.bf16.gmra.mrb[0].mxu0 %v2523
        %v2679 = vpop.f32.mrb[0].mxu0
        %v2680 = vadd.f32 0.0, %v2679
        %v2681 = vpop.f32.mrb[0].mxu0
        %v2682 = vpop.f32.mrb[0].mxu0
        %v2683 = vadd.f32 0.0, %v2682
        %v2684 = vpop.f32.mrb[0].mxu0
        %2685 = vdwg.mxu0
        %v2690 = vunpack.c.l.b16 %v2408
        %v2691 = vunpack.c.l.b16 %v2409
        %v2692 = vunpack.c.l.b16 %v2410
        %v2693 = vunpack.c.l.b16 %v2411
        %v2694 = vpack.c.b16 %v2691, %v2690
        %v2695 = vpack.c.b16 %v2693, %v2692
        %v2699 = vsel %vm1728, %v2392, 0
        %v2702 = vsel %vm1728, %v2393, 0
        %v2705 = vsel %vm1728, %v2394, 0
        %v2708 = vsel %vm1728, %v2395, 0
        %v2711 = vsel %vm1728, %v2396, 0
        %v2714 = vsel %vm1728, %v2397, 0
        %v2717 = vsel %vm1728, %v2398, 0
        %v2720 = vsel %vm1728, %v2399, 0
        %v2723 = vsel %vm1728, %v2400, 0
        %v2726 = vsel %vm1728, %v2401, 0
        %v2729 = vsel %vm1728, %v2402, 0
        %v2732 = vsel %vm1728, %v2403, 0
        %v2735 = vsel %vm1728, %v2404, 0
        %v2738 = vsel %vm1728, %v2405, 0
        %v2741 = vsel %vm1728, %v2406, 0
        %v2744 = vsel %vm1728, %v2407, 0
        %2746 = vmatprep.subr.bf16.mxu0 0
        %2747 = vmatpush1.bf16.msra.mxu0 %v2694
        %2748 = vmatprep.subr.bf16.mxu0 0
        %2749 = vmatpush1.bf16.msra.mxu0 %v2695
        %2750 = vmatprep.subr.bf16.mxu0 0
        %2751 = vmatpush1.bf16.msra.mxu0 0
        %2752 = vmatprep.subr.bf16.mxu0 0
        %2753 = vmatpush1.bf16.msra.mxu0 0
        %2754 = vmatprep.subr.bf16.mxu0 0
        %2755 = vmatpush1.bf16.msra.mxu0 0
        %2756 = vmatprep.subr.bf16.mxu0 0
        %2757 = vmatpush1.bf16.msra.mxu0 0
        %2758 = vmatprep.subr.bf16.mxu0 0
        %2759 = vmatpush1.bf16.msra.mxu0 0
        %2760 = vmatprep.subr.bf16.mxu0 0
        %2761 = vmatpush1.bf16.msra.mxu0 0
        %2762 = vmatprep.subr.bf16.mxu0 0
        %2763 = vmatpush1.bf16.msra.mxu0 0
        %2764 = vmatprep.subr.bf16.mxu0 0
        %2765 = vmatpush1.bf16.msra.mxu0 0
        %2766 = vmatprep.subr.bf16.mxu0 0
        %2767 = vmatpush1.bf16.msra.mxu0 0
        %2768 = vmatprep.subr.bf16.mxu0 0
        %2769 = vmatpush1.bf16.msra.mxu0 0
        %2770 = vmatprep.subr.bf16.mxu0 0
        %2771 = vmatpush1.bf16.msra.mxu0 0
        %2772 = vmatprep.subr.bf16.mxu0 0
        %2773 = vmatpush1.bf16.msra.mxu0 0
        %2774 = vmatprep.subr.bf16.mxu0 0
        %2775 = vmatpush1.bf16.msra.mxu0 0
        %2776 = vmatprep.subr.bf16.mxu0 0
        %2777 = vmatpush1.bf16.msra.mxu0 0
        %2778 = vmatprep.mubr.bf16.mxu0 0
        %2779 = vmatmul.mubr.bf16.gmra.mrb[0].mxu0 %v2699
        %v2780 = vpop.f32.mrb[0].mxu0
        %v2781 = vadd.f32 %v2560, %v2780
        %v2782 = vpop.f32.mrb[0].mxu0
        %v2783 = vpop.f32.mrb[0].mxu0
        %v2784 = vadd.f32 %v2563, %v2783
        %v2785 = vpop.f32.mrb[0].mxu0
        %2786 = vmatprep.mubr.bf16.mxu0 0
        %2787 = vmatmul.mubr.bf16.gmra.mrb[0].mxu0 %v2702
        %v2788 = vpop.f32.mrb[0].mxu0
        %v2789 = vadd.f32 %v2568, %v2788
        %v2790 = vpop.f32.mrb[0].mxu0
        %v2791 = vpop.f32.mrb[0].mxu0
        %v2792 = vadd.f32 %v2571, %v2791
        %v2793 = vpop.f32.mrb[0].mxu0
        %2794 = vmatprep.mubr.bf16.mxu0 0
        %2795 = vmatmul.mubr.bf16.gmra.mrb[0].mxu0 %v2705
        %v2796 = vpop.f32.mrb[0].mxu0
        %v2797 = vadd.f32 %v2576, %v2796
        %v2798 = vpop.f32.mrb[0].mxu0
        %v2799 = vpop.f32.mrb[0].mxu0
        %v2800 = vadd.f32 %v2579, %v2799
        %v2801 = vpop.f32.mrb[0].mxu0
        %2802 = vmatprep.mubr.bf16.mxu0 0
        %2803 = vmatmul.mubr.bf16.gmra.mrb[0].mxu0 %v2708
        %v2804 = vpop.f32.mrb[0].mxu0
        %v2805 = vadd.f32 %v2584, %v2804
        %v2806 = vpop.f32.mrb[0].mxu0
        %v2807 = vpop.f32.mrb[0].mxu0
        %v2808 = vadd.f32 %v2587, %v2807
        %v2809 = vpop.f32.mrb[0].mxu0
        %2810 = vmatprep.mubr.bf16.mxu0 0
        %2811 = vmatmul.mubr.bf16.gmra.mrb[0].mxu0 %v2711
        %v2812 = vpop.f32.mrb[0].mxu0
        %v2813 = vadd.f32 %v2592, %v2812
        %v2814 = vpop.f32.mrb[0].mxu0
        %v2815 = vpop.f32.mrb[0].mxu0
        %v2816 = vadd.f32 %v2595, %v2815
        %v2817 = vpop.f32.mrb[0].mxu0
        %2818 = vmatprep.mubr.bf16.mxu0 0
        %2819 = vmatmul.mubr.bf16.gmra.mrb[0].mxu0 %v2714
        %v2820 = vpop.f32.mrb[0].mxu0
        %v2821 = vadd.f32 %v2600, %v2820
        %v2822 = vpop.f32.mrb[0].mxu0
        %v2823 = vpop.f32.mrb[0].mxu0
        %v2824 = vadd.f32 %v2603, %v2823
        %v2825 = vpop.f32.mrb[0].mxu0
        %2826 = vmatprep.mubr.bf16.mxu0 0
        %2827 = vmatmul.mubr.bf16.gmra.mrb[0].mxu0 %v2717
        %v2828 = vpop.f32.mrb[0].mxu0
        %v2829 = vadd.f32 %v2608, %v2828
        %v2830 = vpop.f32.mrb[0].mxu0
        %v2831 = vpop.f32.mrb[0].mxu0
        %v2832 = vadd.f32 %v2611, %v2831
        %v2833 = vpop.f32.mrb[0].mxu0
        %2834 = vmatprep.mubr.bf16.mxu0 0
        %2835 = vmatmul.mubr.bf16.gmra.mrb[0].mxu0 %v2720
        %v2836 = vpop.f32.mrb[0].mxu0
        %v2837 = vadd.f32 %v2616, %v2836
        %v2838 = vpop.f32.mrb[0].mxu0
        %v2839 = vpop.f32.mrb[0].mxu0
        %v2840 = vadd.f32 %v2619, %v2839
        %v2841 = vpop.f32.mrb[0].mxu0
        %2842 = vmatprep.mubr.bf16.mxu0 0
        %2843 = vmatmul.mubr.bf16.gmra.mrb[0].mxu0 %v2723
        %v2844 = vpop.f32.mrb[0].mxu0
        %v2845 = vadd.f32 %v2624, %v2844
        %v2846 = vpop.f32.mrb[0].mxu0
        %v2847 = vpop.f32.mrb[0].mxu0
        %v2848 = vadd.f32 %v2627, %v2847
        %v2849 = vpop.f32.mrb[0].mxu0
        %2850 = vmatprep.mubr.bf16.mxu0 0
        %2851 = vmatmul.mubr.bf16.gmra.mrb[0].mxu0 %v2726
        %v2852 = vpop.f32.mrb[0].mxu0
        %v2853 = vadd.f32 %v2632, %v2852
        %v2854 = vpop.f32.mrb[0].mxu0
        %v2855 = vpop.f32.mrb[0].mxu0
        %v2856 = vadd.f32 %v2635, %v2855
        %v2857 = vpop.f32.mrb[0].mxu0
        %2858 = vmatprep.mubr.bf16.mxu0 0
        %2859 = vmatmul.mubr.bf16.gmra.mrb[0].mxu0 %v2729
        %v2860 = vpop.f32.mrb[0].mxu0
        %v2861 = vadd.f32 %v2640, %v2860
        %v2862 = vpop.f32.mrb[0].mxu0
        %v2863 = vpop.f32.mrb[0].mxu0
        %v2864 = vadd.f32 %v2643, %v2863
        %v2865 = vpop.f32.mrb[0].mxu0
        %2866 = vmatprep.mubr.bf16.mxu0 0
        %2867 = vmatmul.mubr.bf16.gmra.mrb[0].mxu0 %v2732
        %v2868 = vpop.f32.mrb[0].mxu0
        %v2869 = vadd.f32 %v2648, %v2868
        %v2870 = vpop.f32.mrb[0].mxu0
        %v2871 = vpop.f32.mrb[0].mxu0
        %v2872 = vadd.f32 %v2651, %v2871
        %v2873 = vpop.f32.mrb[0].mxu0
        %2874 = vmatprep.mubr.bf16.mxu0 0
        %2875 = vmatmul.mubr.bf16.gmra.mrb[0].mxu0 %v2735
        %v2876 = vpop.f32.mrb[0].mxu0
        %v2877 = vadd.f32 %v2656, %v2876
        %v2878 = vpop.f32.mrb[0].mxu0
        %v2879 = vpop.f32.mrb[0].mxu0
        %v2880 = vadd.f32 %v2659, %v2879
        %v2881 = vpop.f32.mrb[0].mxu0
        %2882 = vmatprep.mubr.bf16.mxu0 0
        %2883 = vmatmul.mubr.bf16.gmra.mrb[0].mxu0 %v2738
        %v2884 = vpop.f32.mrb[0].mxu0
        %v2885 = vadd.f32 %v2664, %v2884
        %v2886 = vpop.f32.mrb[0].mxu0
        %v2887 = vpop.f32.mrb[0].mxu0
        %v2888 = vadd.f32 %v2667, %v2887
        %v2889 = vpop.f32.mrb[0].mxu0
        %2890 = vmatprep.mubr.bf16.mxu0 0
        %2891 = vmatmul.mubr.bf16.gmra.mrb[0].mxu0 %v2741
        %v2892 = vpop.f32.mrb[0].mxu0
        %v2893 = vadd.f32 %v2672, %v2892
        %v2894 = vpop.f32.mrb[0].mxu0
        %v2895 = vpop.f32.mrb[0].mxu0
        %v2896 = vadd.f32 %v2675, %v2895
        %v2897 = vpop.f32.mrb[0].mxu0
        %2898 = vmatprep.mubr.bf16.mxu0 0
        %2899 = vmatmul.mubr.bf16.gmra.mrb[0].mxu0 %v2744
        %v2900 = vpop.f32.mrb[0].mxu0
        %v2901 = vadd.f32 %v2680, %v2900
        %v2902 = vpop.f32.mrb[0].mxu0
        %v2903 = vpop.f32.mrb[0].mxu0
        %v2904 = vadd.f32 %v2683, %v2903
        %v2905 = vpop.f32.mrb[0].mxu0
        %2906 = vdwg.mxu0
        %v2907 = vld [vmem:[#allocation5 + $0x2] sm:$0xff]
        %v2908 = vld [vmem:[#allocation5 + $0xa] sm:$0xff]
        %v2909 = vld [vmem:[#allocation5 + $0x1a] sm:$0xff]
        %v2910 = vld [vmem:[#allocation5 + $0x22] sm:$0xff]
        %v2911 = vld [vmem:[#allocation5 + $0x32] sm:$0xff]
        %v2912 = vld [vmem:[#allocation5 + $0x3a] sm:$0xff]
        %v2913 = vld [vmem:[#allocation5 + $0x4a] sm:$0xff]
        %v2914 = vld [vmem:[#allocation5 + $0x52] sm:$0xff]
        %v2915 = vld [vmem:[#allocation5 + $0x62] sm:$0xff]
        %v2916 = vld [vmem:[#allocation5 + $0x6a] sm:$0xff]
        %v2917 = vld [vmem:[#allocation5 + $0x7a] sm:$0xff]
        %v2918 = vld [vmem:[#allocation5 + $0x82] sm:$0xff]
        %v2919 = vld [vmem:[#allocation5 + $0x92] sm:$0xff]
        %v2920 = vld [vmem:[#allocation5 + $0x9a] sm:$0xff]
        %v2921 = vld [vmem:[#allocation5 + $0xaa] sm:$0xff]
        %v2922 = vld [vmem:[#allocation5 + $0xb2] sm:$0xff]
        %v2923 = vld [vmem:[#allocation5 + $0xc2] sm:$0xff]
        %v2924 = vld [vmem:[#allocation5 + $0xca] sm:$0xff]
        %v2925 = vld [vmem:[#allocation5 + $0xda] sm:$0xff]
        %v2926 = vld [vmem:[#allocation5 + $0xe2] sm:$0xff]
        %v2927 = vld [vmem:[#allocation5 + $0xf2] sm:$0xff]
        %v2928 = vld [vmem:[#allocation5 + $0xfa] sm:$0xff]
        %v2929 = vld [vmem:[#allocation5 + $0x10a] sm:$0xff]
        %v2930 = vld [vmem:[#allocation5 + $0x112] sm:$0xff]
        %v2931 = vld [vmem:[#allocation5 + $0x122] sm:$0xff]
        %v2932 = vld [vmem:[#allocation5 + $0x12a] sm:$0xff]
        %v2933 = vld [vmem:[#allocation5 + $0x13a] sm:$0xff]
        %v2934 = vld [vmem:[#allocation5 + $0x142] sm:$0xff]
        %v2935 = vld [vmem:[#allocation5 + $0x152] sm:$0xff]
        %v2936 = vld [vmem:[#allocation5 + $0x15a] sm:$0xff]
        %v2937 = vld [vmem:[#allocation5 + $0x16a] sm:$0xff]
        %v2938 = vld [vmem:[#allocation5 + $0x172] sm:$0xff]
        %v2939 = vpack.c.bf16 %v2908, %v2907
        %v2940 = vpack.c.bf16 %v2910, %v2909
        %v2941 = vpack.c.bf16 %v2912, %v2911
        %v2942 = vpack.c.bf16 %v2914, %v2913
        %v2943 = vpack.c.bf16 %v2916, %v2915
        %v2944 = vpack.c.bf16 %v2918, %v2917
        %v2945 = vpack.c.bf16 %v2920, %v2919
        %v2946 = vpack.c.bf16 %v2922, %v2921
        %v2947 = vpack.c.bf16 %v2924, %v2923
        %v2948 = vpack.c.bf16 %v2926, %v2925
        %v2949 = vpack.c.bf16 %v2928, %v2927
        %v2950 = vpack.c.bf16 %v2930, %v2929
        %v2951 = vpack.c.bf16 %v2932, %v2931
        %v2952 = vpack.c.bf16 %v2934, %v2933
        %v2953 = vpack.c.bf16 %v2936, %v2935
        %v2954 = vpack.c.bf16 %v2938, %v2937
        %s2955 = scalar_lea.vmem %s3, 32
        %v2956 = vld [vmem:[%s2955] sm:$0xf]
        %v2957 = vld [vmem:[%s2955 + $0x4] sm:$0xf]
        %v2958 = vld [vmem:[%s2955 + $0x8] sm:$0xf]
        %v2959 = vld [vmem:[%s2955 + $0xc] sm:$0xf]
        %v2964 = vunpack.c.l.b16 %v2956
        %v2965 = vunpack.c.l.b16 %v2957
        %v2966 = vunpack.c.l.b16 %v2958
        %v2967 = vunpack.c.l.b16 %v2959
        %v2968 = vpack.c.b16 %v2965, %v2964
        %v2969 = vpack.c.b16 %v2967, %v2966
        %v2973 = vsel %vm1728, %v2939, 0
        %v2976 = vsel %vm1728, %v2940, 0
        %v2979 = vsel %vm1728, %v2941, 0
        %v2982 = vsel %vm1728, %v2942, 0
        %v2985 = vsel %vm1728, %v2943, 0
        %v2988 = vsel %vm1728, %v2944, 0
        %v2991 = vsel %vm1728, %v2945, 0
        %v2994 = vsel %vm1728, %v2946, 0
        %v2997 = vsel %vm1728, %v2947, 0
        %v3000 = vsel %vm1728, %v2948, 0
        %v3003 = vsel %vm1728, %v2949, 0
        %v3006 = vsel %vm1728, %v2950, 0
        %v3009 = vsel %vm1728, %v2951, 0
        %v3012 = vsel %vm1728, %v2952, 0
        %v3015 = vsel %vm1728, %v2953, 0
        %v3018 = vsel %vm1728, %v2954, 0
        %3020 = vmatprep.subr.bf16.mxu0 0
        %3021 = vmatpush1.bf16.msra.mxu0 %v2968
        %3022 = vmatprep.subr.bf16.mxu0 0
        %3023 = vmatpush1.bf16.msra.mxu0 %v2969
        %3024 = vmatprep.subr.bf16.mxu0 0
        %3025 = vmatpush1.bf16.msra.mxu0 0
        %3026 = vmatprep.subr.bf16.mxu0 0
        %3027 = vmatpush1.bf16.msra.mxu0 0
        %3028 = vmatprep.subr.bf16.mxu0 0
        %3029 = vmatpush1.bf16.msra.mxu0 0
        %3030 = vmatprep.subr.bf16.mxu0 0
        %3031 = vmatpush1.bf16.msra.mxu0 0
        %3032 = vmatprep.subr.bf16.mxu0 0
        %3033 = vmatpush1.bf16.msra.mxu0 0
        %3034 = vmatprep.subr.bf16.mxu0 0
        %3035 = vmatpush1.bf16.msra.mxu0 0
        %3036 = vmatprep.subr.bf16.mxu0 0
        %3037 = vmatpush1.bf16.msra.mxu0 0
        %3038 = vmatprep.subr.bf16.mxu0 0
        %3039 = vmatpush1.bf16.msra.mxu0 0
        %3040 = vmatprep.subr.bf16.mxu0 0
        %3041 = vmatpush1.bf16.msra.mxu0 0
        %3042 = vmatprep.subr.bf16.mxu0 0
        %3043 = vmatpush1.bf16.msra.mxu0 0
        %3044 = vmatprep.subr.bf16.mxu0 0
        %3045 = vmatpush1.bf16.msra.mxu0 0
        %3046 = vmatprep.subr.bf16.mxu0 0
        %3047 = vmatpush1.bf16.msra.mxu0 0
        %3048 = vmatprep.subr.bf16.mxu0 0
        %3049 = vmatpush1.bf16.msra.mxu0 0
        %3050 = vmatprep.subr.bf16.mxu0 0
        %3051 = vmatpush1.bf16.msra.mxu0 0
        %3052 = vmatprep.mubr.bf16.mxu0 0
        %3053 = vmatmul.mubr.bf16.gmra.mrb[0].mxu0 %v2973
        %v3054 = vpop.f32.mrb[0].mxu0
        %v3055 = vadd.f32 0.0, %v3054
        %v3056 = vpop.f32.mrb[0].mxu0
        %v3057 = vpop.f32.mrb[0].mxu0
        %v3058 = vadd.f32 0.0, %v3057
        %v3059 = vpop.f32.mrb[0].mxu0
        %3060 = vmatprep.mubr.bf16.mxu0 0
        %3061 = vmatmul.mubr.bf16.gmra.mrb[0].mxu0 %v2976
        %v3062 = vpop.f32.mrb[0].mxu0
        %v3063 = vadd.f32 0.0, %v3062
        %v3064 = vpop.f32.mrb[0].mxu0
        %v3065 = vpop.f32.mrb[0].mxu0
        %v3066 = vadd.f32 0.0, %v3065
        %v3067 = vpop.f32.mrb[0].mxu0
        %3068 = vmatprep.mubr.bf16.mxu0 0
        %3069 = vmatmul.mubr.bf16.gmra.mrb[0].mxu0 %v2979
        %v3070 = vpop.f32.mrb[0].mxu0
        %v3071 = vadd.f32 0.0, %v3070
        %v3072 = vpop.f32.mrb[0].mxu0
        %v3073 = vpop.f32.mrb[0].mxu0
        %v3074 = vadd.f32 0.0, %v3073
        %v3075 = vpop.f32.mrb[0].mxu0
        %3076 = vmatprep.mubr.bf16.mxu0 0
        %3077 = vmatmul.mubr.bf16.gmra.mrb[0].mxu0 %v2982
        %v3078 = vpop.f32.mrb[0].mxu0
        %v3079 = vadd.f32 0.0, %v3078
        %v3080 = vpop.f32.mrb[0].mxu0
        %v3081 = vpop.f32.mrb[0].mxu0
        %v3082 = vadd.f32 0.0, %v3081
        %v3083 = vpop.f32.mrb[0].mxu0
        %3084 = vmatprep.mubr.bf16.mxu0 0
        %3085 = vmatmul.mubr.bf16.gmra.mrb[0].mxu0 %v2985
        %v3086 = vpop.f32.mrb[0].mxu0
        %v3087 = vadd.f32 0.0, %v3086
        %v3088 = vpop.f32.mrb[0].mxu0
        %v3089 = vpop.f32.mrb[0].mxu0
        %v3090 = vadd.f32 0.0, %v3089
        %v3091 = vpop.f32.mrb[0].mxu0
        %3092 = vmatprep.mubr.bf16.mxu0 0
        %3093 = vmatmul.mubr.bf16.gmra.mrb[0].mxu0 %v2988
        %v3094 = vpop.f32.mrb[0].mxu0
        %v3095 = vadd.f32 0.0, %v3094
        %v3096 = vpop.f32.mrb[0].mxu0
        %v3097 = vpop.f32.mrb[0].mxu0
        %v3098 = vadd.f32 0.0, %v3097
        %v3099 = vpop.f32.mrb[0].mxu0
        %3100 = vmatprep.mubr.bf16.mxu0 0
        %3101 = vmatmul.mubr.bf16.gmra.mrb[0].mxu0 %v2991
        %v3102 = vpop.f32.mrb[0].mxu0
        %v3103 = vadd.f32 0.0, %v3102
        %v3104 = vpop.f32.mrb[0].mxu0
        %v3105 = vpop.f32.mrb[0].mxu0
        %v3106 = vadd.f32 0.0, %v3105
        %v3107 = vpop.f32.mrb[0].mxu0
        %3108 = vmatprep.mubr.bf16.mxu0 0
        %3109 = vmatmul.mubr.bf16.gmra.mrb[0].mxu0 %v2994
        %v3110 = vpop.f32.mrb[0].mxu0
        %v3111 = vadd.f32 0.0, %v3110
        %v3112 = vpop.f32.mrb[0].mxu0
        %v3113 = vpop.f32.mrb[0].mxu0
        %v3114 = vadd.f32 0.0, %v3113
        %v3115 = vpop.f32.mrb[0].mxu0
        %3116 = vmatprep.mubr.bf16.mxu0 0
        %3117 = vmatmul.mubr.bf16.gmra.mrb[0].mxu0 %v2997
        %v3118 = vpop.f32.mrb[0].mxu0
        %v3119 = vadd.f32 0.0, %v3118
        %v3120 = vpop.f32.mrb[0].mxu0
        %v3121 = vpop.f32.mrb[0].mxu0
        %v3122 = vadd.f32 0.0, %v3121
        %v3123 = vpop.f32.mrb[0].mxu0
        %3124 = vmatprep.mubr.bf16.mxu0 0
        %3125 = vmatmul.mubr.bf16.gmra.mrb[0].mxu0 %v3000
        %v3126 = vpop.f32.mrb[0].mxu0
        %v3127 = vadd.f32 0.0, %v3126
        %v3128 = vpop.f32.mrb[0].mxu0
        %v3129 = vpop.f32.mrb[0].mxu0
        %v3130 = vadd.f32 0.0, %v3129
        %v3131 = vpop.f32.mrb[0].mxu0
        %3132 = vmatprep.mubr.bf16.mxu0 0
        %3133 = vmatmul.mubr.bf16.gmra.mrb[0].mxu0 %v3003
        %v3134 = vpop.f32.mrb[0].mxu0
        %v3135 = vadd.f32 0.0, %v3134
        %v3136 = vpop.f32.mrb[0].mxu0
        %v3137 = vpop.f32.mrb[0].mxu0
        %v3138 = vadd.f32 0.0, %v3137
        %v3139 = vpop.f32.mrb[0].mxu0
        %3140 = vmatprep.mubr.bf16.mxu0 0
        %3141 = vmatmul.mubr.bf16.gmra.mrb[0].mxu0 %v3006
        %v3142 = vpop.f32.mrb[0].mxu0
        %v3143 = vadd.f32 0.0, %v3142
        %v3144 = vpop.f32.mrb[0].mxu0
        %v3145 = vpop.f32.mrb[0].mxu0
        %v3146 = vadd.f32 0.0, %v3145
        %v3147 = vpop.f32.mrb[0].mxu0
        %3148 = vmatprep.mubr.bf16.mxu0 0
        %3149 = vmatmul.mubr.bf16.gmra.mrb[0].mxu0 %v3009
        %v3150 = vpop.f32.mrb[0].mxu0
        %v3151 = vadd.f32 0.0, %v3150
        %v3152 = vpop.f32.mrb[0].mxu0
        %v3153 = vpop.f32.mrb[0].mxu0
        %v3154 = vadd.f32 0.0, %v3153
        %v3155 = vpop.f32.mrb[0].mxu0
        %3156 = vmatprep.mubr.bf16.mxu0 0
        %3157 = vmatmul.mubr.bf16.gmra.mrb[0].mxu0 %v3012
        %v3158 = vpop.f32.mrb[0].mxu0
        %v3159 = vadd.f32 0.0, %v3158
        %v3160 = vpop.f32.mrb[0].mxu0
        %v3161 = vpop.f32.mrb[0].mxu0
        %v3162 = vadd.f32 0.0, %v3161
        %v3163 = vpop.f32.mrb[0].mxu0
        %3164 = vmatprep.mubr.bf16.mxu0 0
        %3165 = vmatmul.mubr.bf16.gmra.mrb[0].mxu0 %v3015
        %v3166 = vpop.f32.mrb[0].mxu0
        %v3167 = vadd.f32 0.0, %v3166
        %v3168 = vpop.f32.mrb[0].mxu0
        %v3169 = vpop.f32.mrb[0].mxu0
        %v3170 = vadd.f32 0.0, %v3169
        %v3171 = vpop.f32.mrb[0].mxu0
        %3172 = vmatprep.mubr.bf16.mxu0 0
        %3173 = vmatmul.mubr.bf16.gmra.mrb[0].mxu0 %v3018
        %v3174 = vpop.f32.mrb[0].mxu0
        %v3175 = vadd.f32 0.0, %v3174
        %v3176 = vpop.f32.mrb[0].mxu0
        %v3177 = vpop.f32.mrb[0].mxu0
        %v3178 = vadd.f32 0.0, %v3177
        %v3179 = vpop.f32.mrb[0].mxu0
        %3180 = vdwg.mxu0
        %v3181 = vadd.f32 %v2781, %v3055
        %v3182 = vadd.f32 %v2784, %v3058
        %v3183 = vadd.f32 %v2789, %v3063
        %v3184 = vadd.f32 %v2792, %v3066
        %v3185 = vadd.f32 %v2797, %v3071
        %v3186 = vadd.f32 %v2800, %v3074
        %v3187 = vadd.f32 %v2805, %v3079
        %v3188 = vadd.f32 %v2808, %v3082
        %v3189 = vadd.f32 %v2813, %v3087
        %v3190 = vadd.f32 %v2816, %v3090
        %v3191 = vadd.f32 %v2821, %v3095
        %v3192 = vadd.f32 %v2824, %v3098
        %v3193 = vadd.f32 %v2829, %v3103
        %v3194 = vadd.f32 %v2832, %v3106
        %v3195 = vadd.f32 %v2837, %v3111
        %v3196 = vadd.f32 %v2840, %v3114
        %v3197 = vadd.f32 %v2845, %v3119
        %v3198 = vadd.f32 %v2848, %v3122
        %v3199 = vadd.f32 %v2853, %v3127
        %v3200 = vadd.f32 %v2856, %v3130
        %v3201 = vadd.f32 %v2861, %v3135
        %v3202 = vadd.f32 %v2864, %v3138
        %v3203 = vadd.f32 %v2869, %v3143
        %v3204 = vadd.f32 %v2872, %v3146
        %v3205 = vadd.f32 %v2877, %v3151
        %v3206 = vadd.f32 %v2880, %v3154
        %v3207 = vadd.f32 %v2885, %v3159
        %v3208 = vadd.f32 %v2888, %v3162
        %v3209 = vadd.f32 %v2893, %v3167
        %v3210 = vadd.f32 %v2896, %v3170
        %v3211 = vadd.f32 %v2901, %v3175
        %v3212 = vadd.f32 %v2904, %v3178
        %v3213 = vld [vmem:[%s2327] sm:$0xff]
        %v3214 = vld [vmem:[%s2327 + $0x8] sm:$0xff]
        %v3215 = vld [vmem:[%s2327 + $0x18] sm:$0xff]
        %v3216 = vld [vmem:[%s2327 + $0x20] sm:$0xff]
        %v3217 = vld [vmem:[%s2327 + $0x30] sm:$0xff]
        %v3218 = vld [vmem:[%s2327 + $0x38] sm:$0xff]
        %v3219 = vld [vmem:[%s2327 + $0x48] sm:$0xff]
        %v3220 = vld [vmem:[%s2327 + $0x50] sm:$0xff]
        %v3221 = vld [vmem:[%s2327 + $0x60] sm:$0xff]
        %v3222 = vld [vmem:[%s2327 + $0x68] sm:$0xff]
        %v3223 = vld [vmem:[%s2327 + $0x78] sm:$0xff]
        %v3224 = vld [vmem:[%s2327 + $0x80] sm:$0xff]
        %v3225 = vld [vmem:[%s2327 + $0x90] sm:$0xff]
        %v3226 = vld [vmem:[%s2327 + $0x98] sm:$0xff]
        %v3227 = vld [vmem:[%s2327 + $0xa8] sm:$0xff]
        %v3228 = vld [vmem:[%s2327 + $0xb0] sm:$0xff]
        %v3229 = vld [vmem:[%s2327 + $0xc0] sm:$0xff]
        %v3230 = vld [vmem:[%s2327 + $0xc8] sm:$0xff]
        %v3231 = vld [vmem:[%s2327 + $0xd8] sm:$0xff]
        %v3232 = vld [vmem:[%s2327 + $0xe0] sm:$0xff]
        %v3233 = vld [vmem:[%s2327 + $0xf0] sm:$0xff]
        %v3234 = vld [vmem:[%s2327 + $0xf8] sm:$0xff]
        %v3235 = vld [vmem:[%s2327 + $0x108] sm:$0xff]
        %v3236 = vld [vmem:[%s2327 + $0x110] sm:$0xff]
        %v3237 = vld [vmem:[%s2327 + $0x120] sm:$0xff]
        %v3238 = vld [vmem:[%s2327 + $0x128] sm:$0xff]
        %v3239 = vld [vmem:[%s2327 + $0x138] sm:$0xff]
        %v3240 = vld [vmem:[%s2327 + $0x140] sm:$0xff]
        %v3241 = vld [vmem:[%s2327 + $0x150] sm:$0xff]
        %v3242 = vld [vmem:[%s2327 + $0x158] sm:$0xff]
        %v3243 = vld [vmem:[%s2327 + $0x168] sm:$0xff]
        %v3244 = vld [vmem:[%s2327 + $0x170] sm:$0xff]
        %v3245 = vpack.c.bf16 %v3214, %v3213
        %v3246 = vpack.c.bf16 %v3216, %v3215
        %v3247 = vpack.c.bf16 %v3218, %v3217
        %v3248 = vpack.c.bf16 %v3220, %v3219
        %v3249 = vpack.c.bf16 %v3222, %v3221
        %v3250 = vpack.c.bf16 %v3224, %v3223
        %v3251 = vpack.c.bf16 %v3226, %v3225
        %v3252 = vpack.c.bf16 %v3228, %v3227
        %v3253 = vpack.c.bf16 %v3230, %v3229
        %v3254 = vpack.c.bf16 %v3232, %v3231
        %v3255 = vpack.c.bf16 %v3234, %v3233
        %v3256 = vpack.c.bf16 %v3236, %v3235
        %v3257 = vpack.c.bf16 %v3238, %v3237
        %v3258 = vpack.c.bf16 %v3240, %v3239
        %v3259 = vpack.c.bf16 %v3242, %v3241
        %v3260 = vpack.c.bf16 %v3244, %v3243
        %s3261 = scalar_lea.vmem %s3, 48
        %v3262 = vld [vmem:[%s3261] sm:$0xf]
        %v3263 = vld [vmem:[%s3261 + $0x4] sm:$0xf]
        %v3264 = vld [vmem:[%s3261 + $0x8] sm:$0xf]
        %v3265 = vld [vmem:[%s3261 + $0xc] sm:$0xf]
        %v3270 = vunpack.c.l.b16 %v3262
        %v3271 = vunpack.c.l.b16 %v3263
        %v3272 = vunpack.c.l.b16 %v3264
        %v3273 = vunpack.c.l.b16 %v3265
        %v3274 = vpack.c.b16 %v3271, %v3270
        %v3275 = vpack.c.b16 %v3273, %v3272
        %v3279 = vsel %vm1728, %v3245, 0
        %v3282 = vsel %vm1728, %v3246, 0
        %v3285 = vsel %vm1728, %v3247, 0
        %v3288 = vsel %vm1728, %v3248, 0
        %v3291 = vsel %vm1728, %v3249, 0
        %v3294 = vsel %vm1728, %v3250, 0
        %v3297 = vsel %vm1728, %v3251, 0
        %v3300 = vsel %vm1728, %v3252, 0
        %v3303 = vsel %vm1728, %v3253, 0
        %v3306 = vsel %vm1728, %v3254, 0
        %v3309 = vsel %vm1728, %v3255, 0
        %v3312 = vsel %vm1728, %v3256, 0
        %v3315 = vsel %vm1728, %v3257, 0
        %v3318 = vsel %vm1728, %v3258, 0
        %v3321 = vsel %vm1728, %v3259, 0
        %v3324 = vsel %vm1728, %v3260, 0
        %3326 = vmatprep.subr.bf16.mxu0 0
        %3327 = vmatpush1.bf16.msra.mxu0 %v3274
        %3328 = vmatprep.subr.bf16.mxu0 0
        %3329 = vmatpush1.bf16.msra.mxu0 %v3275
        %3330 = vmatprep.subr.bf16.mxu0 0
        %3331 = vmatpush1.bf16.msra.mxu0 0
        %3332 = vmatprep.subr.bf16.mxu0 0
        %3333 = vmatpush1.bf16.msra.mxu0 0
        %3334 = vmatprep.subr.bf16.mxu0 0
        %3335 = vmatpush1.bf16.msra.mxu0 0
        %3336 = vmatprep.subr.bf16.mxu0 0
        %3337 = vmatpush1.bf16.msra.mxu0 0
        %3338 = vmatprep.subr.bf16.mxu0 0
        %3339 = vmatpush1.bf16.msra.mxu0 0
        %3340 = vmatprep.subr.bf16.mxu0 0
        %3341 = vmatpush1.bf16.msra.mxu0 0
        %3342 = vmatprep.subr.bf16.mxu0 0
        %3343 = vmatpush1.bf16.msra.mxu0 0
        %3344 = vmatprep.subr.bf16.mxu0 0
        %3345 = vmatpush1.bf16.msra.mxu0 0
        %3346 = vmatprep.subr.bf16.mxu0 0
        %3347 = vmatpush1.bf16.msra.mxu0 0
        %3348 = vmatprep.subr.bf16.mxu0 0
        %3349 = vmatpush1.bf16.msra.mxu0 0
        %3350 = vmatprep.subr.bf16.mxu0 0
        %3351 = vmatpush1.bf16.msra.mxu0 0
        %3352 = vmatprep.subr.bf16.mxu0 0
        %3353 = vmatpush1.bf16.msra.mxu0 0
        %3354 = vmatprep.subr.bf16.mxu0 0
        %3355 = vmatpush1.bf16.msra.mxu0 0
        %3356 = vmatprep.subr.bf16.mxu0 0
        %3357 = vmatpush1.bf16.msra.mxu0 0
        %3358 = vmatprep.mubr.bf16.mxu0 0
        %3359 = vmatmul.mubr.bf16.gmra.mrb[0].mxu0 %v3279
        %v3360 = vpop.f32.mrb[0].mxu0
        %v3361 = vadd.f32 0.0, %v3360
        %v3362 = vpop.f32.mrb[0].mxu0
        %v3363 = vpop.f32.mrb[0].mxu0
        %v3364 = vadd.f32 0.0, %v3363
        %v3365 = vpop.f32.mrb[0].mxu0
        %3366 = vmatprep.mubr.bf16.mxu0 0
        %3367 = vmatmul.mubr.bf16.gmra.mrb[0].mxu0 %v3282
        %v3368 = vpop.f32.mrb[0].mxu0
        %v3369 = vadd.f32 0.0, %v3368
        %v3370 = vpop.f32.mrb[0].mxu0
        %v3371 = vpop.f32.mrb[0].mxu0
        %v3372 = vadd.f32 0.0, %v3371
        %v3373 = vpop.f32.mrb[0].mxu0
        %3374 = vmatprep.mubr.bf16.mxu0 0
        %3375 = vmatmul.mubr.bf16.gmra.mrb[0].mxu0 %v3285
        %v3376 = vpop.f32.mrb[0].mxu0
        %v3377 = vadd.f32 0.0, %v3376
        %v3378 = vpop.f32.mrb[0].mxu0
        %v3379 = vpop.f32.mrb[0].mxu0
        %v3380 = vadd.f32 0.0, %v3379
        %v3381 = vpop.f32.mrb[0].mxu0
        %3382 = vmatprep.mubr.bf16.mxu0 0
        %3383 = vmatmul.mubr.bf16.gmra.mrb[0].mxu0 %v3288
        %v3384 = vpop.f32.mrb[0].mxu0
        %v3385 = vadd.f32 0.0, %v3384
        %v3386 = vpop.f32.mrb[0].mxu0
        %v3387 = vpop.f32.mrb[0].mxu0
        %v3388 = vadd.f32 0.0, %v3387
        %v3389 = vpop.f32.mrb[0].mxu0
        %3390 = vmatprep.mubr.bf16.mxu0 0
        %3391 = vmatmul.mubr.bf16.gmra.mrb[0].mxu0 %v3291
        %v3392 = vpop.f32.mrb[0].mxu0
        %v3393 = vadd.f32 0.0, %v3392
        %v3394 = vpop.f32.mrb[0].mxu0
        %v3395 = vpop.f32.mrb[0].mxu0
        %v3396 = vadd.f32 0.0, %v3395
        %v3397 = vpop.f32.mrb[0].mxu0
        %3398 = vmatprep.mubr.bf16.mxu0 0
        %3399 = vmatmul.mubr.bf16.gmra.mrb[0].mxu0 %v3294
        %v3400 = vpop.f32.mrb[0].mxu0
        %v3401 = vadd.f32 0.0, %v3400
        %v3402 = vpop.f32.mrb[0].mxu0
        %v3403 = vpop.f32.mrb[0].mxu0
        %v3404 = vadd.f32 0.0, %v3403
        %v3405 = vpop.f32.mrb[0].mxu0
        %3406 = vmatprep.mubr.bf16.mxu0 0
        %3407 = vmatmul.mubr.bf16.gmra.mrb[0].mxu0 %v3297
        %v3408 = vpop.f32.mrb[0].mxu0
        %v3409 = vadd.f32 0.0, %v3408
        %v3410 = vpop.f32.mrb[0].mxu0
        %v3411 = vpop.f32.mrb[0].mxu0
        %v3412 = vadd.f32 0.0, %v3411
        %v3413 = vpop.f32.mrb[0].mxu0
        %3414 = vmatprep.mubr.bf16.mxu0 0
        %3415 = vmatmul.mubr.bf16.gmra.mrb[0].mxu0 %v3300
        %v3416 = vpop.f32.mrb[0].mxu0
        %v3417 = vadd.f32 0.0, %v3416
        %v3418 = vpop.f32.mrb[0].mxu0
        %v3419 = vpop.f32.mrb[0].mxu0
        %v3420 = vadd.f32 0.0, %v3419
        %v3421 = vpop.f32.mrb[0].mxu0
        %3422 = vmatprep.mubr.bf16.mxu0 0
        %3423 = vmatmul.mubr.bf16.gmra.mrb[0].mxu0 %v3303
        %v3424 = vpop.f32.mrb[0].mxu0
        %v3425 = vadd.f32 0.0, %v3424
        %v3426 = vpop.f32.mrb[0].mxu0
        %v3427 = vpop.f32.mrb[0].mxu0
        %v3428 = vadd.f32 0.0, %v3427
        %v3429 = vpop.f32.mrb[0].mxu0
        %3430 = vmatprep.mubr.bf16.mxu0 0
        %3431 = vmatmul.mubr.bf16.gmra.mrb[0].mxu0 %v3306
        %v3432 = vpop.f32.mrb[0].mxu0
        %v3433 = vadd.f32 0.0, %v3432
        %v3434 = vpop.f32.mrb[0].mxu0
        %v3435 = vpop.f32.mrb[0].mxu0
        %v3436 = vadd.f32 0.0, %v3435
        %v3437 = vpop.f32.mrb[0].mxu0
        %3438 = vmatprep.mubr.bf16.mxu0 0
        %3439 = vmatmul.mubr.bf16.gmra.mrb[0].mxu0 %v3309
        %v3440 = vpop.f32.mrb[0].mxu0
        %v3441 = vadd.f32 0.0, %v3440
        %v3442 = vpop.f32.mrb[0].mxu0
        %v3443 = vpop.f32.mrb[0].mxu0
        %v3444 = vadd.f32 0.0, %v3443
        %v3445 = vpop.f32.mrb[0].mxu0
        %3446 = vmatprep.mubr.bf16.mxu0 0
        %3447 = vmatmul.mubr.bf16.gmra.mrb[0].mxu0 %v3312
        %v3448 = vpop.f32.mrb[0].mxu0
        %v3449 = vadd.f32 0.0, %v3448
        %v3450 = vpop.f32.mrb[0].mxu0
        %v3451 = vpop.f32.mrb[0].mxu0
        %v3452 = vadd.f32 0.0, %v3451
        %v3453 = vpop.f32.mrb[0].mxu0
        %3454 = vmatprep.mubr.bf16.mxu0 0
        %3455 = vmatmul.mubr.bf16.gmra.mrb[0].mxu0 %v3315
        %v3456 = vpop.f32.mrb[0].mxu0
        %v3457 = vadd.f32 0.0, %v3456
        %v3458 = vpop.f32.mrb[0].mxu0
        %v3459 = vpop.f32.mrb[0].mxu0
        %v3460 = vadd.f32 0.0, %v3459
        %v3461 = vpop.f32.mrb[0].mxu0
        %3462 = vmatprep.mubr.bf16.mxu0 0
        %3463 = vmatmul.mubr.bf16.gmra.mrb[0].mxu0 %v3318
        %v3464 = vpop.f32.mrb[0].mxu0
        %v3465 = vadd.f32 0.0, %v3464
        %v3466 = vpop.f32.mrb[0].mxu0
        %v3467 = vpop.f32.mrb[0].mxu0
        %v3468 = vadd.f32 0.0, %v3467
        %v3469 = vpop.f32.mrb[0].mxu0
        %3470 = vmatprep.mubr.bf16.mxu0 0
        %3471 = vmatmul.mubr.bf16.gmra.mrb[0].mxu0 %v3321
        %v3472 = vpop.f32.mrb[0].mxu0
        %v3473 = vadd.f32 0.0, %v3472
        %v3474 = vpop.f32.mrb[0].mxu0
        %v3475 = vpop.f32.mrb[0].mxu0
        %v3476 = vadd.f32 0.0, %v3475
        %v3477 = vpop.f32.mrb[0].mxu0
        %3478 = vmatprep.mubr.bf16.mxu0 0
        %3479 = vmatmul.mubr.bf16.gmra.mrb[0].mxu0 %v3324
        %v3480 = vpop.f32.mrb[0].mxu0
        %v3481 = vadd.f32 0.0, %v3480
        %v3482 = vpop.f32.mrb[0].mxu0
        %v3483 = vpop.f32.mrb[0].mxu0
        %v3484 = vadd.f32 0.0, %v3483
        %v3485 = vpop.f32.mrb[0].mxu0
        %3486 = vdwg.mxu0
        %v3487 = vadd.f32 %v3181, %v3361
        %v3488 = vadd.f32 %v3182, %v3364
        %v3489 = vadd.f32 %v3183, %v3369
        %v3490 = vadd.f32 %v3184, %v3372
        %v3491 = vadd.f32 %v3185, %v3377
        %v3492 = vadd.f32 %v3186, %v3380
        %v3493 = vadd.f32 %v3187, %v3385
        %v3494 = vadd.f32 %v3188, %v3388
        %v3495 = vadd.f32 %v3189, %v3393
        %v3496 = vadd.f32 %v3190, %v3396
        %v3497 = vadd.f32 %v3191, %v3401
        %v3498 = vadd.f32 %v3192, %v3404
        %v3499 = vadd.f32 %v3193, %v3409
        %v3500 = vadd.f32 %v3194, %v3412
        %v3501 = vadd.f32 %v3195, %v3417
        %v3502 = vadd.f32 %v3196, %v3420
        %v3503 = vadd.f32 %v3197, %v3425
        %v3504 = vadd.f32 %v3198, %v3428
        %v3505 = vadd.f32 %v3199, %v3433
        %v3506 = vadd.f32 %v3200, %v3436
        %v3507 = vadd.f32 %v3201, %v3441
        %v3508 = vadd.f32 %v3202, %v3444
        %v3509 = vadd.f32 %v3203, %v3449
        %v3510 = vadd.f32 %v3204, %v3452
        %v3511 = vadd.f32 %v3205, %v3457
        %v3512 = vadd.f32 %v3206, %v3460
        %v3513 = vadd.f32 %v3207, %v3465
        %v3514 = vadd.f32 %v3208, %v3468
        %v3515 = vadd.f32 %v3209, %v3473
        %v3516 = vadd.f32 %v3210, %v3476
        %v3517 = vadd.f32 %v3211, %v3481
        %v3518 = vadd.f32 %v3212, %v3484
        %v3519 = vld [vmem:[%s2327 + $0x1] sm:$0xff]
        %v3520 = vld [vmem:[%s2327 + $0x9] sm:$0xff]
        %v3521 = vld [vmem:[%s2327 + $0x19] sm:$0xff]
        %v3522 = vld [vmem:[%s2327 + $0x21] sm:$0xff]
        %v3523 = vld [vmem:[%s2327 + $0x31] sm:$0xff]
        %v3524 = vld [vmem:[%s2327 + $0x39] sm:$0xff]
        %v3525 = vld [vmem:[%s2327 + $0x49] sm:$0xff]
        %v3526 = vld [vmem:[%s2327 + $0x51] sm:$0xff]
        %v3527 = vld [vmem:[%s2327 + $0x61] sm:$0xff]
        %v3528 = vld [vmem:[%s2327 + $0x69] sm:$0xff]
        %v3529 = vld [vmem:[%s2327 + $0x79] sm:$0xff]
        %v3530 = vld [vmem:[%s2327 + $0x81] sm:$0xff]
        %v3531 = vld [vmem:[%s2327 + $0x91] sm:$0xff]
        %v3532 = vld [vmem:[%s2327 + $0x99] sm:$0xff]
        %v3533 = vld [vmem:[%s2327 + $0xa9] sm:$0xff]
        %v3534 = vld [vmem:[%s2327 + $0xb1] sm:$0xff]
        %v3535 = vld [vmem:[%s2327 + $0xc1] sm:$0xff]
        %v3536 = vld [vmem:[%s2327 + $0xc9] sm:$0xff]
        %v3537 = vld [vmem:[%s2327 + $0xd9] sm:$0xff]
        %v3538 = vld [vmem:[%s2327 + $0xe1] sm:$0xff]
        %v3539 = vld [vmem:[%s2327 + $0xf1] sm:$0xff]
        %v3540 = vld [vmem:[%s2327 + $0xf9] sm:$0xff]
        %v3541 = vld [vmem:[%s2327 + $0x109] sm:$0xff]
        %v3542 = vld [vmem:[%s2327 + $0x111] sm:$0xff]
        %v3543 = vld [vmem:[%s2327 + $0x121] sm:$0xff]
        %v3544 = vld [vmem:[%s2327 + $0x129] sm:$0xff]
        %v3545 = vld [vmem:[%s2327 + $0x139] sm:$0xff]
        %v3546 = vld [vmem:[%s2327 + $0x141] sm:$0xff]
        %v3547 = vld [vmem:[%s2327 + $0x151] sm:$0xff]
        %v3548 = vld [vmem:[%s2327 + $0x159] sm:$0xff]
        %v3549 = vld [vmem:[%s2327 + $0x169] sm:$0xff]
        %v3550 = vld [vmem:[%s2327 + $0x171] sm:$0xff]
        %v3551 = vpack.c.bf16 %v3520, %v3519
        %v3552 = vpack.c.bf16 %v3522, %v3521
        %v3553 = vpack.c.bf16 %v3524, %v3523
        %v3554 = vpack.c.bf16 %v3526, %v3525
        %v3555 = vpack.c.bf16 %v3528, %v3527
        %v3556 = vpack.c.bf16 %v3530, %v3529
        %v3557 = vpack.c.bf16 %v3532, %v3531
        %v3558 = vpack.c.bf16 %v3534, %v3533
        %v3559 = vpack.c.bf16 %v3536, %v3535
        %v3560 = vpack.c.bf16 %v3538, %v3537
        %v3561 = vpack.c.bf16 %v3540, %v3539
        %v3562 = vpack.c.bf16 %v3542, %v3541
        %v3563 = vpack.c.bf16 %v3544, %v3543
        %v3564 = vpack.c.bf16 %v3546, %v3545
        %v3565 = vpack.c.bf16 %v3548, %v3547
        %v3566 = vpack.c.bf16 %v3550, %v3549
        %s3567 = scalar_lea.vmem %s3, 64
        %v3568 = vld [vmem:[%s3567] sm:$0xf]
        %v3569 = vld [vmem:[%s3567 + $0x4] sm:$0xf]
        %v3570 = vld [vmem:[%s3567 + $0x8] sm:$0xf]
        %v3571 = vld [vmem:[%s3567 + $0xc] sm:$0xf]
        %v3576 = vunpack.c.l.b16 %v3568
        %v3577 = vunpack.c.l.b16 %v3569
        %v3578 = vunpack.c.l.b16 %v3570
        %v3579 = vunpack.c.l.b16 %v3571
        %v3580 = vpack.c.b16 %v3577, %v3576
        %v3581 = vpack.c.b16 %v3579, %v3578
        %v3585 = vsel %vm1728, %v3551, 0
        %v3588 = vsel %vm1728, %v3552, 0
        %v3591 = vsel %vm1728, %v3553, 0
        %v3594 = vsel %vm1728, %v3554, 0
        %v3597 = vsel %vm1728, %v3555, 0
        %v3600 = vsel %vm1728, %v3556, 0
        %v3603 = vsel %vm1728, %v3557, 0
        %v3606 = vsel %vm1728, %v3558, 0
        %v3609 = vsel %vm1728, %v3559, 0
        %v3612 = vsel %vm1728, %v3560, 0
        %v3615 = vsel %vm1728, %v3561, 0
        %v3618 = vsel %vm1728, %v3562, 0
        %v3621 = vsel %vm1728, %v3563, 0
        %v3624 = vsel %vm1728, %v3564, 0
        %v3627 = vsel %vm1728, %v3565, 0
        %v3630 = vsel %vm1728, %v3566, 0
        %3632 = vmatprep.subr.bf16.mxu0 0
        %3633 = vmatpush1.bf16.msra.mxu0 %v3580
        %3634 = vmatprep.subr.bf16.mxu0 0
        %3635 = vmatpush1.bf16.msra.mxu0 %v3581
        %3636 = vmatprep.subr.bf16.mxu0 0
        %3637 = vmatpush1.bf16.msra.mxu0 0
        %3638 = vmatprep.subr.bf16.mxu0 0
        %3639 = vmatpush1.bf16.msra.mxu0 0
        %3640 = vmatprep.subr.bf16.mxu0 0
        %3641 = vmatpush1.bf16.msra.mxu0 0
        %3642 = vmatprep.subr.bf16.mxu0 0
        %3643 = vmatpush1.bf16.msra.mxu0 0
        %3644 = vmatprep.subr.bf16.mxu0 0
        %3645 = vmatpush1.bf16.msra.mxu0 0
        %3646 = vmatprep.subr.bf16.mxu0 0
        %3647 = vmatpush1.bf16.msra.mxu0 0
        %3648 = vmatprep.subr.bf16.mxu0 0
        %3649 = vmatpush1.bf16.msra.mxu0 0
        %3650 = vmatprep.subr.bf16.mxu0 0
        %3651 = vmatpush1.bf16.msra.mxu0 0
        %3652 = vmatprep.subr.bf16.mxu0 0
        %3653 = vmatpush1.bf16.msra.mxu0 0
        %3654 = vmatprep.subr.bf16.mxu0 0
        %3655 = vmatpush1.bf16.msra.mxu0 0
        %3656 = vmatprep.subr.bf16.mxu0 0
        %3657 = vmatpush1.bf16.msra.mxu0 0
        %3658 = vmatprep.subr.bf16.mxu0 0
        %3659 = vmatpush1.bf16.msra.mxu0 0
        %3660 = vmatprep.subr.bf16.mxu0 0
        %3661 = vmatpush1.bf16.msra.mxu0 0
        %3662 = vmatprep.subr.bf16.mxu0 0
        %3663 = vmatpush1.bf16.msra.mxu0 0
        %3664 = vmatprep.mubr.bf16.mxu0 0
        %3665 = vmatmul.mubr.bf16.gmra.mrb[0].mxu0 %v3585
        %v3666 = vpop.f32.mrb[0].mxu0
        %v3667 = vadd.f32 0.0, %v3666
        %v3668 = vpop.f32.mrb[0].mxu0
        %v3669 = vpop.f32.mrb[0].mxu0
        %v3670 = vadd.f32 0.0, %v3669
        %v3671 = vpop.f32.mrb[0].mxu0
        %3672 = vmatprep.mubr.bf16.mxu0 0
        %3673 = vmatmul.mubr.bf16.gmra.mrb[0].mxu0 %v3588
        %v3674 = vpop.f32.mrb[0].mxu0
        %v3675 = vadd.f32 0.0, %v3674
        %v3676 = vpop.f32.mrb[0].mxu0
        %v3677 = vpop.f32.mrb[0].mxu0
        %v3678 = vadd.f32 0.0, %v3677
        %v3679 = vpop.f32.mrb[0].mxu0
        %3680 = vmatprep.mubr.bf16.mxu0 0
        %3681 = vmatmul.mubr.bf16.gmra.mrb[0].mxu0 %v3591
        %v3682 = vpop.f32.mrb[0].mxu0
        %v3683 = vadd.f32 0.0, %v3682
        %v3684 = vpop.f32.mrb[0].mxu0
        %v3685 = vpop.f32.mrb[0].mxu0
        %v3686 = vadd.f32 0.0, %v3685
        %v3687 = vpop.f32.mrb[0].mxu0
        %3688 = vmatprep.mubr.bf16.mxu0 0
        %3689 = vmatmul.mubr.bf16.gmra.mrb[0].mxu0 %v3594
        %v3690 = vpop.f32.mrb[0].mxu0
        %v3691 = vadd.f32 0.0, %v3690
        %v3692 = vpop.f32.mrb[0].mxu0
        %v3693 = vpop.f32.mrb[0].mxu0
        %v3694 = vadd.f32 0.0, %v3693
        %v3695 = vpop.f32.mrb[0].mxu0
        %3696 = vmatprep.mubr.bf16.mxu0 0
        %3697 = vmatmul.mubr.bf16.gmra.mrb[0].mxu0 %v3597
        %v3698 = vpop.f32.mrb[0].mxu0
        %v3699 = vadd.f32 0.0, %v3698
        %v3700 = vpop.f32.mrb[0].mxu0
        %v3701 = vpop.f32.mrb[0].mxu0
        %v3702 = vadd.f32 0.0, %v3701
        %v3703 = vpop.f32.mrb[0].mxu0
        %3704 = vmatprep.mubr.bf16.mxu0 0
        %3705 = vmatmul.mubr.bf16.gmra.mrb[0].mxu0 %v3600
        %v3706 = vpop.f32.mrb[0].mxu0
        %v3707 = vadd.f32 0.0, %v3706
        %v3708 = vpop.f32.mrb[0].mxu0
        %v3709 = vpop.f32.mrb[0].mxu0
        %v3710 = vadd.f32 0.0, %v3709
        %v3711 = vpop.f32.mrb[0].mxu0
        %3712 = vmatprep.mubr.bf16.mxu0 0
        %3713 = vmatmul.mubr.bf16.gmra.mrb[0].mxu0 %v3603
        %v3714 = vpop.f32.mrb[0].mxu0
        %v3715 = vadd.f32 0.0, %v3714
        %v3716 = vpop.f32.mrb[0].mxu0
        %v3717 = vpop.f32.mrb[0].mxu0
        %v3718 = vadd.f32 0.0, %v3717
        %v3719 = vpop.f32.mrb[0].mxu0
        %3720 = vmatprep.mubr.bf16.mxu0 0
        %3721 = vmatmul.mubr.bf16.gmra.mrb[0].mxu0 %v3606
        %v3722 = vpop.f32.mrb[0].mxu0
        %v3723 = vadd.f32 0.0, %v3722
        %v3724 = vpop.f32.mrb[0].mxu0
        %v3725 = vpop.f32.mrb[0].mxu0
        %v3726 = vadd.f32 0.0, %v3725
        %v3727 = vpop.f32.mrb[0].mxu0
        %3728 = vmatprep.mubr.bf16.mxu0 0
        %3729 = vmatmul.mubr.bf16.gmra.mrb[0].mxu0 %v3609
        %v3730 = vpop.f32.mrb[0].mxu0
        %v3731 = vadd.f32 0.0, %v3730
        %v3732 = vpop.f32.mrb[0].mxu0
        %v3733 = vpop.f32.mrb[0].mxu0
        %v3734 = vadd.f32 0.0, %v3733
        %v3735 = vpop.f32.mrb[0].mxu0
        %3736 = vmatprep.mubr.bf16.mxu0 0
        %3737 = vmatmul.mubr.bf16.gmra.mrb[0].mxu0 %v3612
        %v3738 = vpop.f32.mrb[0].mxu0
        %v3739 = vadd.f32 0.0, %v3738
        %v3740 = vpop.f32.mrb[0].mxu0
        %v3741 = vpop.f32.mrb[0].mxu0
        %v3742 = vadd.f32 0.0, %v3741
        %v3743 = vpop.f32.mrb[0].mxu0
        %3744 = vmatprep.mubr.bf16.mxu0 0
        %3745 = vmatmul.mubr.bf16.gmra.mrb[0].mxu0 %v3615
        %v3746 = vpop.f32.mrb[0].mxu0
        %v3747 = vadd.f32 0.0, %v3746
        %v3748 = vpop.f32.mrb[0].mxu0
        %v3749 = vpop.f32.mrb[0].mxu0
        %v3750 = vadd.f32 0.0, %v3749
        %v3751 = vpop.f32.mrb[0].mxu0
        %3752 = vmatprep.mubr.bf16.mxu0 0
        %3753 = vmatmul.mubr.bf16.gmra.mrb[0].mxu0 %v3618
        %v3754 = vpop.f32.mrb[0].mxu0
        %v3755 = vadd.f32 0.0, %v3754
        %v3756 = vpop.f32.mrb[0].mxu0
        %v3757 = vpop.f32.mrb[0].mxu0
        %v3758 = vadd.f32 0.0, %v3757
        %v3759 = vpop.f32.mrb[0].mxu0
        %3760 = vmatprep.mubr.bf16.mxu0 0
        %3761 = vmatmul.mubr.bf16.gmra.mrb[0].mxu0 %v3621
        %v3762 = vpop.f32.mrb[0].mxu0
        %v3763 = vadd.f32 0.0, %v3762
        %v3764 = vpop.f32.mrb[0].mxu0
        %v3765 = vpop.f32.mrb[0].mxu0
        %v3766 = vadd.f32 0.0, %v3765
        %v3767 = vpop.f32.mrb[0].mxu0
        %3768 = vmatprep.mubr.bf16.mxu0 0
        %3769 = vmatmul.mubr.bf16.gmra.mrb[0].mxu0 %v3624
        %v3770 = vpop.f32.mrb[0].mxu0
        %v3771 = vadd.f32 0.0, %v3770
        %v3772 = vpop.f32.mrb[0].mxu0
        %v3773 = vpop.f32.mrb[0].mxu0
        %v3774 = vadd.f32 0.0, %v3773
        %v3775 = vpop.f32.mrb[0].mxu0
        %3776 = vmatprep.mubr.bf16.mxu0 0
        %3777 = vmatmul.mubr.bf16.gmra.mrb[0].mxu0 %v3627
        %v3778 = vpop.f32.mrb[0].mxu0
        %v3779 = vadd.f32 0.0, %v3778
        %v3780 = vpop.f32.mrb[0].mxu0
        %v3781 = vpop.f32.mrb[0].mxu0
        %v3782 = vadd.f32 0.0, %v3781
        %v3783 = vpop.f32.mrb[0].mxu0
        %3784 = vmatprep.mubr.bf16.mxu0 0
        %3785 = vmatmul.mubr.bf16.gmra.mrb[0].mxu0 %v3630
        %v3786 = vpop.f32.mrb[0].mxu0
        %v3787 = vadd.f32 0.0, %v3786
        %v3788 = vpop.f32.mrb[0].mxu0
        %v3789 = vpop.f32.mrb[0].mxu0
        %v3790 = vadd.f32 0.0, %v3789
        %v3791 = vpop.f32.mrb[0].mxu0
        %3792 = vdwg.mxu0
        %v3793 = vadd.f32 %v3487, %v3667
        %v3794 = vadd.f32 %v3488, %v3670
        %v3795 = vadd.f32 %v3489, %v3675
        %v3796 = vadd.f32 %v3490, %v3678
        %v3797 = vadd.f32 %v3491, %v3683
        %v3798 = vadd.f32 %v3492, %v3686
        %v3799 = vadd.f32 %v3493, %v3691
        %v3800 = vadd.f32 %v3494, %v3694
        %v3801 = vadd.f32 %v3495, %v3699
        %v3802 = vadd.f32 %v3496, %v3702
        %v3803 = vadd.f32 %v3497, %v3707
        %v3804 = vadd.f32 %v3498, %v3710
        %v3805 = vadd.f32 %v3499, %v3715
        %v3806 = vadd.f32 %v3500, %v3718
        %v3807 = vadd.f32 %v3501, %v3723
        %v3808 = vadd.f32 %v3502, %v3726
        %v3809 = vadd.f32 %v3503, %v3731
        %v3810 = vadd.f32 %v3504, %v3734
        %v3811 = vadd.f32 %v3505, %v3739
        %v3812 = vadd.f32 %v3506, %v3742
        %v3813 = vadd.f32 %v3507, %v3747
        %v3814 = vadd.f32 %v3508, %v3750
        %v3815 = vadd.f32 %v3509, %v3755
        %v3816 = vadd.f32 %v3510, %v3758
        %v3817 = vadd.f32 %v3511, %v3763
        %v3818 = vadd.f32 %v3512, %v3766
        %v3819 = vadd.f32 %v3513, %v3771
        %v3820 = vadd.f32 %v3514, %v3774
        %v3821 = vadd.f32 %v3515, %v3779
        %v3822 = vadd.f32 %v3516, %v3782
        %v3823 = vadd.f32 %v3517, %v3787
        %v3824 = vadd.f32 %v3518, %v3790
        %v3825 = vld [vmem:[%s2327 + $0x2] sm:$0xff]
        %v3826 = vld [vmem:[%s2327 + $0xa] sm:$0xff]
        %v3827 = vld [vmem:[%s2327 + $0x1a] sm:$0xff]
        %v3828 = vld [vmem:[%s2327 + $0x22] sm:$0xff]
        %v3829 = vld [vmem:[%s2327 + $0x32] sm:$0xff]
        %v3830 = vld [vmem:[%s2327 + $0x3a] sm:$0xff]
        %v3831 = vld [vmem:[%s2327 + $0x4a] sm:$0xff]
        %v3832 = vld [vmem:[%s2327 + $0x52] sm:$0xff]
        %v3833 = vld [vmem:[%s2327 + $0x62] sm:$0xff]
        %v3834 = vld [vmem:[%s2327 + $0x6a] sm:$0xff]
        %v3835 = vld [vmem:[%s2327 + $0x7a] sm:$0xff]
        %v3836 = vld [vmem:[%s2327 + $0x82] sm:$0xff]
        %v3837 = vld [vmem:[%s2327 + $0x92] sm:$0xff]
        %v3838 = vld [vmem:[%s2327 + $0x9a] sm:$0xff]
        %v3839 = vld [vmem:[%s2327 + $0xaa] sm:$0xff]
        %v3840 = vld [vmem:[%s2327 + $0xb2] sm:$0xff]
        %v3841 = vld [vmem:[%s2327 + $0xc2] sm:$0xff]
        %v3842 = vld [vmem:[%s2327 + $0xca] sm:$0xff]
        %v3843 = vld [vmem:[%s2327 + $0xda] sm:$0xff]
        %v3844 = vld [vmem:[%s2327 + $0xe2] sm:$0xff]
        %v3845 = vld [vmem:[%s2327 + $0xf2] sm:$0xff]
        %v3846 = vld [vmem:[%s2327 + $0xfa] sm:$0xff]
        %v3847 = vld [vmem:[%s2327 + $0x10a] sm:$0xff]
        %v3848 = vld [vmem:[%s2327 + $0x112] sm:$0xff]
        %v3849 = vld [vmem:[%s2327 + $0x122] sm:$0xff]
        %v3850 = vld [vmem:[%s2327 + $0x12a] sm:$0xff]
        %v3851 = vld [vmem:[%s2327 + $0x13a] sm:$0xff]
        %v3852 = vld [vmem:[%s2327 + $0x142] sm:$0xff]
        %v3853 = vld [vmem:[%s2327 + $0x152] sm:$0xff]
        %v3854 = vld [vmem:[%s2327 + $0x15a] sm:$0xff]
        %v3855 = vld [vmem:[%s2327 + $0x16a] sm:$0xff]
        %v3856 = vld [vmem:[%s2327 + $0x172] sm:$0xff]
        %v3857 = vpack.c.bf16 %v3826, %v3825
        %v3858 = vpack.c.bf16 %v3828, %v3827
        %v3859 = vpack.c.bf16 %v3830, %v3829
        %v3860 = vpack.c.bf16 %v3832, %v3831
        %v3861 = vpack.c.bf16 %v3834, %v3833
        %v3862 = vpack.c.bf16 %v3836, %v3835
        %v3863 = vpack.c.bf16 %v3838, %v3837
        %v3864 = vpack.c.bf16 %v3840, %v3839
        %v3865 = vpack.c.bf16 %v3842, %v3841
        %v3866 = vpack.c.bf16 %v3844, %v3843
        %v3867 = vpack.c.bf16 %v3846, %v3845
        %v3868 = vpack.c.bf16 %v3848, %v3847
        %v3869 = vpack.c.bf16 %v3850, %v3849
        %v3870 = vpack.c.bf16 %v3852, %v3851
        %v3871 = vpack.c.bf16 %v3854, %v3853
        %v3872 = vpack.c.bf16 %v3856, %v3855
        %s3873 = scalar_lea.vmem %s3, 80
        %v3874 = vld [vmem:[%s3873] sm:$0xf]
        %v3875 = vld [vmem:[%s3873 + $0x4] sm:$0xf]
        %v3876 = vld [vmem:[%s3873 + $0x8] sm:$0xf]
        %v3877 = vld [vmem:[%s3873 + $0xc] sm:$0xf]
        %v3882 = vunpack.c.l.b16 %v3874
        %v3883 = vunpack.c.l.b16 %v3875
        %v3884 = vunpack.c.l.b16 %v3876
        %v3885 = vunpack.c.l.b16 %v3877
        %v3886 = vpack.c.b16 %v3883, %v3882
        %v3887 = vpack.c.b16 %v3885, %v3884
        %v3891 = vsel %vm1728, %v3857, 0
        %v3894 = vsel %vm1728, %v3858, 0
        %v3897 = vsel %vm1728, %v3859, 0
        %v3900 = vsel %vm1728, %v3860, 0
        %v3903 = vsel %vm1728, %v3861, 0
        %v3906 = vsel %vm1728, %v3862, 0
        %v3909 = vsel %vm1728, %v3863, 0
        %v3912 = vsel %vm1728, %v3864, 0
        %v3915 = vsel %vm1728, %v3865, 0
        %v3918 = vsel %vm1728, %v3866, 0
        %v3921 = vsel %vm1728, %v3867, 0
        %v3924 = vsel %vm1728, %v3868, 0
        %v3927 = vsel %vm1728, %v3869, 0
        %v3930 = vsel %vm1728, %v3870, 0
        %v3933 = vsel %vm1728, %v3871, 0
        %v3936 = vsel %vm1728, %v3872, 0
        %3938 = vmatprep.subr.bf16.mxu0 0
        %3939 = vmatpush1.bf16.msra.mxu0 %v3886
        %3940 = vmatprep.subr.bf16.mxu0 0
        %3941 = vmatpush1.bf16.msra.mxu0 %v3887
        %3942 = vmatprep.subr.bf16.mxu0 0
        %3943 = vmatpush1.bf16.msra.mxu0 0
        %3944 = vmatprep.subr.bf16.mxu0 0
        %3945 = vmatpush1.bf16.msra.mxu0 0
        %3946 = vmatprep.subr.bf16.mxu0 0
        %3947 = vmatpush1.bf16.msra.mxu0 0
        %3948 = vmatprep.subr.bf16.mxu0 0
        %3949 = vmatpush1.bf16.msra.mxu0 0
        %3950 = vmatprep.subr.bf16.mxu0 0
        %3951 = vmatpush1.bf16.msra.mxu0 0
        %3952 = vmatprep.subr.bf16.mxu0 0
        %3953 = vmatpush1.bf16.msra.mxu0 0
        %3954 = vmatprep.subr.bf16.mxu0 0
        %3955 = vmatpush1.bf16.msra.mxu0 0
        %3956 = vmatprep.subr.bf16.mxu0 0
        %3957 = vmatpush1.bf16.msra.mxu0 0
        %3958 = vmatprep.subr.bf16.mxu0 0
        %3959 = vmatpush1.bf16.msra.mxu0 0
        %3960 = vmatprep.subr.bf16.mxu0 0
        %3961 = vmatpush1.bf16.msra.mxu0 0
        %3962 = vmatprep.subr.bf16.mxu0 0
        %3963 = vmatpush1.bf16.msra.mxu0 0
        %3964 = vmatprep.subr.bf16.mxu0 0
        %3965 = vmatpush1.bf16.msra.mxu0 0
        %3966 = vmatprep.subr.bf16.mxu0 0
        %3967 = vmatpush1.bf16.msra.mxu0 0
        %3968 = vmatprep.subr.bf16.mxu0 0
        %3969 = vmatpush1.bf16.msra.mxu0 0
        %3970 = vmatprep.mubr.bf16.mxu0 0
        %3971 = vmatmul.mubr.bf16.gmra.mrb[0].mxu0 %v3891
        %v3972 = vpop.f32.mrb[0].mxu0
        %v3973 = vadd.f32 0.0, %v3972
        %v3974 = vpop.f32.mrb[0].mxu0
        %v3975 = vpop.f32.mrb[0].mxu0
        %v3976 = vadd.f32 0.0, %v3975
        %v3977 = vpop.f32.mrb[0].mxu0
        %3978 = vmatprep.mubr.bf16.mxu0 0
        %3979 = vmatmul.mubr.bf16.gmra.mrb[0].mxu0 %v3894
        %v3980 = vpop.f32.mrb[0].mxu0
        %v3981 = vadd.f32 0.0, %v3980
        %v3982 = vpop.f32.mrb[0].mxu0
        %v3983 = vpop.f32.mrb[0].mxu0
        %v3984 = vadd.f32 0.0, %v3983
        %v3985 = vpop.f32.mrb[0].mxu0
        %3986 = vmatprep.mubr.bf16.mxu0 0
        %3987 = vmatmul.mubr.bf16.gmra.mrb[0].mxu0 %v3897
        %v3988 = vpop.f32.mrb[0].mxu0
        %v3989 = vadd.f32 0.0, %v3988
        %v3990 = vpop.f32.mrb[0].mxu0
        %v3991 = vpop.f32.mrb[0].mxu0
        %v3992 = vadd.f32 0.0, %v3991
        %v3993 = vpop.f32.mrb[0].mxu0
        %3994 = vmatprep.mubr.bf16.mxu0 0
        %3995 = vmatmul.mubr.bf16.gmra.mrb[0].mxu0 %v3900
        %v3996 = vpop.f32.mrb[0].mxu0
        %v3997 = vadd.f32 0.0, %v3996
        %v3998 = vpop.f32.mrb[0].mxu0
        %v3999 = vpop.f32.mrb[0].mxu0
        %v4000 = vadd.f32 0.0, %v3999
        %v4001 = vpop.f32.mrb[0].mxu0
        %4002 = vmatprep.mubr.bf16.mxu0 0
        %4003 = vmatmul.mubr.bf16.gmra.mrb[0].mxu0 %v3903
        %v4004 = vpop.f32.mrb[0].mxu0
        %v4005 = vadd.f32 0.0, %v4004
        %v4006 = vpop.f32.mrb[0].mxu0
        %v4007 = vpop.f32.mrb[0].mxu0
        %v4008 = vadd.f32 0.0, %v4007
        %v4009 = vpop.f32.mrb[0].mxu0
        %4010 = vmatprep.mubr.bf16.mxu0 0
        %4011 = vmatmul.mubr.bf16.gmra.mrb[0].mxu0 %v3906
        %v4012 = vpop.f32.mrb[0].mxu0
        %v4013 = vadd.f32 0.0, %v4012
        %v4014 = vpop.f32.mrb[0].mxu0
        %v4015 = vpop.f32.mrb[0].mxu0
        %v4016 = vadd.f32 0.0, %v4015
        %v4017 = vpop.f32.mrb[0].mxu0
        %4018 = vmatprep.mubr.bf16.mxu0 0
        %4019 = vmatmul.mubr.bf16.gmra.mrb[0].mxu0 %v3909
        %v4020 = vpop.f32.mrb[0].mxu0
        %v4021 = vadd.f32 0.0, %v4020
        %v4022 = vpop.f32.mrb[0].mxu0
        %v4023 = vpop.f32.mrb[0].mxu0
        %v4024 = vadd.f32 0.0, %v4023
        %v4025 = vpop.f32.mrb[0].mxu0
        %4026 = vmatprep.mubr.bf16.mxu0 0
        %4027 = vmatmul.mubr.bf16.gmra.mrb[0].mxu0 %v3912
        %v4028 = vpop.f32.mrb[0].mxu0
        %v4029 = vadd.f32 0.0, %v4028
        %v4030 = vpop.f32.mrb[0].mxu0
        %v4031 = vpop.f32.mrb[0].mxu0
        %v4032 = vadd.f32 0.0, %v4031
        %v4033 = vpop.f32.mrb[0].mxu0
        %4034 = vmatprep.mubr.bf16.mxu0 0
        %4035 = vmatmul.mubr.bf16.gmra.mrb[0].mxu0 %v3915
        %v4036 = vpop.f32.mrb[0].mxu0
        %v4037 = vadd.f32 0.0, %v4036
        %v4038 = vpop.f32.mrb[0].mxu0
        %v4039 = vpop.f32.mrb[0].mxu0
        %v4040 = vadd.f32 0.0, %v4039
        %v4041 = vpop.f32.mrb[0].mxu0
        %4042 = vmatprep.mubr.bf16.mxu0 0
        %4043 = vmatmul.mubr.bf16.gmra.mrb[0].mxu0 %v3918
        %v4044 = vpop.f32.mrb[0].mxu0
        %v4045 = vadd.f32 0.0, %v4044
        %v4046 = vpop.f32.mrb[0].mxu0
        %v4047 = vpop.f32.mrb[0].mxu0
        %v4048 = vadd.f32 0.0, %v4047
        %v4049 = vpop.f32.mrb[0].mxu0
        %4050 = vmatprep.mubr.bf16.mxu0 0
        %4051 = vmatmul.mubr.bf16.gmra.mrb[0].mxu0 %v3921
        %v4052 = vpop.f32.mrb[0].mxu0
        %v4053 = vadd.f32 0.0, %v4052
        %v4054 = vpop.f32.mrb[0].mxu0
        %v4055 = vpop.f32.mrb[0].mxu0
        %v4056 = vadd.f32 0.0, %v4055
        %v4057 = vpop.f32.mrb[0].mxu0
        %4058 = vmatprep.mubr.bf16.mxu0 0
        %4059 = vmatmul.mubr.bf16.gmra.mrb[0].mxu0 %v3924
        %v4060 = vpop.f32.mrb[0].mxu0
        %v4061 = vadd.f32 0.0, %v4060
        %v4062 = vpop.f32.mrb[0].mxu0
        %v4063 = vpop.f32.mrb[0].mxu0
        %v4064 = vadd.f32 0.0, %v4063
        %v4065 = vpop.f32.mrb[0].mxu0
        %4066 = vmatprep.mubr.bf16.mxu0 0
        %4067 = vmatmul.mubr.bf16.gmra.mrb[0].mxu0 %v3927
        %v4068 = vpop.f32.mrb[0].mxu0
        %v4069 = vadd.f32 0.0, %v4068
        %v4070 = vpop.f32.mrb[0].mxu0
        %v4071 = vpop.f32.mrb[0].mxu0
        %v4072 = vadd.f32 0.0, %v4071
        %v4073 = vpop.f32.mrb[0].mxu0
        %4074 = vmatprep.mubr.bf16.mxu0 0
        %4075 = vmatmul.mubr.bf16.gmra.mrb[0].mxu0 %v3930
        %v4076 = vpop.f32.mrb[0].mxu0
        %v4077 = vadd.f32 0.0, %v4076
        %v4078 = vpop.f32.mrb[0].mxu0
        %v4079 = vpop.f32.mrb[0].mxu0
        %v4080 = vadd.f32 0.0, %v4079
        %v4081 = vpop.f32.mrb[0].mxu0
        %4082 = vmatprep.mubr.bf16.mxu0 0
        %4083 = vmatmul.mubr.bf16.gmra.mrb[0].mxu0 %v3933
        %v4084 = vpop.f32.mrb[0].mxu0
        %v4085 = vadd.f32 0.0, %v4084
        %v4086 = vpop.f32.mrb[0].mxu0
        %v4087 = vpop.f32.mrb[0].mxu0
        %v4088 = vadd.f32 0.0, %v4087
        %v4089 = vpop.f32.mrb[0].mxu0
        %4090 = vmatprep.mubr.bf16.mxu0 0
        %4091 = vmatmul.mubr.bf16.gmra.mrb[0].mxu0 %v3936
        %v4092 = vpop.f32.mrb[0].mxu0
        %v4093 = vadd.f32 0.0, %v4092
        %v4094 = vpop.f32.mrb[0].mxu0
        %v4095 = vpop.f32.mrb[0].mxu0
        %v4096 = vadd.f32 0.0, %v4095
        %v4097 = vpop.f32.mrb[0].mxu0
        %4098 = vdwg.mxu0
        %v4099 = vadd.f32 %v3793, %v3973
        %v4100 = vadd.f32 %v3794, %v3976
        %v4101 = vadd.f32 %v3795, %v3981
        %v4102 = vadd.f32 %v3796, %v3984
        %v4103 = vadd.f32 %v3797, %v3989
        %v4104 = vadd.f32 %v3798, %v3992
        %v4105 = vadd.f32 %v3799, %v3997
        %v4106 = vadd.f32 %v3800, %v4000
        %v4107 = vadd.f32 %v3801, %v4005
        %v4108 = vadd.f32 %v3802, %v4008
        %v4109 = vadd.f32 %v3803, %v4013
        %v4110 = vadd.f32 %v3804, %v4016
        %v4111 = vadd.f32 %v3805, %v4021
        %v4112 = vadd.f32 %v3806, %v4024
        %v4113 = vadd.f32 %v3807, %v4029
        %v4114 = vadd.f32 %v3808, %v4032
        %v4115 = vadd.f32 %v3809, %v4037
        %v4116 = vadd.f32 %v3810, %v4040
        %v4117 = vadd.f32 %v3811, %v4045
        %v4118 = vadd.f32 %v3812, %v4048
        %v4119 = vadd.f32 %v3813, %v4053
        %v4120 = vadd.f32 %v3814, %v4056
        %v4121 = vadd.f32 %v3815, %v4061
        %v4122 = vadd.f32 %v3816, %v4064
        %v4123 = vadd.f32 %v3817, %v4069
        %v4124 = vadd.f32 %v3818, %v4072
        %v4125 = vadd.f32 %v3819, %v4077
        %v4126 = vadd.f32 %v3820, %v4080
        %v4127 = vadd.f32 %v3821, %v4085
        %v4128 = vadd.f32 %v3822, %v4088
        %v4129 = vadd.f32 %v3823, %v4093
        %v4130 = vadd.f32 %v3824, %v4096
        %s4131 = scalar_lea.vmem [#allocation5], 48
        %v4132 = vld [vmem:[%s4131] sm:$0xff]
        %v4133 = vld [vmem:[%s4131 + $0x8] sm:$0xff]
        %v4134 = vld [vmem:[%s4131 + $0x18] sm:$0xff]
        %v4135 = vld [vmem:[%s4131 + $0x20] sm:$0xff]
        %v4136 = vld [vmem:[%s4131 + $0x30] sm:$0xff]
        %v4137 = vld [vmem:[%s4131 + $0x38] sm:$0xff]
        %v4138 = vld [vmem:[%s4131 + $0x48] sm:$0xff]
        %v4139 = vld [vmem:[%s4131 + $0x50] sm:$0xff]
        %v4140 = vld [vmem:[%s4131 + $0x60] sm:$0xff]
        %v4141 = vld [vmem:[%s4131 + $0x68] sm:$0xff]
        %v4142 = vld [vmem:[%s4131 + $0x78] sm:$0xff]
        %v4143 = vld [vmem:[%s4131 + $0x80] sm:$0xff]
        %v4144 = vld [vmem:[%s4131 + $0x90] sm:$0xff]
        %v4145 = vld [vmem:[%s4131 + $0x98] sm:$0xff]
        %v4146 = vld [vmem:[%s4131 + $0xa8] sm:$0xff]
        %v4147 = vld [vmem:[%s4131 + $0xb0] sm:$0xff]
        %v4148 = vld [vmem:[%s4131 + $0xc0] sm:$0xff]
        %v4149 = vld [vmem:[%s4131 + $0xc8] sm:$0xff]
        %v4150 = vld [vmem:[%s4131 + $0xd8] sm:$0xff]
        %v4151 = vld [vmem:[%s4131 + $0xe0] sm:$0xff]
        %v4152 = vld [vmem:[%s4131 + $0xf0] sm:$0xff]
        %v4153 = vld [vmem:[%s4131 + $0xf8] sm:$0xff]
        %v4154 = vld [vmem:[%s4131 + $0x108] sm:$0xff]
        %v4155 = vld [vmem:[%s4131 + $0x110] sm:$0xff]
        %v4156 = vld [vmem:[%s4131 + $0x120] sm:$0xff]
        %v4157 = vld [vmem:[%s4131 + $0x128] sm:$0xff]
        %v4158 = vld [vmem:[%s4131 + $0x138] sm:$0xff]
        %v4159 = vld [vmem:[%s4131 + $0x140] sm:$0xff]
        %v4160 = vld [vmem:[%s4131 + $0x150] sm:$0xff]
        %v4161 = vld [vmem:[%s4131 + $0x158] sm:$0xff]
        %v4162 = vld [vmem:[%s4131 + $0x168] sm:$0xff]
        %v4163 = vld [vmem:[%s4131 + $0x170] sm:$0xff]
        %v4164 = vpack.c.bf16 %v4133, %v4132
        %v4165 = vpack.c.bf16 %v4135, %v4134
        %v4166 = vpack.c.bf16 %v4137, %v4136
        %v4167 = vpack.c.bf16 %v4139, %v4138
        %v4168 = vpack.c.bf16 %v4141, %v4140
        %v4169 = vpack.c.bf16 %v4143, %v4142
        %v4170 = vpack.c.bf16 %v4145, %v4144
        %v4171 = vpack.c.bf16 %v4147, %v4146
        %v4172 = vpack.c.bf16 %v4149, %v4148
        %v4173 = vpack.c.bf16 %v4151, %v4150
        %v4174 = vpack.c.bf16 %v4153, %v4152
        %v4175 = vpack.c.bf16 %v4155, %v4154
        %v4176 = vpack.c.bf16 %v4157, %v4156
        %v4177 = vpack.c.bf16 %v4159, %v4158
        %v4178 = vpack.c.bf16 %v4161, %v4160
        %v4179 = vpack.c.bf16 %v4163, %v4162
        %s4180 = scalar_lea.vmem %s3, 96
        %v4181 = vld [vmem:[%s4180] sm:$0xf]
        %v4182 = vld [vmem:[%s4180 + $0x4] sm:$0xf]
        %v4183 = vld [vmem:[%s4180 + $0x8] sm:$0xf]
        %v4184 = vld [vmem:[%s4180 + $0xc] sm:$0xf]
        %v4189 = vunpack.c.l.b16 %v4181
        %v4190 = vunpack.c.l.b16 %v4182
        %v4191 = vunpack.c.l.b16 %v4183
        %v4192 = vunpack.c.l.b16 %v4184
        %v4193 = vpack.c.b16 %v4190, %v4189
        %v4194 = vpack.c.b16 %v4192, %v4191
        %v4198 = vsel %vm1728, %v4164, 0
        %v4201 = vsel %vm1728, %v4165, 0
        %v4204 = vsel %vm1728, %v4166, 0
        %v4207 = vsel %vm1728, %v4167, 0
        %v4210 = vsel %vm1728, %v4168, 0
        %v4213 = vsel %vm1728, %v4169, 0
        %v4216 = vsel %vm1728, %v4170, 0
        %v4219 = vsel %vm1728, %v4171, 0
        %v4222 = vsel %vm1728, %v4172, 0
        %v4225 = vsel %vm1728, %v4173, 0
        %v4228 = vsel %vm1728, %v4174, 0
        %v4231 = vsel %vm1728, %v4175, 0
        %v4234 = vsel %vm1728, %v4176, 0
        %v4237 = vsel %vm1728, %v4177, 0
        %v4240 = vsel %vm1728, %v4178, 0
        %v4243 = vsel %vm1728, %v4179, 0
        %4245 = vmatprep.subr.bf16.mxu0 0
        %4246 = vmatpush1.bf16.msra.mxu0 %v4193
        %4247 = vmatprep.subr.bf16.mxu0 0
        %4248 = vmatpush1.bf16.msra.mxu0 %v4194
        %4249 = vmatprep.subr.bf16.mxu0 0
        %4250 = vmatpush1.bf16.msra.mxu0 0
        %4251 = vmatprep.subr.bf16.mxu0 0
        %4252 = vmatpush1.bf16.msra.mxu0 0
        %4253 = vmatprep.subr.bf16.mxu0 0
        %4254 = vmatpush1.bf16.msra.mxu0 0
        %4255 = vmatprep.subr.bf16.mxu0 0
        %4256 = vmatpush1.bf16.msra.mxu0 0
        %4257 = vmatprep.subr.bf16.mxu0 0
        %4258 = vmatpush1.bf16.msra.mxu0 0
        %4259 = vmatprep.subr.bf16.mxu0 0
        %4260 = vmatpush1.bf16.msra.mxu0 0
        %4261 = vmatprep.subr.bf16.mxu0 0
        %4262 = vmatpush1.bf16.msra.mxu0 0
        %4263 = vmatprep.subr.bf16.mxu0 0
        %4264 = vmatpush1.bf16.msra.mxu0 0
        %4265 = vmatprep.subr.bf16.mxu0 0
        %4266 = vmatpush1.bf16.msra.mxu0 0
        %4267 = vmatprep.subr.bf16.mxu0 0
        %4268 = vmatpush1.bf16.msra.mxu0 0
        %4269 = vmatprep.subr.bf16.mxu0 0
        %4270 = vmatpush1.bf16.msra.mxu0 0
        %4271 = vmatprep.subr.bf16.mxu0 0
        %4272 = vmatpush1.bf16.msra.mxu0 0
        %4273 = vmatprep.subr.bf16.mxu0 0
        %4274 = vmatpush1.bf16.msra.mxu0 0
        %4275 = vmatprep.subr.bf16.mxu0 0
        %4276 = vmatpush1.bf16.msra.mxu0 0
        %4277 = vmatprep.mubr.bf16.mxu0 0
        %4278 = vmatmul.mubr.bf16.gmra.mrb[0].mxu0 %v4198
        %v4279 = vpop.f32.mrb[0].mxu0
        %v4280 = vadd.f32 0.0, %v4279
        %v4281 = vpop.f32.mrb[0].mxu0
        %v4282 = vpop.f32.mrb[0].mxu0
        %v4283 = vadd.f32 0.0, %v4282
        %v4284 = vpop.f32.mrb[0].mxu0
        %4285 = vmatprep.mubr.bf16.mxu0 0
        %4286 = vmatmul.mubr.bf16.gmra.mrb[0].mxu0 %v4201
        %v4287 = vpop.f32.mrb[0].mxu0
        %v4288 = vadd.f32 0.0, %v4287
        %v4289 = vpop.f32.mrb[0].mxu0
        %v4290 = vpop.f32.mrb[0].mxu0
        %v4291 = vadd.f32 0.0, %v4290
        %v4292 = vpop.f32.mrb[0].mxu0
        %4293 = vmatprep.mubr.bf16.mxu0 0
        %4294 = vmatmul.mubr.bf16.gmra.mrb[0].mxu0 %v4204
        %v4295 = vpop.f32.mrb[0].mxu0
        %v4296 = vadd.f32 0.0, %v4295
        %v4297 = vpop.f32.mrb[0].mxu0
        %v4298 = vpop.f32.mrb[0].mxu0
        %v4299 = vadd.f32 0.0, %v4298
        %v4300 = vpop.f32.mrb[0].mxu0
        %4301 = vmatprep.mubr.bf16.mxu0 0
        %4302 = vmatmul.mubr.bf16.gmra.mrb[0].mxu0 %v4207
        %v4303 = vpop.f32.mrb[0].mxu0
        %v4304 = vadd.f32 0.0, %v4303
        %v4305 = vpop.f32.mrb[0].mxu0
        %v4306 = vpop.f32.mrb[0].mxu0
        %v4307 = vadd.f32 0.0, %v4306
        %v4308 = vpop.f32.mrb[0].mxu0
        %4309 = vmatprep.mubr.bf16.mxu0 0
        %4310 = vmatmul.mubr.bf16.gmra.mrb[0].mxu0 %v4210
        %v4311 = vpop.f32.mrb[0].mxu0
        %v4312 = vadd.f32 0.0, %v4311
        %v4313 = vpop.f32.mrb[0].mxu0
        %v4314 = vpop.f32.mrb[0].mxu0
        %v4315 = vadd.f32 0.0, %v4314
        %v4316 = vpop.f32.mrb[0].mxu0
        %4317 = vmatprep.mubr.bf16.mxu0 0
        %4318 = vmatmul.mubr.bf16.gmra.mrb[0].mxu0 %v4213
        %v4319 = vpop.f32.mrb[0].mxu0
        %v4320 = vadd.f32 0.0, %v4319
        %v4321 = vpop.f32.mrb[0].mxu0
        %v4322 = vpop.f32.mrb[0].mxu0
        %v4323 = vadd.f32 0.0, %v4322
        %v4324 = vpop.f32.mrb[0].mxu0
        %4325 = vmatprep.mubr.bf16.mxu0 0
        %4326 = vmatmul.mubr.bf16.gmra.mrb[0].mxu0 %v4216
        %v4327 = vpop.f32.mrb[0].mxu0
        %v4328 = vadd.f32 0.0, %v4327
        %v4329 = vpop.f32.mrb[0].mxu0
        %v4330 = vpop.f32.mrb[0].mxu0
        %v4331 = vadd.f32 0.0, %v4330
        %v4332 = vpop.f32.mrb[0].mxu0
        %4333 = vmatprep.mubr.bf16.mxu0 0
        %4334 = vmatmul.mubr.bf16.gmra.mrb[0].mxu0 %v4219
        %v4335 = vpop.f32.mrb[0].mxu0
        %v4336 = vadd.f32 0.0, %v4335
        %v4337 = vpop.f32.mrb[0].mxu0
        %v4338 = vpop.f32.mrb[0].mxu0
        %v4339 = vadd.f32 0.0, %v4338
        %v4340 = vpop.f32.mrb[0].mxu0
        %4341 = vmatprep.mubr.bf16.mxu0 0
        %4342 = vmatmul.mubr.bf16.gmra.mrb[0].mxu0 %v4222
        %v4343 = vpop.f32.mrb[0].mxu0
        %v4344 = vadd.f32 0.0, %v4343
        %v4345 = vpop.f32.mrb[0].mxu0
        %v4346 = vpop.f32.mrb[0].mxu0
        %v4347 = vadd.f32 0.0, %v4346
        %v4348 = vpop.f32.mrb[0].mxu0
        %4349 = vmatprep.mubr.bf16.mxu0 0
        %4350 = vmatmul.mubr.bf16.gmra.mrb[0].mxu0 %v4225
        %v4351 = vpop.f32.mrb[0].mxu0
        %v4352 = vadd.f32 0.0, %v4351
        %v4353 = vpop.f32.mrb[0].mxu0
        %v4354 = vpop.f32.mrb[0].mxu0
        %v4355 = vadd.f32 0.0, %v4354
        %v4356 = vpop.f32.mrb[0].mxu0
        %4357 = vmatprep.mubr.bf16.mxu0 0
        %4358 = vmatmul.mubr.bf16.gmra.mrb[0].mxu0 %v4228
        %v4359 = vpop.f32.mrb[0].mxu0
        %v4360 = vadd.f32 0.0, %v4359
        %v4361 = vpop.f32.mrb[0].mxu0
        %v4362 = vpop.f32.mrb[0].mxu0
        %v4363 = vadd.f32 0.0, %v4362
        %v4364 = vpop.f32.mrb[0].mxu0
        %4365 = vmatprep.mubr.bf16.mxu0 0
        %4366 = vmatmul.mubr.bf16.gmra.mrb[0].mxu0 %v4231
        %v4367 = vpop.f32.mrb[0].mxu0
        %v4368 = vadd.f32 0.0, %v4367
        %v4369 = vpop.f32.mrb[0].mxu0
        %v4370 = vpop.f32.mrb[0].mxu0
        %v4371 = vadd.f32 0.0, %v4370
        %v4372 = vpop.f32.mrb[0].mxu0
        %4373 = vmatprep.mubr.bf16.mxu0 0
        %4374 = vmatmul.mubr.bf16.gmra.mrb[0].mxu0 %v4234
        %v4375 = vpop.f32.mrb[0].mxu0
        %v4376 = vadd.f32 0.0, %v4375
        %v4377 = vpop.f32.mrb[0].mxu0
        %v4378 = vpop.f32.mrb[0].mxu0
        %v4379 = vadd.f32 0.0, %v4378
        %v4380 = vpop.f32.mrb[0].mxu0
        %4381 = vmatprep.mubr.bf16.mxu0 0
        %4382 = vmatmul.mubr.bf16.gmra.mrb[0].mxu0 %v4237
        %v4383 = vpop.f32.mrb[0].mxu0
        %v4384 = vadd.f32 0.0, %v4383
        %v4385 = vpop.f32.mrb[0].mxu0
        %v4386 = vpop.f32.mrb[0].mxu0
        %v4387 = vadd.f32 0.0, %v4386
        %v4388 = vpop.f32.mrb[0].mxu0
        %4389 = vmatprep.mubr.bf16.mxu0 0
        %4390 = vmatmul.mubr.bf16.gmra.mrb[0].mxu0 %v4240
        %v4391 = vpop.f32.mrb[0].mxu0
        %v4392 = vadd.f32 0.0, %v4391
        %v4393 = vpop.f32.mrb[0].mxu0
        %v4394 = vpop.f32.mrb[0].mxu0
        %v4395 = vadd.f32 0.0, %v4394
        %v4396 = vpop.f32.mrb[0].mxu0
        %4397 = vmatprep.mubr.bf16.mxu0 0
        %4398 = vmatmul.mubr.bf16.gmra.mrb[0].mxu0 %v4243
        %v4399 = vpop.f32.mrb[0].mxu0
        %v4400 = vadd.f32 0.0, %v4399
        %v4401 = vpop.f32.mrb[0].mxu0
        %v4402 = vpop.f32.mrb[0].mxu0
        %v4403 = vadd.f32 0.0, %v4402
        %v4404 = vpop.f32.mrb[0].mxu0
        %4405 = vdwg.mxu0
        %v4406 = vadd.f32 %v4099, %v4280
        %v4407 = vadd.f32 %v4100, %v4283
        %v4408 = vadd.f32 %v4101, %v4288
        %v4409 = vadd.f32 %v4102, %v4291
        %v4410 = vadd.f32 %v4103, %v4296
        %v4411 = vadd.f32 %v4104, %v4299
        %v4412 = vadd.f32 %v4105, %v4304
        %v4413 = vadd.f32 %v4106, %v4307
        %v4414 = vadd.f32 %v4107, %v4312
        %v4415 = vadd.f32 %v4108, %v4315
        %v4416 = vadd.f32 %v4109, %v4320
        %v4417 = vadd.f32 %v4110, %v4323
        %v4418 = vadd.f32 %v4111, %v4328
        %v4419 = vadd.f32 %v4112, %v4331
        %v4420 = vadd.f32 %v4113, %v4336
        %v4421 = vadd.f32 %v4114, %v4339
        %v4422 = vadd.f32 %v4115, %v4344
        %v4423 = vadd.f32 %v4116, %v4347
        %v4424 = vadd.f32 %v4117, %v4352
        %v4425 = vadd.f32 %v4118, %v4355
        %v4426 = vadd.f32 %v4119, %v4360
        %v4427 = vadd.f32 %v4120, %v4363
        %v4428 = vadd.f32 %v4121, %v4368
        %v4429 = vadd.f32 %v4122, %v4371
        %v4430 = vadd.f32 %v4123, %v4376
        %v4431 = vadd.f32 %v4124, %v4379
        %v4432 = vadd.f32 %v4125, %v4384
        %v4433 = vadd.f32 %v4126, %v4387
        %v4434 = vadd.f32 %v4127, %v4392
        %v4435 = vadd.f32 %v4128, %v4395
        %v4436 = vadd.f32 %v4129, %v4400
        %v4437 = vadd.f32 %v4130, %v4403
        %v4438 = vld [vmem:[%s4131 + $0x1] sm:$0xff]
        %v4439 = vld [vmem:[%s4131 + $0x9] sm:$0xff]
        %v4440 = vld [vmem:[%s4131 + $0x19] sm:$0xff]
        %v4441 = vld [vmem:[%s4131 + $0x21] sm:$0xff]
        %v4442 = vld [vmem:[%s4131 + $0x31] sm:$0xff]
        %v4443 = vld [vmem:[%s4131 + $0x39] sm:$0xff]
        %v4444 = vld [vmem:[%s4131 + $0x49] sm:$0xff]
        %v4445 = vld [vmem:[%s4131 + $0x51] sm:$0xff]
        %v4446 = vld [vmem:[%s4131 + $0x61] sm:$0xff]
        %v4447 = vld [vmem:[%s4131 + $0x69] sm:$0xff]
        %v4448 = vld [vmem:[%s4131 + $0x79] sm:$0xff]
        %v4449 = vld [vmem:[%s4131 + $0x81] sm:$0xff]
        %v4450 = vld [vmem:[%s4131 + $0x91] sm:$0xff]
        %v4451 = vld [vmem:[%s4131 + $0x99] sm:$0xff]
        %v4452 = vld [vmem:[%s4131 + $0xa9] sm:$0xff]
        %v4453 = vld [vmem:[%s4131 + $0xb1] sm:$0xff]
        %v4454 = vld [vmem:[%s4131 + $0xc1] sm:$0xff]
        %v4455 = vld [vmem:[%s4131 + $0xc9] sm:$0xff]
        %v4456 = vld [vmem:[%s4131 + $0xd9] sm:$0xff]
        %v4457 = vld [vmem:[%s4131 + $0xe1] sm:$0xff]
        %v4458 = vld [vmem:[%s4131 + $0xf1] sm:$0xff]
        %v4459 = vld [vmem:[%s4131 + $0xf9] sm:$0xff]
        %v4460 = vld [vmem:[%s4131 + $0x109] sm:$0xff]
        %v4461 = vld [vmem:[%s4131 + $0x111] sm:$0xff]
        %v4462 = vld [vmem:[%s4131 + $0x121] sm:$0xff]
        %v4463 = vld [vmem:[%s4131 + $0x129] sm:$0xff]
        %v4464 = vld [vmem:[%s4131 + $0x139] sm:$0xff]
        %v4465 = vld [vmem:[%s4131 + $0x141] sm:$0xff]
        %v4466 = vld [vmem:[%s4131 + $0x151] sm:$0xff]
        %v4467 = vld [vmem:[%s4131 + $0x159] sm:$0xff]
        %v4468 = vld [vmem:[%s4131 + $0x169] sm:$0xff]
        %v4469 = vld [vmem:[%s4131 + $0x171] sm:$0xff]
        %v4470 = vpack.c.bf16 %v4439, %v4438
        %v4471 = vpack.c.bf16 %v4441, %v4440
        %v4472 = vpack.c.bf16 %v4443, %v4442
        %v4473 = vpack.c.bf16 %v4445, %v4444
        %v4474 = vpack.c.bf16 %v4447, %v4446
        %v4475 = vpack.c.bf16 %v4449, %v4448
        %v4476 = vpack.c.bf16 %v4451, %v4450
        %v4477 = vpack.c.bf16 %v4453, %v4452
        %v4478 = vpack.c.bf16 %v4455, %v4454
        %v4479 = vpack.c.bf16 %v4457, %v4456
        %v4480 = vpack.c.bf16 %v4459, %v4458
        %v4481 = vpack.c.bf16 %v4461, %v4460
        %v4482 = vpack.c.bf16 %v4463, %v4462
        %v4483 = vpack.c.bf16 %v4465, %v4464
        %v4484 = vpack.c.bf16 %v4467, %v4466
        %v4485 = vpack.c.bf16 %v4469, %v4468
        %s4486 = scalar_lea.vmem %s3, 112
        %v4487 = vld [vmem:[%s4486] sm:$0xf]
        %v4488 = vld [vmem:[%s4486 + $0x4] sm:$0xf]
        %v4489 = vld [vmem:[%s4486 + $0x8] sm:$0xf]
        %v4490 = vld [vmem:[%s4486 + $0xc] sm:$0xf]
        %v4495 = vunpack.c.l.b16 %v4487
        %v4496 = vunpack.c.l.b16 %v4488
        %v4497 = vunpack.c.l.b16 %v4489
        %v4498 = vunpack.c.l.b16 %v4490
        %v4499 = vpack.c.b16 %v4496, %v4495
        %v4500 = vpack.c.b16 %v4498, %v4497
        %v4504 = vsel %vm1728, %v4470, 0
        %v4507 = vsel %vm1728, %v4471, 0
        %v4510 = vsel %vm1728, %v4472, 0
        %v4513 = vsel %vm1728, %v4473, 0
        %v4516 = vsel %vm1728, %v4474, 0
        %v4519 = vsel %vm1728, %v4475, 0
        %v4522 = vsel %vm1728, %v4476, 0
        %v4525 = vsel %vm1728, %v4477, 0
        %v4528 = vsel %vm1728, %v4478, 0
        %v4531 = vsel %vm1728, %v4479, 0
        %v4534 = vsel %vm1728, %v4480, 0
        %v4537 = vsel %vm1728, %v4481, 0
        %v4540 = vsel %vm1728, %v4482, 0
        %v4543 = vsel %vm1728, %v4483, 0
        %v4546 = vsel %vm1728, %v4484, 0
        %v4549 = vsel %vm1728, %v4485, 0
        %4551 = vmatprep.subr.bf16.mxu0 0
        %4552 = vmatpush1.bf16.msra.mxu0 %v4499
        %4553 = vmatprep.subr.bf16.mxu0 0
        %4554 = vmatpush1.bf16.msra.mxu0 %v4500
        %4555 = vmatprep.subr.bf16.mxu0 0
        %4556 = vmatpush1.bf16.msra.mxu0 0
        %4557 = vmatprep.subr.bf16.mxu0 0
        %4558 = vmatpush1.bf16.msra.mxu0 0
        %4559 = vmatprep.subr.bf16.mxu0 0
        %4560 = vmatpush1.bf16.msra.mxu0 0
        %4561 = vmatprep.subr.bf16.mxu0 0
        %4562 = vmatpush1.bf16.msra.mxu0 0
        %4563 = vmatprep.subr.bf16.mxu0 0
        %4564 = vmatpush1.bf16.msra.mxu0 0
        %4565 = vmatprep.subr.bf16.mxu0 0
        %4566 = vmatpush1.bf16.msra.mxu0 0
        %4567 = vmatprep.subr.bf16.mxu0 0
        %4568 = vmatpush1.bf16.msra.mxu0 0
        %4569 = vmatprep.subr.bf16.mxu0 0
        %4570 = vmatpush1.bf16.msra.mxu0 0
        %4571 = vmatprep.subr.bf16.mxu0 0
        %4572 = vmatpush1.bf16.msra.mxu0 0
        %4573 = vmatprep.subr.bf16.mxu0 0
        %4574 = vmatpush1.bf16.msra.mxu0 0
        %4575 = vmatprep.subr.bf16.mxu0 0
        %4576 = vmatpush1.bf16.msra.mxu0 0
        %4577 = vmatprep.subr.bf16.mxu0 0
        %4578 = vmatpush1.bf16.msra.mxu0 0
        %4579 = vmatprep.subr.bf16.mxu0 0
        %4580 = vmatpush1.bf16.msra.mxu0 0
        %4581 = vmatprep.subr.bf16.mxu0 0
        %4582 = vmatpush1.bf16.msra.mxu0 0
        %4583 = vmatprep.mubr.bf16.mxu0 0
        %4584 = vmatmul.mubr.bf16.gmra.mrb[0].mxu0 %v4504
        %v4585 = vpop.f32.mrb[0].mxu0
        %v4586 = vadd.f32 0.0, %v4585
        %v4587 = vpop.f32.mrb[0].mxu0
        %v4588 = vpop.f32.mrb[0].mxu0
        %v4589 = vadd.f32 0.0, %v4588
        %v4590 = vpop.f32.mrb[0].mxu0
        %4591 = vmatprep.mubr.bf16.mxu0 0
        %4592 = vmatmul.mubr.bf16.gmra.mrb[0].mxu0 %v4507
        %v4593 = vpop.f32.mrb[0].mxu0
        %v4594 = vadd.f32 0.0, %v4593
        %v4595 = vpop.f32.mrb[0].mxu0
        %v4596 = vpop.f32.mrb[0].mxu0
        %v4597 = vadd.f32 0.0, %v4596
        %v4598 = vpop.f32.mrb[0].mxu0
        %4599 = vmatprep.mubr.bf16.mxu0 0
        %4600 = vmatmul.mubr.bf16.gmra.mrb[0].mxu0 %v4510
        %v4601 = vpop.f32.mrb[0].mxu0
        %v4602 = vadd.f32 0.0, %v4601
        %v4603 = vpop.f32.mrb[0].mxu0
        %v4604 = vpop.f32.mrb[0].mxu0
        %v4605 = vadd.f32 0.0, %v4604
        %v4606 = vpop.f32.mrb[0].mxu0
        %4607 = vmatprep.mubr.bf16.mxu0 0
        %4608 = vmatmul.mubr.bf16.gmra.mrb[0].mxu0 %v4513
        %v4609 = vpop.f32.mrb[0].mxu0
        %v4610 = vadd.f32 0.0, %v4609
        %v4611 = vpop.f32.mrb[0].mxu0
        %v4612 = vpop.f32.mrb[0].mxu0
        %v4613 = vadd.f32 0.0, %v4612
        %v4614 = vpop.f32.mrb[0].mxu0
        %4615 = vmatprep.mubr.bf16.mxu0 0
        %4616 = vmatmul.mubr.bf16.gmra.mrb[0].mxu0 %v4516
        %v4617 = vpop.f32.mrb[0].mxu0
        %v4618 = vadd.f32 0.0, %v4617
        %v4619 = vpop.f32.mrb[0].mxu0
        %v4620 = vpop.f32.mrb[0].mxu0
        %v4621 = vadd.f32 0.0, %v4620
        %v4622 = vpop.f32.mrb[0].mxu0
        %4623 = vmatprep.mubr.bf16.mxu0 0
        %4624 = vmatmul.mubr.bf16.gmra.mrb[0].mxu0 %v4519
        %v4625 = vpop.f32.mrb[0].mxu0
        %v4626 = vadd.f32 0.0, %v4625
        %v4627 = vpop.f32.mrb[0].mxu0
        %v4628 = vpop.f32.mrb[0].mxu0
        %v4629 = vadd.f32 0.0, %v4628
        %v4630 = vpop.f32.mrb[0].mxu0
        %4631 = vmatprep.mubr.bf16.mxu0 0
        %4632 = vmatmul.mubr.bf16.gmra.mrb[0].mxu0 %v4522
        %v4633 = vpop.f32.mrb[0].mxu0
        %v4634 = vadd.f32 0.0, %v4633
        %v4635 = vpop.f32.mrb[0].mxu0
        %v4636 = vpop.f32.mrb[0].mxu0
        %v4637 = vadd.f32 0.0, %v4636
        %v4638 = vpop.f32.mrb[0].mxu0
        %4639 = vmatprep.mubr.bf16.mxu0 0
        %4640 = vmatmul.mubr.bf16.gmra.mrb[0].mxu0 %v4525
        %v4641 = vpop.f32.mrb[0].mxu0
        %v4642 = vadd.f32 0.0, %v4641
        %v4643 = vpop.f32.mrb[0].mxu0
        %v4644 = vpop.f32.mrb[0].mxu0
        %v4645 = vadd.f32 0.0, %v4644
        %v4646 = vpop.f32.mrb[0].mxu0
        %4647 = vmatprep.mubr.bf16.mxu0 0
        %4648 = vmatmul.mubr.bf16.gmra.mrb[0].mxu0 %v4528
        %v4649 = vpop.f32.mrb[0].mxu0
        %v4650 = vadd.f32 0.0, %v4649
        %v4651 = vpop.f32.mrb[0].mxu0
        %v4652 = vpop.f32.mrb[0].mxu0
        %v4653 = vadd.f32 0.0, %v4652
        %v4654 = vpop.f32.mrb[0].mxu0
        %4655 = vmatprep.mubr.bf16.mxu0 0
        %4656 = vmatmul.mubr.bf16.gmra.mrb[0].mxu0 %v4531
        %v4657 = vpop.f32.mrb[0].mxu0
        %v4658 = vadd.f32 0.0, %v4657
        %v4659 = vpop.f32.mrb[0].mxu0
        %v4660 = vpop.f32.mrb[0].mxu0
        %v4661 = vadd.f32 0.0, %v4660
        %v4662 = vpop.f32.mrb[0].mxu0
        %4663 = vmatprep.mubr.bf16.mxu0 0
        %4664 = vmatmul.mubr.bf16.gmra.mrb[0].mxu0 %v4534
        %v4665 = vpop.f32.mrb[0].mxu0
        %v4666 = vadd.f32 0.0, %v4665
        %v4667 = vpop.f32.mrb[0].mxu0
        %v4668 = vpop.f32.mrb[0].mxu0
        %v4669 = vadd.f32 0.0, %v4668
        %v4670 = vpop.f32.mrb[0].mxu0
        %4671 = vmatprep.mubr.bf16.mxu0 0
        %4672 = vmatmul.mubr.bf16.gmra.mrb[0].mxu0 %v4537
        %v4673 = vpop.f32.mrb[0].mxu0
        %v4674 = vadd.f32 0.0, %v4673
        %v4675 = vpop.f32.mrb[0].mxu0
        %v4676 = vpop.f32.mrb[0].mxu0
        %v4677 = vadd.f32 0.0, %v4676
        %v4678 = vpop.f32.mrb[0].mxu0
        %4679 = vmatprep.mubr.bf16.mxu0 0
        %4680 = vmatmul.mubr.bf16.gmra.mrb[0].mxu0 %v4540
        %v4681 = vpop.f32.mrb[0].mxu0
        %v4682 = vadd.f32 0.0, %v4681
        %v4683 = vpop.f32.mrb[0].mxu0
        %v4684 = vpop.f32.mrb[0].mxu0
        %v4685 = vadd.f32 0.0, %v4684
        %v4686 = vpop.f32.mrb[0].mxu0
        %4687 = vmatprep.mubr.bf16.mxu0 0
        %4688 = vmatmul.mubr.bf16.gmra.mrb[0].mxu0 %v4543
        %v4689 = vpop.f32.mrb[0].mxu0
        %v4690 = vadd.f32 0.0, %v4689
        %v4691 = vpop.f32.mrb[0].mxu0
        %v4692 = vpop.f32.mrb[0].mxu0
        %v4693 = vadd.f32 0.0, %v4692
        %v4694 = vpop.f32.mrb[0].mxu0
        %4695 = vmatprep.mubr.bf16.mxu0 0
        %4696 = vmatmul.mubr.bf16.gmra.mrb[0].mxu0 %v4546
        %v4697 = vpop.f32.mrb[0].mxu0
        %v4698 = vadd.f32 0.0, %v4697
        %v4699 = vpop.f32.mrb[0].mxu0
        %v4700 = vpop.f32.mrb[0].mxu0
        %v4701 = vadd.f32 0.0, %v4700
        %v4702 = vpop.f32.mrb[0].mxu0
        %4703 = vmatprep.mubr.bf16.mxu0 0
        %4704 = vmatmul.mubr.bf16.gmra.mrb[0].mxu0 %v4549
        %v4705 = vpop.f32.mrb[0].mxu0
        %v4706 = vadd.f32 0.0, %v4705
        %v4707 = vpop.f32.mrb[0].mxu0
        %v4708 = vpop.f32.mrb[0].mxu0
        %v4709 = vadd.f32 0.0, %v4708
        %v4710 = vpop.f32.mrb[0].mxu0
        %4711 = vdwg.mxu0
        %v4712 = vadd.f32 %v4406, %v4586
        %v4713 = vadd.f32 %v4407, %v4589
        %v4714 = vadd.f32 %v4408, %v4594
        %v4715 = vadd.f32 %v4409, %v4597
        %v4716 = vadd.f32 %v4410, %v4602
        %v4717 = vadd.f32 %v4411, %v4605
        %v4718 = vadd.f32 %v4412, %v4610
        %v4719 = vadd.f32 %v4413, %v4613
        %v4720 = vadd.f32 %v4414, %v4618
        %v4721 = vadd.f32 %v4415, %v4621
        %v4722 = vadd.f32 %v4416, %v4626
        %v4723 = vadd.f32 %v4417, %v4629
        %v4724 = vadd.f32 %v4418, %v4634
        %v4725 = vadd.f32 %v4419, %v4637
        %v4726 = vadd.f32 %v4420, %v4642
        %v4727 = vadd.f32 %v4421, %v4645
        %v4728 = vadd.f32 %v4422, %v4650
        %v4729 = vadd.f32 %v4423, %v4653
        %v4730 = vadd.f32 %v4424, %v4658
        %v4731 = vadd.f32 %v4425, %v4661
        %v4732 = vadd.f32 %v4426, %v4666
        %v4733 = vadd.f32 %v4427, %v4669
        %v4734 = vadd.f32 %v4428, %v4674
        %v4735 = vadd.f32 %v4429, %v4677
        %v4736 = vadd.f32 %v4430, %v4682
        %v4737 = vadd.f32 %v4431, %v4685
        %v4738 = vadd.f32 %v4432, %v4690
        %v4739 = vadd.f32 %v4433, %v4693
        %v4740 = vadd.f32 %v4434, %v4698
        %v4741 = vadd.f32 %v4435, %v4701
        %v4742 = vadd.f32 %v4436, %v4706
        %v4743 = vadd.f32 %v4437, %v4709
        %v4744 = vld [vmem:[%s4131 + $0x2] sm:$0xff]
        %v4745 = vld [vmem:[%s4131 + $0xa] sm:$0xff]
        %v4746 = vld [vmem:[%s4131 + $0x1a] sm:$0xff]
        %v4747 = vld [vmem:[%s4131 + $0x22] sm:$0xff]
        %v4748 = vld [vmem:[%s4131 + $0x32] sm:$0xff]
        %v4749 = vld [vmem:[%s4131 + $0x3a] sm:$0xff]
        %v4750 = vld [vmem:[%s4131 + $0x4a] sm:$0xff]
        %v4751 = vld [vmem:[%s4131 + $0x52] sm:$0xff]
        %v4752 = vld [vmem:[%s4131 + $0x62] sm:$0xff]
        %v4753 = vld [vmem:[%s4131 + $0x6a] sm:$0xff]
        %v4754 = vld [vmem:[%s4131 + $0x7a] sm:$0xff]
        %v4755 = vld [vmem:[%s4131 + $0x82] sm:$0xff]
        %v4756 = vld [vmem:[%s4131 + $0x92] sm:$0xff]
        %v4757 = vld [vmem:[%s4131 + $0x9a] sm:$0xff]
        %v4758 = vld [vmem:[%s4131 + $0xaa] sm:$0xff]
        %v4759 = vld [vmem:[%s4131 + $0xb2] sm:$0xff]
        %v4760 = vld [vmem:[%s4131 + $0xc2] sm:$0xff]
        %v4761 = vld [vmem:[%s4131 + $0xca] sm:$0xff]
        %v4762 = vld [vmem:[%s4131 + $0xda] sm:$0xff]
        %v4763 = vld [vmem:[%s4131 + $0xe2] sm:$0xff]
        %v4764 = vld [vmem:[%s4131 + $0xf2] sm:$0xff]
        %v4765 = vld [vmem:[%s4131 + $0xfa] sm:$0xff]
        %v4766 = vld [vmem:[%s4131 + $0x10a] sm:$0xff]
        %v4767 = vld [vmem:[%s4131 + $0x112] sm:$0xff]
        %v4768 = vld [vmem:[%s4131 + $0x122] sm:$0xff]
        %v4769 = vld [vmem:[%s4131 + $0x12a] sm:$0xff]
        %v4770 = vld [vmem:[%s4131 + $0x13a] sm:$0xff]
        %v4771 = vld [vmem:[%s4131 + $0x142] sm:$0xff]
        %v4772 = vld [vmem:[%s4131 + $0x152] sm:$0xff]
        %v4773 = vld [vmem:[%s4131 + $0x15a] sm:$0xff]
        %v4774 = vld [vmem:[%s4131 + $0x16a] sm:$0xff]
        %v4775 = vld [vmem:[%s4131 + $0x172] sm:$0xff]
        %v4776 = vpack.c.bf16 %v4745, %v4744
        %v4777 = vpack.c.bf16 %v4747, %v4746
        %v4778 = vpack.c.bf16 %v4749, %v4748
        %v4779 = vpack.c.bf16 %v4751, %v4750
        %v4780 = vpack.c.bf16 %v4753, %v4752
        %v4781 = vpack.c.bf16 %v4755, %v4754
        %v4782 = vpack.c.bf16 %v4757, %v4756
        %v4783 = vpack.c.bf16 %v4759, %v4758
        %v4784 = vpack.c.bf16 %v4761, %v4760
        %v4785 = vpack.c.bf16 %v4763, %v4762
        %v4786 = vpack.c.bf16 %v4765, %v4764
        %v4787 = vpack.c.bf16 %v4767, %v4766
        %v4788 = vpack.c.bf16 %v4769, %v4768
        %v4789 = vpack.c.bf16 %v4771, %v4770
        %v4790 = vpack.c.bf16 %v4773, %v4772
        %v4791 = vpack.c.bf16 %v4775, %v4774
        %s4792 = scalar_lea.vmem %s3, 128
        %v4793 = vld [vmem:[%s4792] sm:$0xf]
        %v4794 = vld [vmem:[%s4792 + $0x4] sm:$0xf]
        %v4795 = vld [vmem:[%s4792 + $0x8] sm:$0xf]
        %v4796 = vld [vmem:[%s4792 + $0xc] sm:$0xf]
        %v4801 = vunpack.c.l.b16 %v4793
        %v4802 = vunpack.c.l.b16 %v4794
        %v4803 = vunpack.c.l.b16 %v4795
        %v4804 = vunpack.c.l.b16 %v4796
        %v4805 = vpack.c.b16 %v4802, %v4801
        %v4806 = vpack.c.b16 %v4804, %v4803
        %v4810 = vsel %vm1728, %v4776, 0
        %v4813 = vsel %vm1728, %v4777, 0
        %v4816 = vsel %vm1728, %v4778, 0
        %v4819 = vsel %vm1728, %v4779, 0
        %v4822 = vsel %vm1728, %v4780, 0
        %v4825 = vsel %vm1728, %v4781, 0
        %v4828 = vsel %vm1728, %v4782, 0
        %v4831 = vsel %vm1728, %v4783, 0
        %v4834 = vsel %vm1728, %v4784, 0
        %v4837 = vsel %vm1728, %v4785, 0
        %v4840 = vsel %vm1728, %v4786, 0
        %v4843 = vsel %vm1728, %v4787, 0
        %v4846 = vsel %vm1728, %v4788, 0
        %v4849 = vsel %vm1728, %v4789, 0
        %v4852 = vsel %vm1728, %v4790, 0
        %v4855 = vsel %vm1728, %v4791, 0
        %4857 = vmatprep.subr.bf16.mxu0 0
        %4858 = vmatpush1.bf16.msra.mxu0 %v4805
        %4859 = vmatprep.subr.bf16.mxu0 0
        %4860 = vmatpush1.bf16.msra.mxu0 %v4806
        %4861 = vmatprep.subr.bf16.mxu0 0
        %4862 = vmatpush1.bf16.msra.mxu0 0
        %4863 = vmatprep.subr.bf16.mxu0 0
        %4864 = vmatpush1.bf16.msra.mxu0 0
        %4865 = vmatprep.subr.bf16.mxu0 0
        %4866 = vmatpush1.bf16.msra.mxu0 0
        %4867 = vmatprep.subr.bf16.mxu0 0
        %4868 = vmatpush1.bf16.msra.mxu0 0
        %4869 = vmatprep.subr.bf16.mxu0 0
        %4870 = vmatpush1.bf16.msra.mxu0 0
        %4871 = vmatprep.subr.bf16.mxu0 0
        %4872 = vmatpush1.bf16.msra.mxu0 0
        %4873 = vmatprep.subr.bf16.mxu0 0
        %4874 = vmatpush1.bf16.msra.mxu0 0
        %4875 = vmatprep.subr.bf16.mxu0 0
        %4876 = vmatpush1.bf16.msra.mxu0 0
        %4877 = vmatprep.subr.bf16.mxu0 0
        %4878 = vmatpush1.bf16.msra.mxu0 0
        %4879 = vmatprep.subr.bf16.mxu0 0
        %4880 = vmatpush1.bf16.msra.mxu0 0
        %4881 = vmatprep.subr.bf16.mxu0 0
        %4882 = vmatpush1.bf16.msra.mxu0 0
        %4883 = vmatprep.subr.bf16.mxu0 0
        %4884 = vmatpush1.bf16.msra.mxu0 0
        %4885 = vmatprep.subr.bf16.mxu0 0
        %4886 = vmatpush1.bf16.msra.mxu0 0
        %4887 = vmatprep.subr.bf16.mxu0 0
        %4888 = vmatpush1.bf16.msra.mxu0 0
        %4889 = vmatprep.mubr.bf16.mxu0 0
        %4890 = vmatmul.mubr.bf16.gmra.mrb[0].mxu0 %v4810
        %v4891 = vpop.f32.mrb[0].mxu0
        %v4892 = vadd.f32 0.0, %v4891
        %v4893 = vpop.f32.mrb[0].mxu0
        %v4894 = vpop.f32.mrb[0].mxu0
        %v4895 = vadd.f32 0.0, %v4894
        %v4896 = vpop.f32.mrb[0].mxu0
        %4897 = vmatprep.mubr.bf16.mxu0 0
        %4898 = vmatmul.mubr.bf16.gmra.mrb[0].mxu0 %v4813
        %v4899 = vpop.f32.mrb[0].mxu0
        %v4900 = vadd.f32 0.0, %v4899
        %v4901 = vpop.f32.mrb[0].mxu0
        %v4902 = vpop.f32.mrb[0].mxu0
        %v4903 = vadd.f32 0.0, %v4902
        %v4904 = vpop.f32.mrb[0].mxu0
        %4905 = vmatprep.mubr.bf16.mxu0 0
        %4906 = vmatmul.mubr.bf16.gmra.mrb[0].mxu0 %v4816
        %v4907 = vpop.f32.mrb[0].mxu0
        %v4908 = vadd.f32 0.0, %v4907
        %v4909 = vpop.f32.mrb[0].mxu0
        %v4910 = vpop.f32.mrb[0].mxu0
        %v4911 = vadd.f32 0.0, %v4910
        %v4912 = vpop.f32.mrb[0].mxu0
        %4913 = vmatprep.mubr.bf16.mxu0 0
        %4914 = vmatmul.mubr.bf16.gmra.mrb[0].mxu0 %v4819
        %v4915 = vpop.f32.mrb[0].mxu0
        %v4916 = vadd.f32 0.0, %v4915
        %v4917 = vpop.f32.mrb[0].mxu0
        %v4918 = vpop.f32.mrb[0].mxu0
        %v4919 = vadd.f32 0.0, %v4918
        %v4920 = vpop.f32.mrb[0].mxu0
        %4921 = vmatprep.mubr.bf16.mxu0 0
        %4922 = vmatmul.mubr.bf16.gmra.mrb[0].mxu0 %v4822
        %v4923 = vpop.f32.mrb[0].mxu0
        %v4924 = vadd.f32 0.0, %v4923
        %v4925 = vpop.f32.mrb[0].mxu0
        %v4926 = vpop.f32.mrb[0].mxu0
        %v4927 = vadd.f32 0.0, %v4926
        %v4928 = vpop.f32.mrb[0].mxu0
        %4929 = vmatprep.mubr.bf16.mxu0 0
        %4930 = vmatmul.mubr.bf16.gmra.mrb[0].mxu0 %v4825
        %v4931 = vpop.f32.mrb[0].mxu0
        %v4932 = vadd.f32 0.0, %v4931
        %v4933 = vpop.f32.mrb[0].mxu0
        %v4934 = vpop.f32.mrb[0].mxu0
        %v4935 = vadd.f32 0.0, %v4934
        %v4936 = vpop.f32.mrb[0].mxu0
        %4937 = vmatprep.mubr.bf16.mxu0 0
        %4938 = vmatmul.mubr.bf16.gmra.mrb[0].mxu0 %v4828
        %v4939 = vpop.f32.mrb[0].mxu0
        %v4940 = vadd.f32 0.0, %v4939
        %v4941 = vpop.f32.mrb[0].mxu0
        %v4942 = vpop.f32.mrb[0].mxu0
        %v4943 = vadd.f32 0.0, %v4942
        %v4944 = vpop.f32.mrb[0].mxu0
        %4945 = vmatprep.mubr.bf16.mxu0 0
        %4946 = vmatmul.mubr.bf16.gmra.mrb[0].mxu0 %v4831
        %v4947 = vpop.f32.mrb[0].mxu0
        %v4948 = vadd.f32 0.0, %v4947
        %v4949 = vpop.f32.mrb[0].mxu0
        %v4950 = vpop.f32.mrb[0].mxu0
        %v4951 = vadd.f32 0.0, %v4950
        %v4952 = vpop.f32.mrb[0].mxu0
        %4953 = vmatprep.mubr.bf16.mxu0 0
        %4954 = vmatmul.mubr.bf16.gmra.mrb[0].mxu0 %v4834
        %v4955 = vpop.f32.mrb[0].mxu0
        %v4956 = vadd.f32 0.0, %v4955
        %v4957 = vpop.f32.mrb[0].mxu0
        %v4958 = vpop.f32.mrb[0].mxu0
        %v4959 = vadd.f32 0.0, %v4958
        %v4960 = vpop.f32.mrb[0].mxu0
        %4961 = vmatprep.mubr.bf16.mxu0 0
        %4962 = vmatmul.mubr.bf16.gmra.mrb[0].mxu0 %v4837
        %v4963 = vpop.f32.mrb[0].mxu0
        %v4964 = vadd.f32 0.0, %v4963
        %v4965 = vpop.f32.mrb[0].mxu0
        %v4966 = vpop.f32.mrb[0].mxu0
        %v4967 = vadd.f32 0.0, %v4966
        %v4968 = vpop.f32.mrb[0].mxu0
        %4969 = vmatprep.mubr.bf16.mxu0 0
        %4970 = vmatmul.mubr.bf16.gmra.mrb[0].mxu0 %v4840
        %v4971 = vpop.f32.mrb[0].mxu0
        %v4972 = vadd.f32 0.0, %v4971
        %v4973 = vpop.f32.mrb[0].mxu0
        %v4974 = vpop.f32.mrb[0].mxu0
        %v4975 = vadd.f32 0.0, %v4974
        %v4976 = vpop.f32.mrb[0].mxu0
        %4977 = vmatprep.mubr.bf16.mxu0 0
        %4978 = vmatmul.mubr.bf16.gmra.mrb[0].mxu0 %v4843
        %v4979 = vpop.f32.mrb[0].mxu0
        %v4980 = vadd.f32 0.0, %v4979
        %v4981 = vpop.f32.mrb[0].mxu0
        %v4982 = vpop.f32.mrb[0].mxu0
        %v4983 = vadd.f32 0.0, %v4982
        %v4984 = vpop.f32.mrb[0].mxu0
        %4985 = vmatprep.mubr.bf16.mxu0 0
        %4986 = vmatmul.mubr.bf16.gmra.mrb[0].mxu0 %v4846
        %v4987 = vpop.f32.mrb[0].mxu0
        %v4988 = vadd.f32 0.0, %v4987
        %v4989 = vpop.f32.mrb[0].mxu0
        %v4990 = vpop.f32.mrb[0].mxu0
        %v4991 = vadd.f32 0.0, %v4990
        %v4992 = vpop.f32.mrb[0].mxu0
        %4993 = vmatprep.mubr.bf16.mxu0 0
        %4994 = vmatmul.mubr.bf16.gmra.mrb[0].mxu0 %v4849
        %v4995 = vpop.f32.mrb[0].mxu0
        %v4996 = vadd.f32 0.0, %v4995
        %v4997 = vpop.f32.mrb[0].mxu0
        %v4998 = vpop.f32.mrb[0].mxu0
        %v4999 = vadd.f32 0.0, %v4998
        %v5000 = vpop.f32.mrb[0].mxu0
        %5001 = vmatprep.mubr.bf16.mxu0 0
        %5002 = vmatmul.mubr.bf16.gmra.mrb[0].mxu0 %v4852
        %v5003 = vpop.f32.mrb[0].mxu0
        %v5004 = vadd.f32 0.0, %v5003
        %v5005 = vpop.f32.mrb[0].mxu0
        %v5006 = vpop.f32.mrb[0].mxu0
        %v5007 = vadd.f32 0.0, %v5006
        %v5008 = vpop.f32.mrb[0].mxu0
        %5009 = vmatprep.mubr.bf16.mxu0 0
        %5010 = vmatmul.mubr.bf16.gmra.mrb[0].mxu0 %v4855
        %v5011 = vpop.f32.mrb[0].mxu0
        %v5012 = vadd.f32 0.0, %v5011
        %v5013 = vpop.f32.mrb[0].mxu0
        %v5014 = vpop.f32.mrb[0].mxu0
        %v5015 = vadd.f32 0.0, %v5014
        %v5016 = vpop.f32.mrb[0].mxu0
        %5017 = vdwg.mxu0
        %v5018 = vadd.f32 %v4712, %v4892
        %v5019 = vadd.f32 %v4713, %v4895
        %v5020 = vadd.f32 %v4714, %v4900
        %v5021 = vadd.f32 %v4715, %v4903
        %v5022 = vadd.f32 %v4716, %v4908
        %v5023 = vadd.f32 %v4717, %v4911
        %v5024 = vadd.f32 %v4718, %v4916
        %v5025 = vadd.f32 %v4719, %v4919
        %v5026 = vadd.f32 %v4720, %v4924
        %v5027 = vadd.f32 %v4721, %v4927
        %v5028 = vadd.f32 %v4722, %v4932
        %v5029 = vadd.f32 %v4723, %v4935
        %v5030 = vadd.f32 %v4724, %v4940
        %v5031 = vadd.f32 %v4725, %v4943
        %v5032 = vadd.f32 %v4726, %v4948
        %v5033 = vadd.f32 %v4727, %v4951
        %v5034 = vadd.f32 %v4728, %v4956
        %v5035 = vadd.f32 %v4729, %v4959
        %v5036 = vadd.f32 %v4730, %v4964
        %v5037 = vadd.f32 %v4731, %v4967
        %v5038 = vadd.f32 %v4732, %v4972
        %v5039 = vadd.f32 %v4733, %v4975
        %v5040 = vadd.f32 %v4734, %v4980
        %v5041 = vadd.f32 %v4735, %v4983
        %v5042 = vadd.f32 %v4736, %v4988
        %v5043 = vadd.f32 %v4737, %v4991
        %v5044 = vadd.f32 %v4738, %v4996
        %v5045 = vadd.f32 %v4739, %v4999
        %v5046 = vadd.f32 %v4740, %v5004
        %v5047 = vadd.f32 %v4741, %v5007
        %v5048 = vadd.f32 %v4742, %v5012
        %v5049 = vadd.f32 %v4743, %v5015
        %v5050 = vld [vmem:[%s4] sm:$0x1]
        %v5052 = vlaneseq
        %v5053 = vshrl.u32 %v5052, 7
        %v5054 = vsub.s32 0, %v5053
        %v5055 = vrot.slane %v5050, %v5054
        %v5057 = vadd.f32 %v5018, %v5055
        %v5058 = vadd.f32 %v5019, %v5055
        %v5059 = vadd.f32 %v5020, %v5055
        %v5060 = vadd.f32 %v5021, %v5055
        %v5061 = vadd.f32 %v5022, %v5055
        %v5062 = vadd.f32 %v5023, %v5055
        %v5063 = vadd.f32 %v5024, %v5055
        %v5064 = vadd.f32 %v5025, %v5055
        %v5065 = vadd.f32 %v5026, %v5055
        %v5066 = vadd.f32 %v5027, %v5055
        %v5067 = vadd.f32 %v5028, %v5055
        %v5068 = vadd.f32 %v5029, %v5055
        %v5069 = vadd.f32 %v5030, %v5055
        %v5070 = vadd.f32 %v5031, %v5055
        %v5071 = vadd.f32 %v5032, %v5055
        %v5072 = vadd.f32 %v5033, %v5055
        %v5073 = vadd.f32 %v5034, %v5055
        %v5074 = vadd.f32 %v5035, %v5055
        %v5075 = vadd.f32 %v5036, %v5055
        %v5076 = vadd.f32 %v5037, %v5055
        %v5077 = vadd.f32 %v5038, %v5055
        %v5078 = vadd.f32 %v5039, %v5055
        %v5079 = vadd.f32 %v5040, %v5055
        %v5080 = vadd.f32 %v5041, %v5055
        %v5081 = vadd.f32 %v5042, %v5055
        %v5082 = vadd.f32 %v5043, %v5055
        %v5083 = vadd.f32 %v5044, %v5055
        %v5084 = vadd.f32 %v5045, %v5055
        %v5085 = vadd.f32 %v5046, %v5055
        %v5086 = vadd.f32 %v5047, %v5055
        %v5087 = vadd.f32 %v5048, %v5055
        %v5088 = vadd.f32 %v5049, %v5055
        %v5089 = vmax.f32 %v5057, 0.0
        %v5090 = vmax.f32 %v5058, 0.0
        %v5091 = vmax.f32 %v5059, 0.0
        %v5092 = vmax.f32 %v5060, 0.0
        %v5093 = vmax.f32 %v5061, 0.0
        %v5094 = vmax.f32 %v5062, 0.0
        %v5095 = vmax.f32 %v5063, 0.0
        %v5096 = vmax.f32 %v5064, 0.0
        %v5097 = vmax.f32 %v5065, 0.0
        %v5098 = vmax.f32 %v5066, 0.0
        %v5099 = vmax.f32 %v5067, 0.0
        %v5100 = vmax.f32 %v5068, 0.0
        %v5101 = vmax.f32 %v5069, 0.0
        %v5102 = vmax.f32 %v5070, 0.0
        %v5103 = vmax.f32 %v5071, 0.0
        %v5104 = vmax.f32 %v5072, 0.0
        %v5105 = vmax.f32 %v5073, 0.0
        %v5106 = vmax.f32 %v5074, 0.0
        %v5107 = vmax.f32 %v5075, 0.0
        %v5108 = vmax.f32 %v5076, 0.0
        %v5109 = vmax.f32 %v5077, 0.0
        %v5110 = vmax.f32 %v5078, 0.0
        %v5111 = vmax.f32 %v5079, 0.0
        %v5112 = vmax.f32 %v5080, 0.0
        %v5113 = vmax.f32 %v5081, 0.0
        %v5114 = vmax.f32 %v5082, 0.0
        %v5115 = vmax.f32 %v5083, 0.0
        %v5116 = vmax.f32 %v5084, 0.0
        %v5117 = vmax.f32 %v5085, 0.0
        %v5118 = vmax.f32 %v5086, 0.0
        %v5119 = vmax.f32 %v5087, 0.0
        %v5120 = vmax.f32 %v5088, 0.0
        %vm5121 = vcmask 523264
        %5122 = vst.msk [vmem:[#allocation3] sm:$0xff] %vm5121, %v5089
        %5123 = vst.msk [vmem:[#allocation3 + $0x8] sm:$0xff] %vm5121, %v5090
        %5124 = vst.msk [vmem:[#allocation3 + $0x10] sm:$0xff] %vm5121, %v5091
        %5125 = vst.msk [vmem:[#allocation3 + $0x18] sm:$0xff] %vm5121, %v5092
        %5126 = vst.msk [vmem:[#allocation3 + $0x20] sm:$0xff] %vm5121, %v5093
        %5127 = vst.msk [vmem:[#allocation3 + $0x28] sm:$0xff] %vm5121, %v5094
        %5128 = vst.msk [vmem:[#allocation3 + $0x30] sm:$0xff] %vm5121, %v5095
        %5129 = vst.msk [vmem:[#allocation3 + $0x38] sm:$0xff] %vm5121, %v5096
        %5130 = vst.msk [vmem:[#allocation3 + $0x40] sm:$0xff] %vm5121, %v5097
        %5131 = vst.msk [vmem:[#allocation3 + $0x48] sm:$0xff] %vm5121, %v5098
        %5132 = vst.msk [vmem:[#allocation3 + $0x50] sm:$0xff] %vm5121, %v5099
        %5133 = vst.msk [vmem:[#allocation3 + $0x58] sm:$0xff] %vm5121, %v5100
        %5134 = vst.msk [vmem:[#allocation3 + $0x60] sm:$0xff] %vm5121, %v5101
        %5135 = vst.msk [vmem:[#allocation3 + $0x68] sm:$0xff] %vm5121, %v5102
        %5136 = vst.msk [vmem:[#allocation3 + $0x70] sm:$0xff] %vm5121, %v5103
        %5137 = vst.msk [vmem:[#allocation3 + $0x78] sm:$0xff] %vm5121, %v5104
        %5138 = vst.msk [vmem:[#allocation3 + $0x80] sm:$0xff] %vm5121, %v5105
        %5139 = vst.msk [vmem:[#allocation3 + $0x88] sm:$0xff] %vm5121, %v5106
        %5140 = vst.msk [vmem:[#allocation3 + $0x90] sm:$0xff] %vm5121, %v5107
        %5141 = vst.msk [vmem:[#allocation3 + $0x98] sm:$0xff] %vm5121, %v5108
        %5142 = vst.msk [vmem:[#allocation3 + $0xa0] sm:$0xff] %vm5121, %v5109
        %5143 = vst.msk [vmem:[#allocation3 + $0xa8] sm:$0xff] %vm5121, %v5110
        %5144 = vst.msk [vmem:[#allocation3 + $0xb0] sm:$0xff] %vm5121, %v5111
        %5145 = vst.msk [vmem:[#allocation3 + $0xb8] sm:$0xff] %vm5121, %v5112
        %5146 = vst.msk [vmem:[#allocation3 + $0xc0] sm:$0xff] %vm5121, %v5113
        %5147 = vst.msk [vmem:[#allocation3 + $0xc8] sm:$0xff] %vm5121, %v5114
        %5148 = vst.msk [vmem:[#allocation3 + $0xd0] sm:$0xff] %vm5121, %v5115
        %5149 = vst.msk [vmem:[#allocation3 + $0xd8] sm:$0xff] %vm5121, %v5116
        %5150 = vst.msk [vmem:[#allocation3 + $0xe0] sm:$0xff] %vm5121, %v5117
        %5151 = vst.msk [vmem:[#allocation3 + $0xe8] sm:$0xff] %vm5121, %v5118
        %5152 = vst.msk [vmem:[#allocation3 + $0xf0] sm:$0xff] %vm5121, %v5119
        %5153 = vst.msk [vmem:[#allocation3 + $0xf8] sm:$0xff] %vm5121, %v5120
        %v5154 = vld [vmem:[#allocation3] ss:$2 sm:$0xff]
        %s5155 = scalar_lea.vmem [#allocation3], 16
        %v5156 = vld [vmem:[%s5155] ss:$2 sm:$0xff]
        %s5157 = scalar_lea.vmem [#allocation3], 32
        %v5158 = vld [vmem:[%s5157] ss:$2 sm:$0xff]
        %s5159 = scalar_lea.vmem [#allocation3], 48
        %v5160 = vld [vmem:[%s5159] ss:$2 sm:$0xff]
        %s5161 = scalar_lea.vmem [#allocation3], 64
        %v5162 = vld [vmem:[%s5161] ss:$2 sm:$0xff]
        %s5163 = scalar_lea.vmem [#allocation3], 80
        %v5164 = vld [vmem:[%s5163] ss:$2 sm:$0xff]
        %s5165 = scalar_lea.vmem [#allocation3], 96
        %v5166 = vld [vmem:[%s5165] ss:$2 sm:$0xff]
        %s5167 = scalar_lea.vmem [#allocation3], 112
        %v5168 = vld [vmem:[%s5167] ss:$2 sm:$0xff]
        %s5169 = scalar_lea.vmem [#allocation3], 128
        %v5170 = vld [vmem:[%s5169] ss:$2 sm:$0xff]
        %s5171 = scalar_lea.vmem [#allocation3], 144
        %v5172 = vld [vmem:[%s5171] ss:$2 sm:$0xff]
        %s5173 = scalar_lea.vmem [#allocation3], 160
        %v5174 = vld [vmem:[%s5173] ss:$2 sm:$0xff]
        %s5175 = scalar_lea.vmem [#allocation3], 176
        %v5176 = vld [vmem:[%s5175] ss:$2 sm:$0xff]
        %s5177 = scalar_lea.vmem [#allocation3], 192
        %v5178 = vld [vmem:[%s5177] ss:$2 sm:$0xff]
        %s5179 = scalar_lea.vmem [#allocation3], 208
        %v5180 = vld [vmem:[%s5179] ss:$2 sm:$0xff]
        %s5181 = scalar_lea.vmem [#allocation3], 224
        %v5182 = vld [vmem:[%s5181] ss:$2 sm:$0xff]
        %s5183 = scalar_lea.vmem [#allocation3], 240
        %v5184 = vld [vmem:[%s5183] ss:$2 sm:$0xff]
        %s5185 = scalar_lea.vmem [#allocation3], 1
        %v5186 = vld [vmem:[%s5185] ss:$2 sm:$0xff]
        %s5187 = scalar_lea.vmem [#allocation3], 17
        %v5188 = vld [vmem:[%s5187] ss:$2 sm:$0xff]
        %s5189 = scalar_lea.vmem [#allocation3], 33
        %v5190 = vld [vmem:[%s5189] ss:$2 sm:$0xff]
        %s5191 = scalar_lea.vmem [#allocation3], 49
        %v5192 = vld [vmem:[%s5191] ss:$2 sm:$0xff]
        %s5193 = scalar_lea.vmem [#allocation3], 65
        %v5194 = vld [vmem:[%s5193] ss:$2 sm:$0xff]
        %s5195 = scalar_lea.vmem [#allocation3], 81
        %v5196 = vld [vmem:[%s5195] ss:$2 sm:$0xff]
        %s5197 = scalar_lea.vmem [#allocation3], 97
        %v5198 = vld [vmem:[%s5197] ss:$2 sm:$0xff]
        %s5199 = scalar_lea.vmem [#allocation3], 113
        %v5200 = vld [vmem:[%s5199] ss:$2 sm:$0xff]
        %s5201 = scalar_lea.vmem [#allocation3], 129
        %v5202 = vld [vmem:[%s5201] ss:$2 sm:$0xff]
        %s5203 = scalar_lea.vmem [#allocation3], 145
        %v5204 = vld [vmem:[%s5203] ss:$2 sm:$0xff]
        %s5205 = scalar_lea.vmem [#allocation3], 161
        %v5206 = vld [vmem:[%s5205] ss:$2 sm:$0xff]
        %s5207 = scalar_lea.vmem [#allocation3], 177
        %v5208 = vld [vmem:[%s5207] ss:$2 sm:$0xff]
        %s5209 = scalar_lea.vmem [#allocation3], 193
        %v5210 = vld [vmem:[%s5209] ss:$2 sm:$0xff]
        %s5211 = scalar_lea.vmem [#allocation3], 209
        %v5212 = vld [vmem:[%s5211] ss:$2 sm:$0xff]
        %s5213 = scalar_lea.vmem [#allocation3], 225
        %v5214 = vld [vmem:[%s5213] ss:$2 sm:$0xff]
        %s5215 = scalar_lea.vmem [#allocation3], 241
        %v5216 = vld [vmem:[%s5215] ss:$2 sm:$0xff]
        %v5217 = vmax.f32 %v5154, %v5186
        %v5218 = vmax.f32 %v5156, %v5188
        %v5219 = vmax.f32 %v5158, %v5190
        %v5220 = vmax.f32 %v5160, %v5192
        %v5221 = vmax.f32 %v5162, %v5194
        %v5222 = vmax.f32 %v5164, %v5196
        %v5223 = vmax.f32 %v5166, %v5198
        %v5224 = vmax.f32 %v5168, %v5200
        %v5225 = vmax.f32 %v5170, %v5202
        %v5226 = vmax.f32 %v5172, %v5204
        %v5227 = vmax.f32 %v5174, %v5206
        %v5228 = vmax.f32 %v5176, %v5208
        %v5229 = vmax.f32 %v5178, %v5210
        %v5230 = vmax.f32 %v5180, %v5212
        %v5231 = vmax.f32 %v5182, %v5214
        %v5232 = vmax.f32 %v5184, %v5216
        %v5233 = vsel %vm5121, %v5217, -inf
        %v5234 = vsel %vm5121, %v5218, -inf
        %v5235 = vmax.f32 %v5233, %v5234
        %v5236 = vsel %vm5121, %v5219, -inf
        %v5237 = vsel %vm5121, %v5220, -inf
        %v5238 = vmax.f32 %v5236, %v5237
        %v5239 = vsel %vm5121, %v5221, -inf
        %v5240 = vsel %vm5121, %v5222, -inf
        %v5241 = vmax.f32 %v5239, %v5240
        %v5242 = vsel %vm5121, %v5223, -inf
        %v5243 = vsel %vm5121, %v5224, -inf
        %v5244 = vmax.f32 %v5242, %v5243
        %v5245 = vsel %vm5121, %v5225, -inf
        %v5246 = vsel %vm5121, %v5226, -inf
        %v5247 = vmax.f32 %v5245, %v5246
        %v5248 = vsel %vm5121, %v5227, -inf
        %v5249 = vsel %vm5121, %v5228, -inf
        %v5250 = vmax.f32 %v5248, %v5249
        %v5251 = vsel %vm5121, %v5229, -inf
        %v5252 = vsel %vm5121, %v5230, -inf
        %v5253 = vmax.f32 %v5251, %v5252
        %v5254 = vsel %vm5121, %v5231, -inf
        %v5255 = vsel %vm5121, %v5232, -inf
        %v5256 = vmax.f32 %v5254, %v5255
        %5257 = vst.msk [vmem:[#allocation6] sm:$0xff] %vm5121, 0.0
        %vm5258 = vcmask 517120
        %5259 = vst.msk [vmem:[#allocation6 + $0x8] sm:$0x3] %vm5258, 0.0
        %5260 = vst.msk [vmem:[#allocation6 + $0x10] sm:$0xff] %vm5121, 0.0
        %5261 = vst.msk [vmem:[#allocation6 + $0x18] sm:$0x3] %vm5258, 0.0
        %5262 = vst.msk [vmem:[#allocation6 + $0x20] sm:$0xff] %vm5121, 0.0
        %5263 = vst.msk [vmem:[#allocation6 + $0x28] sm:$0x3] %vm5258, 0.0
        %5264 = vst.msk [vmem:[#allocation6 + $0x30] sm:$0xff] %vm5121, 0.0
        %5265 = vst.msk [vmem:[#allocation6 + $0x38] sm:$0x3] %vm5258, 0.0
        %5266 = vst.msk [vmem:[#allocation6 + $0x40] sm:$0xff] %vm5121, 0.0
        %5267 = vst.msk [vmem:[#allocation6 + $0x48] sm:$0x3] %vm5258, 0.0
        %5268 = vst.msk [vmem:[#allocation6 + $0x50] sm:$0xff] %vm5121, 0.0
        %5269 = vst.msk [vmem:[#allocation6 + $0x58] sm:$0x3] %vm5258, 0.0
        %5270 = vst.msk [vmem:[#allocation6 + $0x60] sm:$0xff] %vm5121, 0.0
        %5271 = vst.msk [vmem:[#allocation6 + $0x68] sm:$0x3] %vm5258, 0.0
        %5272 = vst.msk [vmem:[#allocation6 + $0x70] sm:$0xff] %vm5121, 0.0
        %5273 = vst.msk [vmem:[#allocation6 + $0x78] sm:$0x3] %vm5258, 0.0
        %5274 = vst.msk [vmem:[#allocation6 + $0x80] sm:$0xff] %vm5121, 0.0
        %5275 = vst.msk [vmem:[#allocation6 + $0x88] sm:$0x3] %vm5258, 0.0
        %5276 = vst.msk [vmem:[#allocation6 + $0x90] sm:$0xff] %vm5121, 0.0
        %5277 = vst.msk [vmem:[#allocation6 + $0x98] sm:$0x3] %vm5258, 0.0
        %s5278 = scalar_lea.vmem [#allocation6], 16
        %5279 = vst.msk [vmem:[%s5278 + $0x1] sm:$0xff] %vm5121, %v5235
        %5280 = vst.msk [vmem:[%s5278 + $0x11] sm:$0xff] %vm5121, %v5238
        %5281 = vst.msk [vmem:[%s5278 + $0x21] sm:$0xff] %vm5121, %v5241
        %5282 = vst.msk [vmem:[%s5278 + $0x31] sm:$0xff] %vm5121, %v5244
        %5283 = vst.msk [vmem:[%s5278 + $0x41] sm:$0xff] %vm5121, %v5247
        %5284 = vst.msk [vmem:[%s5278 + $0x51] sm:$0xff] %vm5121, %v5250
        %5285 = vst.msk [vmem:[%s5278 + $0x61] sm:$0xff] %vm5121, %v5253
        %5286 = vst.msk [vmem:[%s5278 + $0x71] sm:$0xff] %vm5121, %v5256
        %v5287 = vld [vmem:[#allocation6] sm:$0xff]
        %v5288 = vld [vmem:[#allocation6 + $0x10] sm:$0xff]
        %v5289 = vld [vmem:[#allocation6 + $0x20] sm:$0xff]
        %v5290 = vld [vmem:[#allocation6 + $0x30] sm:$0xff]
        %v5291 = vld [vmem:[#allocation6 + $0x40] sm:$0xff]
        %v5292 = vld [vmem:[#allocation6 + $0x50] sm:$0xff]
        %v5293 = vld [vmem:[#allocation6 + $0x60] sm:$0xff]
        %v5294 = vld [vmem:[#allocation6 + $0x70] sm:$0xff]
        %v5295 = vpack.c.bf16 %v5288, %v5287
        %v5296 = vpack.c.bf16 %v5290, %v5289
        %v5297 = vpack.c.bf16 %v5292, %v5291
        %v5298 = vpack.c.bf16 %v5294, %v5293
        %v5299 = vld [vmem:[%s5] sm:$0xf]
        %v5300 = vld [vmem:[%s5 + $0x4] sm:$0xf]
        %v5301 = vld [vmem:[%s5 + $0x8] sm:$0xf]
        %v5302 = vld [vmem:[%s5 + $0xc] sm:$0xf]
        %v5303 = vld [vmem:[%s5 + $0x10] sm:$0xf]
        %v5304 = vld [vmem:[%s5 + $0x14] sm:$0xf]
        %v5305 = vld [vmem:[%s5 + $0x18] sm:$0xf]
        %v5306 = vld [vmem:[%s5 + $0x1c] sm:$0xf]
        %v5307 = vld [vmem:[#allocation6 + $0x1] sm:$0xff]
        %v5308 = vld [vmem:[#allocation6 + $0x11] sm:$0xff]
        %v5309 = vld [vmem:[#allocation6 + $0x21] sm:$0xff]
        %v5310 = vld [vmem:[#allocation6 + $0x31] sm:$0xff]
        %v5311 = vld [vmem:[#allocation6 + $0x41] sm:$0xff]
        %v5312 = vld [vmem:[#allocation6 + $0x51] sm:$0xff]
        %v5313 = vld [vmem:[#allocation6 + $0x61] sm:$0xff]
        %v5314 = vld [vmem:[#allocation6 + $0x71] sm:$0xff]
        %v5315 = vpack.c.bf16 %v5308, %v5307
        %v5316 = vpack.c.bf16 %v5310, %v5309
        %v5317 = vpack.c.bf16 %v5312, %v5311
        %v5318 = vpack.c.bf16 %v5314, %v5313
        %s5319 = scalar_lea.vmem %s5, 32
        %v5320 = vld [vmem:[%s5319] sm:$0xf]
        %v5321 = vld [vmem:[%s5319 + $0x4] sm:$0xf]
        %v5322 = vld [vmem:[%s5319 + $0x8] sm:$0xf]
        %v5323 = vld [vmem:[%s5319 + $0xc] sm:$0xf]
        %v5324 = vld [vmem:[%s5319 + $0x10] sm:$0xf]
        %v5325 = vld [vmem:[%s5319 + $0x14] sm:$0xf]
        %v5326 = vld [vmem:[%s5319 + $0x18] sm:$0xf]
        %v5327 = vld [vmem:[%s5319 + $0x1c] sm:$0xf]
        %v5336 = vunpack.c.l.b16 %v5320
        %v5337 = vunpack.c.l.b16 %v5321
        %v5338 = vunpack.c.l.b16 %v5322
        %v5339 = vunpack.c.l.b16 %v5323
        %v5340 = vunpack.c.l.b16 %v5324
        %v5341 = vunpack.c.l.b16 %v5325
        %v5342 = vunpack.c.l.b16 %v5326
        %v5343 = vunpack.c.l.b16 %v5327
        %v5344 = vpack.c.b16 %v5337, %v5336
        %v5345 = vpack.c.b16 %v5339, %v5338
        %v5346 = vpack.c.b16 %v5341, %v5340
        %v5347 = vpack.c.b16 %v5343, %v5342
        %v5353 = vsel %vm5121, %v5315, 0
        %v5356 = vsel %vm5121, %v5316, 0
        %v5359 = vsel %vm5121, %v5317, 0
        %v5362 = vsel %vm5121, %v5318, 0
        %5364 = vmatprep.subr.bf16.mxu0 0
        %5365 = vmatpush1.bf16.msra.mxu0 %v5344
        %5366 = vmatprep.subr.bf16.mxu0 0
        %5367 = vmatpush1.bf16.msra.mxu0 %v5345
        %5368 = vmatprep.subr.bf16.mxu0 0
        %5369 = vmatpush1.bf16.msra.mxu0 %v5346
        %5370 = vmatprep.subr.bf16.mxu0 0
        %5371 = vmatpush1.bf16.msra.mxu0 %v5347
        %5372 = vmatprep.subr.bf16.mxu0 0
        %5373 = vmatpush1.bf16.msra.mxu0 0
        %5374 = vmatprep.subr.bf16.mxu0 0
        %5375 = vmatpush1.bf16.msra.mxu0 0
        %5376 = vmatprep.subr.bf16.mxu0 0
        %5377 = vmatpush1.bf16.msra.mxu0 0
        %5378 = vmatprep.subr.bf16.mxu0 0
        %5379 = vmatpush1.bf16.msra.mxu0 0
        %5380 = vmatprep.subr.bf16.mxu0 0
        %5381 = vmatpush1.bf16.msra.mxu0 0
        %5382 = vmatprep.subr.bf16.mxu0 0
        %5383 = vmatpush1.bf16.msra.mxu0 0
        %5384 = vmatprep.subr.bf16.mxu0 0
        %5385 = vmatpush1.bf16.msra.mxu0 0
        %5386 = vmatprep.subr.bf16.mxu0 0
        %5387 = vmatpush1.bf16.msra.mxu0 0
        %5388 = vmatprep.subr.bf16.mxu0 0
        %5389 = vmatpush1.bf16.msra.mxu0 0
        %5390 = vmatprep.subr.bf16.mxu0 0
        %5391 = vmatpush1.bf16.msra.mxu0 0
        %5392 = vmatprep.subr.bf16.mxu0 0
        %5393 = vmatpush1.bf16.msra.mxu0 0
        %5394 = vmatprep.subr.bf16.mxu0 0
        %5395 = vmatpush1.bf16.msra.mxu0 0
        %5396 = vmatprep.mubr.bf16.mxu0 0
        %5397 = vmatmul.mubr.bf16.gmra.mrb[0].mxu0 %v5353
        %v5398 = vpop.f32.mrb[0].mxu0
        %v5399 = vadd.f32 0.0, %v5398
        %v5400 = vpop.f32.mrb[0].mxu0
        %v5401 = vpop.f32.mrb[0].mxu0
        %v5402 = vadd.f32 0.0, %v5401
        %v5403 = vpop.f32.mrb[0].mxu0
        %5404 = vmatprep.mubr.bf16.mxu0 0
        %5405 = vmatmul.mubr.bf16.gmra.mrb[0].mxu0 %v5356
        %v5406 = vpop.f32.mrb[0].mxu0
        %v5407 = vadd.f32 0.0, %v5406
        %v5408 = vpop.f32.mrb[0].mxu0
        %v5409 = vpop.f32.mrb[0].mxu0
        %v5410 = vadd.f32 0.0, %v5409
        %v5411 = vpop.f32.mrb[0].mxu0
        %5412 = vmatprep.mubr.bf16.mxu0 0
        %5413 = vmatmul.mubr.bf16.gmra.mrb[0].mxu0 %v5359
        %v5414 = vpop.f32.mrb[0].mxu0
        %v5415 = vadd.f32 0.0, %v5414
        %v5416 = vpop.f32.mrb[0].mxu0
        %v5417 = vpop.f32.mrb[0].mxu0
        %v5418 = vadd.f32 0.0, %v5417
        %v5419 = vpop.f32.mrb[0].mxu0
        %5420 = vmatprep.mubr.bf16.mxu0 0
        %5421 = vmatmul.mubr.bf16.gmra.mrb[0].mxu0 %v5362
        %v5422 = vpop.f32.mrb[0].mxu0
        %v5423 = vadd.f32 0.0, %v5422
        %v5424 = vpop.f32.mrb[0].mxu0
        %v5425 = vpop.f32.mrb[0].mxu0
        %v5426 = vadd.f32 0.0, %v5425
        %v5427 = vpop.f32.mrb[0].mxu0
        %5428 = vdwg.mxu0
        %v5437 = vunpack.c.l.b16 %v5299
        %v5438 = vunpack.c.l.b16 %v5300
        %v5439 = vunpack.c.l.b16 %v5301
        %v5440 = vunpack.c.l.b16 %v5302
        %v5441 = vunpack.c.l.b16 %v5303
        %v5442 = vunpack.c.l.b16 %v5304
        %v5443 = vunpack.c.l.b16 %v5305
        %v5444 = vunpack.c.l.b16 %v5306
        %v5445 = vpack.c.b16 %v5438, %v5437
        %v5446 = vpack.c.b16 %v5440, %v5439
        %v5447 = vpack.c.b16 %v5442, %v5441
        %v5448 = vpack.c.b16 %v5444, %v5443
        %v5454 = vsel %vm5121, %v5295, 0
        %v5457 = vsel %vm5121, %v5296, 0
        %v5460 = vsel %vm5121, %v5297, 0
        %v5463 = vsel %vm5121, %v5298, 0
        %5465 = vmatprep.subr.bf16.mxu0 0
        %5466 = vmatpush1.bf16.msra.mxu0 %v5445
        %5467 = vmatprep.subr.bf16.mxu0 0
        %5468 = vmatpush1.bf16.msra.mxu0 %v5446
        %5469 = vmatprep.subr.bf16.mxu0 0
        %5470 = vmatpush1.bf16.msra.mxu0 %v5447
        %5471 = vmatprep.subr.bf16.mxu0 0
        %5472 = vmatpush1.bf16.msra.mxu0 %v5448
        %5473 = vmatprep.subr.bf16.mxu0 0
        %5474 = vmatpush1.bf16.msra.mxu0 0
        %5475 = vmatprep.subr.bf16.mxu0 0
        %5476 = vmatpush1.bf16.msra.mxu0 0
        %5477 = vmatprep.subr.bf16.mxu0 0
        %5478 = vmatpush1.bf16.msra.mxu0 0
        %5479 = vmatprep.subr.bf16.mxu0 0
        %5480 = vmatpush1.bf16.msra.mxu0 0
        %5481 = vmatprep.subr.bf16.mxu0 0
        %5482 = vmatpush1.bf16.msra.mxu0 0
        %5483 = vmatprep.subr.bf16.mxu0 0
        %5484 = vmatpush1.bf16.msra.mxu0 0
        %5485 = vmatprep.subr.bf16.mxu0 0
        %5486 = vmatpush1.bf16.msra.mxu0 0
        %5487 = vmatprep.subr.bf16.mxu0 0
        %5488 = vmatpush1.bf16.msra.mxu0 0
        %5489 = vmatprep.subr.bf16.mxu0 0
        %5490 = vmatpush1.bf16.msra.mxu0 0
        %5491 = vmatprep.subr.bf16.mxu0 0
        %5492 = vmatpush1.bf16.msra.mxu0 0
        %5493 = vmatprep.subr.bf16.mxu0 0
        %5494 = vmatpush1.bf16.msra.mxu0 0
        %5495 = vmatprep.subr.bf16.mxu0 0
        %5496 = vmatpush1.bf16.msra.mxu0 0
        %5497 = vmatprep.mubr.bf16.mxu0 0
        %5498 = vmatmul.mubr.bf16.gmra.mrb[0].mxu0 %v5454
        %v5499 = vpop.f32.mrb[0].mxu0
        %v5500 = vadd.f32 %v5399, %v5499
        %v5501 = vpop.f32.mrb[0].mxu0
        %v5502 = vpop.f32.mrb[0].mxu0
        %v5503 = vadd.f32 %v5402, %v5502
        %v5504 = vpop.f32.mrb[0].mxu0
        %5505 = vmatprep.mubr.bf16.mxu0 0
        %5506 = vmatmul.mubr.bf16.gmra.mrb[0].mxu0 %v5457
        %v5507 = vpop.f32.mrb[0].mxu0
        %v5508 = vadd.f32 %v5407, %v5507
        %v5509 = vpop.f32.mrb[0].mxu0
        %v5510 = vpop.f32.mrb[0].mxu0
        %v5511 = vadd.f32 %v5410, %v5510
        %v5512 = vpop.f32.mrb[0].mxu0
        %5513 = vmatprep.mubr.bf16.mxu0 0
        %5514 = vmatmul.mubr.bf16.gmra.mrb[0].mxu0 %v5460
        %v5515 = vpop.f32.mrb[0].mxu0
        %v5516 = vadd.f32 %v5415, %v5515
        %v5517 = vpop.f32.mrb[0].mxu0
        %v5518 = vpop.f32.mrb[0].mxu0
        %v5519 = vadd.f32 %v5418, %v5518
        %v5520 = vpop.f32.mrb[0].mxu0
        %5521 = vmatprep.mubr.bf16.mxu0 0
        %5522 = vmatmul.mubr.bf16.gmra.mrb[0].mxu0 %v5463
        %v5523 = vpop.f32.mrb[0].mxu0
        %v5524 = vadd.f32 %v5423, %v5523
        %v5525 = vpop.f32.mrb[0].mxu0
        %v5526 = vpop.f32.mrb[0].mxu0
        %v5527 = vadd.f32 %v5426, %v5526
        %v5528 = vpop.f32.mrb[0].mxu0
        %5529 = vdwg.mxu0
        %v5530 = vld [vmem:[#allocation6 + $0x2] sm:$0xff]
        %v5531 = vld [vmem:[#allocation6 + $0x12] sm:$0xff]
        %v5532 = vld [vmem:[#allocation6 + $0x22] sm:$0xff]
        %v5533 = vld [vmem:[#allocation6 + $0x32] sm:$0xff]
        %v5534 = vld [vmem:[#allocation6 + $0x42] sm:$0xff]
        %v5535 = vld [vmem:[#allocation6 + $0x52] sm:$0xff]
        %v5536 = vld [vmem:[#allocation6 + $0x62] sm:$0xff]
        %v5537 = vld [vmem:[#allocation6 + $0x72] sm:$0xff]
        %v5538 = vpack.c.bf16 %v5531, %v5530
        %v5539 = vpack.c.bf16 %v5533, %v5532
        %v5540 = vpack.c.bf16 %v5535, %v5534
        %v5541 = vpack.c.bf16 %v5537, %v5536
        %s5542 = scalar_lea.vmem %s5, 64
        %v5543 = vld [vmem:[%s5542] sm:$0xf]
        %v5544 = vld [vmem:[%s5542 + $0x4] sm:$0xf]
        %v5545 = vld [vmem:[%s5542 + $0x8] sm:$0xf]
        %v5546 = vld [vmem:[%s5542 + $0xc] sm:$0xf]
        %v5547 = vld [vmem:[%s5542 + $0x10] sm:$0xf]
        %v5548 = vld [vmem:[%s5542 + $0x14] sm:$0xf]
        %v5549 = vld [vmem:[%s5542 + $0x18] sm:$0xf]
        %v5550 = vld [vmem:[%s5542 + $0x1c] sm:$0xf]
        %v5559 = vunpack.c.l.b16 %v5543
        %v5560 = vunpack.c.l.b16 %v5544
        %v5561 = vunpack.c.l.b16 %v5545
        %v5562 = vunpack.c.l.b16 %v5546
        %v5563 = vunpack.c.l.b16 %v5547
        %v5564 = vunpack.c.l.b16 %v5548
        %v5565 = vunpack.c.l.b16 %v5549
        %v5566 = vunpack.c.l.b16 %v5550
        %v5567 = vpack.c.b16 %v5560, %v5559
        %v5568 = vpack.c.b16 %v5562, %v5561
        %v5569 = vpack.c.b16 %v5564, %v5563
        %v5570 = vpack.c.b16 %v5566, %v5565
        %v5576 = vsel %vm5121, %v5538, 0
        %v5579 = vsel %vm5121, %v5539, 0
        %v5582 = vsel %vm5121, %v5540, 0
        %v5585 = vsel %vm5121, %v5541, 0
        %5587 = vmatprep.subr.bf16.mxu0 0
        %5588 = vmatpush1.bf16.msra.mxu0 %v5567
        %5589 = vmatprep.subr.bf16.mxu0 0
        %5590 = vmatpush1.bf16.msra.mxu0 %v5568
        %5591 = vmatprep.subr.bf16.mxu0 0
        %5592 = vmatpush1.bf16.msra.mxu0 %v5569
        %5593 = vmatprep.subr.bf16.mxu0 0
        %5594 = vmatpush1.bf16.msra.mxu0 %v5570
        %5595 = vmatprep.subr.bf16.mxu0 0
        %5596 = vmatpush1.bf16.msra.mxu0 0
        %5597 = vmatprep.subr.bf16.mxu0 0
        %5598 = vmatpush1.bf16.msra.mxu0 0
        %5599 = vmatprep.subr.bf16.mxu0 0
        %5600 = vmatpush1.bf16.msra.mxu0 0
        %5601 = vmatprep.subr.bf16.mxu0 0
        %5602 = vmatpush1.bf16.msra.mxu0 0
        %5603 = vmatprep.subr.bf16.mxu0 0
        %5604 = vmatpush1.bf16.msra.mxu0 0
        %5605 = vmatprep.subr.bf16.mxu0 0
        %5606 = vmatpush1.bf16.msra.mxu0 0
        %5607 = vmatprep.subr.bf16.mxu0 0
        %5608 = vmatpush1.bf16.msra.mxu0 0
        %5609 = vmatprep.subr.bf16.mxu0 0
        %5610 = vmatpush1.bf16.msra.mxu0 0
        %5611 = vmatprep.subr.bf16.mxu0 0
        %5612 = vmatpush1.bf16.msra.mxu0 0
        %5613 = vmatprep.subr.bf16.mxu0 0
        %5614 = vmatpush1.bf16.msra.mxu0 0
        %5615 = vmatprep.subr.bf16.mxu0 0
        %5616 = vmatpush1.bf16.msra.mxu0 0
        %5617 = vmatprep.subr.bf16.mxu0 0
        %5618 = vmatpush1.bf16.msra.mxu0 0
        %5619 = vmatprep.mubr.bf16.mxu0 0
        %5620 = vmatmul.mubr.bf16.gmra.mrb[0].mxu0 %v5576
        %v5621 = vpop.f32.mrb[0].mxu0
        %v5622 = vadd.f32 0.0, %v5621
        %v5623 = vpop.f32.mrb[0].mxu0
        %v5624 = vpop.f32.mrb[0].mxu0
        %v5625 = vadd.f32 0.0, %v5624
        %v5626 = vpop.f32.mrb[0].mxu0
        %5627 = vmatprep.mubr.bf16.mxu0 0
        %5628 = vmatmul.mubr.bf16.gmra.mrb[0].mxu0 %v5579
        %v5629 = vpop.f32.mrb[0].mxu0
        %v5630 = vadd.f32 0.0, %v5629
        %v5631 = vpop.f32.mrb[0].mxu0
        %v5632 = vpop.f32.mrb[0].mxu0
        %v5633 = vadd.f32 0.0, %v5632
        %v5634 = vpop.f32.mrb[0].mxu0
        %5635 = vmatprep.mubr.bf16.mxu0 0
        %5636 = vmatmul.mubr.bf16.gmra.mrb[0].mxu0 %v5582
        %v5637 = vpop.f32.mrb[0].mxu0
        %v5638 = vadd.f32 0.0, %v5637
        %v5639 = vpop.f32.mrb[0].mxu0
        %v5640 = vpop.f32.mrb[0].mxu0
        %v5641 = vadd.f32 0.0, %v5640
        %v5642 = vpop.f32.mrb[0].mxu0
        %5643 = vmatprep.mubr.bf16.mxu0 0
        %5644 = vmatmul.mubr.bf16.gmra.mrb[0].mxu0 %v5585
        %v5645 = vpop.f32.mrb[0].mxu0
        %v5646 = vadd.f32 0.0, %v5645
        %v5647 = vpop.f32.mrb[0].mxu0
        %v5648 = vpop.f32.mrb[0].mxu0
        %v5649 = vadd.f32 0.0, %v5648
        %v5650 = vpop.f32.mrb[0].mxu0
        %5651 = vdwg.mxu0
        %v5652 = vadd.f32 %v5500, %v5622
        %v5653 = vadd.f32 %v5503, %v5625
        %v5654 = vadd.f32 %v5508, %v5630
        %v5655 = vadd.f32 %v5511, %v5633
        %v5656 = vadd.f32 %v5516, %v5638
        %v5657 = vadd.f32 %v5519, %v5641
        %v5658 = vadd.f32 %v5524, %v5646
        %v5659 = vadd.f32 %v5527, %v5649
        %v5660 = vld [vmem:[%s5278] sm:$0xff]
        %v5661 = vld [vmem:[%s5278 + $0x10] sm:$0xff]
        %v5662 = vld [vmem:[%s5278 + $0x20] sm:$0xff]
        %v5663 = vld [vmem:[%s5278 + $0x30] sm:$0xff]
        %v5664 = vld [vmem:[%s5278 + $0x40] sm:$0xff]
        %v5665 = vld [vmem:[%s5278 + $0x50] sm:$0xff]
        %v5666 = vld [vmem:[%s5278 + $0x60] sm:$0xff]
        %v5667 = vld [vmem:[%s5278 + $0x70] sm:$0xff]
        %v5668 = vpack.c.bf16 %v5661, %v5660
        %v5669 = vpack.c.bf16 %v5663, %v5662
        %v5670 = vpack.c.bf16 %v5665, %v5664
        %v5671 = vpack.c.bf16 %v5667, %v5666
        %s5672 = scalar_lea.vmem %s5, 96
        %v5673 = vld [vmem:[%s5672] sm:$0xf]
        %v5674 = vld [vmem:[%s5672 + $0x4] sm:$0xf]
        %v5675 = vld [vmem:[%s5672 + $0x8] sm:$0xf]
        %v5676 = vld [vmem:[%s5672 + $0xc] sm:$0xf]
        %v5677 = vld [vmem:[%s5672 + $0x10] sm:$0xf]
        %v5678 = vld [vmem:[%s5672 + $0x14] sm:$0xf]
        %v5679 = vld [vmem:[%s5672 + $0x18] sm:$0xf]
        %v5680 = vld [vmem:[%s5672 + $0x1c] sm:$0xf]
        %v5689 = vunpack.c.l.b16 %v5673
        %v5690 = vunpack.c.l.b16 %v5674
        %v5691 = vunpack.c.l.b16 %v5675
        %v5692 = vunpack.c.l.b16 %v5676
        %v5693 = vunpack.c.l.b16 %v5677
        %v5694 = vunpack.c.l.b16 %v5678
        %v5695 = vunpack.c.l.b16 %v5679
        %v5696 = vunpack.c.l.b16 %v5680
        %v5697 = vpack.c.b16 %v5690, %v5689
        %v5698 = vpack.c.b16 %v5692, %v5691
        %v5699 = vpack.c.b16 %v5694, %v5693
        %v5700 = vpack.c.b16 %v5696, %v5695
        %v5706 = vsel %vm5121, %v5668, 0
        %v5709 = vsel %vm5121, %v5669, 0
        %v5712 = vsel %vm5121, %v5670, 0
        %v5715 = vsel %vm5121, %v5671, 0
        %5717 = vmatprep.subr.bf16.mxu0 0
        %5718 = vmatpush1.bf16.msra.mxu0 %v5697
        %5719 = vmatprep.subr.bf16.mxu0 0
        %5720 = vmatpush1.bf16.msra.mxu0 %v5698
        %5721 = vmatprep.subr.bf16.mxu0 0
        %5722 = vmatpush1.bf16.msra.mxu0 %v5699
        %5723 = vmatprep.subr.bf16.mxu0 0
        %5724 = vmatpush1.bf16.msra.mxu0 %v5700
        %5725 = vmatprep.subr.bf16.mxu0 0
        %5726 = vmatpush1.bf16.msra.mxu0 0
        %5727 = vmatprep.subr.bf16.mxu0 0
        %5728 = vmatpush1.bf16.msra.mxu0 0
        %5729 = vmatprep.subr.bf16.mxu0 0
        %5730 = vmatpush1.bf16.msra.mxu0 0
        %5731 = vmatprep.subr.bf16.mxu0 0
        %5732 = vmatpush1.bf16.msra.mxu0 0
        %5733 = vmatprep.subr.bf16.mxu0 0
        %5734 = vmatpush1.bf16.msra.mxu0 0
        %5735 = vmatprep.subr.bf16.mxu0 0
        %5736 = vmatpush1.bf16.msra.mxu0 0
        %5737 = vmatprep.subr.bf16.mxu0 0
        %5738 = vmatpush1.bf16.msra.mxu0 0
        %5739 = vmatprep.subr.bf16.mxu0 0
        %5740 = vmatpush1.bf16.msra.mxu0 0
        %5741 = vmatprep.subr.bf16.mxu0 0
        %5742 = vmatpush1.bf16.msra.mxu0 0
        %5743 = vmatprep.subr.bf16.mxu0 0
        %5744 = vmatpush1.bf16.msra.mxu0 0
        %5745 = vmatprep.subr.bf16.mxu0 0
        %5746 = vmatpush1.bf16.msra.mxu0 0
        %5747 = vmatprep.subr.bf16.mxu0 0
        %5748 = vmatpush1.bf16.msra.mxu0 0
        %5749 = vmatprep.mubr.bf16.mxu0 0
        %5750 = vmatmul.mubr.bf16.gmra.mrb[0].mxu0 %v5706
        %v5751 = vpop.f32.mrb[0].mxu0
        %v5752 = vadd.f32 0.0, %v5751
        %v5753 = vpop.f32.mrb[0].mxu0
        %v5754 = vpop.f32.mrb[0].mxu0
        %v5755 = vadd.f32 0.0, %v5754
        %v5756 = vpop.f32.mrb[0].mxu0
        %5757 = vmatprep.mubr.bf16.mxu0 0
        %5758 = vmatmul.mubr.bf16.gmra.mrb[0].mxu0 %v5709
        %v5759 = vpop.f32.mrb[0].mxu0
        %v5760 = vadd.f32 0.0, %v5759
        %v5761 = vpop.f32.mrb[0].mxu0
        %v5762 = vpop.f32.mrb[0].mxu0
        %v5763 = vadd.f32 0.0, %v5762
        %v5764 = vpop.f32.mrb[0].mxu0
        %5765 = vmatprep.mubr.bf16.mxu0 0
        %5766 = vmatmul.mubr.bf16.gmra.mrb[0].mxu0 %v5712
        %v5767 = vpop.f32.mrb[0].mxu0
        %v5768 = vadd.f32 0.0, %v5767
        %v5769 = vpop.f32.mrb[0].mxu0
        %v5770 = vpop.f32.mrb[0].mxu0
        %v5771 = vadd.f32 0.0, %v5770
        %v5772 = vpop.f32.mrb[0].mxu0
        %5773 = vmatprep.mubr.bf16.mxu0 0
        %5774 = vmatmul.mubr.bf16.gmra.mrb[0].mxu0 %v5715
        %v5775 = vpop.f32.mrb[0].mxu0
        %v5776 = vadd.f32 0.0, %v5775
        %v5777 = vpop.f32.mrb[0].mxu0
        %v5778 = vpop.f32.mrb[0].mxu0
        %v5779 = vadd.f32 0.0, %v5778
        %v5780 = vpop.f32.mrb[0].mxu0
        %5781 = vdwg.mxu0
        %v5782 = vadd.f32 %v5652, %v5752
        %v5783 = vadd.f32 %v5653, %v5755
        %v5784 = vadd.f32 %v5654, %v5760
        %v5785 = vadd.f32 %v5655, %v5763
        %v5786 = vadd.f32 %v5656, %v5768
        %v5787 = vadd.f32 %v5657, %v5771
        %v5788 = vadd.f32 %v5658, %v5776
        %v5789 = vadd.f32 %v5659, %v5779
        %v5790 = vld [vmem:[%s5278 + $0x1] sm:$0xff]
        %v5791 = vld [vmem:[%s5278 + $0x11] sm:$0xff]
        %v5792 = vld [vmem:[%s5278 + $0x21] sm:$0xff]
        %v5793 = vld [vmem:[%s5278 + $0x31] sm:$0xff]
        %v5794 = vld [vmem:[%s5278 + $0x41] sm:$0xff]
        %v5795 = vld [vmem:[%s5278 + $0x51] sm:$0xff]
        %v5796 = vld [vmem:[%s5278 + $0x61] sm:$0xff]
        %v5797 = vld [vmem:[%s5278 + $0x71] sm:$0xff]
        %v5798 = vpack.c.bf16 %v5791, %v5790
        %v5799 = vpack.c.bf16 %v5793, %v5792
        %v5800 = vpack.c.bf16 %v5795, %v5794
        %v5801 = vpack.c.bf16 %v5797, %v5796
        %s5802 = scalar_lea.vmem %s5, 128
        %v5803 = vld [vmem:[%s5802] sm:$0xf]
        %v5804 = vld [vmem:[%s5802 + $0x4] sm:$0xf]
        %v5805 = vld [vmem:[%s5802 + $0x8] sm:$0xf]
        %v5806 = vld [vmem:[%s5802 + $0xc] sm:$0xf]
        %v5807 = vld [vmem:[%s5802 + $0x10] sm:$0xf]
        %v5808 = vld [vmem:[%s5802 + $0x14] sm:$0xf]
        %v5809 = vld [vmem:[%s5802 + $0x18] sm:$0xf]
        %v5810 = vld [vmem:[%s5802 + $0x1c] sm:$0xf]
        %v5819 = vunpack.c.l.b16 %v5803
        %v5820 = vunpack.c.l.b16 %v5804
        %v5821 = vunpack.c.l.b16 %v5805
        %v5822 = vunpack.c.l.b16 %v5806
        %v5823 = vunpack.c.l.b16 %v5807
        %v5824 = vunpack.c.l.b16 %v5808
        %v5825 = vunpack.c.l.b16 %v5809
        %v5826 = vunpack.c.l.b16 %v5810
        %v5827 = vpack.c.b16 %v5820, %v5819
        %v5828 = vpack.c.b16 %v5822, %v5821
        %v5829 = vpack.c.b16 %v5824, %v5823
        %v5830 = vpack.c.b16 %v5826, %v5825
        %v5836 = vsel %vm5121, %v5798, 0
        %v5839 = vsel %vm5121, %v5799, 0
        %v5842 = vsel %vm5121, %v5800, 0
        %v5845 = vsel %vm5121, %v5801, 0
        %5847 = vmatprep.subr.bf16.mxu0 0
        %5848 = vmatpush1.bf16.msra.mxu0 %v5827
        %5849 = vmatprep.subr.bf16.mxu0 0
        %5850 = vmatpush1.bf16.msra.mxu0 %v5828
        %5851 = vmatprep.subr.bf16.mxu0 0
        %5852 = vmatpush1.bf16.msra.mxu0 %v5829
        %5853 = vmatprep.subr.bf16.mxu0 0
        %5854 = vmatpush1.bf16.msra.mxu0 %v5830
        %5855 = vmatprep.subr.bf16.mxu0 0
        %5856 = vmatpush1.bf16.msra.mxu0 0
        %5857 = vmatprep.subr.bf16.mxu0 0
        %5858 = vmatpush1.bf16.msra.mxu0 0
        %5859 = vmatprep.subr.bf16.mxu0 0
        %5860 = vmatpush1.bf16.msra.mxu0 0
        %5861 = vmatprep.subr.bf16.mxu0 0
        %5862 = vmatpush1.bf16.msra.mxu0 0
        %5863 = vmatprep.subr.bf16.mxu0 0
        %5864 = vmatpush1.bf16.msra.mxu0 0
        %5865 = vmatprep.subr.bf16.mxu0 0
        %5866 = vmatpush1.bf16.msra.mxu0 0
        %5867 = vmatprep.subr.bf16.mxu0 0
        %5868 = vmatpush1.bf16.msra.mxu0 0
        %5869 = vmatprep.subr.bf16.mxu0 0
        %5870 = vmatpush1.bf16.msra.mxu0 0
        %5871 = vmatprep.subr.bf16.mxu0 0
        %5872 = vmatpush1.bf16.msra.mxu0 0
        %5873 = vmatprep.subr.bf16.mxu0 0
        %5874 = vmatpush1.bf16.msra.mxu0 0
        %5875 = vmatprep.subr.bf16.mxu0 0
        %5876 = vmatpush1.bf16.msra.mxu0 0
        %5877 = vmatprep.subr.bf16.mxu0 0
        %5878 = vmatpush1.bf16.msra.mxu0 0
        %5879 = vmatprep.mubr.bf16.mxu0 0
        %5880 = vmatmul.mubr.bf16.gmra.mrb[0].mxu0 %v5836
        %v5881 = vpop.f32.mrb[0].mxu0
        %v5882 = vadd.f32 0.0, %v5881
        %v5883 = vpop.f32.mrb[0].mxu0
        %v5884 = vpop.f32.mrb[0].mxu0
        %v5885 = vadd.f32 0.0, %v5884
        %v5886 = vpop.f32.mrb[0].mxu0
        %5887 = vmatprep.mubr.bf16.mxu0 0
        %5888 = vmatmul.mubr.bf16.gmra.mrb[0].mxu0 %v5839
        %v5889 = vpop.f32.mrb[0].mxu0
        %v5890 = vadd.f32 0.0, %v5889
        %v5891 = vpop.f32.mrb[0].mxu0
        %v5892 = vpop.f32.mrb[0].mxu0
        %v5893 = vadd.f32 0.0, %v5892
        %v5894 = vpop.f32.mrb[0].mxu0
        %5895 = vmatprep.mubr.bf16.mxu0 0
        %5896 = vmatmul.mubr.bf16.gmra.mrb[0].mxu0 %v5842
        %v5897 = vpop.f32.mrb[0].mxu0
        %v5898 = vadd.f32 0.0, %v5897
        %v5899 = vpop.f32.mrb[0].mxu0
        %v5900 = vpop.f32.mrb[0].mxu0
        %v5901 = vadd.f32 0.0, %v5900
        %v5902 = vpop.f32.mrb[0].mxu0
        %5903 = vmatprep.mubr.bf16.mxu0 0
        %5904 = vmatmul.mubr.bf16.gmra.mrb[0].mxu0 %v5845
        %v5905 = vpop.f32.mrb[0].mxu0
        %v5906 = vadd.f32 0.0, %v5905
        %v5907 = vpop.f32.mrb[0].mxu0
        %v5908 = vpop.f32.mrb[0].mxu0
        %v5909 = vadd.f32 0.0, %v5908
        %v5910 = vpop.f32.mrb[0].mxu0
        %5911 = vdwg.mxu0
        %v5912 = vadd.f32 %v5782, %v5882
        %v5913 = vadd.f32 %v5783, %v5885
        %v5914 = vadd.f32 %v5784, %v5890
        %v5915 = vadd.f32 %v5785, %v5893
        %v5916 = vadd.f32 %v5786, %v5898
        %v5917 = vadd.f32 %v5787, %v5901
        %v5918 = vadd.f32 %v5788, %v5906
        %v5919 = vadd.f32 %v5789, %v5909
        %v5920 = vld [vmem:[%s5278 + $0x2] sm:$0xff]
        %v5921 = vld [vmem:[%s5278 + $0x12] sm:$0xff]
        %v5922 = vld [vmem:[%s5278 + $0x22] sm:$0xff]
        %v5923 = vld [vmem:[%s5278 + $0x32] sm:$0xff]
        %v5924 = vld [vmem:[%s5278 + $0x42] sm:$0xff]
        %v5925 = vld [vmem:[%s5278 + $0x52] sm:$0xff]
        %v5926 = vld [vmem:[%s5278 + $0x62] sm:$0xff]
        %v5927 = vld [vmem:[%s5278 + $0x72] sm:$0xff]
        %v5928 = vpack.c.bf16 %v5921, %v5920
        %v5929 = vpack.c.bf16 %v5923, %v5922
        %v5930 = vpack.c.bf16 %v5925, %v5924
        %v5931 = vpack.c.bf16 %v5927, %v5926
        %s5932 = scalar_lea.vmem %s5, 160
        %v5933 = vld [vmem:[%s5932] sm:$0xf]
        %v5934 = vld [vmem:[%s5932 + $0x4] sm:$0xf]
        %v5935 = vld [vmem:[%s5932 + $0x8] sm:$0xf]
        %v5936 = vld [vmem:[%s5932 + $0xc] sm:$0xf]
        %v5937 = vld [vmem:[%s5932 + $0x10] sm:$0xf]
        %v5938 = vld [vmem:[%s5932 + $0x14] sm:$0xf]
        %v5939 = vld [vmem:[%s5932 + $0x18] sm:$0xf]
        %v5940 = vld [vmem:[%s5932 + $0x1c] sm:$0xf]
        %v5949 = vunpack.c.l.b16 %v5933
        %v5950 = vunpack.c.l.b16 %v5934
        %v5951 = vunpack.c.l.b16 %v5935
        %v5952 = vunpack.c.l.b16 %v5936
        %v5953 = vunpack.c.l.b16 %v5937
        %v5954 = vunpack.c.l.b16 %v5938
        %v5955 = vunpack.c.l.b16 %v5939
        %v5956 = vunpack.c.l.b16 %v5940
        %v5957 = vpack.c.b16 %v5950, %v5949
        %v5958 = vpack.c.b16 %v5952, %v5951
        %v5959 = vpack.c.b16 %v5954, %v5953
        %v5960 = vpack.c.b16 %v5956, %v5955
        %v5966 = vsel %vm5121, %v5928, 0
        %v5969 = vsel %vm5121, %v5929, 0
        %v5972 = vsel %vm5121, %v5930, 0
        %v5975 = vsel %vm5121, %v5931, 0
        %5977 = vmatprep.subr.bf16.mxu0 0
        %5978 = vmatpush1.bf16.msra.mxu0 %v5957
        %5979 = vmatprep.subr.bf16.mxu0 0
        %5980 = vmatpush1.bf16.msra.mxu0 %v5958
        %5981 = vmatprep.subr.bf16.mxu0 0
        %5982 = vmatpush1.bf16.msra.mxu0 %v5959
        %5983 = vmatprep.subr.bf16.mxu0 0
        %5984 = vmatpush1.bf16.msra.mxu0 %v5960
        %5985 = vmatprep.subr.bf16.mxu0 0
        %5986 = vmatpush1.bf16.msra.mxu0 0
        %5987 = vmatprep.subr.bf16.mxu0 0
        %5988 = vmatpush1.bf16.msra.mxu0 0
        %5989 = vmatprep.subr.bf16.mxu0 0
        %5990 = vmatpush1.bf16.msra.mxu0 0
        %5991 = vmatprep.subr.bf16.mxu0 0
        %5992 = vmatpush1.bf16.msra.mxu0 0
        %5993 = vmatprep.subr.bf16.mxu0 0
        %5994 = vmatpush1.bf16.msra.mxu0 0
        %5995 = vmatprep.subr.bf16.mxu0 0
        %5996 = vmatpush1.bf16.msra.mxu0 0
        %5997 = vmatprep.subr.bf16.mxu0 0
        %5998 = vmatpush1.bf16.msra.mxu0 0
        %5999 = vmatprep.subr.bf16.mxu0 0
        %6000 = vmatpush1.bf16.msra.mxu0 0
        %6001 = vmatprep.subr.bf16.mxu0 0
        %6002 = vmatpush1.bf16.msra.mxu0 0
        %6003 = vmatprep.subr.bf16.mxu0 0
        %6004 = vmatpush1.bf16.msra.mxu0 0
        %6005 = vmatprep.subr.bf16.mxu0 0
        %6006 = vmatpush1.bf16.msra.mxu0 0
        %6007 = vmatprep.subr.bf16.mxu0 0
        %6008 = vmatpush1.bf16.msra.mxu0 0
        %6009 = vmatprep.mubr.bf16.mxu0 0
        %6010 = vmatmul.mubr.bf16.gmra.mrb[0].mxu0 %v5966
        %v6011 = vpop.f32.mrb[0].mxu0
        %v6012 = vadd.f32 0.0, %v6011
        %v6013 = vpop.f32.mrb[0].mxu0
        %v6014 = vpop.f32.mrb[0].mxu0
        %v6015 = vadd.f32 0.0, %v6014
        %v6016 = vpop.f32.mrb[0].mxu0
        %6017 = vmatprep.mubr.bf16.mxu0 0
        %6018 = vmatmul.mubr.bf16.gmra.mrb[0].mxu0 %v5969
        %v6019 = vpop.f32.mrb[0].mxu0
        %v6020 = vadd.f32 0.0, %v6019
        %v6021 = vpop.f32.mrb[0].mxu0
        %v6022 = vpop.f32.mrb[0].mxu0
        %v6023 = vadd.f32 0.0, %v6022
        %v6024 = vpop.f32.mrb[0].mxu0
        %6025 = vmatprep.mubr.bf16.mxu0 0
        %6026 = vmatmul.mubr.bf16.gmra.mrb[0].mxu0 %v5972
        %v6027 = vpop.f32.mrb[0].mxu0
        %v6028 = vadd.f32 0.0, %v6027
        %v6029 = vpop.f32.mrb[0].mxu0
        %v6030 = vpop.f32.mrb[0].mxu0
        %v6031 = vadd.f32 0.0, %v6030
        %v6032 = vpop.f32.mrb[0].mxu0
        %6033 = vmatprep.mubr.bf16.mxu0 0
        %6034 = vmatmul.mubr.bf16.gmra.mrb[0].mxu0 %v5975
        %v6035 = vpop.f32.mrb[0].mxu0
        %v6036 = vadd.f32 0.0, %v6035
        %v6037 = vpop.f32.mrb[0].mxu0
        %v6038 = vpop.f32.mrb[0].mxu0
        %v6039 = vadd.f32 0.0, %v6038
        %v6040 = vpop.f32.mrb[0].mxu0
        %6041 = vdwg.mxu0
        %v6042 = vadd.f32 %v5912, %v6012
        %v6043 = vadd.f32 %v5913, %v6015
        %v6044 = vadd.f32 %v5914, %v6020
        %v6045 = vadd.f32 %v5915, %v6023
        %v6046 = vadd.f32 %v5916, %v6028
        %v6047 = vadd.f32 %v5917, %v6031
        %v6048 = vadd.f32 %v5918, %v6036
        %v6049 = vadd.f32 %v5919, %v6039
        %s6050 = scalar_lea.vmem [#allocation6], 32
        %v6051 = vld [vmem:[%s6050] sm:$0xff]
        %v6052 = vld [vmem:[%s6050 + $0x10] sm:$0xff]
        %v6053 = vld [vmem:[%s6050 + $0x20] sm:$0xff]
        %v6054 = vld [vmem:[%s6050 + $0x30] sm:$0xff]
        %v6055 = vld [vmem:[%s6050 + $0x40] sm:$0xff]
        %v6056 = vld [vmem:[%s6050 + $0x50] sm:$0xff]
        %v6057 = vld [vmem:[%s6050 + $0x60] sm:$0xff]
        %v6058 = vld [vmem:[%s6050 + $0x70] sm:$0xff]
        %v6059 = vpack.c.bf16 %v6052, %v6051
        %v6060 = vpack.c.bf16 %v6054, %v6053
        %v6061 = vpack.c.bf16 %v6056, %v6055
        %v6062 = vpack.c.bf16 %v6058, %v6057
        %s6063 = scalar_lea.vmem %s5, 192
        %v6064 = vld [vmem:[%s6063] sm:$0xf]
        %v6065 = vld [vmem:[%s6063 + $0x4] sm:$0xf]
        %v6066 = vld [vmem:[%s6063 + $0x8] sm:$0xf]
        %v6067 = vld [vmem:[%s6063 + $0xc] sm:$0xf]
        %v6068 = vld [vmem:[%s6063 + $0x10] sm:$0xf]
        %v6069 = vld [vmem:[%s6063 + $0x14] sm:$0xf]
        %v6070 = vld [vmem:[%s6063 + $0x18] sm:$0xf]
        %v6071 = vld [vmem:[%s6063 + $0x1c] sm:$0xf]
        %v6080 = vunpack.c.l.b16 %v6064
        %v6081 = vunpack.c.l.b16 %v6065
        %v6082 = vunpack.c.l.b16 %v6066
        %v6083 = vunpack.c.l.b16 %v6067
        %v6084 = vunpack.c.l.b16 %v6068
        %v6085 = vunpack.c.l.b16 %v6069
        %v6086 = vunpack.c.l.b16 %v6070
        %v6087 = vunpack.c.l.b16 %v6071
        %v6088 = vpack.c.b16 %v6081, %v6080
        %v6089 = vpack.c.b16 %v6083, %v6082
        %v6090 = vpack.c.b16 %v6085, %v6084
        %v6091 = vpack.c.b16 %v6087, %v6086
        %v6097 = vsel %vm5121, %v6059, 0
        %v6100 = vsel %vm5121, %v6060, 0
        %v6103 = vsel %vm5121, %v6061, 0
        %v6106 = vsel %vm5121, %v6062, 0
        %6108 = vmatprep.subr.bf16.mxu0 0
        %6109 = vmatpush1.bf16.msra.mxu0 %v6088
        %6110 = vmatprep.subr.bf16.mxu0 0
        %6111 = vmatpush1.bf16.msra.mxu0 %v6089
        %6112 = vmatprep.subr.bf16.mxu0 0
        %6113 = vmatpush1.bf16.msra.mxu0 %v6090
        %6114 = vmatprep.subr.bf16.mxu0 0
        %6115 = vmatpush1.bf16.msra.mxu0 %v6091
        %6116 = vmatprep.subr.bf16.mxu0 0
        %6117 = vmatpush1.bf16.msra.mxu0 0
        %6118 = vmatprep.subr.bf16.mxu0 0
        %6119 = vmatpush1.bf16.msra.mxu0 0
        %6120 = vmatprep.subr.bf16.mxu0 0
        %6121 = vmatpush1.bf16.msra.mxu0 0
        %6122 = vmatprep.subr.bf16.mxu0 0
        %6123 = vmatpush1.bf16.msra.mxu0 0
        %6124 = vmatprep.subr.bf16.mxu0 0
        %6125 = vmatpush1.bf16.msra.mxu0 0
        %6126 = vmatprep.subr.bf16.mxu0 0
        %6127 = vmatpush1.bf16.msra.mxu0 0
        %6128 = vmatprep.subr.bf16.mxu0 0
        %6129 = vmatpush1.bf16.msra.mxu0 0
        %6130 = vmatprep.subr.bf16.mxu0 0
        %6131 = vmatpush1.bf16.msra.mxu0 0
        %6132 = vmatprep.subr.bf16.mxu0 0
        %6133 = vmatpush1.bf16.msra.mxu0 0
        %6134 = vmatprep.subr.bf16.mxu0 0
        %6135 = vmatpush1.bf16.msra.mxu0 0
        %6136 = vmatprep.subr.bf16.mxu0 0
        %6137 = vmatpush1.bf16.msra.mxu0 0
        %6138 = vmatprep.subr.bf16.mxu0 0
        %6139 = vmatpush1.bf16.msra.mxu0 0
        %6140 = vmatprep.mubr.bf16.mxu0 0
        %6141 = vmatmul.mubr.bf16.gmra.mrb[0].mxu0 %v6097
        %v6142 = vpop.f32.mrb[0].mxu0
        %v6143 = vadd.f32 0.0, %v6142
        %v6144 = vpop.f32.mrb[0].mxu0
        %v6145 = vpop.f32.mrb[0].mxu0
        %v6146 = vadd.f32 0.0, %v6145
        %v6147 = vpop.f32.mrb[0].mxu0
        %6148 = vmatprep.mubr.bf16.mxu0 0
        %6149 = vmatmul.mubr.bf16.gmra.mrb[0].mxu0 %v6100
        %v6150 = vpop.f32.mrb[0].mxu0
        %v6151 = vadd.f32 0.0, %v6150
        %v6152 = vpop.f32.mrb[0].mxu0
        %v6153 = vpop.f32.mrb[0].mxu0
        %v6154 = vadd.f32 0.0, %v6153
        %v6155 = vpop.f32.mrb[0].mxu0
        %6156 = vmatprep.mubr.bf16.mxu0 0
        %6157 = vmatmul.mubr.bf16.gmra.mrb[0].mxu0 %v6103
        %v6158 = vpop.f32.mrb[0].mxu0
        %v6159 = vadd.f32 0.0, %v6158
        %v6160 = vpop.f32.mrb[0].mxu0
        %v6161 = vpop.f32.mrb[0].mxu0
        %v6162 = vadd.f32 0.0, %v6161
        %v6163 = vpop.f32.mrb[0].mxu0
        %6164 = vmatprep.mubr.bf16.mxu0 0
        %6165 = vmatmul.mubr.bf16.gmra.mrb[0].mxu0 %v6106
        %v6166 = vpop.f32.mrb[0].mxu0
        %v6167 = vadd.f32 0.0, %v6166
        %v6168 = vpop.f32.mrb[0].mxu0
        %v6169 = vpop.f32.mrb[0].mxu0
        %v6170 = vadd.f32 0.0, %v6169
        %v6171 = vpop.f32.mrb[0].mxu0
        %6172 = vdwg.mxu0
        %v6173 = vadd.f32 %v6042, %v6143
        %v6174 = vadd.f32 %v6043, %v6146
        %v6175 = vadd.f32 %v6044, %v6151
        %v6176 = vadd.f32 %v6045, %v6154
        %v6177 = vadd.f32 %v6046, %v6159
        %v6178 = vadd.f32 %v6047, %v6162
        %v6179 = vadd.f32 %v6048, %v6167
        %v6180 = vadd.f32 %v6049, %v6170
        %v6181 = vld [vmem:[%s6050 + $0x1] sm:$0xff]
        %v6182 = vld [vmem:[%s6050 + $0x11] sm:$0xff]
        %v6183 = vld [vmem:[%s6050 + $0x21] sm:$0xff]
        %v6184 = vld [vmem:[%s6050 + $0x31] sm:$0xff]
        %v6185 = vld [vmem:[%s6050 + $0x41] sm:$0xff]
        %v6186 = vld [vmem:[%s6050 + $0x51] sm:$0xff]
        %v6187 = vld [vmem:[%s6050 + $0x61] sm:$0xff]
        %v6188 = vld [vmem:[%s6050 + $0x71] sm:$0xff]
        %v6189 = vpack.c.bf16 %v6182, %v6181
        %v6190 = vpack.c.bf16 %v6184, %v6183
        %v6191 = vpack.c.bf16 %v6186, %v6185
        %v6192 = vpack.c.bf16 %v6188, %v6187
        %s6193 = scalar_lea.vmem %s5, 224
        %v6194 = vld [vmem:[%s6193] sm:$0xf]
        %v6195 = vld [vmem:[%s6193 + $0x4] sm:$0xf]
        %v6196 = vld [vmem:[%s6193 + $0x8] sm:$0xf]
        %v6197 = vld [vmem:[%s6193 + $0xc] sm:$0xf]
        %v6198 = vld [vmem:[%s6193 + $0x10] sm:$0xf]
        %v6199 = vld [vmem:[%s6193 + $0x14] sm:$0xf]
        %v6200 = vld [vmem:[%s6193 + $0x18] sm:$0xf]
        %v6201 = vld [vmem:[%s6193 + $0x1c] sm:$0xf]
        %v6210 = vunpack.c.l.b16 %v6194
        %v6211 = vunpack.c.l.b16 %v6195
        %v6212 = vunpack.c.l.b16 %v6196
        %v6213 = vunpack.c.l.b16 %v6197
        %v6214 = vunpack.c.l.b16 %v6198
        %v6215 = vunpack.c.l.b16 %v6199
        %v6216 = vunpack.c.l.b16 %v6200
        %v6217 = vunpack.c.l.b16 %v6201
        %v6218 = vpack.c.b16 %v6211, %v6210
        %v6219 = vpack.c.b16 %v6213, %v6212
        %v6220 = vpack.c.b16 %v6215, %v6214
        %v6221 = vpack.c.b16 %v6217, %v6216
        %v6227 = vsel %vm5121, %v6189, 0
        %v6230 = vsel %vm5121, %v6190, 0
        %v6233 = vsel %vm5121, %v6191, 0
        %v6236 = vsel %vm5121, %v6192, 0
        %6238 = vmatprep.subr.bf16.mxu0 0
        %6239 = vmatpush1.bf16.msra.mxu0 %v6218
        %6240 = vmatprep.subr.bf16.mxu0 0
        %6241 = vmatpush1.bf16.msra.mxu0 %v6219
        %6242 = vmatprep.subr.bf16.mxu0 0
        %6243 = vmatpush1.bf16.msra.mxu0 %v6220
        %6244 = vmatprep.subr.bf16.mxu0 0
        %6245 = vmatpush1.bf16.msra.mxu0 %v6221
        %6246 = vmatprep.subr.bf16.mxu0 0
        %6247 = vmatpush1.bf16.msra.mxu0 0
        %6248 = vmatprep.subr.bf16.mxu0 0
        %6249 = vmatpush1.bf16.msra.mxu0 0
        %6250 = vmatprep.subr.bf16.mxu0 0
        %6251 = vmatpush1.bf16.msra.mxu0 0
        %6252 = vmatprep.subr.bf16.mxu0 0
        %6253 = vmatpush1.bf16.msra.mxu0 0
        %6254 = vmatprep.subr.bf16.mxu0 0
        %6255 = vmatpush1.bf16.msra.mxu0 0
        %6256 = vmatprep.subr.bf16.mxu0 0
        %6257 = vmatpush1.bf16.msra.mxu0 0
        %6258 = vmatprep.subr.bf16.mxu0 0
        %6259 = vmatpush1.bf16.msra.mxu0 0
        %6260 = vmatprep.subr.bf16.mxu0 0
        %6261 = vmatpush1.bf16.msra.mxu0 0
        %6262 = vmatprep.subr.bf16.mxu0 0
        %6263 = vmatpush1.bf16.msra.mxu0 0
        %6264 = vmatprep.subr.bf16.mxu0 0
        %6265 = vmatpush1.bf16.msra.mxu0 0
        %6266 = vmatprep.subr.bf16.mxu0 0
        %6267 = vmatpush1.bf16.msra.mxu0 0
        %6268 = vmatprep.subr.bf16.mxu0 0
        %6269 = vmatpush1.bf16.msra.mxu0 0
        %6270 = vmatprep.mubr.bf16.mxu0 0
        %6271 = vmatmul.mubr.bf16.gmra.mrb[0].mxu0 %v6227
        %v6272 = vpop.f32.mrb[0].mxu0
        %v6273 = vadd.f32 0.0, %v6272
        %v6274 = vpop.f32.mrb[0].mxu0
        %v6275 = vpop.f32.mrb[0].mxu0
        %v6276 = vadd.f32 0.0, %v6275
        %v6277 = vpop.f32.mrb[0].mxu0
        %6278 = vmatprep.mubr.bf16.mxu0 0
        %6279 = vmatmul.mubr.bf16.gmra.mrb[0].mxu0 %v6230
        %v6280 = vpop.f32.mrb[0].mxu0
        %v6281 = vadd.f32 0.0, %v6280
        %v6282 = vpop.f32.mrb[0].mxu0
        %v6283 = vpop.f32.mrb[0].mxu0
        %v6284 = vadd.f32 0.0, %v6283
        %v6285 = vpop.f32.mrb[0].mxu0
        %6286 = vmatprep.mubr.bf16.mxu0 0
        %6287 = vmatmul.mubr.bf16.gmra.mrb[0].mxu0 %v6233
        %v6288 = vpop.f32.mrb[0].mxu0
        %v6289 = vadd.f32 0.0, %v6288
        %v6290 = vpop.f32.mrb[0].mxu0
        %v6291 = vpop.f32.mrb[0].mxu0
        %v6292 = vadd.f32 0.0, %v6291
        %v6293 = vpop.f32.mrb[0].mxu0
        %6294 = vmatprep.mubr.bf16.mxu0 0
        %6295 = vmatmul.mubr.bf16.gmra.mrb[0].mxu0 %v6236
        %v6296 = vpop.f32.mrb[0].mxu0
        %v6297 = vadd.f32 0.0, %v6296
        %v6298 = vpop.f32.mrb[0].mxu0
        %v6299 = vpop.f32.mrb[0].mxu0
        %v6300 = vadd.f32 0.0, %v6299
        %v6301 = vpop.f32.mrb[0].mxu0
        %6302 = vdwg.mxu0
        %v6303 = vadd.f32 %v6173, %v6273
        %v6304 = vadd.f32 %v6174, %v6276
        %v6305 = vadd.f32 %v6175, %v6281
        %v6306 = vadd.f32 %v6176, %v6284
        %v6307 = vadd.f32 %v6177, %v6289
        %v6308 = vadd.f32 %v6178, %v6292
        %v6309 = vadd.f32 %v6179, %v6297
        %v6310 = vadd.f32 %v6180, %v6300
        %v6311 = vld [vmem:[%s6050 + $0x2] sm:$0xff]
        %v6312 = vld [vmem:[%s6050 + $0x12] sm:$0xff]
        %v6313 = vld [vmem:[%s6050 + $0x22] sm:$0xff]
        %v6314 = vld [vmem:[%s6050 + $0x32] sm:$0xff]
        %v6315 = vld [vmem:[%s6050 + $0x42] sm:$0xff]
        %v6316 = vld [vmem:[%s6050 + $0x52] sm:$0xff]
        %v6317 = vld [vmem:[%s6050 + $0x62] sm:$0xff]
        %v6318 = vld [vmem:[%s6050 + $0x72] sm:$0xff]
        %v6319 = vpack.c.bf16 %v6312, %v6311
        %v6320 = vpack.c.bf16 %v6314, %v6313
        %v6321 = vpack.c.bf16 %v6316, %v6315
        %v6322 = vpack.c.bf16 %v6318, %v6317
        %s6323 = scalar_lea.vmem %s5, 256
        %v6324 = vld [vmem:[%s6323] sm:$0xf]
        %v6325 = vld [vmem:[%s6323 + $0x4] sm:$0xf]
        %v6326 = vld [vmem:[%s6323 + $0x8] sm:$0xf]
        %v6327 = vld [vmem:[%s6323 + $0xc] sm:$0xf]
        %v6328 = vld [vmem:[%s6323 + $0x10] sm:$0xf]
        %v6329 = vld [vmem:[%s6323 + $0x14] sm:$0xf]
        %v6330 = vld [vmem:[%s6323 + $0x18] sm:$0xf]
        %v6331 = vld [vmem:[%s6323 + $0x1c] sm:$0xf]
        %v6340 = vunpack.c.l.b16 %v6324
        %v6341 = vunpack.c.l.b16 %v6325
        %v6342 = vunpack.c.l.b16 %v6326
        %v6343 = vunpack.c.l.b16 %v6327
        %v6344 = vunpack.c.l.b16 %v6328
        %v6345 = vunpack.c.l.b16 %v6329
        %v6346 = vunpack.c.l.b16 %v6330
        %v6347 = vunpack.c.l.b16 %v6331
        %v6348 = vpack.c.b16 %v6341, %v6340
        %v6349 = vpack.c.b16 %v6343, %v6342
        %v6350 = vpack.c.b16 %v6345, %v6344
        %v6351 = vpack.c.b16 %v6347, %v6346
        %v6357 = vsel %vm5121, %v6319, 0
        %v6360 = vsel %vm5121, %v6320, 0
        %v6363 = vsel %vm5121, %v6321, 0
        %v6366 = vsel %vm5121, %v6322, 0
        %6368 = vmatprep.subr.bf16.mxu0 0
        %6369 = vmatpush1.bf16.msra.mxu0 %v6348
        %6370 = vmatprep.subr.bf16.mxu0 0
        %6371 = vmatpush1.bf16.msra.mxu0 %v6349
        %6372 = vmatprep.subr.bf16.mxu0 0
        %6373 = vmatpush1.bf16.msra.mxu0 %v6350
        %6374 = vmatprep.subr.bf16.mxu0 0
        %6375 = vmatpush1.bf16.msra.mxu0 %v6351
        %6376 = vmatprep.subr.bf16.mxu0 0
        %6377 = vmatpush1.bf16.msra.mxu0 0
        %6378 = vmatprep.subr.bf16.mxu0 0
        %6379 = vmatpush1.bf16.msra.mxu0 0
        %6380 = vmatprep.subr.bf16.mxu0 0
        %6381 = vmatpush1.bf16.msra.mxu0 0
        %6382 = vmatprep.subr.bf16.mxu0 0
        %6383 = vmatpush1.bf16.msra.mxu0 0
        %6384 = vmatprep.subr.bf16.mxu0 0
        %6385 = vmatpush1.bf16.msra.mxu0 0
        %6386 = vmatprep.subr.bf16.mxu0 0
        %6387 = vmatpush1.bf16.msra.mxu0 0
        %6388 = vmatprep.subr.bf16.mxu0 0
        %6389 = vmatpush1.bf16.msra.mxu0 0
        %6390 = vmatprep.subr.bf16.mxu0 0
        %6391 = vmatpush1.bf16.msra.mxu0 0
        %6392 = vmatprep.subr.bf16.mxu0 0
        %6393 = vmatpush1.bf16.msra.mxu0 0
        %6394 = vmatprep.subr.bf16.mxu0 0
        %6395 = vmatpush1.bf16.msra.mxu0 0
        %6396 = vmatprep.subr.bf16.mxu0 0
        %6397 = vmatpush1.bf16.msra.mxu0 0
        %6398 = vmatprep.subr.bf16.mxu0 0
        %6399 = vmatpush1.bf16.msra.mxu0 0
        %6400 = vmatprep.mubr.bf16.mxu0 0
        %6401 = vmatmul.mubr.bf16.gmra.mrb[0].mxu0 %v6357
        %v6402 = vpop.f32.mrb[0].mxu0
        %v6403 = vadd.f32 0.0, %v6402
        %v6404 = vpop.f32.mrb[0].mxu0
        %v6405 = vpop.f32.mrb[0].mxu0
        %v6406 = vadd.f32 0.0, %v6405
        %v6407 = vpop.f32.mrb[0].mxu0
        %6408 = vmatprep.mubr.bf16.mxu0 0
        %6409 = vmatmul.mubr.bf16.gmra.mrb[0].mxu0 %v6360
        %v6410 = vpop.f32.mrb[0].mxu0
        %v6411 = vadd.f32 0.0, %v6410
        %v6412 = vpop.f32.mrb[0].mxu0
        %v6413 = vpop.f32.mrb[0].mxu0
        %v6414 = vadd.f32 0.0, %v6413
        %v6415 = vpop.f32.mrb[0].mxu0
        %6416 = vmatprep.mubr.bf16.mxu0 0
        %6417 = vmatmul.mubr.bf16.gmra.mrb[0].mxu0 %v6363
        %v6418 = vpop.f32.mrb[0].mxu0
        %v6419 = vadd.f32 0.0, %v6418
        %v6420 = vpop.f32.mrb[0].mxu0
        %v6421 = vpop.f32.mrb[0].mxu0
        %v6422 = vadd.f32 0.0, %v6421
        %v6423 = vpop.f32.mrb[0].mxu0
        %6424 = vmatprep.mubr.bf16.mxu0 0
        %6425 = vmatmul.mubr.bf16.gmra.mrb[0].mxu0 %v6366
        %v6426 = vpop.f32.mrb[0].mxu0
        %v6427 = vadd.f32 0.0, %v6426
        %v6428 = vpop.f32.mrb[0].mxu0
        %v6429 = vpop.f32.mrb[0].mxu0
        %v6430 = vadd.f32 0.0, %v6429
        %v6431 = vpop.f32.mrb[0].mxu0
        %6432 = vdwg.mxu0
        %v6433 = vadd.f32 %v6303, %v6403
        %v6434 = vadd.f32 %v6304, %v6406
        %v6435 = vadd.f32 %v6305, %v6411
        %v6436 = vadd.f32 %v6306, %v6414
        %v6437 = vadd.f32 %v6307, %v6419
        %v6438 = vadd.f32 %v6308, %v6422
        %v6439 = vadd.f32 %v6309, %v6427
        %v6440 = vadd.f32 %v6310, %v6430
        %v6441 = vld [vmem:[%s6] sm:$0x1]
        %v6443 = vlaneseq
        %v6444 = vshrl.u32 %v6443, 7
        %v6445 = vsub.s32 0, %v6444
        %v6446 = vrot.slane %v6441, %v6445
        %v6448 = vadd.f32 %v6433, %v6446
        %v6449 = vadd.f32 %v6434, %v6446
        %v6450 = vadd.f32 %v6435, %v6446
        %v6451 = vadd.f32 %v6436, %v6446
        %v6452 = vadd.f32 %v6437, %v6446
        %v6453 = vadd.f32 %v6438, %v6446
        %v6454 = vadd.f32 %v6439, %v6446
        %v6455 = vadd.f32 %v6440, %v6446
        %v6456 = vmax.f32 %v6448, 0.0
        %v6457 = vmax.f32 %v6449, 0.0
        %v6458 = vmax.f32 %v6450, 0.0
        %v6459 = vmax.f32 %v6451, 0.0
        %v6460 = vmax.f32 %v6452, 0.0
        %v6461 = vmax.f32 %v6453, 0.0
        %v6462 = vmax.f32 %v6454, 0.0
        %v6463 = vmax.f32 %v6455, 0.0
        %6464 = vst [vmem:[#allocation4] sm:$0xff] %v6456
        %6465 = vst [vmem:[#allocation4 + $0x8] sm:$0xff] %v6457
        %6466 = vst [vmem:[#allocation4 + $0x10] sm:$0xff] %v6458
        %6467 = vst [vmem:[#allocation4 + $0x18] sm:$0xff] %v6459
        %6468 = vst [vmem:[#allocation4 + $0x20] sm:$0xff] %v6460
        %6469 = vst [vmem:[#allocation4 + $0x28] sm:$0xff] %v6461
        %6470 = vst [vmem:[#allocation4 + $0x30] sm:$0xff] %v6462
        %6471 = vst [vmem:[#allocation4 + $0x38] sm:$0xff] %v6463
        %v6472 = vld [vmem:[#allocation4] ss:$2 sm:$0xf]
        %s6473 = scalar_lea.vmem [#allocation4], 8
        %v6474 = vld [vmem:[%s6473] ss:$2 sm:$0xf]
        %s6475 = scalar_lea.vmem [#allocation4], 16
        %v6476 = vld [vmem:[%s6475] ss:$2 sm:$0xf]
        %s6477 = scalar_lea.vmem [#allocation4], 24
        %v6478 = vld [vmem:[%s6477] ss:$2 sm:$0xf]
        %s6479 = scalar_lea.vmem [#allocation4], 32
        %v6480 = vld [vmem:[%s6479] ss:$2 sm:$0xf]
        %s6481 = scalar_lea.vmem [#allocation4], 40
        %v6482 = vld [vmem:[%s6481] ss:$2 sm:$0xf]
        %s6483 = scalar_lea.vmem [#allocation4], 48
        %v6484 = vld [vmem:[%s6483] ss:$2 sm:$0xf]
        %s6485 = scalar_lea.vmem [#allocation4], 56
        %v6486 = vld [vmem:[%s6485] ss:$2 sm:$0xf]
        %s6487 = scalar_lea.vmem [#allocation4], 1
        %v6488 = vld [vmem:[%s6487] ss:$2 sm:$0xf]
        %s6489 = scalar_lea.vmem [#allocation4], 9
        %v6490 = vld [vmem:[%s6489] ss:$2 sm:$0xf]
        %s6491 = scalar_lea.vmem [#allocation4], 17
        %v6492 = vld [vmem:[%s6491] ss:$2 sm:$0xf]
        %s6493 = scalar_lea.vmem [#allocation4], 25
        %v6494 = vld [vmem:[%s6493] ss:$2 sm:$0xf]
        %s6495 = scalar_lea.vmem [#allocation4], 33
        %v6496 = vld [vmem:[%s6495] ss:$2 sm:$0xf]
        %s6497 = scalar_lea.vmem [#allocation4], 41
        %v6498 = vld [vmem:[%s6497] ss:$2 sm:$0xf]
        %s6499 = scalar_lea.vmem [#allocation4], 49
        %v6500 = vld [vmem:[%s6499] ss:$2 sm:$0xf]
        %s6501 = scalar_lea.vmem [#allocation4], 57
        %v6502 = vld [vmem:[%s6501] ss:$2 sm:$0xf]
        %v6503 = vmax.f32 %v6472, %v6488
        %v6504 = vmax.f32 %v6474, %v6490
        %v6505 = vmax.f32 %v6476, %v6492
        %v6506 = vmax.f32 %v6478, %v6494
        %v6507 = vmax.f32 %v6480, %v6496
        %v6508 = vmax.f32 %v6482, %v6498
        %v6509 = vmax.f32 %v6484, %v6500
        %v6510 = vmax.f32 %v6486, %v6502
        %vm6511 = vcmask 1043456
        %v6512 = vsel %vm6511, %v6503, -inf
        %v6513 = vsel %vm6511, %v6504, -inf
        %v6514 = vmax.f32 %v6512, %v6513
        %v6515 = vsel %vm6511, %v6505, -inf
        %v6516 = vsel %vm6511, %v6506, -inf
        %v6517 = vmax.f32 %v6515, %v6516
        %v6518 = vsel %vm6511, %v6507, -inf
        %v6519 = vsel %vm6511, %v6508, -inf
        %v6520 = vmax.f32 %v6518, %v6519
        %v6521 = vsel %vm6511, %v6509, -inf
        %v6522 = vsel %vm6511, %v6510, -inf
        %v6523 = vmax.f32 %v6521, %v6522
        %v6524 = vld [vmem:[%s8] sm:$0x3]
        %v6525 = vpack.c.bf16 %v6514, %v6514
        %v6526 = vld [vmem:[%s7] sm:$0xff]
        %v6527 = vld [vmem:[%s7 + $0x8] sm:$0xff]
        %v6528 = vld [vmem:[%s7 + $0x10] sm:$0xff]
        %v6529 = vld [vmem:[%s7 + $0x18] sm:$0xff]
        %v6530 = vld [vmem:[%s7 + $0x20] sm:$0xff]
        %v6531 = vld [vmem:[%s7 + $0x28] sm:$0xff]
        %v6532 = vld [vmem:[%s7 + $0x30] sm:$0xff]
        %v6533 = vld [vmem:[%s7 + $0x38] sm:$0xff]
        %v6534 = vld [vmem:[%s7 + $0x40] sm:$0xff]
        %v6535 = vld [vmem:[%s7 + $0x48] sm:$0xff]
        %v6536 = vld [vmem:[%s7 + $0x50] sm:$0xff]
        %v6537 = vld [vmem:[%s7 + $0x58] sm:$0xff]
        %v6538 = vld [vmem:[%s7 + $0x60] sm:$0xff]
        %v6539 = vld [vmem:[%s7 + $0x68] sm:$0xff]
        %v6540 = vld [vmem:[%s7 + $0x70] sm:$0xff]
        %v6541 = vld [vmem:[%s7 + $0x78] sm:$0xff]
        %v6558 = vunpack.c.l.b16 %v6526
        %v6559 = vunpack.c.h.b16 %v6526
        %v6560 = vunpack.c.l.b16 %v6527
        %v6561 = vunpack.c.h.b16 %v6527
        %v6562 = vunpack.c.l.b16 %v6528
        %v6563 = vunpack.c.h.b16 %v6528
        %v6564 = vunpack.c.l.b16 %v6529
        %v6565 = vunpack.c.h.b16 %v6529
        %v6566 = vunpack.c.l.b16 %v6530
        %v6567 = vunpack.c.h.b16 %v6530
        %v6568 = vunpack.c.l.b16 %v6531
        %v6569 = vunpack.c.h.b16 %v6531
        %v6570 = vunpack.c.l.b16 %v6532
        %v6571 = vunpack.c.h.b16 %v6532
        %v6572 = vunpack.c.l.b16 %v6533
        %v6573 = vunpack.c.h.b16 %v6533
        %v6574 = vunpack.c.l.b16 %v6534
        %v6575 = vunpack.c.h.b16 %v6534
        %v6576 = vunpack.c.l.b16 %v6535
        %v6577 = vunpack.c.h.b16 %v6535
        %v6578 = vunpack.c.l.b16 %v6536
        %v6579 = vunpack.c.h.b16 %v6536
        %v6580 = vunpack.c.l.b16 %v6537
        %v6581 = vunpack.c.h.b16 %v6537
        %v6582 = vunpack.c.l.b16 %v6538
        %v6583 = vunpack.c.h.b16 %v6538
        %v6584 = vunpack.c.l.b16 %v6539
        %v6585 = vunpack.c.h.b16 %v6539
        %v6586 = vunpack.c.l.b16 %v6540
        %v6587 = vunpack.c.h.b16 %v6540
        %v6588 = vunpack.c.l.b16 %v6541
        %v6589 = vunpack.c.h.b16 %v6541
        %v6590 = vpack.c.b16 %v6560, %v6558
        %v6591 = vpack.c.b16 %v6561, %v6559
        %v6592 = vpack.c.b16 %v6564, %v6562
        %v6593 = vpack.c.b16 %v6565, %v6563
        %v6594 = vpack.c.b16 %v6568, %v6566
        %v6595 = vpack.c.b16 %v6569, %v6567
        %v6596 = vpack.c.b16 %v6572, %v6570
        %v6597 = vpack.c.b16 %v6573, %v6571
        %v6598 = vpack.c.b16 %v6576, %v6574
        %v6599 = vpack.c.b16 %v6577, %v6575
        %v6600 = vpack.c.b16 %v6580, %v6578
        %v6601 = vpack.c.b16 %v6581, %v6579
        %v6602 = vpack.c.b16 %v6584, %v6582
        %v6603 = vpack.c.b16 %v6585, %v6583
        %v6604 = vpack.c.b16 %v6588, %v6586
        %v6605 = vpack.c.b16 %v6589, %v6587
        %6622 = vmatprep.subr.bf16.mxu0 %v6591
        %6623 = vmatpush1.bf16.msra.mxu0 %v6590
        %6624 = vmatprep.subr.bf16.mxu0 %v6593
        %6625 = vmatpush1.bf16.msra.mxu0 %v6592
        %6626 = vmatprep.subr.bf16.mxu0 %v6595
        %6627 = vmatpush1.bf16.msra.mxu0 %v6594
        %6628 = vmatprep.subr.bf16.mxu0 %v6597
        %6629 = vmatpush1.bf16.msra.mxu0 %v6596
        %6630 = vmatprep.subr.bf16.mxu0 %v6599
        %6631 = vmatpush1.bf16.msra.mxu0 %v6598
        %6632 = vmatprep.subr.bf16.mxu0 %v6601
        %6633 = vmatpush1.bf16.msra.mxu0 %v6600
        %6634 = vmatprep.subr.bf16.mxu0 %v6603
        %6635 = vmatpush1.bf16.msra.mxu0 %v6602
        %6636 = vmatprep.subr.bf16.mxu0 %v6605
        %6637 = vmatpush1.bf16.msra.mxu0 %v6604
        %6638 = vmatprep.subr.bf16.mxu0 0
        %6639 = vmatpush1.bf16.msra.mxu0 0
        %6640 = vmatprep.subr.bf16.mxu0 0
        %6641 = vmatpush1.bf16.msra.mxu0 0
        %6642 = vmatprep.subr.bf16.mxu0 0
        %6643 = vmatpush1.bf16.msra.mxu0 0
        %6644 = vmatprep.subr.bf16.mxu0 0
        %6645 = vmatpush1.bf16.msra.mxu0 0
        %6646 = vmatprep.subr.bf16.mxu0 0
        %6647 = vmatpush1.bf16.msra.mxu0 0
        %6648 = vmatprep.subr.bf16.mxu0 0
        %6649 = vmatpush1.bf16.msra.mxu0 0
        %6650 = vmatprep.subr.bf16.mxu0 0
        %6651 = vmatpush1.bf16.msra.mxu0 0
        %6652 = vmatprep.subr.bf16.mxu0 0
        %6653 = vmatpush1.bf16.msra.mxu0 0
        %6654 = vmatprep.mubr.bf16.mxu0 0
        %6655 = vmatmul.mubr.bf16.gmra.mrb[0].mxu0 %v6525
        %v6656 = vpop.f32.mrb[0].mxu0
        %v6657 = vadd.f32 0.0, %v6656
        %v6658 = vpop.f32.mrb[0].mxu0
        %v6659 = vadd.f32 0.0, %v6658
        %v6660 = vpop.f32.mrb[0].mxu0
        %v6661 = vpop.f32.mrb[0].mxu0
        %6662 = vdwg.mxu0
        %v6665 = vcombine.low %v6657, %v6659
        %v6667 = vunpack.c.l.s4 1966171168
        %v6668 = vunpack.c.0.s8 %v6667
        %v6669 = vlaneseq
        %v6670 = vshrl.u32 %v6669, 7
        %v6671 = vsub.s32 %v6668, %v6670
        %v6672 = vrot.slane %v6665, %v6671
        %v6674 = vunpack.c.l.s4 1966171168
        %v6675 = vunpack.c.0.s8 %v6674
        %v6676 = vlaneseq
        %v6677 = vshrl.u32 %v6676, 7
        %v6678 = vsub.s32 %v6675, %v6677
        %v6679 = vrot.slane %v6672, %v6678
        %v6681 = vadd.f32 %v6524, %v6679
        %s6682 = scalar_lea.vmem %s7, 128
        %v6683 = vld [vmem:[%s6682] sm:$0xff]
        %v6684 = vld [vmem:[%s6682 + $0x8] sm:$0xff]
        %v6685 = vld [vmem:[%s6682 + $0x10] sm:$0xff]
        %v6686 = vld [vmem:[%s6682 + $0x18] sm:$0xff]
        %v6687 = vld [vmem:[%s6682 + $0x20] sm:$0xff]
        %v6688 = vld [vmem:[%s6682 + $0x28] sm:$0xff]
        %v6689 = vld [vmem:[%s6682 + $0x30] sm:$0xff]
        %v6690 = vld [vmem:[%s6682 + $0x38] sm:$0xff]
        %v6691 = vld [vmem:[%s6682 + $0x40] sm:$0xff]
        %v6692 = vld [vmem:[%s6682 + $0x48] sm:$0xff]
        %v6693 = vld [vmem:[%s6682 + $0x50] sm:$0xff]
        %v6694 = vld [vmem:[%s6682 + $0x58] sm:$0xff]
        %v6695 = vld [vmem:[%s6682 + $0x60] sm:$0xff]
        %v6696 = vld [vmem:[%s6682 + $0x68] sm:$0xff]
        %v6697 = vld [vmem:[%s6682 + $0x70] sm:$0xff]
        %v6698 = vld [vmem:[%s6682 + $0x78] sm:$0xff]
        %v6700 = vshrl.u32 %v6525, 16
        %v6719 = vunpack.c.l.b16 %v6683
        %v6720 = vunpack.c.h.b16 %v6683
        %v6721 = vunpack.c.l.b16 %v6684
        %v6722 = vunpack.c.h.b16 %v6684
        %v6723 = vunpack.c.l.b16 %v6685
        %v6724 = vunpack.c.h.b16 %v6685
        %v6725 = vunpack.c.l.b16 %v6686
        %v6726 = vunpack.c.h.b16 %v6686
        %v6727 = vunpack.c.l.b16 %v6687
        %v6728 = vunpack.c.h.b16 %v6687
        %v6729 = vunpack.c.l.b16 %v6688
        %v6730 = vunpack.c.h.b16 %v6688
        %v6731 = vunpack.c.l.b16 %v6689
        %v6732 = vunpack.c.h.b16 %v6689
        %v6733 = vunpack.c.l.b16 %v6690
        %v6734 = vunpack.c.h.b16 %v6690
        %v6735 = vunpack.c.l.b16 %v6691
        %v6736 = vunpack.c.h.b16 %v6691
        %v6737 = vunpack.c.l.b16 %v6692
        %v6738 = vunpack.c.h.b16 %v6692
        %v6739 = vunpack.c.l.b16 %v6693
        %v6740 = vunpack.c.h.b16 %v6693
        %v6741 = vunpack.c.l.b16 %v6694
        %v6742 = vunpack.c.h.b16 %v6694
        %v6743 = vunpack.c.l.b16 %v6695
        %v6744 = vunpack.c.h.b16 %v6695
        %v6745 = vunpack.c.l.b16 %v6696
        %v6746 = vunpack.c.h.b16 %v6696
        %v6747 = vunpack.c.l.b16 %v6697
        %v6748 = vunpack.c.h.b16 %v6697
        %v6749 = vunpack.c.l.b16 %v6698
        %v6750 = vunpack.c.h.b16 %v6698
        %v6751 = vpack.c.b16 %v6721, %v6719
        %v6752 = vpack.c.b16 %v6722, %v6720
        %v6753 = vpack.c.b16 %v6725, %v6723
        %v6754 = vpack.c.b16 %v6726, %v6724
        %v6755 = vpack.c.b16 %v6729, %v6727
        %v6756 = vpack.c.b16 %v6730, %v6728
        %v6757 = vpack.c.b16 %v6733, %v6731
        %v6758 = vpack.c.b16 %v6734, %v6732
        %v6759 = vpack.c.b16 %v6737, %v6735
        %v6760 = vpack.c.b16 %v6738, %v6736
        %v6761 = vpack.c.b16 %v6741, %v6739
        %v6762 = vpack.c.b16 %v6742, %v6740
        %v6763 = vpack.c.b16 %v6745, %v6743
        %v6764 = vpack.c.b16 %v6746, %v6744
        %v6765 = vpack.c.b16 %v6749, %v6747
        %v6766 = vpack.c.b16 %v6750, %v6748
        %6783 = vmatprep.subr.bf16.mxu0 %v6752
        %6784 = vmatpush1.bf16.msra.mxu0 %v6751
        %6785 = vmatprep.subr.bf16.mxu0 %v6754
        %6786 = vmatpush1.bf16.msra.mxu0 %v6753
        %6787 = vmatprep.subr.bf16.mxu0 %v6756
        %6788 = vmatpush1.bf16.msra.mxu0 %v6755
        %6789 = vmatprep.subr.bf16.mxu0 %v6758
        %6790 = vmatpush1.bf16.msra.mxu0 %v6757
        %6791 = vmatprep.subr.bf16.mxu0 %v6760
        %6792 = vmatpush1.bf16.msra.mxu0 %v6759
        %6793 = vmatprep.subr.bf16.mxu0 %v6762
        %6794 = vmatpush1.bf16.msra.mxu0 %v6761
        %6795 = vmatprep.subr.bf16.mxu0 %v6764
        %6796 = vmatpush1.bf16.msra.mxu0 %v6763
        %6797 = vmatprep.subr.bf16.mxu0 %v6766
        %6798 = vmatpush1.bf16.msra.mxu0 %v6765
        %6799 = vmatprep.subr.bf16.mxu0 0
        %6800 = vmatpush1.bf16.msra.mxu0 0
        %6801 = vmatprep.subr.bf16.mxu0 0
        %6802 = vmatpush1.bf16.msra.mxu0 0
        %6803 = vmatprep.subr.bf16.mxu0 0
        %6804 = vmatpush1.bf16.msra.mxu0 0
        %6805 = vmatprep.subr.bf16.mxu0 0
        %6806 = vmatpush1.bf16.msra.mxu0 0
        %6807 = vmatprep.subr.bf16.mxu0 0
        %6808 = vmatpush1.bf16.msra.mxu0 0
        %6809 = vmatprep.subr.bf16.mxu0 0
        %6810 = vmatpush1.bf16.msra.mxu0 0
        %6811 = vmatprep.subr.bf16.mxu0 0
        %6812 = vmatpush1.bf16.msra.mxu0 0
        %6813 = vmatprep.subr.bf16.mxu0 0
        %6814 = vmatpush1.bf16.msra.mxu0 0
        %6815 = vmatprep.mubr.bf16.mxu0 0
        %6816 = vmatmul.mubr.bf16.gmra.mrb[0].mxu0 %v6700
        %v6817 = vpop.f32.mrb[0].mxu0
        %v6818 = vadd.f32 0.0, %v6817
        %v6819 = vpop.f32.mrb[0].mxu0
        %v6820 = vadd.f32 0.0, %v6819
        %v6821 = vpop.f32.mrb[0].mxu0
        %v6822 = vpop.f32.mrb[0].mxu0
        %6823 = vdwg.mxu0
        %v6826 = vcombine.low %v6818, %v6820
        %v6828 = vunpack.c.l.s4 1966171168
        %v6829 = vunpack.c.0.s8 %v6828
        %v6830 = vlaneseq
        %v6831 = vshrl.u32 %v6830, 7
        %v6832 = vsub.s32 %v6829, %v6831
        %v6833 = vrot.slane %v6826, %v6832
        %v6835 = vunpack.c.l.s4 1966171168
        %v6836 = vunpack.c.0.s8 %v6835
        %v6837 = vlaneseq
        %v6838 = vshrl.u32 %v6837, 7
        %v6839 = vsub.s32 %v6836, %v6838
        %v6840 = vrot.slane %v6833, %v6839
        %v6842 = vadd.f32 %v6681, %v6840
        %s6843 = scalar_lea.vmem %s7, 256
        %v6844 = vld [vmem:[%s6843] sm:$0xff]
        %v6845 = vld [vmem:[%s6843 + $0x8] sm:$0xff]
        %v6846 = vld [vmem:[%s6843 + $0x10] sm:$0xff]
        %v6847 = vld [vmem:[%s6843 + $0x18] sm:$0xff]
        %v6848 = vld [vmem:[%s6843 + $0x20] sm:$0xff]
        %v6849 = vld [vmem:[%s6843 + $0x28] sm:$0xff]
        %v6850 = vld [vmem:[%s6843 + $0x30] sm:$0xff]
        %v6851 = vld [vmem:[%s6843 + $0x38] sm:$0xff]
        %v6852 = vld [vmem:[%s6843 + $0x40] sm:$0xff]
        %v6853 = vld [vmem:[%s6843 + $0x48] sm:$0xff]
        %v6854 = vld [vmem:[%s6843 + $0x50] sm:$0xff]
        %v6855 = vld [vmem:[%s6843 + $0x58] sm:$0xff]
        %v6856 = vld [vmem:[%s6843 + $0x60] sm:$0xff]
        %v6857 = vld [vmem:[%s6843 + $0x68] sm:$0xff]
        %v6858 = vld [vmem:[%s6843 + $0x70] sm:$0xff]
        %v6859 = vld [vmem:[%s6843 + $0x78] sm:$0xff]
        %v6861 = vrot.slane %v6525, 1
        %v6879 = vunpack.c.l.b16 %v6844
        %v6880 = vunpack.c.h.b16 %v6844
        %v6881 = vunpack.c.l.b16 %v6845
        %v6882 = vunpack.c.h.b16 %v6845
        %v6883 = vunpack.c.l.b16 %v6846
        %v6884 = vunpack.c.h.b16 %v6846
        %v6885 = vunpack.c.l.b16 %v6847
        %v6886 = vunpack.c.h.b16 %v6847
        %v6887 = vunpack.c.l.b16 %v6848
        %v6888 = vunpack.c.h.b16 %v6848
        %v6889 = vunpack.c.l.b16 %v6849
        %v6890 = vunpack.c.h.b16 %v6849
        %v6891 = vunpack.c.l.b16 %v6850
        %v6892 = vunpack.c.h.b16 %v6850
        %v6893 = vunpack.c.l.b16 %v6851
        %v6894 = vunpack.c.h.b16 %v6851
        %v6895 = vunpack.c.l.b16 %v6852
        %v6896 = vunpack.c.h.b16 %v6852
        %v6897 = vunpack.c.l.b16 %v6853
        %v6898 = vunpack.c.h.b16 %v6853
        %v6899 = vunpack.c.l.b16 %v6854
        %v6900 = vunpack.c.h.b16 %v6854
        %v6901 = vunpack.c.l.b16 %v6855
        %v6902 = vunpack.c.h.b16 %v6855
        %v6903 = vunpack.c.l.b16 %v6856
        %v6904 = vunpack.c.h.b16 %v6856
        %v6905 = vunpack.c.l.b16 %v6857
        %v6906 = vunpack.c.h.b16 %v6857
        %v6907 = vunpack.c.l.b16 %v6858
        %v6908 = vunpack.c.h.b16 %v6858
        %v6909 = vunpack.c.l.b16 %v6859
        %v6910 = vunpack.c.h.b16 %v6859
        %v6911 = vpack.c.b16 %v6881, %v6879
        %v6912 = vpack.c.b16 %v6882, %v6880
        %v6913 = vpack.c.b16 %v6885, %v6883
        %v6914 = vpack.c.b16 %v6886, %v6884
        %v6915 = vpack.c.b16 %v6889, %v6887
        %v6916 = vpack.c.b16 %v6890, %v6888
        %v6917 = vpack.c.b16 %v6893, %v6891
        %v6918 = vpack.c.b16 %v6894, %v6892
        %v6919 = vpack.c.b16 %v6897, %v6895
        %v6920 = vpack.c.b16 %v6898, %v6896
        %v6921 = vpack.c.b16 %v6901, %v6899
        %v6922 = vpack.c.b16 %v6902, %v6900
        %v6923 = vpack.c.b16 %v6905, %v6903
        %v6924 = vpack.c.b16 %v6906, %v6904
        %v6925 = vpack.c.b16 %v6909, %v6907
        %v6926 = vpack.c.b16 %v6910, %v6908
        %6943 = vmatprep.subr.bf16.mxu0 %v6912
        %6944 = vmatpush1.bf16.msra.mxu0 %v6911
        %6945 = vmatprep.subr.bf16.mxu0 %v6914
        %6946 = vmatpush1.bf16.msra.mxu0 %v6913
        %6947 = vmatprep.subr.bf16.mxu0 %v6916
        %6948 = vmatpush1.bf16.msra.mxu0 %v6915
        %6949 = vmatprep.subr.bf16.mxu0 %v6918
        %6950 = vmatpush1.bf16.msra.mxu0 %v6917
        %6951 = vmatprep.subr.bf16.mxu0 %v6920
        %6952 = vmatpush1.bf16.msra.mxu0 %v6919
        %6953 = vmatprep.subr.bf16.mxu0 %v6922
        %6954 = vmatpush1.bf16.msra.mxu0 %v6921
        %6955 = vmatprep.subr.bf16.mxu0 %v6924
        %6956 = vmatpush1.bf16.msra.mxu0 %v6923
        %6957 = vmatprep.subr.bf16.mxu0 %v6926
        %6958 = vmatpush1.bf16.msra.mxu0 %v6925
        %6959 = vmatprep.subr.bf16.mxu0 0
        %6960 = vmatpush1.bf16.msra.mxu0 0
        %6961 = vmatprep.subr.bf16.mxu0 0
        %6962 = vmatpush1.bf16.msra.mxu0 0
        %6963 = vmatprep.subr.bf16.mxu0 0
        %6964 = vmatpush1.bf16.msra.mxu0 0
        %6965 = vmatprep.subr.bf16.mxu0 0
        %6966 = vmatpush1.bf16.msra.mxu0 0
        %6967 = vmatprep.subr.bf16.mxu0 0
        %6968 = vmatpush1.bf16.msra.mxu0 0
        %6969 = vmatprep.subr.bf16.mxu0 0
        %6970 = vmatpush1.bf16.msra.mxu0 0
        %6971 = vmatprep.subr.bf16.mxu0 0
        %6972 = vmatpush1.bf16.msra.mxu0 0
        %6973 = vmatprep.subr.bf16.mxu0 0
        %6974 = vmatpush1.bf16.msra.mxu0 0
        %6975 = vmatprep.mubr.bf16.mxu0 0
        %6976 = vmatmul.mubr.bf16.gmra.mrb[0].mxu0 %v6861
        %v6977 = vpop.f32.mrb[0].mxu0
        %v6978 = vadd.f32 0.0, %v6977
        %v6979 = vpop.f32.mrb[0].mxu0
        %v6980 = vadd.f32 0.0, %v6979
        %v6981 = vpop.f32.mrb[0].mxu0
        %v6982 = vpop.f32.mrb[0].mxu0
        %6983 = vdwg.mxu0
        %v6986 = vcombine.low %v6978, %v6980
        %v6988 = vunpack.c.l.s4 1966171168
        %v6989 = vunpack.c.0.s8 %v6988
        %v6990 = vlaneseq
        %v6991 = vshrl.u32 %v6990, 7
        %v6992 = vsub.s32 %v6989, %v6991
        %v6993 = vrot.slane %v6986, %v6992
        %v6995 = vunpack.c.l.s4 1966171168
        %v6996 = vunpack.c.0.s8 %v6995
        %v6997 = vlaneseq
        %v6998 = vshrl.u32 %v6997, 7
        %v6999 = vsub.s32 %v6996, %v6998
        %v7000 = vrot.slane %v6993, %v6999
        %v7002 = vadd.f32 %v6842, %v7000
        %s7003 = scalar_lea.vmem %s7, 384
        %v7004 = vld [vmem:[%s7003] sm:$0xff]
        %v7005 = vld [vmem:[%s7003 + $0x8] sm:$0xff]
        %v7006 = vld [vmem:[%s7003 + $0x10] sm:$0xff]
        %v7007 = vld [vmem:[%s7003 + $0x18] sm:$0xff]
        %v7008 = vld [vmem:[%s7003 + $0x20] sm:$0xff]
        %v7009 = vld [vmem:[%s7003 + $0x28] sm:$0xff]
        %v7010 = vld [vmem:[%s7003 + $0x30] sm:$0xff]
        %v7011 = vld [vmem:[%s7003 + $0x38] sm:$0xff]
        %v7012 = vld [vmem:[%s7003 + $0x40] sm:$0xff]
        %v7013 = vld [vmem:[%s7003 + $0x48] sm:$0xff]
        %v7014 = vld [vmem:[%s7003 + $0x50] sm:$0xff]
        %v7015 = vld [vmem:[%s7003 + $0x58] sm:$0xff]
        %v7016 = vld [vmem:[%s7003 + $0x60] sm:$0xff]
        %v7017 = vld [vmem:[%s7003 + $0x68] sm:$0xff]
        %v7018 = vld [vmem:[%s7003 + $0x70] sm:$0xff]
        %v7019 = vld [vmem:[%s7003 + $0x78] sm:$0xff]
        %v7020 = vrot.slane %v6700, 1
        %v7038 = vunpack.c.l.b16 %v7004
        %v7039 = vunpack.c.h.b16 %v7004
        %v7040 = vunpack.c.l.b16 %v7005
        %v7041 = vunpack.c.h.b16 %v7005
        %v7042 = vunpack.c.l.b16 %v7006
        %v7043 = vunpack.c.h.b16 %v7006
        %v7044 = vunpack.c.l.b16 %v7007
        %v7045 = vunpack.c.h.b16 %v7007
        %v7046 = vunpack.c.l.b16 %v7008
        %v7047 = vunpack.c.h.b16 %v7008
        %v7048 = vunpack.c.l.b16 %v7009
        %v7049 = vunpack.c.h.b16 %v7009
        %v7050 = vunpack.c.l.b16 %v7010
        %v7051 = vunpack.c.h.b16 %v7010
        %v7052 = vunpack.c.l.b16 %v7011
        %v7053 = vunpack.c.h.b16 %v7011
        %v7054 = vunpack.c.l.b16 %v7012
        %v7055 = vunpack.c.h.b16 %v7012
        %v7056 = vunpack.c.l.b16 %v7013
        %v7057 = vunpack.c.h.b16 %v7013
        %v7058 = vunpack.c.l.b16 %v7014
        %v7059 = vunpack.c.h.b16 %v7014
        %v7060 = vunpack.c.l.b16 %v7015
        %v7061 = vunpack.c.h.b16 %v7015
        %v7062 = vunpack.c.l.b16 %v7016
        %v7063 = vunpack.c.h.b16 %v7016
        %v7064 = vunpack.c.l.b16 %v7017
        %v7065 = vunpack.c.h.b16 %v7017
        %v7066 = vunpack.c.l.b16 %v7018
        %v7067 = vunpack.c.h.b16 %v7018
        %v7068 = vunpack.c.l.b16 %v7019
        %v7069 = vunpack.c.h.b16 %v7019
        %v7070 = vpack.c.b16 %v7040, %v7038
        %v7071 = vpack.c.b16 %v7041, %v7039
        %v7072 = vpack.c.b16 %v7044, %v7042
        %v7073 = vpack.c.b16 %v7045, %v7043
        %v7074 = vpack.c.b16 %v7048, %v7046
        %v7075 = vpack.c.b16 %v7049, %v7047
        %v7076 = vpack.c.b16 %v7052, %v7050
        %v7077 = vpack.c.b16 %v7053, %v7051
        %v7078 = vpack.c.b16 %v7056, %v7054
        %v7079 = vpack.c.b16 %v7057, %v7055
        %v7080 = vpack.c.b16 %v7060, %v7058
        %v7081 = vpack.c.b16 %v7061, %v7059
        %v7082 = vpack.c.b16 %v7064, %v7062
        %v7083 = vpack.c.b16 %v7065, %v7063
        %v7084 = vpack.c.b16 %v7068, %v7066
        %v7085 = vpack.c.b16 %v7069, %v7067
        %7102 = vmatprep.subr.bf16.mxu0 %v7071
        %7103 = vmatpush1.bf16.msra.mxu0 %v7070
        %7104 = vmatprep.subr.bf16.mxu0 %v7073
        %7105 = vmatpush1.bf16.msra.mxu0 %v7072
        %7106 = vmatprep.subr.bf16.mxu0 %v7075
        %7107 = vmatpush1.bf16.msra.mxu0 %v7074
        %7108 = vmatprep.subr.bf16.mxu0 %v7077
        %7109 = vmatpush1.bf16.msra.mxu0 %v7076
        %7110 = vmatprep.subr.bf16.mxu0 %v7079
        %7111 = vmatpush1.bf16.msra.mxu0 %v7078
        %7112 = vmatprep.subr.bf16.mxu0 %v7081
        %7113 = vmatpush1.bf16.msra.mxu0 %v7080
        %7114 = vmatprep.subr.bf16.mxu0 %v7083
        %7115 = vmatpush1.bf16.msra.mxu0 %v7082
        %7116 = vmatprep.subr.bf16.mxu0 %v7085
        %7117 = vmatpush1.bf16.msra.mxu0 %v7084
        %7118 = vmatprep.subr.bf16.mxu0 0
        %7119 = vmatpush1.bf16.msra.mxu0 0
        %7120 = vmatprep.subr.bf16.mxu0 0
        %7121 = vmatpush1.bf16.msra.mxu0 0
        %7122 = vmatprep.subr.bf16.mxu0 0
        %7123 = vmatpush1.bf16.msra.mxu0 0
        %7124 = vmatprep.subr.bf16.mxu0 0
        %7125 = vmatpush1.bf16.msra.mxu0 0
        %7126 = vmatprep.subr.bf16.mxu0 0
        %7127 = vmatpush1.bf16.msra.mxu0 0
        %7128 = vmatprep.subr.bf16.mxu0 0
        %7129 = vmatpush1.bf16.msra.mxu0 0
        %7130 = vmatprep.subr.bf16.mxu0 0
        %7131 = vmatpush1.bf16.msra.mxu0 0
        %7132 = vmatprep.subr.bf16.mxu0 0
        %7133 = vmatpush1.bf16.msra.mxu0 0
        %7134 = vmatprep.mubr.bf16.mxu0 0
        %7135 = vmatmul.mubr.bf16.gmra.mrb[0].mxu0 %v7020
        %v7136 = vpop.f32.mrb[0].mxu0
        %v7137 = vadd.f32 0.0, %v7136
        %v7138 = vpop.f32.mrb[0].mxu0
        %v7139 = vadd.f32 0.0, %v7138
        %v7140 = vpop.f32.mrb[0].mxu0
        %v7141 = vpop.f32.mrb[0].mxu0
        %7142 = vdwg.mxu0
        %v7145 = vcombine.low %v7137, %v7139
        %v7147 = vunpack.c.l.s4 1966171168
        %v7148 = vunpack.c.0.s8 %v7147
        %v7149 = vlaneseq
        %v7150 = vshrl.u32 %v7149, 7
        %v7151 = vsub.s32 %v7148, %v7150
        %v7152 = vrot.slane %v7145, %v7151
        %v7154 = vunpack.c.l.s4 1966171168
        %v7155 = vunpack.c.0.s8 %v7154
        %v7156 = vlaneseq
        %v7157 = vshrl.u32 %v7156, 7
        %v7158 = vsub.s32 %v7155, %v7157
        %v7159 = vrot.slane %v7152, %v7158
        %v7161 = vadd.f32 %v7002, %v7159
        %v7162 = vpack.c.bf16 %v6517, %v6517
        %s7163 = scalar_lea.vmem %s7, 512
        %v7164 = vld [vmem:[%s7163] sm:$0xff]
        %v7165 = vld [vmem:[%s7163 + $0x8] sm:$0xff]
        %v7166 = vld [vmem:[%s7163 + $0x10] sm:$0xff]
        %v7167 = vld [vmem:[%s7163 + $0x18] sm:$0xff]
        %v7168 = vld [vmem:[%s7163 + $0x20] sm:$0xff]
        %v7169 = vld [vmem:[%s7163 + $0x28] sm:$0xff]
        %v7170 = vld [vmem:[%s7163 + $0x30] sm:$0xff]
        %v7171 = vld [vmem:[%s7163 + $0x38] sm:$0xff]
        %v7172 = vld [vmem:[%s7163 + $0x40] sm:$0xff]
        %v7173 = vld [vmem:[%s7163 + $0x48] sm:$0xff]
        %v7174 = vld [vmem:[%s7163 + $0x50] sm:$0xff]
        %v7175 = vld [vmem:[%s7163 + $0x58] sm:$0xff]
        %v7176 = vld [vmem:[%s7163 + $0x60] sm:$0xff]
        %v7177 = vld [vmem:[%s7163 + $0x68] sm:$0xff]
        %v7178 = vld [vmem:[%s7163 + $0x70] sm:$0xff]
        %v7179 = vld [vmem:[%s7163 + $0x78] sm:$0xff]
        %v7196 = vunpack.c.l.b16 %v7164
        %v7197 = vunpack.c.h.b16 %v7164
        %v7198 = vunpack.c.l.b16 %v7165
        %v7199 = vunpack.c.h.b16 %v7165
        %v7200 = vunpack.c.l.b16 %v7166
        %v7201 = vunpack.c.h.b16 %v7166
        %v7202 = vunpack.c.l.b16 %v7167
        %v7203 = vunpack.c.h.b16 %v7167
        %v7204 = vunpack.c.l.b16 %v7168
        %v7205 = vunpack.c.h.b16 %v7168
        %v7206 = vunpack.c.l.b16 %v7169
        %v7207 = vunpack.c.h.b16 %v7169
        %v7208 = vunpack.c.l.b16 %v7170
        %v7209 = vunpack.c.h.b16 %v7170
        %v7210 = vunpack.c.l.b16 %v7171
        %v7211 = vunpack.c.h.b16 %v7171
        %v7212 = vunpack.c.l.b16 %v7172
        %v7213 = vunpack.c.h.b16 %v7172
        %v7214 = vunpack.c.l.b16 %v7173
        %v7215 = vunpack.c.h.b16 %v7173
        %v7216 = vunpack.c.l.b16 %v7174
        %v7217 = vunpack.c.h.b16 %v7174
        %v7218 = vunpack.c.l.b16 %v7175
        %v7219 = vunpack.c.h.b16 %v7175
        %v7220 = vunpack.c.l.b16 %v7176
        %v7221 = vunpack.c.h.b16 %v7176
        %v7222 = vunpack.c.l.b16 %v7177
        %v7223 = vunpack.c.h.b16 %v7177
        %v7224 = vunpack.c.l.b16 %v7178
        %v7225 = vunpack.c.h.b16 %v7178
        %v7226 = vunpack.c.l.b16 %v7179
        %v7227 = vunpack.c.h.b16 %v7179
        %v7228 = vpack.c.b16 %v7198, %v7196
        %v7229 = vpack.c.b16 %v7199, %v7197
        %v7230 = vpack.c.b16 %v7202, %v7200
        %v7231 = vpack.c.b16 %v7203, %v7201
        %v7232 = vpack.c.b16 %v7206, %v7204
        %v7233 = vpack.c.b16 %v7207, %v7205
        %v7234 = vpack.c.b16 %v7210, %v7208
        %v7235 = vpack.c.b16 %v7211, %v7209
        %v7236 = vpack.c.b16 %v7214, %v7212
        %v7237 = vpack.c.b16 %v7215, %v7213
        %v7238 = vpack.c.b16 %v7218, %v7216
        %v7239 = vpack.c.b16 %v7219, %v7217
        %v7240 = vpack.c.b16 %v7222, %v7220
        %v7241 = vpack.c.b16 %v7223, %v7221
        %v7242 = vpack.c.b16 %v7226, %v7224
        %v7243 = vpack.c.b16 %v7227, %v7225
        %7260 = vmatprep.subr.bf16.mxu0 %v7229
        %7261 = vmatpush1.bf16.msra.mxu0 %v7228
        %7262 = vmatprep.subr.bf16.mxu0 %v7231
        %7263 = vmatpush1.bf16.msra.mxu0 %v7230
        %7264 = vmatprep.subr.bf16.mxu0 %v7233
        %7265 = vmatpush1.bf16.msra.mxu0 %v7232
        %7266 = vmatprep.subr.bf16.mxu0 %v7235
        %7267 = vmatpush1.bf16.msra.mxu0 %v7234
        %7268 = vmatprep.subr.bf16.mxu0 %v7237
        %7269 = vmatpush1.bf16.msra.mxu0 %v7236
        %7270 = vmatprep.subr.bf16.mxu0 %v7239
        %7271 = vmatpush1.bf16.msra.mxu0 %v7238
        %7272 = vmatprep.subr.bf16.mxu0 %v7241
        %7273 = vmatpush1.bf16.msra.mxu0 %v7240
        %7274 = vmatprep.subr.bf16.mxu0 %v7243
        %7275 = vmatpush1.bf16.msra.mxu0 %v7242
        %7276 = vmatprep.subr.bf16.mxu0 0
        %7277 = vmatpush1.bf16.msra.mxu0 0
        %7278 = vmatprep.subr.bf16.mxu0 0
        %7279 = vmatpush1.bf16.msra.mxu0 0
        %7280 = vmatprep.subr.bf16.mxu0 0
        %7281 = vmatpush1.bf16.msra.mxu0 0
        %7282 = vmatprep.subr.bf16.mxu0 0
        %7283 = vmatpush1.bf16.msra.mxu0 0
        %7284 = vmatprep.subr.bf16.mxu0 0
        %7285 = vmatpush1.bf16.msra.mxu0 0
        %7286 = vmatprep.subr.bf16.mxu0 0
        %7287 = vmatpush1.bf16.msra.mxu0 0
        %7288 = vmatprep.subr.bf16.mxu0 0
        %7289 = vmatpush1.bf16.msra.mxu0 0
        %7290 = vmatprep.subr.bf16.mxu0 0
        %7291 = vmatpush1.bf16.msra.mxu0 0
        %7292 = vmatprep.mubr.bf16.mxu0 0
        %7293 = vmatmul.mubr.bf16.gmra.mrb[0].mxu0 %v7162
        %v7294 = vpop.f32.mrb[0].mxu0
        %v7295 = vadd.f32 0.0, %v7294
        %v7296 = vpop.f32.mrb[0].mxu0
        %v7297 = vadd.f32 0.0, %v7296
        %v7298 = vpop.f32.mrb[0].mxu0
        %v7299 = vpop.f32.mrb[0].mxu0
        %7300 = vdwg.mxu0
        %v7303 = vcombine.low %v7295, %v7297
        %v7305 = vunpack.c.l.s4 1966171168
        %v7306 = vunpack.c.0.s8 %v7305
        %v7307 = vlaneseq
        %v7308 = vshrl.u32 %v7307, 7
        %v7309 = vsub.s32 %v7306, %v7308
        %v7310 = vrot.slane %v7303, %v7309
        %v7312 = vunpack.c.l.s4 1966171168
        %v7313 = vunpack.c.0.s8 %v7312
        %v7314 = vlaneseq
        %v7315 = vshrl.u32 %v7314, 7
        %v7316 = vsub.s32 %v7313, %v7315
        %v7317 = vrot.slane %v7310, %v7316
        %v7319 = vadd.f32 %v7161, %v7317
        %s7320 = scalar_lea.vmem %s7, 640
        %v7321 = vld [vmem:[%s7320] sm:$0xff]
        %v7322 = vld [vmem:[%s7320 + $0x8] sm:$0xff]
        %v7323 = vld [vmem:[%s7320 + $0x10] sm:$0xff]
        %v7324 = vld [vmem:[%s7320 + $0x18] sm:$0xff]
        %v7325 = vld [vmem:[%s7320 + $0x20] sm:$0xff]
        %v7326 = vld [vmem:[%s7320 + $0x28] sm:$0xff]
        %v7327 = vld [vmem:[%s7320 + $0x30] sm:$0xff]
        %v7328 = vld [vmem:[%s7320 + $0x38] sm:$0xff]
        %v7329 = vld [vmem:[%s7320 + $0x40] sm:$0xff]
        %v7330 = vld [vmem:[%s7320 + $0x48] sm:$0xff]
        %v7331 = vld [vmem:[%s7320 + $0x50] sm:$0xff]
        %v7332 = vld [vmem:[%s7320 + $0x58] sm:$0xff]
        %v7333 = vld [vmem:[%s7320 + $0x60] sm:$0xff]
        %v7334 = vld [vmem:[%s7320 + $0x68] sm:$0xff]
        %v7335 = vld [vmem:[%s7320 + $0x70] sm:$0xff]
        %v7336 = vld [vmem:[%s7320 + $0x78] sm:$0xff]
        %v7338 = vshrl.u32 %v7162, 16
        %v7357 = vunpack.c.l.b16 %v7321
        %v7358 = vunpack.c.h.b16 %v7321
        %v7359 = vunpack.c.l.b16 %v7322
        %v7360 = vunpack.c.h.b16 %v7322
        %v7361 = vunpack.c.l.b16 %v7323
        %v7362 = vunpack.c.h.b16 %v7323
        %v7363 = vunpack.c.l.b16 %v7324
        %v7364 = vunpack.c.h.b16 %v7324
        %v7365 = vunpack.c.l.b16 %v7325
        %v7366 = vunpack.c.h.b16 %v7325
        %v7367 = vunpack.c.l.b16 %v7326
        %v7368 = vunpack.c.h.b16 %v7326
        %v7369 = vunpack.c.l.b16 %v7327
        %v7370 = vunpack.c.h.b16 %v7327
        %v7371 = vunpack.c.l.b16 %v7328
        %v7372 = vunpack.c.h.b16 %v7328
        %v7373 = vunpack.c.l.b16 %v7329
        %v7374 = vunpack.c.h.b16 %v7329
        %v7375 = vunpack.c.l.b16 %v7330
        %v7376 = vunpack.c.h.b16 %v7330
        %v7377 = vunpack.c.l.b16 %v7331
        %v7378 = vunpack.c.h.b16 %v7331
        %v7379 = vunpack.c.l.b16 %v7332
        %v7380 = vunpack.c.h.b16 %v7332
        %v7381 = vunpack.c.l.b16 %v7333
        %v7382 = vunpack.c.h.b16 %v7333
        %v7383 = vunpack.c.l.b16 %v7334
        %v7384 = vunpack.c.h.b16 %v7334
        %v7385 = vunpack.c.l.b16 %v7335
        %v7386 = vunpack.c.h.b16 %v7335
        %v7387 = vunpack.c.l.b16 %v7336
        %v7388 = vunpack.c.h.b16 %v7336
        %v7389 = vpack.c.b16 %v7359, %v7357
        %v7390 = vpack.c.b16 %v7360, %v7358
        %v7391 = vpack.c.b16 %v7363, %v7361
        %v7392 = vpack.c.b16 %v7364, %v7362
        %v7393 = vpack.c.b16 %v7367, %v7365
        %v7394 = vpack.c.b16 %v7368, %v7366
        %v7395 = vpack.c.b16 %v7371, %v7369
        %v7396 = vpack.c.b16 %v7372, %v7370
        %v7397 = vpack.c.b16 %v7375, %v7373
        %v7398 = vpack.c.b16 %v7376, %v7374
        %v7399 = vpack.c.b16 %v7379, %v7377
        %v7400 = vpack.c.b16 %v7380, %v7378
        %v7401 = vpack.c.b16 %v7383, %v7381
        %v7402 = vpack.c.b16 %v7384, %v7382
        %v7403 = vpack.c.b16 %v7387, %v7385
        %v7404 = vpack.c.b16 %v7388, %v7386
        %7421 = vmatprep.subr.bf16.mxu0 %v7390
        %7422 = vmatpush1.bf16.msra.mxu0 %v7389
        %7423 = vmatprep.subr.bf16.mxu0 %v7392
        %7424 = vmatpush1.bf16.msra.mxu0 %v7391
        %7425 = vmatprep.subr.bf16.mxu0 %v7394
        %7426 = vmatpush1.bf16.msra.mxu0 %v7393
        %7427 = vmatprep.subr.bf16.mxu0 %v7396
        %7428 = vmatpush1.bf16.msra.mxu0 %v7395
        %7429 = vmatprep.subr.bf16.mxu0 %v7398
        %7430 = vmatpush1.bf16.msra.mxu0 %v7397
        %7431 = vmatprep.subr.bf16.mxu0 %v7400
        %7432 = vmatpush1.bf16.msra.mxu0 %v7399
        %7433 = vmatprep.subr.bf16.mxu0 %v7402
        %7434 = vmatpush1.bf16.msra.mxu0 %v7401
        %7435 = vmatprep.subr.bf16.mxu0 %v7404
        %7436 = vmatpush1.bf16.msra.mxu0 %v7403
        %7437 = vmatprep.subr.bf16.mxu0 0
        %7438 = vmatpush1.bf16.msra.mxu0 0
        %7439 = vmatprep.subr.bf16.mxu0 0
        %7440 = vmatpush1.bf16.msra.mxu0 0
        %7441 = vmatprep.subr.bf16.mxu0 0
        %7442 = vmatpush1.bf16.msra.mxu0 0
        %7443 = vmatprep.subr.bf16.mxu0 0
        %7444 = vmatpush1.bf16.msra.mxu0 0
        %7445 = vmatprep.subr.bf16.mxu0 0
        %7446 = vmatpush1.bf16.msra.mxu0 0
        %7447 = vmatprep.subr.bf16.mxu0 0
        %7448 = vmatpush1.bf16.msra.mxu0 0
        %7449 = vmatprep.subr.bf16.mxu0 0
        %7450 = vmatpush1.bf16.msra.mxu0 0
        %7451 = vmatprep.subr.bf16.mxu0 0
        %7452 = vmatpush1.bf16.msra.mxu0 0
        %7453 = vmatprep.mubr.bf16.mxu0 0
        %7454 = vmatmul.mubr.bf16.gmra.mrb[0].mxu0 %v7338
        %v7455 = vpop.f32.mrb[0].mxu0
        %v7456 = vadd.f32 0.0, %v7455
        %v7457 = vpop.f32.mrb[0].mxu0
        %v7458 = vadd.f32 0.0, %v7457
        %v7459 = vpop.f32.mrb[0].mxu0
        %v7460 = vpop.f32.mrb[0].mxu0
        %7461 = vdwg.mxu0
        %v7464 = vcombine.low %v7456, %v7458
        %v7466 = vunpack.c.l.s4 1966171168
        %v7467 = vunpack.c.0.s8 %v7466
        %v7468 = vlaneseq
        %v7469 = vshrl.u32 %v7468, 7
        %v7470 = vsub.s32 %v7467, %v7469
        %v7471 = vrot.slane %v7464, %v7470
        %v7473 = vunpack.c.l.s4 1966171168
        %v7474 = vunpack.c.0.s8 %v7473
        %v7475 = vlaneseq
        %v7476 = vshrl.u32 %v7475, 7
        %v7477 = vsub.s32 %v7474, %v7476
        %v7478 = vrot.slane %v7471, %v7477
        %v7480 = vadd.f32 %v7319, %v7478
        %s7481 = scalar_lea.vmem %s7, 768
        %v7482 = vld [vmem:[%s7481] sm:$0xff]
        %v7483 = vld [vmem:[%s7481 + $0x8] sm:$0xff]
        %v7484 = vld [vmem:[%s7481 + $0x10] sm:$0xff]
        %v7485 = vld [vmem:[%s7481 + $0x18] sm:$0xff]
        %v7486 = vld [vmem:[%s7481 + $0x20] sm:$0xff]
        %v7487 = vld [vmem:[%s7481 + $0x28] sm:$0xff]
        %v7488 = vld [vmem:[%s7481 + $0x30] sm:$0xff]
        %v7489 = vld [vmem:[%s7481 + $0x38] sm:$0xff]
        %v7490 = vld [vmem:[%s7481 + $0x40] sm:$0xff]
        %v7491 = vld [vmem:[%s7481 + $0x48] sm:$0xff]
        %v7492 = vld [vmem:[%s7481 + $0x50] sm:$0xff]
        %v7493 = vld [vmem:[%s7481 + $0x58] sm:$0xff]
        %v7494 = vld [vmem:[%s7481 + $0x60] sm:$0xff]
        %v7495 = vld [vmem:[%s7481 + $0x68] sm:$0xff]
        %v7496 = vld [vmem:[%s7481 + $0x70] sm:$0xff]
        %v7497 = vld [vmem:[%s7481 + $0x78] sm:$0xff]
        %v7499 = vrot.slane %v7162, 1
        %v7517 = vunpack.c.l.b16 %v7482
        %v7518 = vunpack.c.h.b16 %v7482
        %v7519 = vunpack.c.l.b16 %v7483
        %v7520 = vunpack.c.h.b16 %v7483
        %v7521 = vunpack.c.l.b16 %v7484
        %v7522 = vunpack.c.h.b16 %v7484
        %v7523 = vunpack.c.l.b16 %v7485
        %v7524 = vunpack.c.h.b16 %v7485
        %v7525 = vunpack.c.l.b16 %v7486
        %v7526 = vunpack.c.h.b16 %v7486
        %v7527 = vunpack.c.l.b16 %v7487
        %v7528 = vunpack.c.h.b16 %v7487
        %v7529 = vunpack.c.l.b16 %v7488
        %v7530 = vunpack.c.h.b16 %v7488
        %v7531 = vunpack.c.l.b16 %v7489
        %v7532 = vunpack.c.h.b16 %v7489
        %v7533 = vunpack.c.l.b16 %v7490
        %v7534 = vunpack.c.h.b16 %v7490
        %v7535 = vunpack.c.l.b16 %v7491
        %v7536 = vunpack.c.h.b16 %v7491
        %v7537 = vunpack.c.l.b16 %v7492
        %v7538 = vunpack.c.h.b16 %v7492
        %v7539 = vunpack.c.l.b16 %v7493
        %v7540 = vunpack.c.h.b16 %v7493
        %v7541 = vunpack.c.l.b16 %v7494
        %v7542 = vunpack.c.h.b16 %v7494
        %v7543 = vunpack.c.l.b16 %v7495
        %v7544 = vunpack.c.h.b16 %v7495
        %v7545 = vunpack.c.l.b16 %v7496
        %v7546 = vunpack.c.h.b16 %v7496
        %v7547 = vunpack.c.l.b16 %v7497
        %v7548 = vunpack.c.h.b16 %v7497
        %v7549 = vpack.c.b16 %v7519, %v7517
        %v7550 = vpack.c.b16 %v7520, %v7518
        %v7551 = vpack.c.b16 %v7523, %v7521
        %v7552 = vpack.c.b16 %v7524, %v7522
        %v7553 = vpack.c.b16 %v7527, %v7525
        %v7554 = vpack.c.b16 %v7528, %v7526
        %v7555 = vpack.c.b16 %v7531, %v7529
        %v7556 = vpack.c.b16 %v7532, %v7530
        %v7557 = vpack.c.b16 %v7535, %v7533
        %v7558 = vpack.c.b16 %v7536, %v7534
        %v7559 = vpack.c.b16 %v7539, %v7537
        %v7560 = vpack.c.b16 %v7540, %v7538
        %v7561 = vpack.c.b16 %v7543, %v7541
        %v7562 = vpack.c.b16 %v7544, %v7542
        %v7563 = vpack.c.b16 %v7547, %v7545
        %v7564 = vpack.c.b16 %v7548, %v7546
        %7581 = vmatprep.subr.bf16.mxu0 %v7550
        %7582 = vmatpush1.bf16.msra.mxu0 %v7549
        %7583 = vmatprep.subr.bf16.mxu0 %v7552
        %7584 = vmatpush1.bf16.msra.mxu0 %v7551
        %7585 = vmatprep.subr.bf16.mxu0 %v7554
        %7586 = vmatpush1.bf16.msra.mxu0 %v7553
        %7587 = vmatprep.subr.bf16.mxu0 %v7556
        %7588 = vmatpush1.bf16.msra.mxu0 %v7555
        %7589 = vmatprep.subr.bf16.mxu0 %v7558
        %7590 = vmatpush1.bf16.msra.mxu0 %v7557
        %7591 = vmatprep.subr.bf16.mxu0 %v7560
        %7592 = vmatpush1.bf16.msra.mxu0 %v7559
        %7593 = vmatprep.subr.bf16.mxu0 %v7562
        %7594 = vmatpush1.bf16.msra.mxu0 %v7561
        %7595 = vmatprep.subr.bf16.mxu0 %v7564
        %7596 = vmatpush1.bf16.msra.mxu0 %v7563
        %7597 = vmatprep.subr.bf16.mxu0 0
        %7598 = vmatpush1.bf16.msra.mxu0 0
        %7599 = vmatprep.subr.bf16.mxu0 0
        %7600 = vmatpush1.bf16.msra.mxu0 0
        %7601 = vmatprep.subr.bf16.mxu0 0
        %7602 = vmatpush1.bf16.msra.mxu0 0
        %7603 = vmatprep.subr.bf16.mxu0 0
        %7604 = vmatpush1.bf16.msra.mxu0 0
        %7605 = vmatprep.subr.bf16.mxu0 0
        %7606 = vmatpush1.bf16.msra.mxu0 0
        %7607 = vmatprep.subr.bf16.mxu0 0
        %7608 = vmatpush1.bf16.msra.mxu0 0
        %7609 = vmatprep.subr.bf16.mxu0 0
        %7610 = vmatpush1.bf16.msra.mxu0 0
        %7611 = vmatprep.subr.bf16.mxu0 0
        %7612 = vmatpush1.bf16.msra.mxu0 0
        %7613 = vmatprep.mubr.bf16.mxu0 0
        %7614 = vmatmul.mubr.bf16.gmra.mrb[0].mxu0 %v7499
        %v7615 = vpop.f32.mrb[0].mxu0
        %v7616 = vadd.f32 0.0, %v7615
        %v7617 = vpop.f32.mrb[0].mxu0
        %v7618 = vadd.f32 0.0, %v7617
        %v7619 = vpop.f32.mrb[0].mxu0
        %v7620 = vpop.f32.mrb[0].mxu0
        %7621 = vdwg.mxu0
        %v7624 = vcombine.low %v7616, %v7618
        %v7626 = vunpack.c.l.s4 1966171168
        %v7627 = vunpack.c.0.s8 %v7626
        %v7628 = vlaneseq
        %v7629 = vshrl.u32 %v7628, 7
        %v7630 = vsub.s32 %v7627, %v7629
        %v7631 = vrot.slane %v7624, %v7630
        %v7633 = vunpack.c.l.s4 1966171168
        %v7634 = vunpack.c.0.s8 %v7633
        %v7635 = vlaneseq
        %v7636 = vshrl.u32 %v7635, 7
        %v7637 = vsub.s32 %v7634, %v7636
        %v7638 = vrot.slane %v7631, %v7637
        %v7640 = vadd.f32 %v7480, %v7638
        %s7641 = scalar_lea.vmem %s7, 896
        %v7642 = vld [vmem:[%s7641] sm:$0xff]
        %v7643 = vld [vmem:[%s7641 + $0x8] sm:$0xff]
        %v7644 = vld [vmem:[%s7641 + $0x10] sm:$0xff]
        %v7645 = vld [vmem:[%s7641 + $0x18] sm:$0xff]
        %v7646 = vld [vmem:[%s7641 + $0x20] sm:$0xff]
        %v7647 = vld [vmem:[%s7641 + $0x28] sm:$0xff]
        %v7648 = vld [vmem:[%s7641 + $0x30] sm:$0xff]
        %v7649 = vld [vmem:[%s7641 + $0x38] sm:$0xff]
        %v7650 = vld [vmem:[%s7641 + $0x40] sm:$0xff]
        %v7651 = vld [vmem:[%s7641 + $0x48] sm:$0xff]
        %v7652 = vld [vmem:[%s7641 + $0x50] sm:$0xff]
        %v7653 = vld [vmem:[%s7641 + $0x58] sm:$0xff]
        %v7654 = vld [vmem:[%s7641 + $0x60] sm:$0xff]
        %v7655 = vld [vmem:[%s7641 + $0x68] sm:$0xff]
        %v7656 = vld [vmem:[%s7641 + $0x70] sm:$0xff]
        %v7657 = vld [vmem:[%s7641 + $0x78] sm:$0xff]
        %v7658 = vrot.slane %v7338, 1
        %v7676 = vunpack.c.l.b16 %v7642
        %v7677 = vunpack.c.h.b16 %v7642
        %v7678 = vunpack.c.l.b16 %v7643
        %v7679 = vunpack.c.h.b16 %v7643
        %v7680 = vunpack.c.l.b16 %v7644
        %v7681 = vunpack.c.h.b16 %v7644
        %v7682 = vunpack.c.l.b16 %v7645
        %v7683 = vunpack.c.h.b16 %v7645
        %v7684 = vunpack.c.l.b16 %v7646
        %v7685 = vunpack.c.h.b16 %v7646
        %v7686 = vunpack.c.l.b16 %v7647
        %v7687 = vunpack.c.h.b16 %v7647
        %v7688 = vunpack.c.l.b16 %v7648
        %v7689 = vunpack.c.h.b16 %v7648
        %v7690 = vunpack.c.l.b16 %v7649
        %v7691 = vunpack.c.h.b16 %v7649
        %v7692 = vunpack.c.l.b16 %v7650
        %v7693 = vunpack.c.h.b16 %v7650
        %v7694 = vunpack.c.l.b16 %v7651
        %v7695 = vunpack.c.h.b16 %v7651
        %v7696 = vunpack.c.l.b16 %v7652
        %v7697 = vunpack.c.h.b16 %v7652
        %v7698 = vunpack.c.l.b16 %v7653
        %v7699 = vunpack.c.h.b16 %v7653
        %v7700 = vunpack.c.l.b16 %v7654
        %v7701 = vunpack.c.h.b16 %v7654
        %v7702 = vunpack.c.l.b16 %v7655
        %v7703 = vunpack.c.h.b16 %v7655
        %v7704 = vunpack.c.l.b16 %v7656
        %v7705 = vunpack.c.h.b16 %v7656
        %v7706 = vunpack.c.l.b16 %v7657
        %v7707 = vunpack.c.h.b16 %v7657
        %v7708 = vpack.c.b16 %v7678, %v7676
        %v7709 = vpack.c.b16 %v7679, %v7677
        %v7710 = vpack.c.b16 %v7682, %v7680
        %v7711 = vpack.c.b16 %v7683, %v7681
        %v7712 = vpack.c.b16 %v7686, %v7684
        %v7713 = vpack.c.b16 %v7687, %v7685
        %v7714 = vpack.c.b16 %v7690, %v7688
        %v7715 = vpack.c.b16 %v7691, %v7689
        %v7716 = vpack.c.b16 %v7694, %v7692
        %v7717 = vpack.c.b16 %v7695, %v7693
        %v7718 = vpack.c.b16 %v7698, %v7696
        %v7719 = vpack.c.b16 %v7699, %v7697
        %v7720 = vpack.c.b16 %v7702, %v7700
        %v7721 = vpack.c.b16 %v7703, %v7701
        %v7722 = vpack.c.b16 %v7706, %v7704
        %v7723 = vpack.c.b16 %v7707, %v7705
        %7740 = vmatprep.subr.bf16.mxu0 %v7709
        %7741 = vmatpush1.bf16.msra.mxu0 %v7708
        %7742 = vmatprep.subr.bf16.mxu0 %v7711
        %7743 = vmatpush1.bf16.msra.mxu0 %v7710
        %7744 = vmatprep.subr.bf16.mxu0 %v7713
        %7745 = vmatpush1.bf16.msra.mxu0 %v7712
        %7746 = vmatprep.subr.bf16.mxu0 %v7715
        %7747 = vmatpush1.bf16.msra.mxu0 %v7714
        %7748 = vmatprep.subr.bf16.mxu0 %v7717
        %7749 = vmatpush1.bf16.msra.mxu0 %v7716
        %7750 = vmatprep.subr.bf16.mxu0 %v7719
        %7751 = vmatpush1.bf16.msra.mxu0 %v7718
        %7752 = vmatprep.subr.bf16.mxu0 %v7721
        %7753 = vmatpush1.bf16.msra.mxu0 %v7720
        %7754 = vmatprep.subr.bf16.mxu0 %v7723
        %7755 = vmatpush1.bf16.msra.mxu0 %v7722
        %7756 = vmatprep.subr.bf16.mxu0 0
        %7757 = vmatpush1.bf16.msra.mxu0 0
        %7758 = vmatprep.subr.bf16.mxu0 0
        %7759 = vmatpush1.bf16.msra.mxu0 0
        %7760 = vmatprep.subr.bf16.mxu0 0
        %7761 = vmatpush1.bf16.msra.mxu0 0
        %7762 = vmatprep.subr.bf16.mxu0 0
        %7763 = vmatpush1.bf16.msra.mxu0 0
        %7764 = vmatprep.subr.bf16.mxu0 0
        %7765 = vmatpush1.bf16.msra.mxu0 0
        %7766 = vmatprep.subr.bf16.mxu0 0
        %7767 = vmatpush1.bf16.msra.mxu0 0
        %7768 = vmatprep.subr.bf16.mxu0 0
        %7769 = vmatpush1.bf16.msra.mxu0 0
        %7770 = vmatprep.subr.bf16.mxu0 0
        %7771 = vmatpush1.bf16.msra.mxu0 0
        %7772 = vmatprep.mubr.bf16.mxu0 0
        %7773 = vmatmul.mubr.bf16.gmra.mrb[0].mxu0 %v7658
        %v7774 = vpop.f32.mrb[0].mxu0
        %v7775 = vadd.f32 0.0, %v7774
        %v7776 = vpop.f32.mrb[0].mxu0
        %v7777 = vadd.f32 0.0, %v7776
        %v7778 = vpop.f32.mrb[0].mxu0
        %v7779 = vpop.f32.mrb[0].mxu0
        %7780 = vdwg.mxu0
        %v7783 = vcombine.low %v7775, %v7777
        %v7785 = vunpack.c.l.s4 1966171168
        %v7786 = vunpack.c.0.s8 %v7785
        %v7787 = vlaneseq
        %v7788 = vshrl.u32 %v7787, 7
        %v7789 = vsub.s32 %v7786, %v7788
        %v7790 = vrot.slane %v7783, %v7789
        %v7792 = vunpack.c.l.s4 1966171168
        %v7793 = vunpack.c.0.s8 %v7792
        %v7794 = vlaneseq
        %v7795 = vshrl.u32 %v7794, 7
        %v7796 = vsub.s32 %v7793, %v7795
        %v7797 = vrot.slane %v7790, %v7796
        %v7799 = vadd.f32 %v7640, %v7797
        %v7800 = vpack.c.bf16 %v6520, %v6520
        %s7801 = scalar_lea.vmem %s7, 1024
        %v7802 = vld [vmem:[%s7801] sm:$0xff]
        %v7803 = vld [vmem:[%s7801 + $0x8] sm:$0xff]
        %v7804 = vld [vmem:[%s7801 + $0x10] sm:$0xff]
        %v7805 = vld [vmem:[%s7801 + $0x18] sm:$0xff]
        %v7806 = vld [vmem:[%s7801 + $0x20] sm:$0xff]
        %v7807 = vld [vmem:[%s7801 + $0x28] sm:$0xff]
        %v7808 = vld [vmem:[%s7801 + $0x30] sm:$0xff]
        %v7809 = vld [vmem:[%s7801 + $0x38] sm:$0xff]
        %v7810 = vld [vmem:[%s7801 + $0x40] sm:$0xff]
        %v7811 = vld [vmem:[%s7801 + $0x48] sm:$0xff]
        %v7812 = vld [vmem:[%s7801 + $0x50] sm:$0xff]
        %v7813 = vld [vmem:[%s7801 + $0x58] sm:$0xff]
        %v7814 = vld [vmem:[%s7801 + $0x60] sm:$0xff]
        %v7815 = vld [vmem:[%s7801 + $0x68] sm:$0xff]
        %v7816 = vld [vmem:[%s7801 + $0x70] sm:$0xff]
        %v7817 = vld [vmem:[%s7801 + $0x78] sm:$0xff]
        %v7834 = vunpack.c.l.b16 %v7802
        %v7835 = vunpack.c.h.b16 %v7802
        %v7836 = vunpack.c.l.b16 %v7803
        %v7837 = vunpack.c.h.b16 %v7803
        %v7838 = vunpack.c.l.b16 %v7804
        %v7839 = vunpack.c.h.b16 %v7804
        %v7840 = vunpack.c.l.b16 %v7805
        %v7841 = vunpack.c.h.b16 %v7805
        %v7842 = vunpack.c.l.b16 %v7806
        %v7843 = vunpack.c.h.b16 %v7806
        %v7844 = vunpack.c.l.b16 %v7807
        %v7845 = vunpack.c.h.b16 %v7807
        %v7846 = vunpack.c.l.b16 %v7808
        %v7847 = vunpack.c.h.b16 %v7808
        %v7848 = vunpack.c.l.b16 %v7809
        %v7849 = vunpack.c.h.b16 %v7809
        %v7850 = vunpack.c.l.b16 %v7810
        %v7851 = vunpack.c.h.b16 %v7810
        %v7852 = vunpack.c.l.b16 %v7811
        %v7853 = vunpack.c.h.b16 %v7811
        %v7854 = vunpack.c.l.b16 %v7812
        %v7855 = vunpack.c.h.b16 %v7812
        %v7856 = vunpack.c.l.b16 %v7813
        %v7857 = vunpack.c.h.b16 %v7813
        %v7858 = vunpack.c.l.b16 %v7814
        %v7859 = vunpack.c.h.b16 %v7814
        %v7860 = vunpack.c.l.b16 %v7815
        %v7861 = vunpack.c.h.b16 %v7815
        %v7862 = vunpack.c.l.b16 %v7816
        %v7863 = vunpack.c.h.b16 %v7816
        %v7864 = vunpack.c.l.b16 %v7817
        %v7865 = vunpack.c.h.b16 %v7817
        %v7866 = vpack.c.b16 %v7836, %v7834
        %v7867 = vpack.c.b16 %v7837, %v7835
        %v7868 = vpack.c.b16 %v7840, %v7838
        %v7869 = vpack.c.b16 %v7841, %v7839
        %v7870 = vpack.c.b16 %v7844, %v7842
        %v7871 = vpack.c.b16 %v7845, %v7843
        %v7872 = vpack.c.b16 %v7848, %v7846
        %v7873 = vpack.c.b16 %v7849, %v7847
        %v7874 = vpack.c.b16 %v7852, %v7850
        %v7875 = vpack.c.b16 %v7853, %v7851
        %v7876 = vpack.c.b16 %v7856, %v7854
        %v7877 = vpack.c.b16 %v7857, %v7855
        %v7878 = vpack.c.b16 %v7860, %v7858
        %v7879 = vpack.c.b16 %v7861, %v7859
        %v7880 = vpack.c.b16 %v7864, %v7862
        %v7881 = vpack.c.b16 %v7865, %v7863
        %7898 = vmatprep.subr.bf16.mxu0 %v7867
        %7899 = vmatpush1.bf16.msra.mxu0 %v7866
        %7900 = vmatprep.subr.bf16.mxu0 %v7869
        %7901 = vmatpush1.bf16.msra.mxu0 %v7868
        %7902 = vmatprep.subr.bf16.mxu0 %v7871
        %7903 = vmatpush1.bf16.msra.mxu0 %v7870
        %7904 = vmatprep.subr.bf16.mxu0 %v7873
        %7905 = vmatpush1.bf16.msra.mxu0 %v7872
        %7906 = vmatprep.subr.bf16.mxu0 %v7875
        %7907 = vmatpush1.bf16.msra.mxu0 %v7874
        %7908 = vmatprep.subr.bf16.mxu0 %v7877
        %7909 = vmatpush1.bf16.msra.mxu0 %v7876
        %7910 = vmatprep.subr.bf16.mxu0 %v7879
        %7911 = vmatpush1.bf16.msra.mxu0 %v7878
        %7912 = vmatprep.subr.bf16.mxu0 %v7881
        %7913 = vmatpush1.bf16.msra.mxu0 %v7880
        %7914 = vmatprep.subr.bf16.mxu0 0
        %7915 = vmatpush1.bf16.msra.mxu0 0
        %7916 = vmatprep.subr.bf16.mxu0 0
        %7917 = vmatpush1.bf16.msra.mxu0 0
        %7918 = vmatprep.subr.bf16.mxu0 0
        %7919 = vmatpush1.bf16.msra.mxu0 0
        %7920 = vmatprep.subr.bf16.mxu0 0
        %7921 = vmatpush1.bf16.msra.mxu0 0
        %7922 = vmatprep.subr.bf16.mxu0 0
        %7923 = vmatpush1.bf16.msra.mxu0 0
        %7924 = vmatprep.subr.bf16.mxu0 0
        %7925 = vmatpush1.bf16.msra.mxu0 0
        %7926 = vmatprep.subr.bf16.mxu0 0
        %7927 = vmatpush1.bf16.msra.mxu0 0
        %7928 = vmatprep.subr.bf16.mxu0 0
        %7929 = vmatpush1.bf16.msra.mxu0 0
        %7930 = vmatprep.mubr.bf16.mxu0 0
        %7931 = vmatmul.mubr.bf16.gmra.mrb[0].mxu0 %v7800
        %v7932 = vpop.f32.mrb[0].mxu0
        %v7933 = vadd.f32 0.0, %v7932
        %v7934 = vpop.f32.mrb[0].mxu0
        %v7935 = vadd.f32 0.0, %v7934
        %v7936 = vpop.f32.mrb[0].mxu0
        %v7937 = vpop.f32.mrb[0].mxu0
        %7938 = vdwg.mxu0
        %v7941 = vcombine.low %v7933, %v7935
        %v7943 = vunpack.c.l.s4 1966171168
        %v7944 = vunpack.c.0.s8 %v7943
        %v7945 = vlaneseq
        %v7946 = vshrl.u32 %v7945, 7
        %v7947 = vsub.s32 %v7944, %v7946
        %v7948 = vrot.slane %v7941, %v7947
        %v7950 = vunpack.c.l.s4 1966171168
        %v7951 = vunpack.c.0.s8 %v7950
        %v7952 = vlaneseq
        %v7953 = vshrl.u32 %v7952, 7
        %v7954 = vsub.s32 %v7951, %v7953
        %v7955 = vrot.slane %v7948, %v7954
        %v7957 = vadd.f32 %v7799, %v7955
        %s7958 = scalar_lea.vmem %s7, 1152
        %v7959 = vld [vmem:[%s7958] sm:$0xff]
        %v7960 = vld [vmem:[%s7958 + $0x8] sm:$0xff]
        %v7961 = vld [vmem:[%s7958 + $0x10] sm:$0xff]
        %v7962 = vld [vmem:[%s7958 + $0x18] sm:$0xff]
        %v7963 = vld [vmem:[%s7958 + $0x20] sm:$0xff]
        %v7964 = vld [vmem:[%s7958 + $0x28] sm:$0xff]
        %v7965 = vld [vmem:[%s7958 + $0x30] sm:$0xff]
        %v7966 = vld [vmem:[%s7958 + $0x38] sm:$0xff]
        %v7967 = vld [vmem:[%s7958 + $0x40] sm:$0xff]
        %v7968 = vld [vmem:[%s7958 + $0x48] sm:$0xff]
        %v7969 = vld [vmem:[%s7958 + $0x50] sm:$0xff]
        %v7970 = vld [vmem:[%s7958 + $0x58] sm:$0xff]
        %v7971 = vld [vmem:[%s7958 + $0x60] sm:$0xff]
        %v7972 = vld [vmem:[%s7958 + $0x68] sm:$0xff]
        %v7973 = vld [vmem:[%s7958 + $0x70] sm:$0xff]
        %v7974 = vld [vmem:[%s7958 + $0x78] sm:$0xff]
        %v7976 = vshrl.u32 %v7800, 16
        %v7995 = vunpack.c.l.b16 %v7959
        %v7996 = vunpack.c.h.b16 %v7959
        %v7997 = vunpack.c.l.b16 %v7960
        %v7998 = vunpack.c.h.b16 %v7960
        %v7999 = vunpack.c.l.b16 %v7961
        %v8000 = vunpack.c.h.b16 %v7961
        %v8001 = vunpack.c.l.b16 %v7962
        %v8002 = vunpack.c.h.b16 %v7962
        %v8003 = vunpack.c.l.b16 %v7963
        %v8004 = vunpack.c.h.b16 %v7963
        %v8005 = vunpack.c.l.b16 %v7964
        %v8006 = vunpack.c.h.b16 %v7964
        %v8007 = vunpack.c.l.b16 %v7965
        %v8008 = vunpack.c.h.b16 %v7965
        %v8009 = vunpack.c.l.b16 %v7966
        %v8010 = vunpack.c.h.b16 %v7966
        %v8011 = vunpack.c.l.b16 %v7967
        %v8012 = vunpack.c.h.b16 %v7967
        %v8013 = vunpack.c.l.b16 %v7968
        %v8014 = vunpack.c.h.b16 %v7968
        %v8015 = vunpack.c.l.b16 %v7969
        %v8016 = vunpack.c.h.b16 %v7969
        %v8017 = vunpack.c.l.b16 %v7970
        %v8018 = vunpack.c.h.b16 %v7970
        %v8019 = vunpack.c.l.b16 %v7971
        %v8020 = vunpack.c.h.b16 %v7971
        %v8021 = vunpack.c.l.b16 %v7972
        %v8022 = vunpack.c.h.b16 %v7972
        %v8023 = vunpack.c.l.b16 %v7973
        %v8024 = vunpack.c.h.b16 %v7973
        %v8025 = vunpack.c.l.b16 %v7974
        %v8026 = vunpack.c.h.b16 %v7974
        %v8027 = vpack.c.b16 %v7997, %v7995
        %v8028 = vpack.c.b16 %v7998, %v7996
        %v8029 = vpack.c.b16 %v8001, %v7999
        %v8030 = vpack.c.b16 %v8002, %v8000
        %v8031 = vpack.c.b16 %v8005, %v8003
        %v8032 = vpack.c.b16 %v8006, %v8004
        %v8033 = vpack.c.b16 %v8009, %v8007
        %v8034 = vpack.c.b16 %v8010, %v8008
        %v8035 = vpack.c.b16 %v8013, %v8011
        %v8036 = vpack.c.b16 %v8014, %v8012
        %v8037 = vpack.c.b16 %v8017, %v8015
        %v8038 = vpack.c.b16 %v8018, %v8016
        %v8039 = vpack.c.b16 %v8021, %v8019
        %v8040 = vpack.c.b16 %v8022, %v8020
        %v8041 = vpack.c.b16 %v8025, %v8023
        %v8042 = vpack.c.b16 %v8026, %v8024
        %8059 = vmatprep.subr.bf16.mxu0 %v8028
        %8060 = vmatpush1.bf16.msra.mxu0 %v8027
        %8061 = vmatprep.subr.bf16.mxu0 %v8030
        %8062 = vmatpush1.bf16.msra.mxu0 %v8029
        %8063 = vmatprep.subr.bf16.mxu0 %v8032
        %8064 = vmatpush1.bf16.msra.mxu0 %v8031
        %8065 = vmatprep.subr.bf16.mxu0 %v8034
        %8066 = vmatpush1.bf16.msra.mxu0 %v8033
        %8067 = vmatprep.subr.bf16.mxu0 %v8036
        %8068 = vmatpush1.bf16.msra.mxu0 %v8035
        %8069 = vmatprep.subr.bf16.mxu0 %v8038
        %8070 = vmatpush1.bf16.msra.mxu0 %v8037
        %8071 = vmatprep.subr.bf16.mxu0 %v8040
        %8072 = vmatpush1.bf16.msra.mxu0 %v8039
        %8073 = vmatprep.subr.bf16.mxu0 %v8042
        %8074 = vmatpush1.bf16.msra.mxu0 %v8041
        %8075 = vmatprep.subr.bf16.mxu0 0
        %8076 = vmatpush1.bf16.msra.mxu0 0
        %8077 = vmatprep.subr.bf16.mxu0 0
        %8078 = vmatpush1.bf16.msra.mxu0 0
        %8079 = vmatprep.subr.bf16.mxu0 0
        %8080 = vmatpush1.bf16.msra.mxu0 0
        %8081 = vmatprep.subr.bf16.mxu0 0
        %8082 = vmatpush1.bf16.msra.mxu0 0
        %8083 = vmatprep.subr.bf16.mxu0 0
        %8084 = vmatpush1.bf16.msra.mxu0 0
        %8085 = vmatprep.subr.bf16.mxu0 0
        %8086 = vmatpush1.bf16.msra.mxu0 0
        %8087 = vmatprep.subr.bf16.mxu0 0
        %8088 = vmatpush1.bf16.msra.mxu0 0
        %8089 = vmatprep.subr.bf16.mxu0 0
        %8090 = vmatpush1.bf16.msra.mxu0 0
        %8091 = vmatprep.mubr.bf16.mxu0 0
        %8092 = vmatmul.mubr.bf16.gmra.mrb[0].mxu0 %v7976
        %v8093 = vpop.f32.mrb[0].mxu0
        %v8094 = vadd.f32 0.0, %v8093
        %v8095 = vpop.f32.mrb[0].mxu0
        %v8096 = vadd.f32 0.0, %v8095
        %v8097 = vpop.f32.mrb[0].mxu0
        %v8098 = vpop.f32.mrb[0].mxu0
        %8099 = vdwg.mxu0
        %v8102 = vcombine.low %v8094, %v8096
        %v8104 = vunpack.c.l.s4 1966171168
        %v8105 = vunpack.c.0.s8 %v8104
        %v8106 = vlaneseq
        %v8107 = vshrl.u32 %v8106, 7
        %v8108 = vsub.s32 %v8105, %v8107
        %v8109 = vrot.slane %v8102, %v8108
        %v8111 = vunpack.c.l.s4 1966171168
        %v8112 = vunpack.c.0.s8 %v8111
        %v8113 = vlaneseq
        %v8114 = vshrl.u32 %v8113, 7
        %v8115 = vsub.s32 %v8112, %v8114
        %v8116 = vrot.slane %v8109, %v8115
        %v8118 = vadd.f32 %v7957, %v8116
        %s8119 = scalar_lea.vmem %s7, 1280
        %v8120 = vld [vmem:[%s8119] sm:$0xff]
        %v8121 = vld [vmem:[%s8119 + $0x8] sm:$0xff]
        %v8122 = vld [vmem:[%s8119 + $0x10] sm:$0xff]
        %v8123 = vld [vmem:[%s8119 + $0x18] sm:$0xff]
        %v8124 = vld [vmem:[%s8119 + $0x20] sm:$0xff]
        %v8125 = vld [vmem:[%s8119 + $0x28] sm:$0xff]
        %v8126 = vld [vmem:[%s8119 + $0x30] sm:$0xff]
        %v8127 = vld [vmem:[%s8119 + $0x38] sm:$0xff]
        %v8128 = vld [vmem:[%s8119 + $0x40] sm:$0xff]
        %v8129 = vld [vmem:[%s8119 + $0x48] sm:$0xff]
        %v8130 = vld [vmem:[%s8119 + $0x50] sm:$0xff]
        %v8131 = vld [vmem:[%s8119 + $0x58] sm:$0xff]
        %v8132 = vld [vmem:[%s8119 + $0x60] sm:$0xff]
        %v8133 = vld [vmem:[%s8119 + $0x68] sm:$0xff]
        %v8134 = vld [vmem:[%s8119 + $0x70] sm:$0xff]
        %v8135 = vld [vmem:[%s8119 + $0x78] sm:$0xff]
        %v8137 = vrot.slane %v7800, 1
        %v8155 = vunpack.c.l.b16 %v8120
        %v8156 = vunpack.c.h.b16 %v8120
        %v8157 = vunpack.c.l.b16 %v8121
        %v8158 = vunpack.c.h.b16 %v8121
        %v8159 = vunpack.c.l.b16 %v8122
        %v8160 = vunpack.c.h.b16 %v8122
        %v8161 = vunpack.c.l.b16 %v8123
        %v8162 = vunpack.c.h.b16 %v8123
        %v8163 = vunpack.c.l.b16 %v8124
        %v8164 = vunpack.c.h.b16 %v8124
        %v8165 = vunpack.c.l.b16 %v8125
        %v8166 = vunpack.c.h.b16 %v8125
        %v8167 = vunpack.c.l.b16 %v8126
        %v8168 = vunpack.c.h.b16 %v8126
        %v8169 = vunpack.c.l.b16 %v8127
        %v8170 = vunpack.c.h.b16 %v8127
        %v8171 = vunpack.c.l.b16 %v8128
        %v8172 = vunpack.c.h.b16 %v8128
        %v8173 = vunpack.c.l.b16 %v8129
        %v8174 = vunpack.c.h.b16 %v8129
        %v8175 = vunpack.c.l.b16 %v8130
        %v8176 = vunpack.c.h.b16 %v8130
        %v8177 = vunpack.c.l.b16 %v8131
        %v8178 = vunpack.c.h.b16 %v8131
        %v8179 = vunpack.c.l.b16 %v8132
        %v8180 = vunpack.c.h.b16 %v8132
        %v8181 = vunpack.c.l.b16 %v8133
        %v8182 = vunpack.c.h.b16 %v8133
        %v8183 = vunpack.c.l.b16 %v8134
        %v8184 = vunpack.c.h.b16 %v8134
        %v8185 = vunpack.c.l.b16 %v8135
        %v8186 = vunpack.c.h.b16 %v8135
        %v8187 = vpack.c.b16 %v8157, %v8155
        %v8188 = vpack.c.b16 %v8158, %v8156
        %v8189 = vpack.c.b16 %v8161, %v8159
        %v8190 = vpack.c.b16 %v8162, %v8160
        %v8191 = vpack.c.b16 %v8165, %v8163
        %v8192 = vpack.c.b16 %v8166, %v8164
        %v8193 = vpack.c.b16 %v8169, %v8167
        %v8194 = vpack.c.b16 %v8170, %v8168
        %v8195 = vpack.c.b16 %v8173, %v8171
        %v8196 = vpack.c.b16 %v8174, %v8172
        %v8197 = vpack.c.b16 %v8177, %v8175
        %v8198 = vpack.c.b16 %v8178, %v8176
        %v8199 = vpack.c.b16 %v8181, %v8179
        %v8200 = vpack.c.b16 %v8182, %v8180
        %v8201 = vpack.c.b16 %v8185, %v8183
        %v8202 = vpack.c.b16 %v8186, %v8184
        %8219 = vmatprep.subr.bf16.mxu0 %v8188
        %8220 = vmatpush1.bf16.msra.mxu0 %v8187
        %8221 = vmatprep.subr.bf16.mxu0 %v8190
        %8222 = vmatpush1.bf16.msra.mxu0 %v8189
        %8223 = vmatprep.subr.bf16.mxu0 %v8192
        %8224 = vmatpush1.bf16.msra.mxu0 %v8191
        %8225 = vmatprep.subr.bf16.mxu0 %v8194
        %8226 = vmatpush1.bf16.msra.mxu0 %v8193
        %8227 = vmatprep.subr.bf16.mxu0 %v8196
        %8228 = vmatpush1.bf16.msra.mxu0 %v8195
        %8229 = vmatprep.subr.bf16.mxu0 %v8198
        %8230 = vmatpush1.bf16.msra.mxu0 %v8197
        %8231 = vmatprep.subr.bf16.mxu0 %v8200
        %8232 = vmatpush1.bf16.msra.mxu0 %v8199
        %8233 = vmatprep.subr.bf16.mxu0 %v8202
        %8234 = vmatpush1.bf16.msra.mxu0 %v8201
        %8235 = vmatprep.subr.bf16.mxu0 0
        %8236 = vmatpush1.bf16.msra.mxu0 0
        %8237 = vmatprep.subr.bf16.mxu0 0
        %8238 = vmatpush1.bf16.msra.mxu0 0
        %8239 = vmatprep.subr.bf16.mxu0 0
        %8240 = vmatpush1.bf16.msra.mxu0 0
        %8241 = vmatprep.subr.bf16.mxu0 0
        %8242 = vmatpush1.bf16.msra.mxu0 0
        %8243 = vmatprep.subr.bf16.mxu0 0
        %8244 = vmatpush1.bf16.msra.mxu0 0
        %8245 = vmatprep.subr.bf16.mxu0 0
        %8246 = vmatpush1.bf16.msra.mxu0 0
        %8247 = vmatprep.subr.bf16.mxu0 0
        %8248 = vmatpush1.bf16.msra.mxu0 0
        %8249 = vmatprep.subr.bf16.mxu0 0
        %8250 = vmatpush1.bf16.msra.mxu0 0
        %8251 = vmatprep.mubr.bf16.mxu0 0
        %8252 = vmatmul.mubr.bf16.gmra.mrb[0].mxu0 %v8137
        %v8253 = vpop.f32.mrb[0].mxu0
        %v8254 = vadd.f32 0.0, %v8253
        %v8255 = vpop.f32.mrb[0].mxu0
        %v8256 = vadd.f32 0.0, %v8255
        %v8257 = vpop.f32.mrb[0].mxu0
        %v8258 = vpop.f32.mrb[0].mxu0
        %8259 = vdwg.mxu0
        %v8262 = vcombine.low %v8254, %v8256
        %v8264 = vunpack.c.l.s4 1966171168
        %v8265 = vunpack.c.0.s8 %v8264
        %v8266 = vlaneseq
        %v8267 = vshrl.u32 %v8266, 7
        %v8268 = vsub.s32 %v8265, %v8267
        %v8269 = vrot.slane %v8262, %v8268
        %v8271 = vunpack.c.l.s4 1966171168
        %v8272 = vunpack.c.0.s8 %v8271
        %v8273 = vlaneseq
        %v8274 = vshrl.u32 %v8273, 7
        %v8275 = vsub.s32 %v8272, %v8274
        %v8276 = vrot.slane %v8269, %v8275
        %v8278 = vadd.f32 %v8118, %v8276
        %s8279 = scalar_lea.vmem %s7, 1408
        %v8280 = vld [vmem:[%s8279] sm:$0xff]
        %v8281 = vld [vmem:[%s8279 + $0x8] sm:$0xff]
        %v8282 = vld [vmem:[%s8279 + $0x10] sm:$0xff]
        %v8283 = vld [vmem:[%s8279 + $0x18] sm:$0xff]
        %v8284 = vld [vmem:[%s8279 + $0x20] sm:$0xff]
        %v8285 = vld [vmem:[%s8279 + $0x28] sm:$0xff]
        %v8286 = vld [vmem:[%s8279 + $0x30] sm:$0xff]
        %v8287 = vld [vmem:[%s8279 + $0x38] sm:$0xff]
        %v8288 = vld [vmem:[%s8279 + $0x40] sm:$0xff]
        %v8289 = vld [vmem:[%s8279 + $0x48] sm:$0xff]
        %v8290 = vld [vmem:[%s8279 + $0x50] sm:$0xff]
        %v8291 = vld [vmem:[%s8279 + $0x58] sm:$0xff]
        %v8292 = vld [vmem:[%s8279 + $0x60] sm:$0xff]
        %v8293 = vld [vmem:[%s8279 + $0x68] sm:$0xff]
        %v8294 = vld [vmem:[%s8279 + $0x70] sm:$0xff]
        %v8295 = vld [vmem:[%s8279 + $0x78] sm:$0xff]
        %v8296 = vrot.slane %v7976, 1
        %v8314 = vunpack.c.l.b16 %v8280
        %v8315 = vunpack.c.h.b16 %v8280
        %v8316 = vunpack.c.l.b16 %v8281
        %v8317 = vunpack.c.h.b16 %v8281
        %v8318 = vunpack.c.l.b16 %v8282
        %v8319 = vunpack.c.h.b16 %v8282
        %v8320 = vunpack.c.l.b16 %v8283
        %v8321 = vunpack.c.h.b16 %v8283
        %v8322 = vunpack.c.l.b16 %v8284
        %v8323 = vunpack.c.h.b16 %v8284
        %v8324 = vunpack.c.l.b16 %v8285
        %v8325 = vunpack.c.h.b16 %v8285
        %v8326 = vunpack.c.l.b16 %v8286
        %v8327 = vunpack.c.h.b16 %v8286
        %v8328 = vunpack.c.l.b16 %v8287
        %v8329 = vunpack.c.h.b16 %v8287
        %v8330 = vunpack.c.l.b16 %v8288
        %v8331 = vunpack.c.h.b16 %v8288
        %v8332 = vunpack.c.l.b16 %v8289
        %v8333 = vunpack.c.h.b16 %v8289
        %v8334 = vunpack.c.l.b16 %v8290
        %v8335 = vunpack.c.h.b16 %v8290
        %v8336 = vunpack.c.l.b16 %v8291
        %v8337 = vunpack.c.h.b16 %v8291
        %v8338 = vunpack.c.l.b16 %v8292
        %v8339 = vunpack.c.h.b16 %v8292
        %v8340 = vunpack.c.l.b16 %v8293
        %v8341 = vunpack.c.h.b16 %v8293
        %v8342 = vunpack.c.l.b16 %v8294
        %v8343 = vunpack.c.h.b16 %v8294
        %v8344 = vunpack.c.l.b16 %v8295
        %v8345 = vunpack.c.h.b16 %v8295
        %v8346 = vpack.c.b16 %v8316, %v8314
        %v8347 = vpack.c.b16 %v8317, %v8315
        %v8348 = vpack.c.b16 %v8320, %v8318
        %v8349 = vpack.c.b16 %v8321, %v8319
        %v8350 = vpack.c.b16 %v8324, %v8322
        %v8351 = vpack.c.b16 %v8325, %v8323
        %v8352 = vpack.c.b16 %v8328, %v8326
        %v8353 = vpack.c.b16 %v8329, %v8327
        %v8354 = vpack.c.b16 %v8332, %v8330
        %v8355 = vpack.c.b16 %v8333, %v8331
        %v8356 = vpack.c.b16 %v8336, %v8334
        %v8357 = vpack.c.b16 %v8337, %v8335
        %v8358 = vpack.c.b16 %v8340, %v8338
        %v8359 = vpack.c.b16 %v8341, %v8339
        %v8360 = vpack.c.b16 %v8344, %v8342
        %v8361 = vpack.c.b16 %v8345, %v8343
        %8378 = vmatprep.subr.bf16.mxu0 %v8347
        %8379 = vmatpush1.bf16.msra.mxu0 %v8346
        %8380 = vmatprep.subr.bf16.mxu0 %v8349
        %8381 = vmatpush1.bf16.msra.mxu0 %v8348
        %8382 = vmatprep.subr.bf16.mxu0 %v8351
        %8383 = vmatpush1.bf16.msra.mxu0 %v8350
        %8384 = vmatprep.subr.bf16.mxu0 %v8353
        %8385 = vmatpush1.bf16.msra.mxu0 %v8352
        %8386 = vmatprep.subr.bf16.mxu0 %v8355
        %8387 = vmatpush1.bf16.msra.mxu0 %v8354
        %8388 = vmatprep.subr.bf16.mxu0 %v8357
        %8389 = vmatpush1.bf16.msra.mxu0 %v8356
        %8390 = vmatprep.subr.bf16.mxu0 %v8359
        %8391 = vmatpush1.bf16.msra.mxu0 %v8358
        %8392 = vmatprep.subr.bf16.mxu0 %v8361
        %8393 = vmatpush1.bf16.msra.mxu0 %v8360
        %8394 = vmatprep.subr.bf16.mxu0 0
        %8395 = vmatpush1.bf16.msra.mxu0 0
        %8396 = vmatprep.subr.bf16.mxu0 0
        %8397 = vmatpush1.bf16.msra.mxu0 0
        %8398 = vmatprep.subr.bf16.mxu0 0
        %8399 = vmatpush1.bf16.msra.mxu0 0
        %8400 = vmatprep.subr.bf16.mxu0 0
        %8401 = vmatpush1.bf16.msra.mxu0 0
        %8402 = vmatprep.subr.bf16.mxu0 0
        %8403 = vmatpush1.bf16.msra.mxu0 0
        %8404 = vmatprep.subr.bf16.mxu0 0
        %8405 = vmatpush1.bf16.msra.mxu0 0
        %8406 = vmatprep.subr.bf16.mxu0 0
        %8407 = vmatpush1.bf16.msra.mxu0 0
        %8408 = vmatprep.subr.bf16.mxu0 0
        %8409 = vmatpush1.bf16.msra.mxu0 0
        %8410 = vmatprep.mubr.bf16.mxu0 0
        %8411 = vmatmul.mubr.bf16.gmra.mrb[0].mxu0 %v8296
        %v8412 = vpop.f32.mrb[0].mxu0
        %v8413 = vadd.f32 0.0, %v8412
        %v8414 = vpop.f32.mrb[0].mxu0
        %v8415 = vadd.f32 0.0, %v8414
        %v8416 = vpop.f32.mrb[0].mxu0
        %v8417 = vpop.f32.mrb[0].mxu0
        %8418 = vdwg.mxu0
        %v8421 = vcombine.low %v8413, %v8415
        %v8423 = vunpack.c.l.s4 1966171168
        %v8424 = vunpack.c.0.s8 %v8423
        %v8425 = vlaneseq
        %v8426 = vshrl.u32 %v8425, 7
        %v8427 = vsub.s32 %v8424, %v8426
        %v8428 = vrot.slane %v8421, %v8427
        %v8430 = vunpack.c.l.s4 1966171168
        %v8431 = vunpack.c.0.s8 %v8430
        %v8432 = vlaneseq
        %v8433 = vshrl.u32 %v8432, 7
        %v8434 = vsub.s32 %v8431, %v8433
        %v8435 = vrot.slane %v8428, %v8434
        %v8437 = vadd.f32 %v8278, %v8435
        %v8438 = vpack.c.bf16 %v6523, %v6523
        %s8439 = scalar_lea.vmem %s7, 1536
        %v8440 = vld [vmem:[%s8439] sm:$0xff]
        %v8441 = vld [vmem:[%s8439 + $0x8] sm:$0xff]
        %v8442 = vld [vmem:[%s8439 + $0x10] sm:$0xff]
        %v8443 = vld [vmem:[%s8439 + $0x18] sm:$0xff]
        %v8444 = vld [vmem:[%s8439 + $0x20] sm:$0xff]
        %v8445 = vld [vmem:[%s8439 + $0x28] sm:$0xff]
        %v8446 = vld [vmem:[%s8439 + $0x30] sm:$0xff]
        %v8447 = vld [vmem:[%s8439 + $0x38] sm:$0xff]
        %v8448 = vld [vmem:[%s8439 + $0x40] sm:$0xff]
        %v8449 = vld [vmem:[%s8439 + $0x48] sm:$0xff]
        %v8450 = vld [vmem:[%s8439 + $0x50] sm:$0xff]
        %v8451 = vld [vmem:[%s8439 + $0x58] sm:$0xff]
        %v8452 = vld [vmem:[%s8439 + $0x60] sm:$0xff]
        %v8453 = vld [vmem:[%s8439 + $0x68] sm:$0xff]
        %v8454 = vld [vmem:[%s8439 + $0x70] sm:$0xff]
        %v8455 = vld [vmem:[%s8439 + $0x78] sm:$0xff]
        %v8472 = vunpack.c.l.b16 %v8440
        %v8473 = vunpack.c.h.b16 %v8440
        %v8474 = vunpack.c.l.b16 %v8441
        %v8475 = vunpack.c.h.b16 %v8441
        %v8476 = vunpack.c.l.b16 %v8442
        %v8477 = vunpack.c.h.b16 %v8442
        %v8478 = vunpack.c.l.b16 %v8443
        %v8479 = vunpack.c.h.b16 %v8443
        %v8480 = vunpack.c.l.b16 %v8444
        %v8481 = vunpack.c.h.b16 %v8444
        %v8482 = vunpack.c.l.b16 %v8445
        %v8483 = vunpack.c.h.b16 %v8445
        %v8484 = vunpack.c.l.b16 %v8446
        %v8485 = vunpack.c.h.b16 %v8446
        %v8486 = vunpack.c.l.b16 %v8447
        %v8487 = vunpack.c.h.b16 %v8447
        %v8488 = vunpack.c.l.b16 %v8448
        %v8489 = vunpack.c.h.b16 %v8448
        %v8490 = vunpack.c.l.b16 %v8449
        %v8491 = vunpack.c.h.b16 %v8449
        %v8492 = vunpack.c.l.b16 %v8450
        %v8493 = vunpack.c.h.b16 %v8450
        %v8494 = vunpack.c.l.b16 %v8451
        %v8495 = vunpack.c.h.b16 %v8451
        %v8496 = vunpack.c.l.b16 %v8452
        %v8497 = vunpack.c.h.b16 %v8452
        %v8498 = vunpack.c.l.b16 %v8453
        %v8499 = vunpack.c.h.b16 %v8453
        %v8500 = vunpack.c.l.b16 %v8454
        %v8501 = vunpack.c.h.b16 %v8454
        %v8502 = vunpack.c.l.b16 %v8455
        %v8503 = vunpack.c.h.b16 %v8455
        %v8504 = vpack.c.b16 %v8474, %v8472
        %v8505 = vpack.c.b16 %v8475, %v8473
        %v8506 = vpack.c.b16 %v8478, %v8476
        %v8507 = vpack.c.b16 %v8479, %v8477
        %v8508 = vpack.c.b16 %v8482, %v8480
        %v8509 = vpack.c.b16 %v8483, %v8481
        %v8510 = vpack.c.b16 %v8486, %v8484
        %v8511 = vpack.c.b16 %v8487, %v8485
        %v8512 = vpack.c.b16 %v8490, %v8488
        %v8513 = vpack.c.b16 %v8491, %v8489
        %v8514 = vpack.c.b16 %v8494, %v8492
        %v8515 = vpack.c.b16 %v8495, %v8493
        %v8516 = vpack.c.b16 %v8498, %v8496
        %v8517 = vpack.c.b16 %v8499, %v8497
        %v8518 = vpack.c.b16 %v8502, %v8500
        %v8519 = vpack.c.b16 %v8503, %v8501
        %8536 = vmatprep.subr.bf16.mxu0 %v8505
        %8537 = vmatpush1.bf16.msra.mxu0 %v8504
        %8538 = vmatprep.subr.bf16.mxu0 %v8507
        %8539 = vmatpush1.bf16.msra.mxu0 %v8506
        %8540 = vmatprep.subr.bf16.mxu0 %v8509
        %8541 = vmatpush1.bf16.msra.mxu0 %v8508
        %8542 = vmatprep.subr.bf16.mxu0 %v8511
        %8543 = vmatpush1.bf16.msra.mxu0 %v8510
        %8544 = vmatprep.subr.bf16.mxu0 %v8513
        %8545 = vmatpush1.bf16.msra.mxu0 %v8512
        %8546 = vmatprep.subr.bf16.mxu0 %v8515
        %8547 = vmatpush1.bf16.msra.mxu0 %v8514
        %8548 = vmatprep.subr.bf16.mxu0 %v8517
        %8549 = vmatpush1.bf16.msra.mxu0 %v8516
        %8550 = vmatprep.subr.bf16.mxu0 %v8519
        %8551 = vmatpush1.bf16.msra.mxu0 %v8518
        %8552 = vmatprep.subr.bf16.mxu0 0
        %8553 = vmatpush1.bf16.msra.mxu0 0
        %8554 = vmatprep.subr.bf16.mxu0 0
        %8555 = vmatpush1.bf16.msra.mxu0 0
        %8556 = vmatprep.subr.bf16.mxu0 0
        %8557 = vmatpush1.bf16.msra.mxu0 0
        %8558 = vmatprep.subr.bf16.mxu0 0
        %8559 = vmatpush1.bf16.msra.mxu0 0
        %8560 = vmatprep.subr.bf16.mxu0 0
        %8561 = vmatpush1.bf16.msra.mxu0 0
        %8562 = vmatprep.subr.bf16.mxu0 0
        %8563 = vmatpush1.bf16.msra.mxu0 0
        %8564 = vmatprep.subr.bf16.mxu0 0
        %8565 = vmatpush1.bf16.msra.mxu0 0
        %8566 = vmatprep.subr.bf16.mxu0 0
        %8567 = vmatpush1.bf16.msra.mxu0 0
        %8568 = vmatprep.mubr.bf16.mxu0 0
        %8569 = vmatmul.mubr.bf16.gmra.mrb[0].mxu0 %v8438
        %v8570 = vpop.f32.mrb[0].mxu0
        %v8571 = vadd.f32 0.0, %v8570
        %v8572 = vpop.f32.mrb[0].mxu0
        %v8573 = vadd.f32 0.0, %v8572
        %v8574 = vpop.f32.mrb[0].mxu0
        %v8575 = vpop.f32.mrb[0].mxu0
        %8576 = vdwg.mxu0
        %v8579 = vcombine.low %v8571, %v8573
        %v8581 = vunpack.c.l.s4 1966171168
        %v8582 = vunpack.c.0.s8 %v8581
        %v8583 = vlaneseq
        %v8584 = vshrl.u32 %v8583, 7
        %v8585 = vsub.s32 %v8582, %v8584
        %v8586 = vrot.slane %v8579, %v8585
        %v8588 = vunpack.c.l.s4 1966171168
        %v8589 = vunpack.c.0.s8 %v8588
        %v8590 = vlaneseq
        %v8591 = vshrl.u32 %v8590, 7
        %v8592 = vsub.s32 %v8589, %v8591
        %v8593 = vrot.slane %v8586, %v8592
        %v8595 = vadd.f32 %v8437, %v8593
        %s8596 = scalar_lea.vmem %s7, 1664
        %v8597 = vld [vmem:[%s8596] sm:$0xff]
        %v8598 = vld [vmem:[%s8596 + $0x8] sm:$0xff]
        %v8599 = vld [vmem:[%s8596 + $0x10] sm:$0xff]
        %v8600 = vld [vmem:[%s8596 + $0x18] sm:$0xff]
        %v8601 = vld [vmem:[%s8596 + $0x20] sm:$0xff]
        %v8602 = vld [vmem:[%s8596 + $0x28] sm:$0xff]
        %v8603 = vld [vmem:[%s8596 + $0x30] sm:$0xff]
        %v8604 = vld [vmem:[%s8596 + $0x38] sm:$0xff]
        %v8605 = vld [vmem:[%s8596 + $0x40] sm:$0xff]
        %v8606 = vld [vmem:[%s8596 + $0x48] sm:$0xff]
        %v8607 = vld [vmem:[%s8596 + $0x50] sm:$0xff]
        %v8608 = vld [vmem:[%s8596 + $0x58] sm:$0xff]
        %v8609 = vld [vmem:[%s8596 + $0x60] sm:$0xff]
        %v8610 = vld [vmem:[%s8596 + $0x68] sm:$0xff]
        %v8611 = vld [vmem:[%s8596 + $0x70] sm:$0xff]
        %v8612 = vld [vmem:[%s8596 + $0x78] sm:$0xff]
        %v8614 = vshrl.u32 %v8438, 16
        %v8633 = vunpack.c.l.b16 %v8597
        %v8634 = vunpack.c.h.b16 %v8597
        %v8635 = vunpack.c.l.b16 %v8598
        %v8636 = vunpack.c.h.b16 %v8598
        %v8637 = vunpack.c.l.b16 %v8599
        %v8638 = vunpack.c.h.b16 %v8599
        %v8639 = vunpack.c.l.b16 %v8600
        %v8640 = vunpack.c.h.b16 %v8600
        %v8641 = vunpack.c.l.b16 %v8601
        %v8642 = vunpack.c.h.b16 %v8601
        %v8643 = vunpack.c.l.b16 %v8602
        %v8644 = vunpack.c.h.b16 %v8602
        %v8645 = vunpack.c.l.b16 %v8603
        %v8646 = vunpack.c.h.b16 %v8603
        %v8647 = vunpack.c.l.b16 %v8604
        %v8648 = vunpack.c.h.b16 %v8604
        %v8649 = vunpack.c.l.b16 %v8605
        %v8650 = vunpack.c.h.b16 %v8605
        %v8651 = vunpack.c.l.b16 %v8606
        %v8652 = vunpack.c.h.b16 %v8606
        %v8653 = vunpack.c.l.b16 %v8607
        %v8654 = vunpack.c.h.b16 %v8607
        %v8655 = vunpack.c.l.b16 %v8608
        %v8656 = vunpack.c.h.b16 %v8608
        %v8657 = vunpack.c.l.b16 %v8609
        %v8658 = vunpack.c.h.b16 %v8609
        %v8659 = vunpack.c.l.b16 %v8610
        %v8660 = vunpack.c.h.b16 %v8610
        %v8661 = vunpack.c.l.b16 %v8611
        %v8662 = vunpack.c.h.b16 %v8611
        %v8663 = vunpack.c.l.b16 %v8612
        %v8664 = vunpack.c.h.b16 %v8612
        %v8665 = vpack.c.b16 %v8635, %v8633
        %v8666 = vpack.c.b16 %v8636, %v8634
        %v8667 = vpack.c.b16 %v8639, %v8637
        %v8668 = vpack.c.b16 %v8640, %v8638
        %v8669 = vpack.c.b16 %v8643, %v8641
        %v8670 = vpack.c.b16 %v8644, %v8642
        %v8671 = vpack.c.b16 %v8647, %v8645
        %v8672 = vpack.c.b16 %v8648, %v8646
        %v8673 = vpack.c.b16 %v8651, %v8649
        %v8674 = vpack.c.b16 %v8652, %v8650
        %v8675 = vpack.c.b16 %v8655, %v8653
        %v8676 = vpack.c.b16 %v8656, %v8654
        %v8677 = vpack.c.b16 %v8659, %v8657
        %v8678 = vpack.c.b16 %v8660, %v8658
        %v8679 = vpack.c.b16 %v8663, %v8661
        %v8680 = vpack.c.b16 %v8664, %v8662
        %8697 = vmatprep.subr.bf16.mxu0 %v8666
        %8698 = vmatpush1.bf16.msra.mxu0 %v8665
        %8699 = vmatprep.subr.bf16.mxu0 %v8668
        %8700 = vmatpush1.bf16.msra.mxu0 %v8667
        %8701 = vmatprep.subr.bf16.mxu0 %v8670
        %8702 = vmatpush1.bf16.msra.mxu0 %v8669
        %8703 = vmatprep.subr.bf16.mxu0 %v8672
        %8704 = vmatpush1.bf16.msra.mxu0 %v8671
        %8705 = vmatprep.subr.bf16.mxu0 %v8674
        %8706 = vmatpush1.bf16.msra.mxu0 %v8673
        %8707 = vmatprep.subr.bf16.mxu0 %v8676
        %8708 = vmatpush1.bf16.msra.mxu0 %v8675
        %8709 = vmatprep.subr.bf16.mxu0 %v8678
        %8710 = vmatpush1.bf16.msra.mxu0 %v8677
        %8711 = vmatprep.subr.bf16.mxu0 %v8680
        %8712 = vmatpush1.bf16.msra.mxu0 %v8679
        %8713 = vmatprep.subr.bf16.mxu0 0
        %8714 = vmatpush1.bf16.msra.mxu0 0
        %8715 = vmatprep.subr.bf16.mxu0 0
        %8716 = vmatpush1.bf16.msra.mxu0 0
        %8717 = vmatprep.subr.bf16.mxu0 0
        %8718 = vmatpush1.bf16.msra.mxu0 0
        %8719 = vmatprep.subr.bf16.mxu0 0
        %8720 = vmatpush1.bf16.msra.mxu0 0
        %8721 = vmatprep.subr.bf16.mxu0 0
        %8722 = vmatpush1.bf16.msra.mxu0 0
        %8723 = vmatprep.subr.bf16.mxu0 0
        %8724 = vmatpush1.bf16.msra.mxu0 0
        %8725 = vmatprep.subr.bf16.mxu0 0
        %8726 = vmatpush1.bf16.msra.mxu0 0
        %8727 = vmatprep.subr.bf16.mxu0 0
        %8728 = vmatpush1.bf16.msra.mxu0 0
        %8729 = vmatprep.mubr.bf16.mxu0 0
        %8730 = vmatmul.mubr.bf16.gmra.mrb[0].mxu0 %v8614
        %v8731 = vpop.f32.mrb[0].mxu0
        %v8732 = vadd.f32 0.0, %v8731
        %v8733 = vpop.f32.mrb[0].mxu0
        %v8734 = vadd.f32 0.0, %v8733
        %v8735 = vpop.f32.mrb[0].mxu0
        %v8736 = vpop.f32.mrb[0].mxu0
        %8737 = vdwg.mxu0
        %v8740 = vcombine.low %v8732, %v8734
        %v8742 = vunpack.c.l.s4 1966171168
        %v8743 = vunpack.c.0.s8 %v8742
        %v8744 = vlaneseq
        %v8745 = vshrl.u32 %v8744, 7
        %v8746 = vsub.s32 %v8743, %v8745
        %v8747 = vrot.slane %v8740, %v8746
        %v8749 = vunpack.c.l.s4 1966171168
        %v8750 = vunpack.c.0.s8 %v8749
        %v8751 = vlaneseq
        %v8752 = vshrl.u32 %v8751, 7
        %v8753 = vsub.s32 %v8750, %v8752
        %v8754 = vrot.slane %v8747, %v8753
        %v8756 = vadd.f32 %v8595, %v8754
        %s8757 = scalar_lea.vmem %s7, 1792
        %v8758 = vld [vmem:[%s8757] sm:$0xff]
        %v8759 = vld [vmem:[%s8757 + $0x8] sm:$0xff]
        %v8760 = vld [vmem:[%s8757 + $0x10] sm:$0xff]
        %v8761 = vld [vmem:[%s8757 + $0x18] sm:$0xff]
        %v8762 = vld [vmem:[%s8757 + $0x20] sm:$0xff]
        %v8763 = vld [vmem:[%s8757 + $0x28] sm:$0xff]
        %v8764 = vld [vmem:[%s8757 + $0x30] sm:$0xff]
        %v8765 = vld [vmem:[%s8757 + $0x38] sm:$0xff]
        %v8766 = vld [vmem:[%s8757 + $0x40] sm:$0xff]
        %v8767 = vld [vmem:[%s8757 + $0x48] sm:$0xff]
        %v8768 = vld [vmem:[%s8757 + $0x50] sm:$0xff]
        %v8769 = vld [vmem:[%s8757 + $0x58] sm:$0xff]
        %v8770 = vld [vmem:[%s8757 + $0x60] sm:$0xff]
        %v8771 = vld [vmem:[%s8757 + $0x68] sm:$0xff]
        %v8772 = vld [vmem:[%s8757 + $0x70] sm:$0xff]
        %v8773 = vld [vmem:[%s8757 + $0x78] sm:$0xff]
        %v8775 = vrot.slane %v8438, 1
        %v8793 = vunpack.c.l.b16 %v8758
        %v8794 = vunpack.c.h.b16 %v8758
        %v8795 = vunpack.c.l.b16 %v8759
        %v8796 = vunpack.c.h.b16 %v8759
        %v8797 = vunpack.c.l.b16 %v8760
        %v8798 = vunpack.c.h.b16 %v8760
        %v8799 = vunpack.c.l.b16 %v8761
        %v8800 = vunpack.c.h.b16 %v8761
        %v8801 = vunpack.c.l.b16 %v8762
        %v8802 = vunpack.c.h.b16 %v8762
        %v8803 = vunpack.c.l.b16 %v8763
        %v8804 = vunpack.c.h.b16 %v8763
        %v8805 = vunpack.c.l.b16 %v8764
        %v8806 = vunpack.c.h.b16 %v8764
        %v8807 = vunpack.c.l.b16 %v8765
        %v8808 = vunpack.c.h.b16 %v8765
        %v8809 = vunpack.c.l.b16 %v8766
        %v8810 = vunpack.c.h.b16 %v8766
        %v8811 = vunpack.c.l.b16 %v8767
        %v8812 = vunpack.c.h.b16 %v8767
        %v8813 = vunpack.c.l.b16 %v8768
        %v8814 = vunpack.c.h.b16 %v8768
        %v8815 = vunpack.c.l.b16 %v8769
        %v8816 = vunpack.c.h.b16 %v8769
        %v8817 = vunpack.c.l.b16 %v8770
        %v8818 = vunpack.c.h.b16 %v8770
        %v8819 = vunpack.c.l.b16 %v8771
        %v8820 = vunpack.c.h.b16 %v8771
        %v8821 = vunpack.c.l.b16 %v8772
        %v8822 = vunpack.c.h.b16 %v8772
        %v8823 = vunpack.c.l.b16 %v8773
        %v8824 = vunpack.c.h.b16 %v8773
        %v8825 = vpack.c.b16 %v8795, %v8793
        %v8826 = vpack.c.b16 %v8796, %v8794
        %v8827 = vpack.c.b16 %v8799, %v8797
        %v8828 = vpack.c.b16 %v8800, %v8798
        %v8829 = vpack.c.b16 %v8803, %v8801
        %v8830 = vpack.c.b16 %v8804, %v8802
        %v8831 = vpack.c.b16 %v8807, %v8805
        %v8832 = vpack.c.b16 %v8808, %v8806
        %v8833 = vpack.c.b16 %v8811, %v8809
        %v8834 = vpack.c.b16 %v8812, %v8810
        %v8835 = vpack.c.b16 %v8815, %v8813
        %v8836 = vpack.c.b16 %v8816, %v8814
        %v8837 = vpack.c.b16 %v8819, %v8817
        %v8838 = vpack.c.b16 %v8820, %v8818
        %v8839 = vpack.c.b16 %v8823, %v8821
        %v8840 = vpack.c.b16 %v8824, %v8822
        %8857 = vmatprep.subr.bf16.mxu0 %v8826
        %8858 = vmatpush1.bf16.msra.mxu0 %v8825
        %8859 = vmatprep.subr.bf16.mxu0 %v8828
        %8860 = vmatpush1.bf16.msra.mxu0 %v8827
        %8861 = vmatprep.subr.bf16.mxu0 %v8830
        %8862 = vmatpush1.bf16.msra.mxu0 %v8829
        %8863 = vmatprep.subr.bf16.mxu0 %v8832
        %8864 = vmatpush1.bf16.msra.mxu0 %v8831
        %8865 = vmatprep.subr.bf16.mxu0 %v8834
        %8866 = vmatpush1.bf16.msra.mxu0 %v8833
        %8867 = vmatprep.subr.bf16.mxu0 %v8836
        %8868 = vmatpush1.bf16.msra.mxu0 %v8835
        %8869 = vmatprep.subr.bf16.mxu0 %v8838
        %8870 = vmatpush1.bf16.msra.mxu0 %v8837
        %8871 = vmatprep.subr.bf16.mxu0 %v8840
        %8872 = vmatpush1.bf16.msra.mxu0 %v8839
        %8873 = vmatprep.subr.bf16.mxu0 0
        %8874 = vmatpush1.bf16.msra.mxu0 0
        %8875 = vmatprep.subr.bf16.mxu0 0
        %8876 = vmatpush1.bf16.msra.mxu0 0
        %8877 = vmatprep.subr.bf16.mxu0 0
        %8878 = vmatpush1.bf16.msra.mxu0 0
        %8879 = vmatprep.subr.bf16.mxu0 0
        %8880 = vmatpush1.bf16.msra.mxu0 0
        %8881 = vmatprep.subr.bf16.mxu0 0
        %8882 = vmatpush1.bf16.msra.mxu0 0
        %8883 = vmatprep.subr.bf16.mxu0 0
        %8884 = vmatpush1.bf16.msra.mxu0 0
        %8885 = vmatprep.subr.bf16.mxu0 0
        %8886 = vmatpush1.bf16.msra.mxu0 0
        %8887 = vmatprep.subr.bf16.mxu0 0
        %8888 = vmatpush1.bf16.msra.mxu0 0
        %8889 = vmatprep.mubr.bf16.mxu0 0
        %8890 = vmatmul.mubr.bf16.gmra.mrb[0].mxu0 %v8775
        %v8891 = vpop.f32.mrb[0].mxu0
        %v8892 = vadd.f32 0.0, %v8891
        %v8893 = vpop.f32.mrb[0].mxu0
        %v8894 = vadd.f32 0.0, %v8893
        %v8895 = vpop.f32.mrb[0].mxu0
        %v8896 = vpop.f32.mrb[0].mxu0
        %8897 = vdwg.mxu0
        %v8900 = vcombine.low %v8892, %v8894
        %v8902 = vunpack.c.l.s4 1966171168
        %v8903 = vunpack.c.0.s8 %v8902
        %v8904 = vlaneseq
        %v8905 = vshrl.u32 %v8904, 7
        %v8906 = vsub.s32 %v8903, %v8905
        %v8907 = vrot.slane %v8900, %v8906
        %v8909 = vunpack.c.l.s4 1966171168
        %v8910 = vunpack.c.0.s8 %v8909
        %v8911 = vlaneseq
        %v8912 = vshrl.u32 %v8911, 7
        %v8913 = vsub.s32 %v8910, %v8912
        %v8914 = vrot.slane %v8907, %v8913
        %v8916 = vadd.f32 %v8756, %v8914
        %s8917 = scalar_lea.vmem %s7, 1920
        %v8918 = vld [vmem:[%s8917] sm:$0xff]
        %v8919 = vld [vmem:[%s8917 + $0x8] sm:$0xff]
        %v8920 = vld [vmem:[%s8917 + $0x10] sm:$0xff]
        %v8921 = vld [vmem:[%s8917 + $0x18] sm:$0xff]
        %v8922 = vld [vmem:[%s8917 + $0x20] sm:$0xff]
        %v8923 = vld [vmem:[%s8917 + $0x28] sm:$0xff]
        %v8924 = vld [vmem:[%s8917 + $0x30] sm:$0xff]
        %v8925 = vld [vmem:[%s8917 + $0x38] sm:$0xff]
        %v8926 = vld [vmem:[%s8917 + $0x40] sm:$0xff]
        %v8927 = vld [vmem:[%s8917 + $0x48] sm:$0xff]
        %v8928 = vld [vmem:[%s8917 + $0x50] sm:$0xff]
        %v8929 = vld [vmem:[%s8917 + $0x58] sm:$0xff]
        %v8930 = vld [vmem:[%s8917 + $0x60] sm:$0xff]
        %v8931 = vld [vmem:[%s8917 + $0x68] sm:$0xff]
        %v8932 = vld [vmem:[%s8917 + $0x70] sm:$0xff]
        %v8933 = vld [vmem:[%s8917 + $0x78] sm:$0xff]
        %v8934 = vrot.slane %v8614, 1
        %v8952 = vunpack.c.l.b16 %v8918
        %v8953 = vunpack.c.h.b16 %v8918
        %v8954 = vunpack.c.l.b16 %v8919
        %v8955 = vunpack.c.h.b16 %v8919
        %v8956 = vunpack.c.l.b16 %v8920
        %v8957 = vunpack.c.h.b16 %v8920
        %v8958 = vunpack.c.l.b16 %v8921
        %v8959 = vunpack.c.h.b16 %v8921
        %v8960 = vunpack.c.l.b16 %v8922
        %v8961 = vunpack.c.h.b16 %v8922
        %v8962 = vunpack.c.l.b16 %v8923
        %v8963 = vunpack.c.h.b16 %v8923
        %v8964 = vunpack.c.l.b16 %v8924
        %v8965 = vunpack.c.h.b16 %v8924
        %v8966 = vunpack.c.l.b16 %v8925
        %v8967 = vunpack.c.h.b16 %v8925
        %v8968 = vunpack.c.l.b16 %v8926
        %v8969 = vunpack.c.h.b16 %v8926
        %v8970 = vunpack.c.l.b16 %v8927
        %v8971 = vunpack.c.h.b16 %v8927
        %v8972 = vunpack.c.l.b16 %v8928
        %v8973 = vunpack.c.h.b16 %v8928
        %v8974 = vunpack.c.l.b16 %v8929
        %v8975 = vunpack.c.h.b16 %v8929
        %v8976 = vunpack.c.l.b16 %v8930
        %v8977 = vunpack.c.h.b16 %v8930
        %v8978 = vunpack.c.l.b16 %v8931
        %v8979 = vunpack.c.h.b16 %v8931
        %v8980 = vunpack.c.l.b16 %v8932
        %v8981 = vunpack.c.h.b16 %v8932
        %v8982 = vunpack.c.l.b16 %v8933
        %v8983 = vunpack.c.h.b16 %v8933
        %v8984 = vpack.c.b16 %v8954, %v8952
        %v8985 = vpack.c.b16 %v8955, %v8953
        %v8986 = vpack.c.b16 %v8958, %v8956
        %v8987 = vpack.c.b16 %v8959, %v8957
        %v8988 = vpack.c.b16 %v8962, %v8960
        %v8989 = vpack.c.b16 %v8963, %v8961
        %v8990 = vpack.c.b16 %v8966, %v8964
        %v8991 = vpack.c.b16 %v8967, %v8965
        %v8992 = vpack.c.b16 %v8970, %v8968
        %v8993 = vpack.c.b16 %v8971, %v8969
        %v8994 = vpack.c.b16 %v8974, %v8972
        %v8995 = vpack.c.b16 %v8975, %v8973
        %v8996 = vpack.c.b16 %v8978, %v8976
        %v8997 = vpack.c.b16 %v8979, %v8977
        %v8998 = vpack.c.b16 %v8982, %v8980
        %v8999 = vpack.c.b16 %v8983, %v8981
        %9016 = vmatprep.subr.bf16.mxu0 %v8985
        %9017 = vmatpush1.bf16.msra.mxu0 %v8984
        %9018 = vmatprep.subr.bf16.mxu0 %v8987
        %9019 = vmatpush1.bf16.msra.mxu0 %v8986
        %9020 = vmatprep.subr.bf16.mxu0 %v8989
        %9021 = vmatpush1.bf16.msra.mxu0 %v8988
        %9022 = vmatprep.subr.bf16.mxu0 %v8991
        %9023 = vmatpush1.bf16.msra.mxu0 %v8990
        %9024 = vmatprep.subr.bf16.mxu0 %v8993
        %9025 = vmatpush1.bf16.msra.mxu0 %v8992
        %9026 = vmatprep.subr.bf16.mxu0 %v8995
        %9027 = vmatpush1.bf16.msra.mxu0 %v8994
        %9028 = vmatprep.subr.bf16.mxu0 %v8997
        %9029 = vmatpush1.bf16.msra.mxu0 %v8996
        %9030 = vmatprep.subr.bf16.mxu0 %v8999
        %9031 = vmatpush1.bf16.msra.mxu0 %v8998
        %9032 = vmatprep.subr.bf16.mxu0 0
        %9033 = vmatpush1.bf16.msra.mxu0 0
        %9034 = vmatprep.subr.bf16.mxu0 0
        %9035 = vmatpush1.bf16.msra.mxu0 0
        %9036 = vmatprep.subr.bf16.mxu0 0
        %9037 = vmatpush1.bf16.msra.mxu0 0
        %9038 = vmatprep.subr.bf16.mxu0 0
        %9039 = vmatpush1.bf16.msra.mxu0 0
        %9040 = vmatprep.subr.bf16.mxu0 0
        %9041 = vmatpush1.bf16.msra.mxu0 0
        %9042 = vmatprep.subr.bf16.mxu0 0
        %9043 = vmatpush1.bf16.msra.mxu0 0
        %9044 = vmatprep.subr.bf16.mxu0 0
        %9045 = vmatpush1.bf16.msra.mxu0 0
        %9046 = vmatprep.subr.bf16.mxu0 0
        %9047 = vmatpush1.bf16.msra.mxu0 0
        %9048 = vmatprep.mubr.bf16.mxu0 0
        %9049 = vmatmul.mubr.bf16.gmra.mrb[0].mxu0 %v8934
        %v9050 = vpop.f32.mrb[0].mxu0
        %v9051 = vadd.f32 0.0, %v9050
        %v9052 = vpop.f32.mrb[0].mxu0
        %v9053 = vadd.f32 0.0, %v9052
        %v9054 = vpop.f32.mrb[0].mxu0
        %v9055 = vpop.f32.mrb[0].mxu0
        %9056 = vdwg.mxu0
        %v9059 = vcombine.low %v9051, %v9053
        %v9061 = vunpack.c.l.s4 1966171168
        %v9062 = vunpack.c.0.s8 %v9061
        %v9063 = vlaneseq
        %v9064 = vshrl.u32 %v9063, 7
        %v9065 = vsub.s32 %v9062, %v9064
        %v9066 = vrot.slane %v9059, %v9065
        %v9068 = vunpack.c.l.s4 1966171168
        %v9069 = vunpack.c.0.s8 %v9068
        %v9070 = vlaneseq
        %v9071 = vshrl.u32 %v9070, 7
        %v9072 = vsub.s32 %v9069, %v9071
        %v9073 = vrot.slane %v9066, %v9072
        %v9075 = vadd.f32 %v8916, %v9073
        %v9076 = vmax.f32 %v9075, 0.0
        %v9078 = vlaneseq
        %v9079 = vshrl.u32 %v9078, 7
        %v9080 = vsub.s32 0, %v9079
        %v9081 = vrot.slane %v9076, %v9080
        %v9082 = vlaneseq
        %v9083 = vshrl.u32 %v9082, 7
        %v9084 = vsub.s32 1, %v9083
        %v9085 = vrot.slane %v9076, %v9084
        %v9088 = vpack.c.bf16 %v9081, %v9081
        %v9089 = vpack.c.bf16 %v9085, %v9085
        %v9090 = vld [vmem:[%s9] sm:$0xf]
        %v9091 = vld [vmem:[%s9 + $0x4] sm:$0xf]
        %v9092 = vld [vmem:[%s9 + $0x8] sm:$0xf]
        %v9093 = vld [vmem:[%s9 + $0xc] sm:$0xf]
        %v9094 = vld [vmem:[%s9 + $0x10] sm:$0xf]
        %v9095 = vld [vmem:[%s9 + $0x14] sm:$0xf]
        %v9096 = vld [vmem:[%s9 + $0x18] sm:$0xf]
        %v9097 = vld [vmem:[%s9 + $0x1c] sm:$0xf]
        %v9098 = vld [vmem:[%s9 + $0x20] sm:$0xf]
        %v9099 = vld [vmem:[%s9 + $0x24] sm:$0xf]
        %v9100 = vld [vmem:[%s9 + $0x28] sm:$0xf]
        %v9101 = vld [vmem:[%s9 + $0x2c] sm:$0xf]
        %v9102 = vld [vmem:[%s9 + $0x30] sm:$0xf]
        %v9103 = vld [vmem:[%s9 + $0x34] sm:$0xf]
        %v9104 = vld [vmem:[%s9 + $0x38] sm:$0xf]
        %v9105 = vld [vmem:[%s9 + $0x3c] sm:$0xf]
        %v9106 = vld [vmem:[%s9 + $0x40] sm:$0xf]
        %v9107 = vld [vmem:[%s9 + $0x44] sm:$0xf]
        %v9108 = vld [vmem:[%s9 + $0x48] sm:$0xf]
        %v9109 = vld [vmem:[%s9 + $0x4c] sm:$0xf]
        %v9110 = vld [vmem:[%s9 + $0x50] sm:$0xf]
        %v9111 = vld [vmem:[%s9 + $0x54] sm:$0xf]
        %v9112 = vld [vmem:[%s9 + $0x58] sm:$0xf]
        %v9113 = vld [vmem:[%s9 + $0x5c] sm:$0xf]
        %v9114 = vld [vmem:[%s9 + $0x60] sm:$0xf]
        %v9115 = vld [vmem:[%s9 + $0x64] sm:$0xf]
        %v9116 = vld [vmem:[%s9 + $0x68] sm:$0xf]
        %v9117 = vld [vmem:[%s9 + $0x6c] sm:$0xf]
        %v9118 = vld [vmem:[%s9 + $0x70] sm:$0xf]
        %v9119 = vld [vmem:[%s9 + $0x74] sm:$0xf]
        %v9120 = vld [vmem:[%s9 + $0x78] sm:$0xf]
        %v9121 = vld [vmem:[%s9 + $0x7c] sm:$0xf]
        %v9122 = vld [vmem:[%s10] sm:$0x1]
        %v9155 = vunpack.c.l.b16 %v9090
        %v9156 = vunpack.c.l.b16 %v9091
        %v9157 = vunpack.c.l.b16 %v9092
        %v9158 = vunpack.c.l.b16 %v9093
        %v9159 = vunpack.c.l.b16 %v9094
        %v9160 = vunpack.c.l.b16 %v9095
        %v9161 = vunpack.c.l.b16 %v9096
        %v9162 = vunpack.c.l.b16 %v9097
        %v9163 = vunpack.c.l.b16 %v9098
        %v9164 = vunpack.c.l.b16 %v9099
        %v9165 = vunpack.c.l.b16 %v9100
        %v9166 = vunpack.c.l.b16 %v9101
        %v9167 = vunpack.c.l.b16 %v9102
        %v9168 = vunpack.c.l.b16 %v9103
        %v9169 = vunpack.c.l.b16 %v9104
        %v9170 = vunpack.c.l.b16 %v9105
        %v9171 = vunpack.c.l.b16 %v9106
        %v9172 = vunpack.c.l.b16 %v9107
        %v9173 = vunpack.c.l.b16 %v9108
        %v9174 = vunpack.c.l.b16 %v9109
        %v9175 = vunpack.c.l.b16 %v9110
        %v9176 = vunpack.c.l.b16 %v9111
        %v9177 = vunpack.c.l.b16 %v9112
        %v9178 = vunpack.c.l.b16 %v9113
        %v9179 = vunpack.c.l.b16 %v9114
        %v9180 = vunpack.c.l.b16 %v9115
        %v9181 = vunpack.c.l.b16 %v9116
        %v9182 = vunpack.c.l.b16 %v9117
        %v9183 = vunpack.c.l.b16 %v9118
        %v9184 = vunpack.c.l.b16 %v9119
        %v9185 = vunpack.c.l.b16 %v9120
        %v9186 = vunpack.c.l.b16 %v9121
        %v9187 = vpack.c.b16 %v9156, %v9155
        %v9188 = vpack.c.b16 %v9158, %v9157
        %v9189 = vpack.c.b16 %v9160, %v9159
        %v9190 = vpack.c.b16 %v9162, %v9161
        %v9191 = vpack.c.b16 %v9164, %v9163
        %v9192 = vpack.c.b16 %v9166, %v9165
        %v9193 = vpack.c.b16 %v9168, %v9167
        %v9194 = vpack.c.b16 %v9170, %v9169
        %v9195 = vpack.c.b16 %v9172, %v9171
        %v9196 = vpack.c.b16 %v9174, %v9173
        %v9197 = vpack.c.b16 %v9176, %v9175
        %v9198 = vpack.c.b16 %v9178, %v9177
        %v9199 = vpack.c.b16 %v9180, %v9179
        %v9200 = vpack.c.b16 %v9182, %v9181
        %v9201 = vpack.c.b16 %v9184, %v9183
        %v9202 = vpack.c.b16 %v9186, %v9185
        %9219 = vmatprep.subr.bf16.mxu0 0
        %9220 = vmatpush1.bf16.msra.mxu0 %v9187
        %9221 = vmatprep.subr.bf16.mxu0 0
        %9222 = vmatpush1.bf16.msra.mxu0 %v9188
        %9223 = vmatprep.subr.bf16.mxu0 0
        %9224 = vmatpush1.bf16.msra.mxu0 %v9189
        %9225 = vmatprep.subr.bf16.mxu0 0
        %9226 = vmatpush1.bf16.msra.mxu0 %v9190
        %9227 = vmatprep.subr.bf16.mxu0 0
        %9228 = vmatpush1.bf16.msra.mxu0 %v9191
        %9229 = vmatprep.subr.bf16.mxu0 0
        %9230 = vmatpush1.bf16.msra.mxu0 %v9192
        %9231 = vmatprep.subr.bf16.mxu0 0
        %9232 = vmatpush1.bf16.msra.mxu0 %v9193
        %9233 = vmatprep.subr.bf16.mxu0 0
        %9234 = vmatpush1.bf16.msra.mxu0 %v9194
        %9235 = vmatprep.subr.bf16.mxu0 0
        %9236 = vmatpush1.bf16.msra.mxu0 %v9195
        %9237 = vmatprep.subr.bf16.mxu0 0
        %9238 = vmatpush1.bf16.msra.mxu0 %v9196
        %9239 = vmatprep.subr.bf16.mxu0 0
        %9240 = vmatpush1.bf16.msra.mxu0 %v9197
        %9241 = vmatprep.subr.bf16.mxu0 0
        %9242 = vmatpush1.bf16.msra.mxu0 %v9198
        %9243 = vmatprep.subr.bf16.mxu0 0
        %9244 = vmatpush1.bf16.msra.mxu0 %v9199
        %9245 = vmatprep.subr.bf16.mxu0 0
        %9246 = vmatpush1.bf16.msra.mxu0 %v9200
        %9247 = vmatprep.subr.bf16.mxu0 0
        %9248 = vmatpush1.bf16.msra.mxu0 %v9201
        %9249 = vmatprep.subr.bf16.mxu0 0
        %9250 = vmatpush1.bf16.msra.mxu0 %v9202
        %9251 = vmatprep.mubr.bf16.mxu0 %v9089
        %9252 = vmatmul.mubr.bf16.gmra.mrb[0].mxu0 %v9088
        %v9253 = vpop.f32.mrb[0].mxu0
        %v9254 = vadd.f32 %v9122, %v9253
        %v9255 = vpop.f32.mrb[0].mxu0
        %v9256 = vpop.f32.mrb[0].mxu0
        %v9257 = vpop.f32.mrb[0].mxu0
        %9258 = vdwg.mxu0
        %vm9259 = vcmask 73728
        %9260 = vst.msk [vmem:[%s378] sm:$0x1] %vm9259, %v9254
        %s9261 = sand.u32 %s269, 1
        %s9262 = scalar_lea.sflag [#allocation8], %s9261
        %s9263 = sand.u32 %s269, 1
        %s9264 = scalar_lea.vmem [#allocation7], %s9263
        // Predicated region
        $region65: #{simple_cnn_forward.1} parent=63 // pred_check
          %p9265 = pneg %p279
        $region66: #{simple_cnn_forward.1} parent=63 // pred_check_branch
          %9267 = sbr.rel (%p9265) target = $region68
        $region67: #{simple_cnn_forward.1} parent=63 // pred_region
          %s9269 = ssub.s32 16, 16
          %9270 = vsyncadd %s9262, %s9269
          %s9271 = smul.addr %s25, 16
          %s9272 = scalar_lea.hbm %s11, %s9271
          %s9274 = sshll.u32 %s9264, 4
          %s9275 = int_to_ptr.vmem [resolvable:$true] %s9274
          %9277 = dma.vmem_to_hbm [thread:$0]  %s9275, 16, %s9272, %s9262
        $region68: #{simple_cnn_forward.1} parent=63 // pred_fallthru
          _
      $region64: #{simple_cnn_forward.1} parent=5 // pred_fallthru
        _
      %p9278 = scmp.le.s32.totalorder 2, %s20
      // Predicated region
      $region69: #{simple_cnn_forward.1} parent=5 // pred_check
        %p9279 = pneg %p9278
      $region70: #{simple_cnn_forward.1} parent=5 // pred_check_branch
        %9281 = sbr.rel (%p9279) target = $region72
      $region71: #{simple_cnn_forward.1} parent=5 // pred_region
        %s9282 = ssub.s32 %s20, 2
        // Predicated region
        $region73: #{simple_cnn_forward.1} parent=71 // pred_check
          %p9283 = pneg %p285
        $region74: #{simple_cnn_forward.1} parent=71 // pred_check_branch
          %9285 = sbr.rel (%p9283) target = $region76
        $region75: #{simple_cnn_forward.1} parent=71 // pred_region
          %s9286 = sand.u32 %s270, 1
          %s9287 = scalar_lea.sflag [#allocation8], %s9286
          %s9288 = sand.u32 %s270, 1
          %s9289 = scalar_lea.vmem [#allocation7], %s9288
          %9290 = dma.done %s9287, 16
        $region76: #{simple_cnn_forward.1} parent=71 // pred_fallthru
          _
      $region72: #{simple_cnn_forward.1} parent=5 // pred_fallthru
        _
    $region6: #{simple_cnn_forward.1} parent=1 // loop_footer
      %s24 = sadd.s32 1, %s20
    $region7: #{simple_cnn_forward.1} parent=1 // loop_footer_branch
      %19 = sbr.rel target = $region3
    $region8: #{simple_cnn_forward.1} parent=1 // loop_exit
      _
    %9291 = vsyncpa [#allocation8], 1
    %s9292 = scalar_lea.sflag [#allocation8], 1
    %9293 = vsyncpa %s9292, 1

</llo_original>
